<compile_context>
chip_gen: v7x
topology: tpu7x:2x2x1
jax: 0.10.0
libtpu: 0.0.40
codegen_flags: <defaults>
</compile_context>

<pallas_src>
import numpy as np
import jax
import jax.numpy as jnp
from jax.experimental import pallas as pl
from jax.experimental.pallas import tpu as pltpu


_PARAM_ORDER = (
    "a_dw1", "a_pw1", "a_s1", "a_b1", "a_dw2", "a_pw2", "a_s2", "a_b2",
    "att_s", "att_b", "up_mat",
    "s_dw1", "s_pw1", "s_s1", "s_b1", "s_dw2", "s_pw2", "s_s2", "s_b2",
    "fc_w", "fc_b",
)


# ------------------------------ fused Pallas kernel ------------------------------

def _fused_kernel(x3_ref,
                  a_dw1, a_pw1, a_s1, a_b1, a_dw2, a_pw2, a_s2, a_b2,
                  att_s, att_b, up_mat,
                  s_dw1, s_pw1, s_s1, s_b1, s_dw2, s_pw2, s_s2, s_b2,
                  fc_w, fc_b,
                  out_ref, feat_ref,
                  pad8, pad4, mat16):
    """One batch element per grid step.  Everything stays in VMEM."""
    _, H, W, C = x3_ref.shape
    H2, W2 = H // 2, W // 2

    # Zero the padded halo buffers; interiors are fully rewritten before every use,
    # so the 1-pixel zero border (padding=1) persists for all four depthwise convs.
    pad8[...] = jnp.zeros((H + 2, W + 2, C), jnp.float32)
    pad4[...] = jnp.zeros((H2 + 2, W2 + 2, C), jnp.float32)

    def dw_taps(pad_ref, w_ref, h, w):
        """Stride-1 depthwise 3x3 over a zero-padded scratch -> (h, w, C) value."""
        k = w_ref[...]                                            # (3, 3, C)
        acc = pad_ref[0:h, 0:w, :] * k[0:1, 0:1, :]
        for kh in range(3):
            for kw in range(3):
                if kh == 0 and kw == 0:
                    continue
                acc = acc + pad_ref[kh:kh + h, kw:kw + w, :] * k[kh:kh + 1, kw:kw + 1, :]
        return acc

    def dw_stride2_to_mat(pad_ref, w_ref):
        """Depthwise 3x3, stride 2, pad 1: stride-1 taps + even row/col subsample (all in VMEM),
        written row-major into the (H2*W2, C) matrix buffer."""
        acc = dw_taps(pad_ref, w_ref, H, W)                       # (H, W, C)
        for oh in range(H2):
            row = acc[2 * oh]                                     # (W, C)
            for ow in range(W2):
                r = oh * W2 + ow
                mat16[r:r + 1, :] = row[2 * ow:2 * ow + 1, :]

    def dw_stride1_to_mat(w_ref):
        acc = dw_taps(pad4, w_ref, H2, W2)                        # (H2, W2, C)
        for i in range(H2):
            mat16[i * W2:(i + 1) * W2, :] = acc[i]

    def mat_to_pad4(x):
        """(H2*W2, C) value -> interior of the padded 4x4 scratch."""
        for i in range(H2):
            pad4[i + 1, 1:W2 + 1, :] = x[i * W2:(i + 1) * W2, :]

    def pw_bn_relu(x, w_ref, s_ref, b_ref):
        """1x1 conv as channel matmul (bf16 MXU operands, f32 accum) + folded BN + ReLU."""
        y = jnp.dot(x.astype(jnp.bfloat16), w_ref[...],
                    preferred_element_type=jnp.float32)
        return jnp.maximum(y * s_ref[...] + b_ref[...], 0.0)

    # ------------------ attention branch: SepConv(C -> C, stride 2) ------------------
    pad8[1:H + 1, 1:W + 1, :] = x3_ref[0]
    dw_stride2_to_mat(pad8, a_dw1)
    t = pw_bn_relu(mat16[...], a_pw1, a_s1, a_b1)                 # (H2*W2, C)
    mat_to_pad4(t)
    dw_stride1_to_mat(a_dw2)
    t = pw_bn_relu(mat16[...], a_pw2, a_s2, a_b2)                 # (H2*W2, C)

    # ---- BN + ReLU + bilinear x2 upsample (precomputed spatial matmul) + Sigmoid gate ----
    a = jnp.maximum(t * att_s[...] + att_b[...], 0.0)             # (H2*W2, C)
    up = jnp.dot(up_mat[...], a, preferred_element_type=jnp.float32)   # (H*W, C)
    for h in range(H):                                            # fea = sigmoid(att) * x3
        fea_row = jax.nn.sigmoid(up[h * W:(h + 1) * W, :]) * x3_ref[0, h]
        pad8[h + 1, 1:W + 1, :] = fea_row                         # feed scala dw1 halo buffer

    # ------------------- scala branch: SepConv(C -> 2C, stride 2) --------------------
    dw_stride2_to_mat(pad8, s_dw1)
    g = pw_bn_relu(mat16[...], s_pw1, s_s1, s_b1)                 # (H2*W2, C)
    mat_to_pad4(g)
    dw_stride1_to_mat(s_dw2)
    g = pw_bn_relu(mat16[...], s_pw2, s_s2, s_b2)                 # (H2*W2, 2C)

    # ---------------- AvgPool2d(4,4) on the 4x4 map (== mean) + Linear ----------------
    feat = jnp.mean(g, axis=0, keepdims=True)                     # (1, 2C)
    feat_ref[0] = feat.astype(feat_ref.dtype)
    logits = jnp.dot(feat.astype(jnp.bfloat16), fc_w[...],
                     preferred_element_type=jnp.float32) + fc_b[...]
    out_ref[0] = logits.astype(out_ref.dtype)                     # (1, ncls_pad) lane-dense


# --------------------------------- wrapper (glue) ---------------------------------

def resnet_attention3_forward(x3, params, num_classes):
    N, H, W, C = x3.shape
    H2, W2 = H // 2, W // 2
    assert (H2, W2) == (4, 4), "AvgPool2d(4,4) in the reference expects a 4x4 map after stride 2"
    C2 = params["s_pw2"].shape[1]
    ncls_pad = params["fc_w"].shape[1]

    weights = [params[k] for k in _PARAM_ORDER]

    def _const_spec(a):
        z = (0,) * a.ndim
        return pl.BlockSpec(a.shape, lambda n, _z=z: _z)

    out_pad, feat = pl.pallas_call(
        _fused_kernel,
        out_shape=(jax.ShapeDtypeStruct((N, 1, ncls_pad), jnp.float32),
                   jax.ShapeDtypeStruct((N, 1, C2), jnp.float32)),
        grid=(N,),
        in_specs=[pl.BlockSpec((1, H, W, C), lambda n: (n, 0, 0, 0))]
                 + [_const_spec(a) for a in weights],
        out_specs=(pl.BlockSpec((1, 1, ncls_pad), lambda n: (n, 0, 0)),
                   pl.BlockSpec((1, 1, C2), lambda n: (n, 0, 0))),
        scratch_shapes=[pltpu.VMEM((H + 2, W + 2, C), jnp.float32),   # padded 8x8 halo
                        pltpu.VMEM((H2 + 2, W2 + 2, C), jnp.float32),  # padded 4x4 halo
                        pltpu.VMEM((H2 * W2, C), jnp.float32)],        # flattened 4x4 map
        compiler_params=pltpu.CompilerParams(dimension_semantics=("parallel",)),
    )(x3, *weights)

    out = out_pad.reshape(N, ncls_pad)[:, :num_classes]
    feature_out = feat.reshape(N, C2)
    return out, feature_out


# ----------------------------- deterministic parameters -----------------------------

def fold_bn(gamma, beta, mean, var, eps=1e-5):
    scale = gamma / jnp.sqrt(var + eps)
    bias = beta - mean * scale
    return scale.reshape(1, -1).astype(jnp.float32), bias.reshape(1, -1).astype(jnp.float32)


def init_bn(key, c):
    k1, k2, k3, k4 = jax.random.split(key, 4)
    gamma = 1.0 + 0.1 * jax.random.normal(k1, (c,), jnp.float32)
    beta = 0.1 * jax.random.normal(k2, (c,), jnp.float32)
    mean = 0.1 * jax.random.normal(k3, (c,), jnp.float32)
    var = 1.0 + 0.1 * jax.random.uniform(k4, (c,), jnp.float32)
    return fold_bn(gamma, beta, mean, var)


def init_sepconv(key, cin, cout, prefix):
    ks = jax.random.split(key, 6)
    dw1 = 0.1 * jax.random.normal(ks[0], (3, 3, cin), jnp.float32)
    pw1 = (0.05 * jax.random.normal(ks[1], (cin, cin), jnp.float32)).astype(jnp.bfloat16)
    s1, b1 = init_bn(ks[2], cin)
    dw2 = 0.1 * jax.random.normal(ks[3], (3, 3, cin), jnp.float32)
    pw2 = (0.05 * jax.random.normal(ks[4], (cin, cout), jnp.float32)).astype(jnp.bfloat16)
    s2, b2 = init_bn(ks[5], cout)
    return {f"{prefix}dw1": dw1, f"{prefix}pw1": pw1, f"{prefix}s1": s1, f"{prefix}b1": b1,
            f"{prefix}dw2": dw2, f"{prefix}pw2": pw2, f"{prefix}s2": s2, f"{prefix}b2": b2}


def bilinear_upsample_matrix(in_size, out_size):
    """Row-stochastic (out_size, in_size) matrix reproducing PyTorch
    nn.Upsample(scale_factor=2, mode='bilinear', align_corners=False)."""
    scale = in_size / out_size
    src = (np.arange(out_size) + 0.5) * scale - 0.5
    src = np.maximum(src, 0.0)
    i0 = np.minimum(np.floor(src).astype(np.int64), in_size - 1)
    i1 = np.minimum(i0 + 1, in_size - 1)
    w1 = src - i0
    w0 = 1.0 - w1
    m = np.zeros((out_size, in_size), dtype=np.float32)
    m[np.arange(out_size), i0] += w0
    m[np.arange(out_size), i1] += w1
    return m


def init_params(key, c, h, w, num_classes):
    k1, k2, k3, k4, k5 = jax.random.split(key, 5)
    p = {}
    p.update(init_sepconv(k1, c, c, "a_"))                 # attention SepConv(C -> C)
    p["att_s"], p["att_b"] = init_bn(k2, c)                # BatchNorm2d after the SepConv
    p.update(init_sepconv(k3, c, 2 * c, "s_"))             # scala SepConv(C -> 2C)

    ncls_pad = ((num_classes + 127) // 128) * 128          # lane-dense fc output
    fc_w = jnp.zeros((2 * c, ncls_pad), jnp.float32)
    fc_w = fc_w.at[:, :num_classes].set(
        0.05 * jax.random.normal(k4, (2 * c, num_classes), jnp.float32))
    p["fc_w"] = fc_w.astype(jnp.bfloat16)
    fc_b = jnp.zeros((1, ncls_pad), jnp.float32)
    fc_b = fc_b.at[:, :num_classes].set(
        0.05 * jax.random.normal(k5, (num_classes,), jnp.float32))
    p["fc_b"] = fc_b

    uh = bilinear_upsample_matrix(h // 2, h)
    uw = bilinear_upsample_matrix(w // 2, w)
    # Combined (H*W, H2*W2) spatial operator: U[(h*W+w),(hi*W2+wi)] = uh[h,hi]*uw[w,wi]
    p["up_mat"] = jnp.asarray(np.kron(uh, uw), jnp.float32)
    return p


# --------------------------------------- main ---------------------------------------

if __name__ == "__main__":
    # x3 is the ResNet layer-3 feature map (block.expansion = 1): NCHW (2, 256, 8, 8)
    # -> NHWC (2, 8, 8, 256) in this implementation.
    N, C, H, W = 2, 256, 8, 8
    num_classes = 100

    key = jax.random.PRNGKey(0)
    kx, kp = jax.random.split(key)
    x3 = jax.random.normal(kx, (N, H, W, C), jnp.float32)
    params = init_params(kp, C, H, W, num_classes)

    fwd = jax.jit(resnet_attention3_forward, static_argnames="num_classes")
    out, feature_out = fwd(x3, params, num_classes=num_classes)
    jax.block_until_ready((out, feature_out))

    assert out.shape == (N, num_classes)
    assert feature_out.shape == (N, 2 * C)
    assert bool(jnp.all(jnp.isfinite(out))) and bool(jnp.all(jnp.isfinite(feature_out)))
    print("KERNEL_OK")
</pallas_src>

<mosaic_0001>
module attributes {stable_mosaic.version = 11 : i64} {
  func.func @_fused_kernel(%arg0: i32, %arg1: memref<1x8x8x256xf32, #tpu.memory_space<vmem>>, %arg2: memref<3x3x256xf32, #tpu.memory_space<vmem>>, %arg3: memref<256x256xbf16, #tpu.memory_space<vmem>>, %arg4: memref<1x256xf32, #tpu.memory_space<vmem>>, %arg5: memref<1x256xf32, #tpu.memory_space<vmem>>, %arg6: memref<3x3x256xf32, #tpu.memory_space<vmem>>, %arg7: memref<256x256xbf16, #tpu.memory_space<vmem>>, %arg8: memref<1x256xf32, #tpu.memory_space<vmem>>, %arg9: memref<1x256xf32, #tpu.memory_space<vmem>>, %arg10: memref<1x256xf32, #tpu.memory_space<vmem>>, %arg11: memref<1x256xf32, #tpu.memory_space<vmem>>, %arg12: memref<64x16xf32, #tpu.memory_space<vmem>>, %arg13: memref<3x3x256xf32, #tpu.memory_space<vmem>>, %arg14: memref<256x256xbf16, #tpu.memory_space<vmem>>, %arg15: memref<1x256xf32, #tpu.memory_space<vmem>>, %arg16: memref<1x256xf32, #tpu.memory_space<vmem>>, %arg17: memref<3x3x256xf32, #tpu.memory_space<vmem>>, %arg18: memref<256x512xbf16, #tpu.memory_space<vmem>>, %arg19: memref<1x512xf32, #tpu.memory_space<vmem>>, %arg20: memref<1x512xf32, #tpu.memory_space<vmem>>, %arg21: memref<512x128xbf16, #tpu.memory_space<vmem>>, %arg22: memref<1x128xf32, #tpu.memory_space<vmem>>, %arg23: memref<1x1x128xf32, #tpu.memory_space<vmem>>, %arg24: memref<1x1x512xf32, #tpu.memory_space<vmem>>, %arg25: memref<10x10x256xf32, #tpu.memory_space<vmem>>, %arg26: memref<6x6x256xf32, #tpu.memory_space<vmem>>, %arg27: memref<16x256xf32, #tpu.memory_space<vmem>>) attributes {dimension_semantics = [#tpu.dimension_semantics<parallel>], iteration_bounds = array<i64: 2>, scalar_prefetch = 0 : i64, scratch_operands = 3 : i64, tpu.core_type = #tpu.core_type<tc>, window_params = [{transform_indices = @transform_0, window_bounds = array<i64: 1, 8, 8, 256>}, {pipeline_mode = #tpu.pipeline_mode<synchronous>, transform_indices = @transform_1, window_bounds = array<i64: 3, 3, 256>}, {pipeline_mode = #tpu.pipeline_mode<synchronous>, transform_indices = @transform_2, window_bounds = array<i64: 256, 256>}, {pipeline_mode = #tpu.pipeline_mode<synchronous>, transform_indices = @transform_3, window_bounds = array<i64: 1, 256>}, {pipeline_mode = #tpu.pipeline_mode<synchronous>, transform_indices = @transform_4, window_bounds = array<i64: 1, 256>}, {pipeline_mode = #tpu.pipeline_mode<synchronous>, transform_indices = @transform_5, window_bounds = array<i64: 3, 3, 256>}, {pipeline_mode = #tpu.pipeline_mode<synchronous>, transform_indices = @transform_6, window_bounds = array<i64: 256, 256>}, {pipeline_mode = #tpu.pipeline_mode<synchronous>, transform_indices = @transform_7, window_bounds = array<i64: 1, 256>}, {pipeline_mode = #tpu.pipeline_mode<synchronous>, transform_indices = @transform_8, window_bounds = array<i64: 1, 256>}, {pipeline_mode = #tpu.pipeline_mode<synchronous>, transform_indices = @transform_9, window_bounds = array<i64: 1, 256>}, {pipeline_mode = #tpu.pipeline_mode<synchronous>, transform_indices = @transform_10, window_bounds = array<i64: 1, 256>}, {pipeline_mode = #tpu.pipeline_mode<synchronous>, transform_indices = @transform_11, window_bounds = array<i64: 64, 16>}, {pipeline_mode = #tpu.pipeline_mode<synchronous>, transform_indices = @transform_12, window_bounds = array<i64: 3, 3, 256>}, {pipeline_mode = #tpu.pipeline_mode<synchronous>, transform_indices = @transform_13, window_bounds = array<i64: 256, 256>}, {pipeline_mode = #tpu.pipeline_mode<synchronous>, transform_indices = @transform_14, window_bounds = array<i64: 1, 256>}, {pipeline_mode = #tpu.pipeline_mode<synchronous>, transform_indices = @transform_15, window_bounds = array<i64: 1, 256>}, {pipeline_mode = #tpu.pipeline_mode<synchronous>, transform_indices = @transform_16, window_bounds = array<i64: 3, 3, 256>}, {pipeline_mode = #tpu.pipeline_mode<synchronous>, transform_indices = @transform_17, window_bounds = array<i64: 256, 512>}, {pipeline_mode = #tpu.pipeline_mode<synchronous>, transform_indices = @transform_18, window_bounds = array<i64: 1, 512>}, {pipeline_mode = #tpu.pipeline_mode<synchronous>, transform_indices = @transform_19, window_bounds = array<i64: 1, 512>}, {pipeline_mode = #tpu.pipeline_mode<synchronous>, transform_indices = @transform_20, window_bounds = array<i64: 512, 128>}, {pipeline_mode = #tpu.pipeline_mode<synchronous>, transform_indices = @transform_21, window_bounds = array<i64: 1, 128>}, {transform_indices = @transform_22, window_bounds = array<i64: 1, 1, 128>}, {transform_indices = @transform_23, window_bounds = array<i64: 1, 1, 512>}]} {
    %cst = arith.constant 0.000000e+00 : f32
    %0 = vector.broadcast %cst : f32 to vector<10x10x256xf32>
    %c0 = arith.constant 0 : index
    %c0_0 = arith.constant 0 : index
    %c0_1 = arith.constant 0 : index
    %1 = vector.load %arg25[%c0, %c0_0, %c0_1] : memref<10x10x256xf32, #tpu.memory_space<vmem>>, vector<10x10x256xf32>
    tpu.vector_store %arg25[%c0, %c0_0, %c0_1], %0 {strides = array<i32>} : memref<10x10x256xf32, #tpu.memory_space<vmem>>, vector<10x10x256xf32>,
    %cst_2 = arith.constant 0.000000e+00 : f32
    %2 = vector.broadcast %cst_2 : f32 to vector<6x6x256xf32>
    %c0_3 = arith.constant 0 : index
    %c0_4 = arith.constant 0 : index
    %c0_5 = arith.constant 0 : index
    %3 = vector.load %arg26[%c0_3, %c0_4, %c0_5] : memref<6x6x256xf32, #tpu.memory_space<vmem>>, vector<6x6x256xf32>
    tpu.vector_store %arg26[%c0_3, %c0_4, %c0_5], %2 {strides = array<i32>} : memref<6x6x256xf32, #tpu.memory_space<vmem>>, vector<6x6x256xf32>,
    %c0_6 = arith.constant 0 : index
    %c0_7 = arith.constant 0 : index
    %c0_8 = arith.constant 0 : index
    %c0_9 = arith.constant 0 : index
    %4 = vector.load %arg1[%c0_6, %c0_7, %c0_8, %c0_9] : memref<1x8x8x256xf32, #tpu.memory_space<vmem>>, vector<1x8x8x256xf32>
    %5 = vector.shape_cast %4 : vector<1x8x8x256xf32> to vector<8x8x256xf32>
    %c1 = arith.constant 1 : index
    %c1_10 = arith.constant 1 : index
    %c0_11 = arith.constant 0 : index
    %6 = vector.load %arg25[%c1, %c1_10, %c0_11] : memref<10x10x256xf32, #tpu.memory_space<vmem>>, vector<8x8x256xf32>
    tpu.vector_store %arg25[%c1, %c1_10, %c0_11], %5 {strides = array<i32>} : memref<10x10x256xf32, #tpu.memory_space<vmem>>, vector<8x8x256xf32>,
    %c0_12 = arith.constant 0 : index
    %c0_13 = arith.constant 0 : index
    %c0_14 = arith.constant 0 : index
    %7 = vector.load %arg2[%c0_12, %c0_13, %c0_14] : memref<3x3x256xf32, #tpu.memory_space<vmem>>, vector<3x3x256xf32>
    %c0_15 = arith.constant 0 : index
    %c0_16 = arith.constant 0 : index
    %c0_17 = arith.constant 0 : index
    %8 = vector.load %arg25[%c0_15, %c0_16, %c0_17] : memref<10x10x256xf32, #tpu.memory_space<vmem>>, vector<8x8x256xf32>
    %9 = vector.extract_strided_slice %7 {offsets = [0, 0, 0], sizes = [1, 1, 256], strides = [1, 1, 1]} : vector<3x3x256xf32> to vector<1x1x256xf32>
    %10 = vector.broadcast %9 : vector<1x1x256xf32> to vector<8x8x256xf32>
    %11 = arith.mulf %8, %10 : vector<8x8x256xf32>
    %c0_18 = arith.constant 0 : index
    %c1_19 = arith.constant 1 : index
    %c0_20 = arith.constant 0 : index
    %12 = vector.load %arg25[%c0_18, %c1_19, %c0_20] : memref<10x10x256xf32, #tpu.memory_space<vmem>>, vector<8x8x256xf32>
    %13 = vector.extract_strided_slice %7 {offsets = [0, 1, 0], sizes = [1, 1, 256], strides = [1, 1, 1]} : vector<3x3x256xf32> to vector<1x1x256xf32>
    %14 = vector.broadcast %13 : vector<1x1x256xf32> to vector<8x8x256xf32>
    %15 = arith.mulf %12, %14 : vector<8x8x256xf32>
    %16 = arith.addf %11, %15 : vector<8x8x256xf32>
    %c0_21 = arith.constant 0 : index
    %c2 = arith.constant 2 : index
    %c0_22 = arith.constant 0 : index
    %17 = vector.load %arg25[%c0_21, %c2, %c0_22] : memref<10x10x256xf32, #tpu.memory_space<vmem>>, vector<8x8x256xf32>
    %18 = vector.extract_strided_slice %7 {offsets = [0, 2, 0], sizes = [1, 1, 256], strides = [1, 1, 1]} : vector<3x3x256xf32> to vector<1x1x256xf32>
    %19 = vector.broadcast %18 : vector<1x1x256xf32> to vector<8x8x256xf32>
    %20 = arith.mulf %17, %19 : vector<8x8x256xf32>
    %21 = arith.addf %16, %20 : vector<8x8x256xf32>
    %c1_23 = arith.constant 1 : index
    %c0_24 = arith.constant 0 : index
    %c0_25 = arith.constant 0 : index
    %22 = vector.load %arg25[%c1_23, %c0_24, %c0_25] : memref<10x10x256xf32, #tpu.memory_space<vmem>>, vector<8x8x256xf32>
    %23 = vector.extract_strided_slice %7 {offsets = [1, 0, 0], sizes = [1, 1, 256], strides = [1, 1, 1]} : vector<3x3x256xf32> to vector<1x1x256xf32>
    %24 = vector.broadcast %23 : vector<1x1x256xf32> to vector<8x8x256xf32>
    %25 = arith.mulf %22, %24 : vector<8x8x256xf32>
    %26 = arith.addf %21, %25 : vector<8x8x256xf32>
    %c1_26 = arith.constant 1 : index
    %c1_27 = arith.constant 1 : index
    %c0_28 = arith.constant 0 : index
    %27 = vector.load %arg25[%c1_26, %c1_27, %c0_28] : memref<10x10x256xf32, #tpu.memory_space<vmem>>, vector<8x8x256xf32>
    %28 = vector.extract_strided_slice %7 {offsets = [1, 1, 0], sizes = [1, 1, 256], strides = [1, 1, 1]} : vector<3x3x256xf32> to vector<1x1x256xf32>
    %29 = vector.broadcast %28 : vector<1x1x256xf32> to vector<8x8x256xf32>
    %30 = arith.mulf %27, %29 : vector<8x8x256xf32>
    %31 = arith.addf %26, %30 : vector<8x8x256xf32>
    %c1_29 = arith.constant 1 : index
    %c2_30 = arith.constant 2 : index
    %c0_31 = arith.constant 0 : index
    %32 = vector.load %arg25[%c1_29, %c2_30, %c0_31] : memref<10x10x256xf32, #tpu.memory_space<vmem>>, vector<8x8x256xf32>
    %33 = vector.extract_strided_slice %7 {offsets = [1, 2, 0], sizes = [1, 1, 256], strides = [1, 1, 1]} : vector<3x3x256xf32> to vector<1x1x256xf32>
    %34 = vector.broadcast %33 : vector<1x1x256xf32> to vector<8x8x256xf32>
    %35 = arith.mulf %32, %34 : vector<8x8x256xf32>
    %36 = arith.addf %31, %35 : vector<8x8x256xf32>
    %c2_32 = arith.constant 2 : index
    %c0_33 = arith.constant 0 : index
    %c0_34 = arith.constant 0 : index
    %37 = vector.load %arg25[%c2_32, %c0_33, %c0_34] : memref<10x10x256xf32, #tpu.memory_space<vmem>>, vector<8x8x256xf32>
    %38 = vector.extract_strided_slice %7 {offsets = [2, 0, 0], sizes = [1, 1, 256], strides = [1, 1, 1]} : vector<3x3x256xf32> to vector<1x1x256xf32>
    %39 = vector.broadcast %38 : vector<1x1x256xf32> to vector<8x8x256xf32>
    %40 = arith.mulf %37, %39 : vector<8x8x256xf32>
    %41 = arith.addf %36, %40 : vector<8x8x256xf32>
    %c2_35 = arith.constant 2 : index
    %c1_36 = arith.constant 1 : index
    %c0_37 = arith.constant 0 : index
    %42 = vector.load %arg25[%c2_35, %c1_36, %c0_37] : memref<10x10x256xf32, #tpu.memory_space<vmem>>, vector<8x8x256xf32>
    %43 = vector.extract_strided_slice %7 {offsets = [2, 1, 0], sizes = [1, 1, 256], strides = [1, 1, 1]} : vector<3x3x256xf32> to vector<1x1x256xf32>
    %44 = vector.broadcast %43 : vector<1x1x256xf32> to vector<8x8x256xf32>
    %45 = arith.mulf %42, %44 : vector<8x8x256xf32>
    %46 = arith.addf %41, %45 : vector<8x8x256xf32>
    %c2_38 = arith.constant 2 : index
    %c2_39 = arith.constant 2 : index
    %c0_40 = arith.constant 0 : index
    %47 = vector.load %arg25[%c2_38, %c2_39, %c0_40] : memref<10x10x256xf32, #tpu.memory_space<vmem>>, vector<8x8x256xf32>
    %48 = vector.extract_strided_slice %7 {offsets = [2, 2, 0], sizes = [1, 1, 256], strides = [1, 1, 1]} : vector<3x3x256xf32> to vector<1x1x256xf32>
    %49 = vector.broadcast %48 : vector<1x1x256xf32> to vector<8x8x256xf32>
    %50 = arith.mulf %47, %49 : vector<8x8x256xf32>
    %51 = arith.addf %46, %50 : vector<8x8x256xf32>
    %52 = vector.extract_strided_slice %51 {offsets = [0, 0, 0], sizes = [1, 8, 256], strides = [1, 1, 1]} : vector<8x8x256xf32> to vector<1x8x256xf32>
    %53 = vector.shape_cast %52 : vector<1x8x256xf32> to vector<8x256xf32>
    %54 = vector.extract_strided_slice %53 {offsets = [0, 0], sizes = [1, 256], strides = [1, 1]} : vector<8x256xf32> to vector<1x256xf32>
    %c0_41 = arith.constant 0 : index
    %c0_42 = arith.constant 0 : index
    %55 = vector.load %arg27[%c0_41, %c0_42] : memref<16x256xf32, #tpu.memory_space<vmem>>, vector<1x256xf32>
    tpu.vector_store %arg27[%c0_41, %c0_42], %54 {strides = array<i32>} : memref<16x256xf32, #tpu.memory_space<vmem>>, vector<1x256xf32>,
    %56 = vector.extract_strided_slice %53 {offsets = [2, 0], sizes = [1, 256], strides = [1, 1]} : vector<8x256xf32> to vector<1x256xf32>
    %c1_43 = arith.constant 1 : index
    %c0_44 = arith.constant 0 : index
    %57 = vector.load %arg27[%c1_43, %c0_44] : memref<16x256xf32, #tpu.memory_space<vmem>>, vector<1x256xf32>
    tpu.vector_store %arg27[%c1_43, %c0_44], %56 {strides = array<i32>} : memref<16x256xf32, #tpu.memory_space<vmem>>, vector<1x256xf32>,
    %58 = vector.extract_strided_slice %53 {offsets = [4, 0], sizes = [1, 256], strides = [1, 1]} : vector<8x256xf32> to vector<1x256xf32>
    %c2_45 = arith.constant 2 : index
    %c0_46 = arith.constant 0 : index
    %59 = vector.load %arg27[%c2_45, %c0_46] : memref<16x256xf32, #tpu.memory_space<vmem>>, vector<1x256xf32>
    tpu.vector_store %arg27[%c2_45, %c0_46], %58 {strides = array<i32>} : memref<16x256xf32, #tpu.memory_space<vmem>>, vector<1x256xf32>,
    %60 = vector.extract_strided_slice %53 {offsets = [6, 0], sizes = [1, 256], strides = [1, 1]} : vector<8x256xf32> to vector<1x256xf32>
    %c3 = arith.constant 3 : index
    %c0_47 = arith.constant 0 : index
    %61 = vector.load %arg27[%c3, %c0_47] : memref<16x256xf32, #tpu.memory_space<vmem>>, vector<1x256xf32>
    tpu.vector_store %arg27[%c3, %c0_47], %60 {strides = array<i32>} : memref<16x256xf32, #tpu.memory_space<vmem>>, vector<1x256xf32>,
    %62 = vector.extract_strided_slice %51 {offsets = [2, 0, 0], sizes = [1, 8, 256], strides = [1, 1, 1]} : vector<8x8x256xf32> to vector<1x8x256xf32>
    %63 = vector.shape_cast %62 : vector<1x8x256xf32> to vector<8x256xf32>
    %64 = vector.extract_strided_slice %63 {offsets = [0, 0], sizes = [1, 256], strides = [1, 1]} : vector<8x256xf32> to vector<1x256xf32>
    %c4 = arith.constant 4 : index
    %c0_48 = arith.constant 0 : index
    %65 = vector.load %arg27[%c4, %c0_48] : memref<16x256xf32, #tpu.memory_space<vmem>>, vector<1x256xf32>
    tpu.vector_store %arg27[%c4, %c0_48], %64 {strides = array<i32>} : memref<16x256xf32, #tpu.memory_space<vmem>>, vector<1x256xf32>,
    %66 = vector.extract_strided_slice %63 {offsets = [2, 0], sizes = [1, 256], strides = [1, 1]} : vector<8x256xf32> to vector<1x256xf32>
    %c5 = arith.constant 5 : index
    %c0_49 = arith.constant 0 : index
    %67 = vector.load %arg27[%c5, %c0_49] : memref<16x256xf32, #tpu.memory_space<vmem>>, vector<1x256xf32>
    tpu.vector_store %arg27[%c5, %c0_49], %66 {strides = array<i32>} : memref<16x256xf32, #tpu.memory_space<vmem>>, vector<1x256xf32>,
    %68 = vector.extract_strided_slice %63 {offsets = [4, 0], sizes = [1, 256], strides = [1, 1]} : vector<8x256xf32> to vector<1x256xf32>
    %c6 = arith.constant 6 : index
    %c0_50 = arith.constant 0 : index
    %69 = vector.load %arg27[%c6, %c0_50] : memref<16x256xf32, #tpu.memory_space<vmem>>, vector<1x256xf32>
    tpu.vector_store %arg27[%c6, %c0_50], %68 {strides = array<i32>} : memref<16x256xf32, #tpu.memory_space<vmem>>, vector<1x256xf32>,
    %70 = vector.extract_strided_slice %63 {offsets = [6, 0], sizes = [1, 256], strides = [1, 1]} : vector<8x256xf32> to vector<1x256xf32>
    %c7 = arith.constant 7 : index
    %c0_51 = arith.constant 0 : index
    %71 = vector.load %arg27[%c7, %c0_51] : memref<16x256xf32, #tpu.memory_space<vmem>>, vector<1x256xf32>
    tpu.vector_store %arg27[%c7, %c0_51], %70 {strides = array<i32>} : memref<16x256xf32, #tpu.memory_space<vmem>>, vector<1x256xf32>,
    %72 = vector.extract_strided_slice %51 {offsets = [4, 0, 0], sizes = [1, 8, 256], strides = [1, 1, 1]} : vector<8x8x256xf32> to vector<1x8x256xf32>
    %73 = vector.shape_cast %72 : vector<1x8x256xf32> to vector<8x256xf32>
    %74 = vector.extract_strided_slice %73 {offsets = [0, 0], sizes = [1, 256], strides = [1, 1]} : vector<8x256xf32> to vector<1x256xf32>
    %c8 = arith.constant 8 : index
    %c0_52 = arith.constant 0 : index
    %75 = vector.load %arg27[%c8, %c0_52] : memref<16x256xf32, #tpu.memory_space<vmem>>, vector<1x256xf32>
    tpu.vector_store %arg27[%c8, %c0_52], %74 {strides = array<i32>} : memref<16x256xf32, #tpu.memory_space<vmem>>, vector<1x256xf32>,
    %76 = vector.extract_strided_slice %73 {offsets = [2, 0], sizes = [1, 256], strides = [1, 1]} : vector<8x256xf32> to vector<1x256xf32>
    %c9 = arith.constant 9 : index
    %c0_53 = arith.constant 0 : index
    %77 = vector.load %arg27[%c9, %c0_53] : memref<16x256xf32, #tpu.memory_space<vmem>>, vector<1x256xf32>
    tpu.vector_store %arg27[%c9, %c0_53], %76 {strides = array<i32>} : memref<16x256xf32, #tpu.memory_space<vmem>>, vector<1x256xf32>,
    %78 = vector.extract_strided_slice %73 {offsets = [4, 0], sizes = [1, 256], strides = [1, 1]} : vector<8x256xf32> to vector<1x256xf32>
    %c10 = arith.constant 10 : index
    %c0_54 = arith.constant 0 : index
    %79 = vector.load %arg27[%c10, %c0_54] : memref<16x256xf32, #tpu.memory_space<vmem>>, vector<1x256xf32>
    tpu.vector_store %arg27[%c10, %c0_54], %78 {strides = array<i32>} : memref<16x256xf32, #tpu.memory_space<vmem>>, vector<1x256xf32>,
    %80 = vector.extract_strided_slice %73 {offsets = [6, 0], sizes = [1, 256], strides = [1, 1]} : vector<8x256xf32> to vector<1x256xf32>
    %c11 = arith.constant 11 : index
    %c0_55 = arith.constant 0 : index
    %81 = vector.load %arg27[%c11, %c0_55] : memref<16x256xf32, #tpu.memory_space<vmem>>, vector<1x256xf32>
    tpu.vector_store %arg27[%c11, %c0_55], %80 {strides = array<i32>} : memref<16x256xf32, #tpu.memory_space<vmem>>, vector<1x256xf32>,
    %82 = vector.extract_strided_slice %51 {offsets = [6, 0, 0], sizes = [1, 8, 256], strides = [1, 1, 1]} : vector<8x8x256xf32> to vector<1x8x256xf32>
    %83 = vector.shape_cast %82 : vector<1x8x256xf32> to vector<8x256xf32>
    %84 = vector.extract_strided_slice %83 {offsets = [0, 0], sizes = [1, 256], strides = [1, 1]} : vector<8x256xf32> to vector<1x256xf32>
    %c12 = arith.constant 12 : index
    %c0_56 = arith.constant 0 : index
    %85 = vector.load %arg27[%c12, %c0_56] : memref<16x256xf32, #tpu.memory_space<vmem>>, vector<1x256xf32>
    tpu.vector_store %arg27[%c12, %c0_56], %84 {strides = array<i32>} : memref<16x256xf32, #tpu.memory_space<vmem>>, vector<1x256xf32>,
    %86 = vector.extract_strided_slice %83 {offsets = [2, 0], sizes = [1, 256], strides = [1, 1]} : vector<8x256xf32> to vector<1x256xf32>
    %c13 = arith.constant 13 : index
    %c0_57 = arith.constant 0 : index
    %87 = vector.load %arg27[%c13, %c0_57] : memref<16x256xf32, #tpu.memory_space<vmem>>, vector<1x256xf32>
    tpu.vector_store %arg27[%c13, %c0_57], %86 {strides = array<i32>} : memref<16x256xf32, #tpu.memory_space<vmem>>, vector<1x256xf32>,
    %88 = vector.extract_strided_slice %83 {offsets = [4, 0], sizes = [1, 256], strides = [1, 1]} : vector<8x256xf32> to vector<1x256xf32>
    %c14 = arith.constant 14 : index
    %c0_58 = arith.constant 0 : index
    %89 = vector.load %arg27[%c14, %c0_58] : memref<16x256xf32, #tpu.memory_space<vmem>>, vector<1x256xf32>
    tpu.vector_store %arg27[%c14, %c0_58], %88 {strides = array<i32>} : memref<16x256xf32, #tpu.memory_space<vmem>>, vector<1x256xf32>,
    %90 = vector.extract_strided_slice %83 {offsets = [6, 0], sizes = [1, 256], strides = [1, 1]} : vector<8x256xf32> to vector<1x256xf32>
    %c15 = arith.constant 15 : index
    %c0_59 = arith.constant 0 : index
    %91 = vector.load %arg27[%c15, %c0_59] : memref<16x256xf32, #tpu.memory_space<vmem>>, vector<1x256xf32>
    tpu.vector_store %arg27[%c15, %c0_59], %90 {strides = array<i32>} : memref<16x256xf32, #tpu.memory_space<vmem>>, vector<1x256xf32>,
    %c0_60 = arith.constant 0 : index
    %c0_61 = arith.constant 0 : index
    %92 = vector.load %arg27[%c0_60, %c0_61] : memref<16x256xf32, #tpu.memory_space<vmem>>, vector<16x256xf32>
    %93 = arith.truncf %92 : vector<16x256xf32> to vector<16x256xbf16>
    %c0_62 = arith.constant 0 : index
    %c0_63 = arith.constant 0 : index
    %94 = vector.load %arg3[%c0_62, %c0_63] : memref<256x256xbf16, #tpu.memory_space<vmem>>, vector<256x256xbf16>
    %cst_64 = arith.constant dense<0.000000e+00> : vector<16x256xf32>
    %95 = tpu.matmul %93, %94, %cst_64 {dimension_numbers = #tpu.dot_dimension_numbers<[1], [0], [0], [1], [0, 0, 1, 1], [], []>} : vector<16x256xbf16>, vector<256x256xbf16>, vector<16x256xf32> -> vector<16x256xf32>
    %c0_65 = arith.constant 0 : index
    %c0_66 = arith.constant 0 : index
    %96 = vector.load %arg4[%c0_65, %c0_66] : memref<1x256xf32, #tpu.memory_space<vmem>>, vector<1x256xf32>
    %97 = vector.broadcast %96 : vector<1x256xf32> to vector<16x256xf32>
    %98 = arith.mulf %95, %97 : vector<16x256xf32>
    %c0_67 = arith.constant 0 : index
    %c0_68 = arith.constant 0 : index
    %99 = vector.load %arg5[%c0_67, %c0_68] : memref<1x256xf32, #tpu.memory_space<vmem>>, vector<1x256xf32>
    %100 = vector.broadcast %99 : vector<1x256xf32> to vector<16x256xf32>
    %101 = arith.addf %98, %100 : vector<16x256xf32>
    %cst_69 = arith.constant 0.000000e+00 : f32
    %102 = vector.broadcast %cst_69 : f32 to vector<16x256xf32>
    %103 = arith.maximumf %101, %102 : vector<16x256xf32>
    %104 = vector.extract_strided_slice %103 {offsets = [0, 0], sizes = [4, 256], strides = [1, 1]} : vector<16x256xf32> to vector<4x256xf32>
    %c1_70 = arith.constant 1 : index
    %c1_71 = arith.constant 1 : index
    %c0_72 = arith.constant 0 : index
    %105 = vector.load %arg26[%c1_70, %c1_71, %c0_72] : memref<6x6x256xf32, #tpu.memory_space<vmem>>, vector<1x4x256xf32>
    %106 = vector.shape_cast %105 : vector<1x4x256xf32> to vector<4x256xf32>
    %107 = vector.shape_cast %104 : vector<4x256xf32> to vector<1x4x256xf32>
    tpu.vector_store %arg26[%c1_70, %c1_71, %c0_72], %107 {strides = array<i32>} : memref<6x6x256xf32, #tpu.memory_space<vmem>>, vector<1x4x256xf32>,
    %108 = vector.extract_strided_slice %103 {offsets = [4, 0], sizes = [4, 256], strides = [1, 1]} : vector<16x256xf32> to vector<4x256xf32>
    %c2_73 = arith.constant 2 : index
    %c1_74 = arith.constant 1 : index
    %c0_75 = arith.constant 0 : index
    %109 = vector.load %arg26[%c2_73, %c1_74, %c0_75] : memref<6x6x256xf32, #tpu.memory_space<vmem>>, vector<1x4x256xf32>
    %110 = vector.shape_cast %109 : vector<1x4x256xf32> to vector<4x256xf32>
    %111 = vector.shape_cast %108 : vector<4x256xf32> to vector<1x4x256xf32>
    tpu.vector_store %arg26[%c2_73, %c1_74, %c0_75], %111 {strides = array<i32>} : memref<6x6x256xf32, #tpu.memory_space<vmem>>, vector<1x4x256xf32>,
    %112 = vector.extract_strided_slice %103 {offsets = [8, 0], sizes = [4, 256], strides = [1, 1]} : vector<16x256xf32> to vector<4x256xf32>
    %c3_76 = arith.constant 3 : index
    %c1_77 = arith.constant 1 : index
    %c0_78 = arith.constant 0 : index
    %113 = vector.load %arg26[%c3_76, %c1_77, %c0_78] : memref<6x6x256xf32, #tpu.memory_space<vmem>>, vector<1x4x256xf32>
    %114 = vector.shape_cast %113 : vector<1x4x256xf32> to vector<4x256xf32>
    %115 = vector.shape_cast %112 : vector<4x256xf32> to vector<1x4x256xf32>
    tpu.vector_store %arg26[%c3_76, %c1_77, %c0_78], %115 {strides = array<i32>} : memref<6x6x256xf32, #tpu.memory_space<vmem>>, vector<1x4x256xf32>,
    %116 = vector.extract_strided_slice %103 {offsets = [12, 0], sizes = [4, 256], strides = [1, 1]} : vector<16x256xf32> to vector<4x256xf32>
    %c4_79 = arith.constant 4 : index
    %c1_80 = arith.constant 1 : index
    %c0_81 = arith.constant 0 : index
    %117 = vector.load %arg26[%c4_79, %c1_80, %c0_81] : memref<6x6x256xf32, #tpu.memory_space<vmem>>, vector<1x4x256xf32>
    %118 = vector.shape_cast %117 : vector<1x4x256xf32> to vector<4x256xf32>
    %119 = vector.shape_cast %116 : vector<4x256xf32> to vector<1x4x256xf32>
    tpu.vector_store %arg26[%c4_79, %c1_80, %c0_81], %119 {strides = array<i32>} : memref<6x6x256xf32, #tpu.memory_space<vmem>>, vector<1x4x256xf32>,
    %c0_82 = arith.constant 0 : index
    %c0_83 = arith.constant 0 : index
    %c0_84 = arith.constant 0 : index
    %120 = vector.load %arg6[%c0_82, %c0_83, %c0_84] : memref<3x3x256xf32, #tpu.memory_space<vmem>>, vector<3x3x256xf32>
    %c0_85 = arith.constant 0 : index
    %c0_86 = arith.constant 0 : index
    %c0_87 = arith.constant 0 : index
    %121 = vector.load %arg26[%c0_85, %c0_86, %c0_87] : memref<6x6x256xf32, #tpu.memory_space<vmem>>, vector<4x4x256xf32>
    %122 = vector.extract_strided_slice %120 {offsets = [0, 0, 0], sizes = [1, 1, 256], strides = [1, 1, 1]} : vector<3x3x256xf32> to vector<1x1x256xf32>
    %123 = vector.broadcast %122 : vector<1x1x256xf32> to vector<4x4x256xf32>
    %124 = arith.mulf %121, %123 : vector<4x4x256xf32>
    %c0_88 = arith.constant 0 : index
    %c1_89 = arith.constant 1 : index
    %c0_90 = arith.constant 0 : index
    %125 = vector.load %arg26[%c0_88, %c1_89, %c0_90] : memref<6x6x256xf32, #tpu.memory_space<vmem>>, vector<4x4x256xf32>
    %126 = vector.extract_strided_slice %120 {offsets = [0, 1, 0], sizes = [1, 1, 256], strides = [1, 1, 1]} : vector<3x3x256xf32> to vector<1x1x256xf32>
    %127 = vector.broadcast %126 : vector<1x1x256xf32> to vector<4x4x256xf32>
    %128 = arith.mulf %125, %127 : vector<4x4x256xf32>
    %129 = arith.addf %124, %128 : vector<4x4x256xf32>
    %c0_91 = arith.constant 0 : index
    %c2_92 = arith.constant 2 : index
    %c0_93 = arith.constant 0 : index
    %130 = vector.load %arg26[%c0_91, %c2_92, %c0_93] : memref<6x6x256xf32, #tpu.memory_space<vmem>>, vector<4x4x256xf32>
    %131 = vector.extract_strided_slice %120 {offsets = [0, 2, 0], sizes = [1, 1, 256], strides = [1, 1, 1]} : vector<3x3x256xf32> to vector<1x1x256xf32>
    %132 = vector.broadcast %131 : vector<1x1x256xf32> to vector<4x4x256xf32>
    %133 = arith.mulf %130, %132 : vector<4x4x256xf32>
    %134 = arith.addf %129, %133 : vector<4x4x256xf32>
    %c1_94 = arith.constant 1 : index
    %c0_95 = arith.constant 0 : index
    %c0_96 = arith.constant 0 : index
    %135 = vector.load %arg26[%c1_94, %c0_95, %c0_96] : memref<6x6x256xf32, #tpu.memory_space<vmem>>, vector<4x4x256xf32>
    %136 = vector.extract_strided_slice %120 {offsets = [1, 0, 0], sizes = [1, 1, 256], strides = [1, 1, 1]} : vector<3x3x256xf32> to vector<1x1x256xf32>
    %137 = vector.broadcast %136 : vector<1x1x256xf32> to vector<4x4x256xf32>
    %138 = arith.mulf %135, %137 : vector<4x4x256xf32>
    %139 = arith.addf %134, %138 : vector<4x4x256xf32>
    %c1_97 = arith.constant 1 : index
    %c1_98 = arith.constant 1 : index
    %c0_99 = arith.constant 0 : index
    %140 = vector.load %arg26[%c1_97, %c1_98, %c0_99] : memref<6x6x256xf32, #tpu.memory_space<vmem>>, vector<4x4x256xf32>
    %141 = vector.extract_strided_slice %120 {offsets = [1, 1, 0], sizes = [1, 1, 256], strides = [1, 1, 1]} : vector<3x3x256xf32> to vector<1x1x256xf32>
    %142 = vector.broadcast %141 : vector<1x1x256xf32> to vector<4x4x256xf32>
    %143 = arith.mulf %140, %142 : vector<4x4x256xf32>
    %144 = arith.addf %139, %143 : vector<4x4x256xf32>
    %c1_100 = arith.constant 1 : index
    %c2_101 = arith.constant 2 : index
    %c0_102 = arith.constant 0 : index
    %145 = vector.load %arg26[%c1_100, %c2_101, %c0_102] : memref<6x6x256xf32, #tpu.memory_space<vmem>>, vector<4x4x256xf32>
    %146 = vector.extract_strided_slice %120 {offsets = [1, 2, 0], sizes = [1, 1, 256], strides = [1, 1, 1]} : vector<3x3x256xf32> to vector<1x1x256xf32>
    %147 = vector.broadcast %146 : vector<1x1x256xf32> to vector<4x4x256xf32>
    %148 = arith.mulf %145, %147 : vector<4x4x256xf32>
    %149 = arith.addf %144, %148 : vector<4x4x256xf32>
    %c2_103 = arith.constant 2 : index
    %c0_104 = arith.constant 0 : index
    %c0_105 = arith.constant 0 : index
    %150 = vector.load %arg26[%c2_103, %c0_104, %c0_105] : memref<6x6x256xf32, #tpu.memory_space<vmem>>, vector<4x4x256xf32>
    %151 = vector.extract_strided_slice %120 {offsets = [2, 0, 0], sizes = [1, 1, 256], strides = [1, 1, 1]} : vector<3x3x256xf32> to vector<1x1x256xf32>
    %152 = vector.broadcast %151 : vector<1x1x256xf32> to vector<4x4x256xf32>
    %153 = arith.mulf %150, %152 : vector<4x4x256xf32>
    %154 = arith.addf %149, %153 : vector<4x4x256xf32>
    %c2_106 = arith.constant 2 : index
    %c1_107 = arith.constant 1 : index
    %c0_108 = arith.constant 0 : index
    %155 = vector.load %arg26[%c2_106, %c1_107, %c0_108] : memref<6x6x256xf32, #tpu.memory_space<vmem>>, vector<4x4x256xf32>
    %156 = vector.extract_strided_slice %120 {offsets = [2, 1, 0], sizes = [1, 1, 256], strides = [1, 1, 1]} : vector<3x3x256xf32> to vector<1x1x256xf32>
    %157 = vector.broadcast %156 : vector<1x1x256xf32> to vector<4x4x256xf32>
    %158 = arith.mulf %155, %157 : vector<4x4x256xf32>
    %159 = arith.addf %154, %158 : vector<4x4x256xf32>
    %c2_109 = arith.constant 2 : index
    %c2_110 = arith.constant 2 : index
    %c0_111 = arith.constant 0 : index
    %160 = vector.load %arg26[%c2_109, %c2_110, %c0_111] : memref<6x6x256xf32, #tpu.memory_space<vmem>>, vector<4x4x256xf32>
    %161 = vector.extract_strided_slice %120 {offsets = [2, 2, 0], sizes = [1, 1, 256], strides = [1, 1, 1]} : vector<3x3x256xf32> to vector<1x1x256xf32>
    %162 = vector.broadcast %161 : vector<1x1x256xf32> to vector<4x4x256xf32>
    %163 = arith.mulf %160, %162 : vector<4x4x256xf32>
    %164 = arith.addf %159, %163 : vector<4x4x256xf32>
    %165 = vector.extract_strided_slice %164 {offsets = [0, 0, 0], sizes = [1, 4, 256], strides = [1, 1, 1]} : vector<4x4x256xf32> to vector<1x4x256xf32>
    %166 = vector.shape_cast %165 : vector<1x4x256xf32> to vector<4x256xf32>
    %c0_112 = arith.constant 0 : index
    %c0_113 = arith.constant 0 : index
    %167 = vector.load %arg27[%c0_112, %c0_113] : memref<16x256xf32, #tpu.memory_space<vmem>>, vector<4x256xf32>
    tpu.vector_store %arg27[%c0_112, %c0_113], %166 {strides = array<i32>} : memref<16x256xf32, #tpu.memory_space<vmem>>, vector<4x256xf32>,
    %168 = vector.extract_strided_slice %164 {offsets = [1, 0, 0], sizes = [1, 4, 256], strides = [1, 1, 1]} : vector<4x4x256xf32> to vector<1x4x256xf32>
    %169 = vector.shape_cast %168 : vector<1x4x256xf32> to vector<4x256xf32>
    %c4_114 = arith.constant 4 : index
    %c0_115 = arith.constant 0 : index
    %170 = vector.load %arg27[%c4_114, %c0_115] : memref<16x256xf32, #tpu.memory_space<vmem>>, vector<4x256xf32>
    tpu.vector_store %arg27[%c4_114, %c0_115], %169 {strides = array<i32>} : memref<16x256xf32, #tpu.memory_space<vmem>>, vector<4x256xf32>,
    %171 = vector.extract_strided_slice %164 {offsets = [2, 0, 0], sizes = [1, 4, 256], strides = [1, 1, 1]} : vector<4x4x256xf32> to vector<1x4x256xf32>
    %172 = vector.shape_cast %171 : vector<1x4x256xf32> to vector<4x256xf32>
    %c8_116 = arith.constant 8 : index
    %c0_117 = arith.constant 0 : index
    %173 = vector.load %arg27[%c8_116, %c0_117] : memref<16x256xf32, #tpu.memory_space<vmem>>, vector<4x256xf32>
    tpu.vector_store %arg27[%c8_116, %c0_117], %172 {strides = array<i32>} : memref<16x256xf32, #tpu.memory_space<vmem>>, vector<4x256xf32>,
    %174 = vector.extract_strided_slice %164 {offsets = [3, 0, 0], sizes = [1, 4, 256], strides = [1, 1, 1]} : vector<4x4x256xf32> to vector<1x4x256xf32>
    %175 = vector.shape_cast %174 : vector<1x4x256xf32> to vector<4x256xf32>
    %c12_118 = arith.constant 12 : index
    %c0_119 = arith.constant 0 : index
    %176 = vector.load %arg27[%c12_118, %c0_119] : memref<16x256xf32, #tpu.memory_space<vmem>>, vector<4x256xf32>
    tpu.vector_store %arg27[%c12_118, %c0_119], %175 {strides = array<i32>} : memref<16x256xf32, #tpu.memory_space<vmem>>, vector<4x256xf32>,
    %c0_120 = arith.constant 0 : index
    %c0_121 = arith.constant 0 : index
    %177 = vector.load %arg27[%c0_120, %c0_121] : memref<16x256xf32, #tpu.memory_space<vmem>>, vector<16x256xf32>
    %178 = arith.truncf %177 : vector<16x256xf32> to vector<16x256xbf16>
    %c0_122 = arith.constant 0 : index
    %c0_123 = arith.constant 0 : index
    %179 = vector.load %arg7[%c0_122, %c0_123] : memref<256x256xbf16, #tpu.memory_space<vmem>>, vector<256x256xbf16>
    %cst_124 = arith.constant dense<0.000000e+00> : vector<16x256xf32>
    %180 = tpu.matmul %178, %179, %cst_124 {dimension_numbers = #tpu.dot_dimension_numbers<[1], [0], [0], [1], [0, 0, 1, 1], [], []>} : vector<16x256xbf16>, vector<256x256xbf16>, vector<16x256xf32> -> vector<16x256xf32>
    %c0_125 = arith.constant 0 : index
    %c0_126 = arith.constant 0 : index
    %181 = vector.load %arg8[%c0_125, %c0_126] : memref<1x256xf32, #tpu.memory_space<vmem>>, vector<1x256xf32>
    %182 = vector.broadcast %181 : vector<1x256xf32> to vector<16x256xf32>
    %183 = arith.mulf %180, %182 : vector<16x256xf32>
    %c0_127 = arith.constant 0 : index
    %c0_128 = arith.constant 0 : index
    %184 = vector.load %arg9[%c0_127, %c0_128] : memref<1x256xf32, #tpu.memory_space<vmem>>, vector<1x256xf32>
    %185 = vector.broadcast %184 : vector<1x256xf32> to vector<16x256xf32>
    %186 = arith.addf %183, %185 : vector<16x256xf32>
    %cst_129 = arith.constant 0.000000e+00 : f32
    %187 = vector.broadcast %cst_129 : f32 to vector<16x256xf32>
    %188 = arith.maximumf %186, %187 : vector<16x256xf32>
    %c0_130 = arith.constant 0 : index
    %c0_131 = arith.constant 0 : index
    %189 = vector.load %arg10[%c0_130, %c0_131] : memref<1x256xf32, #tpu.memory_space<vmem>>, vector<1x256xf32>
    %190 = vector.broadcast %189 : vector<1x256xf32> to vector<16x256xf32>
    %191 = arith.mulf %188, %190 : vector<16x256xf32>
    %c0_132 = arith.constant 0 : index
    %c0_133 = arith.constant 0 : index
    %192 = vector.load %arg11[%c0_132, %c0_133] : memref<1x256xf32, #tpu.memory_space<vmem>>, vector<1x256xf32>
    %193 = vector.broadcast %192 : vector<1x256xf32> to vector<16x256xf32>
    %194 = arith.addf %191, %193 : vector<16x256xf32>
    %cst_134 = arith.constant 0.000000e+00 : f32
    %195 = vector.broadcast %cst_134 : f32 to vector<16x256xf32>
    %196 = arith.maximumf %194, %195 : vector<16x256xf32>
    %c0_135 = arith.constant 0 : index
    %c0_136 = arith.constant 0 : index
    %197 = vector.load %arg12[%c0_135, %c0_136] : memref<64x16xf32, #tpu.memory_space<vmem>>, vector<64x16xf32>
    %cst_137 = arith.constant dense<0.000000e+00> : vector<64x256xf32>
    %198 = tpu.matmul %197, %196, %cst_137 {dimension_numbers = #tpu.dot_dimension_numbers<[1], [0], [0], [1], [0, 0, 1, 1], [], []>} : vector<64x16xf32>, vector<16x256xf32>, vector<64x256xf32> -> vector<64x256xf32>
    %199 = vector.extract_strided_slice %198 {offsets = [0, 0], sizes = [8, 256], strides = [1, 1]} : vector<64x256xf32> to vector<8x256xf32>
    %200 = arith.negf %199 : vector<8x256xf32>
    %201 = math.exp %200 : vector<8x256xf32>
    %cst_138 = arith.constant 1.000000e+00 : f32
    %202 = vector.broadcast %cst_138 : f32 to vector<8x256xf32>
    %203 = arith.addf %202, %201 : vector<8x256xf32>
    %204 = arith.divf %202, %203 : vector<8x256xf32>
    %c0_139 = arith.constant 0 : index
    %c0_140 = arith.constant 0 : index
    %c0_141 = arith.constant 0 : index
    %c0_142 = arith.constant 0 : index
    %205 = vector.load %arg1[%c0_139, %c0_140, %c0_141, %c0_142] : memref<1x8x8x256xf32, #tpu.memory_space<vmem>>, vector<1x1x8x256xf32>
    %206 = vector.shape_cast %205 : vector<1x1x8x256xf32> to vector<8x256xf32>
    %207 = arith.mulf %204, %206 : vector<8x256xf32>
    %c1_143 = arith.constant 1 : index
    %c1_144 = arith.constant 1 : index
    %c0_145 = arith.constant 0 : index
    %208 = vector.load %arg25[%c1_143, %c1_144, %c0_145] : memref<10x10x256xf32, #tpu.memory_space<vmem>>, vector<1x8x256xf32>
    %209 = vector.shape_cast %208 : vector<1x8x256xf32> to vector<8x256xf32>
    %210 = vector.shape_cast %207 : vector<8x256xf32> to vector<1x8x256xf32>
    tpu.vector_store %arg25[%c1_143, %c1_144, %c0_145], %210 {strides = array<i32>} : memref<10x10x256xf32, #tpu.memory_space<vmem>>, vector<1x8x256xf32>,
    %211 = vector.extract_strided_slice %198 {offsets = [8, 0], sizes = [8, 256], strides = [1, 1]} : vector<64x256xf32> to vector<8x256xf32>
    %212 = arith.negf %211 : vector<8x256xf32>
    %213 = math.exp %212 : vector<8x256xf32>
    %cst_146 = arith.constant 1.000000e+00 : f32
    %214 = vector.broadcast %cst_146 : f32 to vector<8x256xf32>
    %215 = arith.addf %214, %213 : vector<8x256xf32>
    %216 = arith.divf %214, %215 : vector<8x256xf32>
    %c0_147 = arith.constant 0 : index
    %c1_148 = arith.constant 1 : index
    %c0_149 = arith.constant 0 : index
    %c0_150 = arith.constant 0 : index
    %217 = vector.load %arg1[%c0_147, %c1_148, %c0_149, %c0_150] : memref<1x8x8x256xf32, #tpu.memory_space<vmem>>, vector<1x1x8x256xf32>
    %218 = vector.shape_cast %217 : vector<1x1x8x256xf32> to vector<8x256xf32>
    %219 = arith.mulf %216, %218 : vector<8x256xf32>
    %c2_151 = arith.constant 2 : index
    %c1_152 = arith.constant 1 : index
    %c0_153 = arith.constant 0 : index
    %220 = vector.load %arg25[%c2_151, %c1_152, %c0_153] : memref<10x10x256xf32, #tpu.memory_space<vmem>>, vector<1x8x256xf32>
    %221 = vector.shape_cast %220 : vector<1x8x256xf32> to vector<8x256xf32>
    %222 = vector.shape_cast %219 : vector<8x256xf32> to vector<1x8x256xf32>
    tpu.vector_store %arg25[%c2_151, %c1_152, %c0_153], %222 {strides = array<i32>} : memref<10x10x256xf32, #tpu.memory_space<vmem>>, vector<1x8x256xf32>,
    %223 = vector.extract_strided_slice %198 {offsets = [16, 0], sizes = [8, 256], strides = [1, 1]} : vector<64x256xf32> to vector<8x256xf32>
    %224 = arith.negf %223 : vector<8x256xf32>
    %225 = math.exp %224 : vector<8x256xf32>
    %cst_154 = arith.constant 1.000000e+00 : f32
    %226 = vector.broadcast %cst_154 : f32 to vector<8x256xf32>
    %227 = arith.addf %226, %225 : vector<8x256xf32>
    %228 = arith.divf %226, %227 : vector<8x256xf32>
    %c0_155 = arith.constant 0 : index
    %c2_156 = arith.constant 2 : index
    %c0_157 = arith.constant 0 : index
    %c0_158 = arith.constant 0 : index
    %229 = vector.load %arg1[%c0_155, %c2_156, %c0_157, %c0_158] : memref<1x8x8x256xf32, #tpu.memory_space<vmem>>, vector<1x1x8x256xf32>
    %230 = vector.shape_cast %229 : vector<1x1x8x256xf32> to vector<8x256xf32>
    %231 = arith.mulf %228, %230 : vector<8x256xf32>
    %c3_159 = arith.constant 3 : index
    %c1_160 = arith.constant 1 : index
    %c0_161 = arith.constant 0 : index
    %232 = vector.load %arg25[%c3_159, %c1_160, %c0_161] : memref<10x10x256xf32, #tpu.memory_space<vmem>>, vector<1x8x256xf32>
    %233 = vector.shape_cast %232 : vector<1x8x256xf32> to vector<8x256xf32>
    %234 = vector.shape_cast %231 : vector<8x256xf32> to vector<1x8x256xf32>
    tpu.vector_store %arg25[%c3_159, %c1_160, %c0_161], %234 {strides = array<i32>} : memref<10x10x256xf32, #tpu.memory_space<vmem>>, vector<1x8x256xf32>,
    %235 = vector.extract_strided_slice %198 {offsets = [24, 0], sizes = [8, 256], strides = [1, 1]} : vector<64x256xf32> to vector<8x256xf32>
    %236 = arith.negf %235 : vector<8x256xf32>
    %237 = math.exp %236 : vector<8x256xf32>
    %cst_162 = arith.constant 1.000000e+00 : f32
    %238 = vector.broadcast %cst_162 : f32 to vector<8x256xf32>
    %239 = arith.addf %238, %237 : vector<8x256xf32>
    %240 = arith.divf %238, %239 : vector<8x256xf32>
    %c0_163 = arith.constant 0 : index
    %c3_164 = arith.constant 3 : index
    %c0_165 = arith.constant 0 : index
    %c0_166 = arith.constant 0 : index
    %241 = vector.load %arg1[%c0_163, %c3_164, %c0_165, %c0_166] : memref<1x8x8x256xf32, #tpu.memory_space<vmem>>, vector<1x1x8x256xf32>
    %242 = vector.shape_cast %241 : vector<1x1x8x256xf32> to vector<8x256xf32>
    %243 = arith.mulf %240, %242 : vector<8x256xf32>
    %c4_167 = arith.constant 4 : index
    %c1_168 = arith.constant 1 : index
    %c0_169 = arith.constant 0 : index
    %244 = vector.load %arg25[%c4_167, %c1_168, %c0_169] : memref<10x10x256xf32, #tpu.memory_space<vmem>>, vector<1x8x256xf32>
    %245 = vector.shape_cast %244 : vector<1x8x256xf32> to vector<8x256xf32>
    %246 = vector.shape_cast %243 : vector<8x256xf32> to vector<1x8x256xf32>
    tpu.vector_store %arg25[%c4_167, %c1_168, %c0_169], %246 {strides = array<i32>} : memref<10x10x256xf32, #tpu.memory_space<vmem>>, vector<1x8x256xf32>,
    %247 = vector.extract_strided_slice %198 {offsets = [32, 0], sizes = [8, 256], strides = [1, 1]} : vector<64x256xf32> to vector<8x256xf32>
    %248 = arith.negf %247 : vector<8x256xf32>
    %249 = math.exp %248 : vector<8x256xf32>
    %cst_170 = arith.constant 1.000000e+00 : f32
    %250 = vector.broadcast %cst_170 : f32 to vector<8x256xf32>
    %251 = arith.addf %250, %249 : vector<8x256xf32>
    %252 = arith.divf %250, %251 : vector<8x256xf32>
    %c0_171 = arith.constant 0 : index
    %c4_172 = arith.constant 4 : index
    %c0_173 = arith.constant 0 : index
    %c0_174 = arith.constant 0 : index
    %253 = vector.load %arg1[%c0_171, %c4_172, %c0_173, %c0_174] : memref<1x8x8x256xf32, #tpu.memory_space<vmem>>, vector<1x1x8x256xf32>
    %254 = vector.shape_cast %253 : vector<1x1x8x256xf32> to vector<8x256xf32>
    %255 = arith.mulf %252, %254 : vector<8x256xf32>
    %c5_175 = arith.constant 5 : index
    %c1_176 = arith.constant 1 : index
    %c0_177 = arith.constant 0 : index
    %256 = vector.load %arg25[%c5_175, %c1_176, %c0_177] : memref<10x10x256xf32, #tpu.memory_space<vmem>>, vector<1x8x256xf32>
    %257 = vector.shape_cast %256 : vector<1x8x256xf32> to vector<8x256xf32>
    %258 = vector.shape_cast %255 : vector<8x256xf32> to vector<1x8x256xf32>
    tpu.vector_store %arg25[%c5_175, %c1_176, %c0_177], %258 {strides = array<i32>} : memref<10x10x256xf32, #tpu.memory_space<vmem>>, vector<1x8x256xf32>,
    %259 = vector.extract_strided_slice %198 {offsets = [40, 0], sizes = [8, 256], strides = [1, 1]} : vector<64x256xf32> to vector<8x256xf32>
    %260 = arith.negf %259 : vector<8x256xf32>
    %261 = math.exp %260 : vector<8x256xf32>
    %cst_178 = arith.constant 1.000000e+00 : f32
    %262 = vector.broadcast %cst_178 : f32 to vector<8x256xf32>
    %263 = arith.addf %262, %261 : vector<8x256xf32>
    %264 = arith.divf %262, %263 : vector<8x256xf32>
    %c0_179 = arith.constant 0 : index
    %c5_180 = arith.constant 5 : index
    %c0_181 = arith.constant 0 : index
    %c0_182 = arith.constant 0 : index
    %265 = vector.load %arg1[%c0_179, %c5_180, %c0_181, %c0_182] : memref<1x8x8x256xf32, #tpu.memory_space<vmem>>, vector<1x1x8x256xf32>
    %266 = vector.shape_cast %265 : vector<1x1x8x256xf32> to vector<8x256xf32>
    %267 = arith.mulf %264, %266 : vector<8x256xf32>
    %c6_183 = arith.constant 6 : index
    %c1_184 = arith.constant 1 : index
    %c0_185 = arith.constant 0 : index
    %268 = vector.load %arg25[%c6_183, %c1_184, %c0_185] : memref<10x10x256xf32, #tpu.memory_space<vmem>>, vector<1x8x256xf32>
    %269 = vector.shape_cast %268 : vector<1x8x256xf32> to vector<8x256xf32>
    %270 = vector.shape_cast %267 : vector<8x256xf32> to vector<1x8x256xf32>
    tpu.vector_store %arg25[%c6_183, %c1_184, %c0_185], %270 {strides = array<i32>} : memref<10x10x256xf32, #tpu.memory_space<vmem>>, vector<1x8x256xf32>,
    %271 = vector.extract_strided_slice %198 {offsets = [48, 0], sizes = [8, 256], strides = [1, 1]} : vector<64x256xf32> to vector<8x256xf32>
    %272 = arith.negf %271 : vector<8x256xf32>
    %273 = math.exp %272 : vector<8x256xf32>
    %cst_186 = arith.constant 1.000000e+00 : f32
    %274 = vector.broadcast %cst_186 : f32 to vector<8x256xf32>
    %275 = arith.addf %274, %273 : vector<8x256xf32>
    %276 = arith.divf %274, %275 : vector<8x256xf32>
    %c0_187 = arith.constant 0 : index
    %c6_188 = arith.constant 6 : index
    %c0_189 = arith.constant 0 : index
    %c0_190 = arith.constant 0 : index
    %277 = vector.load %arg1[%c0_187, %c6_188, %c0_189, %c0_190] : memref<1x8x8x256xf32, #tpu.memory_space<vmem>>, vector<1x1x8x256xf32>
    %278 = vector.shape_cast %277 : vector<1x1x8x256xf32> to vector<8x256xf32>
    %279 = arith.mulf %276, %278 : vector<8x256xf32>
    %c7_191 = arith.constant 7 : index
    %c1_192 = arith.constant 1 : index
    %c0_193 = arith.constant 0 : index
    %280 = vector.load %arg25[%c7_191, %c1_192, %c0_193] : memref<10x10x256xf32, #tpu.memory_space<vmem>>, vector<1x8x256xf32>
    %281 = vector.shape_cast %280 : vector<1x8x256xf32> to vector<8x256xf32>
    %282 = vector.shape_cast %279 : vector<8x256xf32> to vector<1x8x256xf32>
    tpu.vector_store %arg25[%c7_191, %c1_192, %c0_193], %282 {strides = array<i32>} : memref<10x10x256xf32, #tpu.memory_space<vmem>>, vector<1x8x256xf32>,
    %283 = vector.extract_strided_slice %198 {offsets = [56, 0], sizes = [8, 256], strides = [1, 1]} : vector<64x256xf32> to vector<8x256xf32>
    %284 = arith.negf %283 : vector<8x256xf32>
    %285 = math.exp %284 : vector<8x256xf32>
    %cst_194 = arith.constant 1.000000e+00 : f32
    %286 = vector.broadcast %cst_194 : f32 to vector<8x256xf32>
    %287 = arith.addf %286, %285 : vector<8x256xf32>
    %288 = arith.divf %286, %287 : vector<8x256xf32>
    %c0_195 = arith.constant 0 : index
    %c7_196 = arith.constant 7 : index
    %c0_197 = arith.constant 0 : index
    %c0_198 = arith.constant 0 : index
    %289 = vector.load %arg1[%c0_195, %c7_196, %c0_197, %c0_198] : memref<1x8x8x256xf32, #tpu.memory_space<vmem>>, vector<1x1x8x256xf32>
    %290 = vector.shape_cast %289 : vector<1x1x8x256xf32> to vector<8x256xf32>
    %291 = arith.mulf %288, %290 : vector<8x256xf32>
    %c8_199 = arith.constant 8 : index
    %c1_200 = arith.constant 1 : index
    %c0_201 = arith.constant 0 : index
    %292 = vector.load %arg25[%c8_199, %c1_200, %c0_201] : memref<10x10x256xf32, #tpu.memory_space<vmem>>, vector<1x8x256xf32>
    %293 = vector.shape_cast %292 : vector<1x8x256xf32> to vector<8x256xf32>
    %294 = vector.shape_cast %291 : vector<8x256xf32> to vector<1x8x256xf32>
    tpu.vector_store %arg25[%c8_199, %c1_200, %c0_201], %294 {strides = array<i32>} : memref<10x10x256xf32, #tpu.memory_space<vmem>>, vector<1x8x256xf32>,
    %c0_202 = arith.constant 0 : index
    %c0_203 = arith.constant 0 : index
    %c0_204 = arith.constant 0 : index
    %295 = vector.load %arg13[%c0_202, %c0_203, %c0_204] : memref<3x3x256xf32, #tpu.memory_space<vmem>>, vector<3x3x256xf32>
    %c0_205 = arith.constant 0 : index
    %c0_206 = arith.constant 0 : index
    %c0_207 = arith.constant 0 : index
    %296 = vector.load %arg25[%c0_205, %c0_206, %c0_207] : memref<10x10x256xf32, #tpu.memory_space<vmem>>, vector<8x8x256xf32>
    %297 = vector.extract_strided_slice %295 {offsets = [0, 0, 0], sizes = [1, 1, 256], strides = [1, 1, 1]} : vector<3x3x256xf32> to vector<1x1x256xf32>
    %298 = vector.broadcast %297 : vector<1x1x256xf32> to vector<8x8x256xf32>
    %299 = arith.mulf %296, %298 : vector<8x8x256xf32>
    %c0_208 = arith.constant 0 : index
    %c1_209 = arith.constant 1 : index
    %c0_210 = arith.constant 0 : index
    %300 = vector.load %arg25[%c0_208, %c1_209, %c0_210] : memref<10x10x256xf32, #tpu.memory_space<vmem>>, vector<8x8x256xf32>
    %301 = vector.extract_strided_slice %295 {offsets = [0, 1, 0], sizes = [1, 1, 256], strides = [1, 1, 1]} : vector<3x3x256xf32> to vector<1x1x256xf32>
    %302 = vector.broadcast %301 : vector<1x1x256xf32> to vector<8x8x256xf32>
    %303 = arith.mulf %300, %302 : vector<8x8x256xf32>
    %304 = arith.addf %299, %303 : vector<8x8x256xf32>
    %c0_211 = arith.constant 0 : index
    %c2_212 = arith.constant 2 : index
    %c0_213 = arith.constant 0 : index
    %305 = vector.load %arg25[%c0_211, %c2_212, %c0_213] : memref<10x10x256xf32, #tpu.memory_space<vmem>>, vector<8x8x256xf32>
    %306 = vector.extract_strided_slice %295 {offsets = [0, 2, 0], sizes = [1, 1, 256], strides = [1, 1, 1]} : vector<3x3x256xf32> to vector<1x1x256xf32>
    %307 = vector.broadcast %306 : vector<1x1x256xf32> to vector<8x8x256xf32>
    %308 = arith.mulf %305, %307 : vector<8x8x256xf32>
    %309 = arith.addf %304, %308 : vector<8x8x256xf32>
    %c1_214 = arith.constant 1 : index
    %c0_215 = arith.constant 0 : index
    %c0_216 = arith.constant 0 : index
    %310 = vector.load %arg25[%c1_214, %c0_215, %c0_216] : memref<10x10x256xf32, #tpu.memory_space<vmem>>, vector<8x8x256xf32>
    %311 = vector.extract_strided_slice %295 {offsets = [1, 0, 0], sizes = [1, 1, 256], strides = [1, 1, 1]} : vector<3x3x256xf32> to vector<1x1x256xf32>
    %312 = vector.broadcast %311 : vector<1x1x256xf32> to vector<8x8x256xf32>
    %313 = arith.mulf %310, %312 : vector<8x8x256xf32>
    %314 = arith.addf %309, %313 : vector<8x8x256xf32>
    %c1_217 = arith.constant 1 : index
    %c1_218 = arith.constant 1 : index
    %c0_219 = arith.constant 0 : index
    %315 = vector.load %arg25[%c1_217, %c1_218, %c0_219] : memref<10x10x256xf32, #tpu.memory_space<vmem>>, vector<8x8x256xf32>
    %316 = vector.extract_strided_slice %295 {offsets = [1, 1, 0], sizes = [1, 1, 256], strides = [1, 1, 1]} : vector<3x3x256xf32> to vector<1x1x256xf32>
    %317 = vector.broadcast %316 : vector<1x1x256xf32> to vector<8x8x256xf32>
    %318 = arith.mulf %315, %317 : vector<8x8x256xf32>
    %319 = arith.addf %314, %318 : vector<8x8x256xf32>
    %c1_220 = arith.constant 1 : index
    %c2_221 = arith.constant 2 : index
    %c0_222 = arith.constant 0 : index
    %320 = vector.load %arg25[%c1_220, %c2_221, %c0_222] : memref<10x10x256xf32, #tpu.memory_space<vmem>>, vector<8x8x256xf32>
    %321 = vector.extract_strided_slice %295 {offsets = [1, 2, 0], sizes = [1, 1, 256], strides = [1, 1, 1]} : vector<3x3x256xf32> to vector<1x1x256xf32>
    %322 = vector.broadcast %321 : vector<1x1x256xf32> to vector<8x8x256xf32>
    %323 = arith.mulf %320, %322 : vector<8x8x256xf32>
    %324 = arith.addf %319, %323 : vector<8x8x256xf32>
    %c2_223 = arith.constant 2 : index
    %c0_224 = arith.constant 0 : index
    %c0_225 = arith.constant 0 : index
    %325 = vector.load %arg25[%c2_223, %c0_224, %c0_225] : memref<10x10x256xf32, #tpu.memory_space<vmem>>, vector<8x8x256xf32>
    %326 = vector.extract_strided_slice %295 {offsets = [2, 0, 0], sizes = [1, 1, 256], strides = [1, 1, 1]} : vector<3x3x256xf32> to vector<1x1x256xf32>
    %327 = vector.broadcast %326 : vector<1x1x256xf32> to vector<8x8x256xf32>
    %328 = arith.mulf %325, %327 : vector<8x8x256xf32>
    %329 = arith.addf %324, %328 : vector<8x8x256xf32>
    %c2_226 = arith.constant 2 : index
    %c1_227 = arith.constant 1 : index
    %c0_228 = arith.constant 0 : index
    %330 = vector.load %arg25[%c2_226, %c1_227, %c0_228] : memref<10x10x256xf32, #tpu.memory_space<vmem>>, vector<8x8x256xf32>
    %331 = vector.extract_strided_slice %295 {offsets = [2, 1, 0], sizes = [1, 1, 256], strides = [1, 1, 1]} : vector<3x3x256xf32> to vector<1x1x256xf32>
    %332 = vector.broadcast %331 : vector<1x1x256xf32> to vector<8x8x256xf32>
    %333 = arith.mulf %330, %332 : vector<8x8x256xf32>
    %334 = arith.addf %329, %333 : vector<8x8x256xf32>
    %c2_229 = arith.constant 2 : index
    %c2_230 = arith.constant 2 : index
    %c0_231 = arith.constant 0 : index
    %335 = vector.load %arg25[%c2_229, %c2_230, %c0_231] : memref<10x10x256xf32, #tpu.memory_space<vmem>>, vector<8x8x256xf32>
    %336 = vector.extract_strided_slice %295 {offsets = [2, 2, 0], sizes = [1, 1, 256], strides = [1, 1, 1]} : vector<3x3x256xf32> to vector<1x1x256xf32>
    %337 = vector.broadcast %336 : vector<1x1x256xf32> to vector<8x8x256xf32>
    %338 = arith.mulf %335, %337 : vector<8x8x256xf32>
    %339 = arith.addf %334, %338 : vector<8x8x256xf32>
    %340 = vector.extract_strided_slice %339 {offsets = [0, 0, 0], sizes = [1, 8, 256], strides = [1, 1, 1]} : vector<8x8x256xf32> to vector<1x8x256xf32>
    %341 = vector.shape_cast %340 : vector<1x8x256xf32> to vector<8x256xf32>
    %342 = vector.extract_strided_slice %341 {offsets = [0, 0], sizes = [1, 256], strides = [1, 1]} : vector<8x256xf32> to vector<1x256xf32>
    %c0_232 = arith.constant 0 : index
    %c0_233 = arith.constant 0 : index
    %343 = vector.load %arg27[%c0_232, %c0_233] : memref<16x256xf32, #tpu.memory_space<vmem>>, vector<1x256xf32>
    tpu.vector_store %arg27[%c0_232, %c0_233], %342 {strides = array<i32>} : memref<16x256xf32, #tpu.memory_space<vmem>>, vector<1x256xf32>,
    %344 = vector.extract_strided_slice %341 {offsets = [2, 0], sizes = [1, 256], strides = [1, 1]} : vector<8x256xf32> to vector<1x256xf32>
    %c1_234 = arith.constant 1 : index
    %c0_235 = arith.constant 0 : index
    %345 = vector.load %arg27[%c1_234, %c0_235] : memref<16x256xf32, #tpu.memory_space<vmem>>, vector<1x256xf32>
    tpu.vector_store %arg27[%c1_234, %c0_235], %344 {strides = array<i32>} : memref<16x256xf32, #tpu.memory_space<vmem>>, vector<1x256xf32>,
    %346 = vector.extract_strided_slice %341 {offsets = [4, 0], sizes = [1, 256], strides = [1, 1]} : vector<8x256xf32> to vector<1x256xf32>
    %c2_236 = arith.constant 2 : index
    %c0_237 = arith.constant 0 : index
    %347 = vector.load %arg27[%c2_236, %c0_237] : memref<16x256xf32, #tpu.memory_space<vmem>>, vector<1x256xf32>
    tpu.vector_store %arg27[%c2_236, %c0_237], %346 {strides = array<i32>} : memref<16x256xf32, #tpu.memory_space<vmem>>, vector<1x256xf32>,
    %348 = vector.extract_strided_slice %341 {offsets = [6, 0], sizes = [1, 256], strides = [1, 1]} : vector<8x256xf32> to vector<1x256xf32>
    %c3_238 = arith.constant 3 : index
    %c0_239 = arith.constant 0 : index
    %349 = vector.load %arg27[%c3_238, %c0_239] : memref<16x256xf32, #tpu.memory_space<vmem>>, vector<1x256xf32>
    tpu.vector_store %arg27[%c3_238, %c0_239], %348 {strides = array<i32>} : memref<16x256xf32, #tpu.memory_space<vmem>>, vector<1x256xf32>,
    %350 = vector.extract_strided_slice %339 {offsets = [2, 0, 0], sizes = [1, 8, 256], strides = [1, 1, 1]} : vector<8x8x256xf32> to vector<1x8x256xf32>
    %351 = vector.shape_cast %350 : vector<1x8x256xf32> to vector<8x256xf32>
    %352 = vector.extract_strided_slice %351 {offsets = [0, 0], sizes = [1, 256], strides = [1, 1]} : vector<8x256xf32> to vector<1x256xf32>
    %c4_240 = arith.constant 4 : index
    %c0_241 = arith.constant 0 : index
    %353 = vector.load %arg27[%c4_240, %c0_241] : memref<16x256xf32, #tpu.memory_space<vmem>>, vector<1x256xf32>
    tpu.vector_store %arg27[%c4_240, %c0_241], %352 {strides = array<i32>} : memref<16x256xf32, #tpu.memory_space<vmem>>, vector<1x256xf32>,
    %354 = vector.extract_strided_slice %351 {offsets = [2, 0], sizes = [1, 256], strides = [1, 1]} : vector<8x256xf32> to vector<1x256xf32>
    %c5_242 = arith.constant 5 : index
    %c0_243 = arith.constant 0 : index
    %355 = vector.load %arg27[%c5_242, %c0_243] : memref<16x256xf32, #tpu.memory_space<vmem>>, vector<1x256xf32>
    tpu.vector_store %arg27[%c5_242, %c0_243], %354 {strides = array<i32>} : memref<16x256xf32, #tpu.memory_space<vmem>>, vector<1x256xf32>,
    %356 = vector.extract_strided_slice %351 {offsets = [4, 0], sizes = [1, 256], strides = [1, 1]} : vector<8x256xf32> to vector<1x256xf32>
    %c6_244 = arith.constant 6 : index
    %c0_245 = arith.constant 0 : index
    %357 = vector.load %arg27[%c6_244, %c0_245] : memref<16x256xf32, #tpu.memory_space<vmem>>, vector<1x256xf32>
    tpu.vector_store %arg27[%c6_244, %c0_245], %356 {strides = array<i32>} : memref<16x256xf32, #tpu.memory_space<vmem>>, vector<1x256xf32>,
    %358 = vector.extract_strided_slice %351 {offsets = [6, 0], sizes = [1, 256], strides = [1, 1]} : vector<8x256xf32> to vector<1x256xf32>
    %c7_246 = arith.constant 7 : index
    %c0_247 = arith.constant 0 : index
    %359 = vector.load %arg27[%c7_246, %c0_247] : memref<16x256xf32, #tpu.memory_space<vmem>>, vector<1x256xf32>
    tpu.vector_store %arg27[%c7_246, %c0_247], %358 {strides = array<i32>} : memref<16x256xf32, #tpu.memory_space<vmem>>, vector<1x256xf32>,
    %360 = vector.extract_strided_slice %339 {offsets = [4, 0, 0], sizes = [1, 8, 256], strides = [1, 1, 1]} : vector<8x8x256xf32> to vector<1x8x256xf32>
    %361 = vector.shape_cast %360 : vector<1x8x256xf32> to vector<8x256xf32>
    %362 = vector.extract_strided_slice %361 {offsets = [0, 0], sizes = [1, 256], strides = [1, 1]} : vector<8x256xf32> to vector<1x256xf32>
    %c8_248 = arith.constant 8 : index
    %c0_249 = arith.constant 0 : index
    %363 = vector.load %arg27[%c8_248, %c0_249] : memref<16x256xf32, #tpu.memory_space<vmem>>, vector<1x256xf32>
    tpu.vector_store %arg27[%c8_248, %c0_249], %362 {strides = array<i32>} : memref<16x256xf32, #tpu.memory_space<vmem>>, vector<1x256xf32>,
    %364 = vector.extract_strided_slice %361 {offsets = [2, 0], sizes = [1, 256], strides = [1, 1]} : vector<8x256xf32> to vector<1x256xf32>
    %c9_250 = arith.constant 9 : index
    %c0_251 = arith.constant 0 : index
    %365 = vector.load %arg27[%c9_250, %c0_251] : memref<16x256xf32, #tpu.memory_space<vmem>>, vector<1x256xf32>
    tpu.vector_store %arg27[%c9_250, %c0_251], %364 {strides = array<i32>} : memref<16x256xf32, #tpu.memory_space<vmem>>, vector<1x256xf32>,
    %366 = vector.extract_strided_slice %361 {offsets = [4, 0], sizes = [1, 256], strides = [1, 1]} : vector<8x256xf32> to vector<1x256xf32>
    %c10_252 = arith.constant 10 : index
    %c0_253 = arith.constant 0 : index
    %367 = vector.load %arg27[%c10_252, %c0_253] : memref<16x256xf32, #tpu.memory_space<vmem>>, vector<1x256xf32>
    tpu.vector_store %arg27[%c10_252, %c0_253], %366 {strides = array<i32>} : memref<16x256xf32, #tpu.memory_space<vmem>>, vector<1x256xf32>,
    %368 = vector.extract_strided_slice %361 {offsets = [6, 0], sizes = [1, 256], strides = [1, 1]} : vector<8x256xf32> to vector<1x256xf32>
    %c11_254 = arith.constant 11 : index
    %c0_255 = arith.constant 0 : index
    %369 = vector.load %arg27[%c11_254, %c0_255] : memref<16x256xf32, #tpu.memory_space<vmem>>, vector<1x256xf32>
    tpu.vector_store %arg27[%c11_254, %c0_255], %368 {strides = array<i32>} : memref<16x256xf32, #tpu.memory_space<vmem>>, vector<1x256xf32>,
    %370 = vector.extract_strided_slice %339 {offsets = [6, 0, 0], sizes = [1, 8, 256], strides = [1, 1, 1]} : vector<8x8x256xf32> to vector<1x8x256xf32>
    %371 = vector.shape_cast %370 : vector<1x8x256xf32> to vector<8x256xf32>
    %372 = vector.extract_strided_slice %371 {offsets = [0, 0], sizes = [1, 256], strides = [1, 1]} : vector<8x256xf32> to vector<1x256xf32>
    %c12_256 = arith.constant 12 : index
    %c0_257 = arith.constant 0 : index
    %373 = vector.load %arg27[%c12_256, %c0_257] : memref<16x256xf32, #tpu.memory_space<vmem>>, vector<1x256xf32>
    tpu.vector_store %arg27[%c12_256, %c0_257], %372 {strides = array<i32>} : memref<16x256xf32, #tpu.memory_space<vmem>>, vector<1x256xf32>,
    %374 = vector.extract_strided_slice %371 {offsets = [2, 0], sizes = [1, 256], strides = [1, 1]} : vector<8x256xf32> to vector<1x256xf32>
    %c13_258 = arith.constant 13 : index
    %c0_259 = arith.constant 0 : index
    %375 = vector.load %arg27[%c13_258, %c0_259] : memref<16x256xf32, #tpu.memory_space<vmem>>, vector<1x256xf32>
    tpu.vector_store %arg27[%c13_258, %c0_259], %374 {strides = array<i32>} : memref<16x256xf32, #tpu.memory_space<vmem>>, vector<1x256xf32>,
    %376 = vector.extract_strided_slice %371 {offsets = [4, 0], sizes = [1, 256], strides = [1, 1]} : vector<8x256xf32> to vector<1x256xf32>
    %c14_260 = arith.constant 14 : index
    %c0_261 = arith.constant 0 : index
    %377 = vector.load %arg27[%c14_260, %c0_261] : memref<16x256xf32, #tpu.memory_space<vmem>>, vector<1x256xf32>
    tpu.vector_store %arg27[%c14_260, %c0_261], %376 {strides = array<i32>} : memref<16x256xf32, #tpu.memory_space<vmem>>, vector<1x256xf32>,
    %378 = vector.extract_strided_slice %371 {offsets = [6, 0], sizes = [1, 256], strides = [1, 1]} : vector<8x256xf32> to vector<1x256xf32>
    %c15_262 = arith.constant 15 : index
    %c0_263 = arith.constant 0 : index
    %379 = vector.load %arg27[%c15_262, %c0_263] : memref<16x256xf32, #tpu.memory_space<vmem>>, vector<1x256xf32>
    tpu.vector_store %arg27[%c15_262, %c0_263], %378 {strides = array<i32>} : memref<16x256xf32, #tpu.memory_space<vmem>>, vector<1x256xf32>,
    %c0_264 = arith.constant 0 : index
    %c0_265 = arith.constant 0 : index
    %380 = vector.load %arg27[%c0_264, %c0_265] : memref<16x256xf32, #tpu.memory_space<vmem>>, vector<16x256xf32>
    %381 = arith.truncf %380 : vector<16x256xf32> to vector<16x256xbf16>
    %c0_266 = arith.constant 0 : index
    %c0_267 = arith.constant 0 : index
    %382 = vector.load %arg14[%c0_266, %c0_267] : memref<256x256xbf16, #tpu.memory_space<vmem>>, vector<256x256xbf16>
    %cst_268 = arith.constant dense<0.000000e+00> : vector<16x256xf32>
    %383 = tpu.matmul %381, %382, %cst_268 {dimension_numbers = #tpu.dot_dimension_numbers<[1], [0], [0], [1], [0, 0, 1, 1], [], []>} : vector<16x256xbf16>, vector<256x256xbf16>, vector<16x256xf32> -> vector<16x256xf32>
    %c0_269 = arith.constant 0 : index
    %c0_270 = arith.constant 0 : index
    %384 = vector.load %arg15[%c0_269, %c0_270] : memref<1x256xf32, #tpu.memory_space<vmem>>, vector<1x256xf32>
    %385 = vector.broadcast %384 : vector<1x256xf32> to vector<16x256xf32>
    %386 = arith.mulf %383, %385 : vector<16x256xf32>
    %c0_271 = arith.constant 0 : index
    %c0_272 = arith.constant 0 : index
    %387 = vector.load %arg16[%c0_271, %c0_272] : memref<1x256xf32, #tpu.memory_space<vmem>>, vector<1x256xf32>
    %388 = vector.broadcast %387 : vector<1x256xf32> to vector<16x256xf32>
    %389 = arith.addf %386, %388 : vector<16x256xf32>
    %cst_273 = arith.constant 0.000000e+00 : f32
    %390 = vector.broadcast %cst_273 : f32 to vector<16x256xf32>
    %391 = arith.maximumf %389, %390 : vector<16x256xf32>
    %392 = vector.extract_strided_slice %391 {offsets = [0, 0], sizes = [4, 256], strides = [1, 1]} : vector<16x256xf32> to vector<4x256xf32>
    %c1_274 = arith.constant 1 : index
    %c1_275 = arith.constant 1 : index
    %c0_276 = arith.constant 0 : index
    %393 = vector.load %arg26[%c1_274, %c1_275, %c0_276] : memref<6x6x256xf32, #tpu.memory_space<vmem>>, vector<1x4x256xf32>
    %394 = vector.shape_cast %393 : vector<1x4x256xf32> to vector<4x256xf32>
    %395 = vector.shape_cast %392 : vector<4x256xf32> to vector<1x4x256xf32>
    tpu.vector_store %arg26[%c1_274, %c1_275, %c0_276], %395 {strides = array<i32>} : memref<6x6x256xf32, #tpu.memory_space<vmem>>, vector<1x4x256xf32>,
    %396 = vector.extract_strided_slice %391 {offsets = [4, 0], sizes = [4, 256], strides = [1, 1]} : vector<16x256xf32> to vector<4x256xf32>
    %c2_277 = arith.constant 2 : index
    %c1_278 = arith.constant 1 : index
    %c0_279 = arith.constant 0 : index
    %397 = vector.load %arg26[%c2_277, %c1_278, %c0_279] : memref<6x6x256xf32, #tpu.memory_space<vmem>>, vector<1x4x256xf32>
    %398 = vector.shape_cast %397 : vector<1x4x256xf32> to vector<4x256xf32>
    %399 = vector.shape_cast %396 : vector<4x256xf32> to vector<1x4x256xf32>
    tpu.vector_store %arg26[%c2_277, %c1_278, %c0_279], %399 {strides = array<i32>} : memref<6x6x256xf32, #tpu.memory_space<vmem>>, vector<1x4x256xf32>,
    %400 = vector.extract_strided_slice %391 {offsets = [8, 0], sizes = [4, 256], strides = [1, 1]} : vector<16x256xf32> to vector<4x256xf32>
    %c3_280 = arith.constant 3 : index
    %c1_281 = arith.constant 1 : index
    %c0_282 = arith.constant 0 : index
    %401 = vector.load %arg26[%c3_280, %c1_281, %c0_282] : memref<6x6x256xf32, #tpu.memory_space<vmem>>, vector<1x4x256xf32>
    %402 = vector.shape_cast %401 : vector<1x4x256xf32> to vector<4x256xf32>
    %403 = vector.shape_cast %400 : vector<4x256xf32> to vector<1x4x256xf32>
    tpu.vector_store %arg26[%c3_280, %c1_281, %c0_282], %403 {strides = array<i32>} : memref<6x6x256xf32, #tpu.memory_space<vmem>>, vector<1x4x256xf32>,
    %404 = vector.extract_strided_slice %391 {offsets = [12, 0], sizes = [4, 256], strides = [1, 1]} : vector<16x256xf32> to vector<4x256xf32>
    %c4_283 = arith.constant 4 : index
    %c1_284 = arith.constant 1 : index
    %c0_285 = arith.constant 0 : index
    %405 = vector.load %arg26[%c4_283, %c1_284, %c0_285] : memref<6x6x256xf32, #tpu.memory_space<vmem>>, vector<1x4x256xf32>
    %406 = vector.shape_cast %405 : vector<1x4x256xf32> to vector<4x256xf32>
    %407 = vector.shape_cast %404 : vector<4x256xf32> to vector<1x4x256xf32>
    tpu.vector_store %arg26[%c4_283, %c1_284, %c0_285], %407 {strides = array<i32>} : memref<6x6x256xf32, #tpu.memory_space<vmem>>, vector<1x4x256xf32>,
    %c0_286 = arith.constant 0 : index
    %c0_287 = arith.constant 0 : index
    %c0_288 = arith.constant 0 : index
    %408 = vector.load %arg17[%c0_286, %c0_287, %c0_288] : memref<3x3x256xf32, #tpu.memory_space<vmem>>, vector<3x3x256xf32>
    %c0_289 = arith.constant 0 : index
    %c0_290 = arith.constant 0 : index
    %c0_291 = arith.constant 0 : index
    %409 = vector.load %arg26[%c0_289, %c0_290, %c0_291] : memref<6x6x256xf32, #tpu.memory_space<vmem>>, vector<4x4x256xf32>
    %410 = vector.extract_strided_slice %408 {offsets = [0, 0, 0], sizes = [1, 1, 256], strides = [1, 1, 1]} : vector<3x3x256xf32> to vector<1x1x256xf32>
    %411 = vector.broadcast %410 : vector<1x1x256xf32> to vector<4x4x256xf32>
    %412 = arith.mulf %409, %411 : vector<4x4x256xf32>
    %c0_292 = arith.constant 0 : index
    %c1_293 = arith.constant 1 : index
    %c0_294 = arith.constant 0 : index
    %413 = vector.load %arg26[%c0_292, %c1_293, %c0_294] : memref<6x6x256xf32, #tpu.memory_space<vmem>>, vector<4x4x256xf32>
    %414 = vector.extract_strided_slice %408 {offsets = [0, 1, 0], sizes = [1, 1, 256], strides = [1, 1, 1]} : vector<3x3x256xf32> to vector<1x1x256xf32>
    %415 = vector.broadcast %414 : vector<1x1x256xf32> to vector<4x4x256xf32>
    %416 = arith.mulf %413, %415 : vector<4x4x256xf32>
    %417 = arith.addf %412, %416 : vector<4x4x256xf32>
    %c0_295 = arith.constant 0 : index
    %c2_296 = arith.constant 2 : index
    %c0_297 = arith.constant 0 : index
    %418 = vector.load %arg26[%c0_295, %c2_296, %c0_297] : memref<6x6x256xf32, #tpu.memory_space<vmem>>, vector<4x4x256xf32>
    %419 = vector.extract_strided_slice %408 {offsets = [0, 2, 0], sizes = [1, 1, 256], strides = [1, 1, 1]} : vector<3x3x256xf32> to vector<1x1x256xf32>
    %420 = vector.broadcast %419 : vector<1x1x256xf32> to vector<4x4x256xf32>
    %421 = arith.mulf %418, %420 : vector<4x4x256xf32>
    %422 = arith.addf %417, %421 : vector<4x4x256xf32>
    %c1_298 = arith.constant 1 : index
    %c0_299 = arith.constant 0 : index
    %c0_300 = arith.constant 0 : index
    %423 = vector.load %arg26[%c1_298, %c0_299, %c0_300] : memref<6x6x256xf32, #tpu.memory_space<vmem>>, vector<4x4x256xf32>
    %424 = vector.extract_strided_slice %408 {offsets = [1, 0, 0], sizes = [1, 1, 256], strides = [1, 1, 1]} : vector<3x3x256xf32> to vector<1x1x256xf32>
    %425 = vector.broadcast %424 : vector<1x1x256xf32> to vector<4x4x256xf32>
    %426 = arith.mulf %423, %425 : vector<4x4x256xf32>
    %427 = arith.addf %422, %426 : vector<4x4x256xf32>
    %c1_301 = arith.constant 1 : index
    %c1_302 = arith.constant 1 : index
    %c0_303 = arith.constant 0 : index
    %428 = vector.load %arg26[%c1_301, %c1_302, %c0_303] : memref<6x6x256xf32, #tpu.memory_space<vmem>>, vector<4x4x256xf32>
    %429 = vector.extract_strided_slice %408 {offsets = [1, 1, 0], sizes = [1, 1, 256], strides = [1, 1, 1]} : vector<3x3x256xf32> to vector<1x1x256xf32>
    %430 = vector.broadcast %429 : vector<1x1x256xf32> to vector<4x4x256xf32>
    %431 = arith.mulf %428, %430 : vector<4x4x256xf32>
    %432 = arith.addf %427, %431 : vector<4x4x256xf32>
    %c1_304 = arith.constant 1 : index
    %c2_305 = arith.constant 2 : index
    %c0_306 = arith.constant 0 : index
    %433 = vector.load %arg26[%c1_304, %c2_305, %c0_306] : memref<6x6x256xf32, #tpu.memory_space<vmem>>, vector<4x4x256xf32>
    %434 = vector.extract_strided_slice %408 {offsets = [1, 2, 0], sizes = [1, 1, 256], strides = [1, 1, 1]} : vector<3x3x256xf32> to vector<1x1x256xf32>
    %435 = vector.broadcast %434 : vector<1x1x256xf32> to vector<4x4x256xf32>
    %436 = arith.mulf %433, %435 : vector<4x4x256xf32>
    %437 = arith.addf %432, %436 : vector<4x4x256xf32>
    %c2_307 = arith.constant 2 : index
    %c0_308 = arith.constant 0 : index
    %c0_309 = arith.constant 0 : index
    %438 = vector.load %arg26[%c2_307, %c0_308, %c0_309] : memref<6x6x256xf32, #tpu.memory_space<vmem>>, vector<4x4x256xf32>
    %439 = vector.extract_strided_slice %408 {offsets = [2, 0, 0], sizes = [1, 1, 256], strides = [1, 1, 1]} : vector<3x3x256xf32> to vector<1x1x256xf32>
    %440 = vector.broadcast %439 : vector<1x1x256xf32> to vector<4x4x256xf32>
    %441 = arith.mulf %438, %440 : vector<4x4x256xf32>
    %442 = arith.addf %437, %441 : vector<4x4x256xf32>
    %c2_310 = arith.constant 2 : index
    %c1_311 = arith.constant 1 : index
    %c0_312 = arith.constant 0 : index
    %443 = vector.load %arg26[%c2_310, %c1_311, %c0_312] : memref<6x6x256xf32, #tpu.memory_space<vmem>>, vector<4x4x256xf32>
    %444 = vector.extract_strided_slice %408 {offsets = [2, 1, 0], sizes = [1, 1, 256], strides = [1, 1, 1]} : vector<3x3x256xf32> to vector<1x1x256xf32>
    %445 = vector.broadcast %444 : vector<1x1x256xf32> to vector<4x4x256xf32>
    %446 = arith.mulf %443, %445 : vector<4x4x256xf32>
    %447 = arith.addf %442, %446 : vector<4x4x256xf32>
    %c2_313 = arith.constant 2 : index
    %c2_314 = arith.constant 2 : index
    %c0_315 = arith.constant 0 : index
    %448 = vector.load %arg26[%c2_313, %c2_314, %c0_315] : memref<6x6x256xf32, #tpu.memory_space<vmem>>, vector<4x4x256xf32>
    %449 = vector.extract_strided_slice %408 {offsets = [2, 2, 0], sizes = [1, 1, 256], strides = [1, 1, 1]} : vector<3x3x256xf32> to vector<1x1x256xf32>
    %450 = vector.broadcast %449 : vector<1x1x256xf32> to vector<4x4x256xf32>
    %451 = arith.mulf %448, %450 : vector<4x4x256xf32>
    %452 = arith.addf %447, %451 : vector<4x4x256xf32>
    %453 = vector.extract_strided_slice %452 {offsets = [0, 0, 0], sizes = [1, 4, 256], strides = [1, 1, 1]} : vector<4x4x256xf32> to vector<1x4x256xf32>
    %454 = vector.shape_cast %453 : vector<1x4x256xf32> to vector<4x256xf32>
    %c0_316 = arith.constant 0 : index
    %c0_317 = arith.constant 0 : index
    %455 = vector.load %arg27[%c0_316, %c0_317] : memref<16x256xf32, #tpu.memory_space<vmem>>, vector<4x256xf32>
    tpu.vector_store %arg27[%c0_316, %c0_317], %454 {strides = array<i32>} : memref<16x256xf32, #tpu.memory_space<vmem>>, vector<4x256xf32>,
    %456 = vector.extract_strided_slice %452 {offsets = [1, 0, 0], sizes = [1, 4, 256], strides = [1, 1, 1]} : vector<4x4x256xf32> to vector<1x4x256xf32>
    %457 = vector.shape_cast %456 : vector<1x4x256xf32> to vector<4x256xf32>
    %c4_318 = arith.constant 4 : index
    %c0_319 = arith.constant 0 : index
    %458 = vector.load %arg27[%c4_318, %c0_319] : memref<16x256xf32, #tpu.memory_space<vmem>>, vector<4x256xf32>
    tpu.vector_store %arg27[%c4_318, %c0_319], %457 {strides = array<i32>} : memref<16x256xf32, #tpu.memory_space<vmem>>, vector<4x256xf32>,
    %459 = vector.extract_strided_slice %452 {offsets = [2, 0, 0], sizes = [1, 4, 256], strides = [1, 1, 1]} : vector<4x4x256xf32> to vector<1x4x256xf32>
    %460 = vector.shape_cast %459 : vector<1x4x256xf32> to vector<4x256xf32>
    %c8_320 = arith.constant 8 : index
    %c0_321 = arith.constant 0 : index
    %461 = vector.load %arg27[%c8_320, %c0_321] : memref<16x256xf32, #tpu.memory_space<vmem>>, vector<4x256xf32>
    tpu.vector_store %arg27[%c8_320, %c0_321], %460 {strides = array<i32>} : memref<16x256xf32, #tpu.memory_space<vmem>>, vector<4x256xf32>,
    %462 = vector.extract_strided_slice %452 {offsets = [3, 0, 0], sizes = [1, 4, 256], strides = [1, 1, 1]} : vector<4x4x256xf32> to vector<1x4x256xf32>
    %463 = vector.shape_cast %462 : vector<1x4x256xf32> to vector<4x256xf32>
    %c12_322 = arith.constant 12 : index
    %c0_323 = arith.constant 0 : index
    %464 = vector.load %arg27[%c12_322, %c0_323] : memref<16x256xf32, #tpu.memory_space<vmem>>, vector<4x256xf32>
    tpu.vector_store %arg27[%c12_322, %c0_323], %463 {strides = array<i32>} : memref<16x256xf32, #tpu.memory_space<vmem>>, vector<4x256xf32>,
    %c0_324 = arith.constant 0 : index
    %c0_325 = arith.constant 0 : index
    %465 = vector.load %arg27[%c0_324, %c0_325] : memref<16x256xf32, #tpu.memory_space<vmem>>, vector<16x256xf32>
    %466 = arith.truncf %465 : vector<16x256xf32> to vector<16x256xbf16>
    %c0_326 = arith.constant 0 : index
    %c0_327 = arith.constant 0 : index
    %467 = vector.load %arg18[%c0_326, %c0_327] : memref<256x512xbf16, #tpu.memory_space<vmem>>, vector<256x512xbf16>
    %cst_328 = arith.constant dense<0.000000e+00> : vector<16x512xf32>
    %468 = tpu.matmul %466, %467, %cst_328 {dimension_numbers = #tpu.dot_dimension_numbers<[1], [0], [0], [1], [0, 0, 1, 1], [], []>} : vector<16x256xbf16>, vector<256x512xbf16>, vector<16x512xf32> -> vector<16x512xf32>
    %c0_329 = arith.constant 0 : index
    %c0_330 = arith.constant 0 : index
    %469 = vector.load %arg19[%c0_329, %c0_330] : memref<1x512xf32, #tpu.memory_space<vmem>>, vector<1x512xf32>
    %470 = vector.broadcast %469 : vector<1x512xf32> to vector<16x512xf32>
    %471 = arith.mulf %468, %470 : vector<16x512xf32>
    %c0_331 = arith.constant 0 : index
    %c0_332 = arith.constant 0 : index
    %472 = vector.load %arg20[%c0_331, %c0_332] : memref<1x512xf32, #tpu.memory_space<vmem>>, vector<1x512xf32>
    %473 = vector.broadcast %472 : vector<1x512xf32> to vector<16x512xf32>
    %474 = arith.addf %471, %473 : vector<16x512xf32>
    %cst_333 = arith.constant 0.000000e+00 : f32
    %475 = vector.broadcast %cst_333 : f32 to vector<16x512xf32>
    %476 = arith.maximumf %474, %475 : vector<16x512xf32>
    %cst_334 = arith.constant dense<0.000000e+00> : vector<512xf32>
    %477 = vector.multi_reduction <add>, %476, %cst_334 [0] : vector<16x512xf32> to vector<512xf32>
    %478 = vector.shape_cast %477 : vector<512xf32> to vector<1x512xf32>
    %cst_335 = arith.constant 1.600000e+01 : f32
    %479 = vector.broadcast %cst_335 : f32 to vector<1x512xf32>
    %480 = arith.divf %478, %479 : vector<1x512xf32>
    %c0_336 = arith.constant 0 : index
    %c0_337 = arith.constant 0 : index
    %c0_338 = arith.constant 0 : index
    %481 = vector.load %arg24[%c0_336, %c0_337, %c0_338] : memref<1x1x512xf32, #tpu.memory_space<vmem>>, vector<1x1x512xf32>
    %482 = vector.shape_cast %481 : vector<1x1x512xf32> to vector<1x512xf32>
    %483 = vector.shape_cast %480 : vector<1x512xf32> to vector<1x1x512xf32>
    tpu.vector_store %arg24[%c0_336, %c0_337, %c0_338], %483 {strides = array<i32>} : memref<1x1x512xf32, #tpu.memory_space<vmem>>, vector<1x1x512xf32>,
    %484 = arith.truncf %480 : vector<1x512xf32> to vector<1x512xbf16>
    %c0_339 = arith.constant 0 : index
    %c0_340 = arith.constant 0 : index
    %485 = vector.load %arg21[%c0_339, %c0_340] : memref<512x128xbf16, #tpu.memory_space<vmem>>, vector<512x128xbf16>
    %cst_341 = arith.constant dense<0.000000e+00> : vector<1x128xf32>
    %486 = tpu.matmul %484, %485, %cst_341 {dimension_numbers = #tpu.dot_dimension_numbers<[1], [0], [0], [1], [0, 0, 1, 1], [], []>} : vector<1x512xbf16>, vector<512x128xbf16>, vector<1x128xf32> -> vector<1x128xf32>
    %c0_342 = arith.constant 0 : index
    %c0_343 = arith.constant 0 : index
    %487 = vector.load %arg22[%c0_342, %c0_343] : memref<1x128xf32, #tpu.memory_space<vmem>>, vector<1x128xf32>
    %488 = arith.addf %486, %487 : vector<1x128xf32>
    %c0_344 = arith.constant 0 : index
    %c0_345 = arith.constant 0 : index
    %c0_346 = arith.constant 0 : index
    %489 = vector.load %arg23[%c0_344, %c0_345, %c0_346] : memref<1x1x128xf32, #tpu.memory_space<vmem>>, vector<1x1x128xf32>
    %490 = vector.shape_cast %489 : vector<1x1x128xf32> to vector<1x128xf32>
    %491 = vector.shape_cast %488 : vector<1x128xf32> to vector<1x1x128xf32>
    tpu.vector_store %arg23[%c0_344, %c0_345, %c0_346], %491 {strides = array<i32>} : memref<1x1x128xf32, #tpu.memory_space<vmem>>, vector<1x1x128xf32>,
    return
  }
  func.func @transform_0(%arg0: i32) -> (i32, i32, i32, i32) {
    %c0_i32 = arith.constant 0 : i32
    %c0_i32_0 = arith.constant 0 : i32
    %c0_i32_1 = arith.constant 0 : i32
    %c0_i32_2 = arith.constant 0 : i32
    return %arg0, %c0_i32, %c0_i32_0, %c0_i32_1 : i32, i32, i32, i32
  }
  func.func @transform_1(%arg0: i32) -> (i32, i32, i32) {
    %c0_i32 = arith.constant 0 : i32
    %c0_i32_0 = arith.constant 0 : i32
    %c0_i32_1 = arith.constant 0 : i32
    %c0_i32_2 = arith.constant 0 : i32
    return %c0_i32, %c0_i32_0, %c0_i32_1 : i32, i32, i32
  }
  func.func @transform_2(%arg0: i32) -> (i32, i32) {
    %c0_i32 = arith.constant 0 : i32
    %c0_i32_0 = arith.constant 0 : i32
    %c0_i32_1 = arith.constant 0 : i32
    return %c0_i32, %c0_i32_0 : i32, i32
  }
  func.func @transform_3(%arg0: i32) -> (i32, i32) {
    %c0_i32 = arith.constant 0 : i32
    %c0_i32_0 = arith.constant 0 : i32
    %c0_i32_1 = arith.constant 0 : i32
    return %c0_i32, %c0_i32_0 : i32, i32
  }
  func.func @transform_4(%arg0: i32) -> (i32, i32) {
    %c0_i32 = arith.constant 0 : i32
    %c0_i32_0 = arith.constant 0 : i32
    %c0_i32_1 = arith.constant 0 : i32
    return %c0_i32, %c0_i32_0 : i32, i32
  }
  func.func @transform_5(%arg0: i32) -> (i32, i32, i32) {
    %c0_i32 = arith.constant 0 : i32
    %c0_i32_0 = arith.constant 0 : i32
    %c0_i32_1 = arith.constant 0 : i32
    %c0_i32_2 = arith.constant 0 : i32
    return %c0_i32, %c0_i32_0, %c0_i32_1 : i32, i32, i32
  }
  func.func @transform_6(%arg0: i32) -> (i32, i32) {
    %c0_i32 = arith.constant 0 : i32
    %c0_i32_0 = arith.constant 0 : i32
    %c0_i32_1 = arith.constant 0 : i32
    return %c0_i32, %c0_i32_0 : i32, i32
  }
  func.func @transform_7(%arg0: i32) -> (i32, i32) {
    %c0_i32 = arith.constant 0 : i32
    %c0_i32_0 = arith.constant 0 : i32
    %c0_i32_1 = arith.constant 0 : i32
    return %c0_i32, %c0_i32_0 : i32, i32
  }
  func.func @transform_8(%arg0: i32) -> (i32, i32) {
    %c0_i32 = arith.constant 0 : i32
    %c0_i32_0 = arith.constant 0 : i32
    %c0_i32_1 = arith.constant 0 : i32
    return %c0_i32, %c0_i32_0 : i32, i32
  }
  func.func @transform_9(%arg0: i32) -> (i32, i32) {
    %c0_i32 = arith.constant 0 : i32
    %c0_i32_0 = arith.constant 0 : i32
    %c0_i32_1 = arith.constant 0 : i32
    return %c0_i32, %c0_i32_0 : i32, i32
  }
  func.func @transform_10(%arg0: i32) -> (i32, i32) {
    %c0_i32 = arith.constant 0 : i32
    %c0_i32_0 = arith.constant 0 : i32
    %c0_i32_1 = arith.constant 0 : i32
    return %c0_i32, %c0_i32_0 : i32, i32
  }
  func.func @transform_11(%arg0: i32) -> (i32, i32) {
    %c0_i32 = arith.constant 0 : i32
    %c0_i32_0 = arith.constant 0 : i32
    %c0_i32_1 = arith.constant 0 : i32
    return %c0_i32, %c0_i32_0 : i32, i32
  }
  func.func @transform_12(%arg0: i32) -> (i32, i32, i32) {
    %c0_i32 = arith.constant 0 : i32
    %c0_i32_0 = arith.constant 0 : i32
    %c0_i32_1 = arith.constant 0 : i32
    %c0_i32_2 = arith.constant 0 : i32
    return %c0_i32, %c0_i32_0, %c0_i32_1 : i32, i32, i32
  }
  func.func @transform_13(%arg0: i32) -> (i32, i32) {
    %c0_i32 = arith.constant 0 : i32
    %c0_i32_0 = arith.constant 0 : i32
    %c0_i32_1 = arith.constant 0 : i32
    return %c0_i32, %c0_i32_0 : i32, i32
  }
  func.func @transform_14(%arg0: i32) -> (i32, i32) {
    %c0_i32 = arith.constant 0 : i32
    %c0_i32_0 = arith.constant 0 : i32
    %c0_i32_1 = arith.constant 0 : i32
    return %c0_i32, %c0_i32_0 : i32, i32
  }
  func.func @transform_15(%arg0: i32) -> (i32, i32) {
    %c0_i32 = arith.constant 0 : i32
    %c0_i32_0 = arith.constant 0 : i32
    %c0_i32_1 = arith.constant 0 : i32
    return %c0_i32, %c0_i32_0 : i32, i32
  }
  func.func @transform_16(%arg0: i32) -> (i32, i32, i32) {
    %c0_i32 = arith.constant 0 : i32
    %c0_i32_0 = arith.constant 0 : i32
    %c0_i32_1 = arith.constant 0 : i32
    %c0_i32_2 = arith.constant 0 : i32
    return %c0_i32, %c0_i32_0, %c0_i32_1 : i32, i32, i32
  }
  func.func @transform_17(%arg0: i32) -> (i32, i32) {
    %c0_i32 = arith.constant 0 : i32
    %c0_i32_0 = arith.constant 0 : i32
    %c0_i32_1 = arith.constant 0 : i32
    return %c0_i32, %c0_i32_0 : i32, i32
  }
  func.func @transform_18(%arg0: i32) -> (i32, i32) {
    %c0_i32 = arith.constant 0 : i32
    %c0_i32_0 = arith.constant 0 : i32
    %c0_i32_1 = arith.constant 0 : i32
    return %c0_i32, %c0_i32_0 : i32, i32
  }
  func.func @transform_19(%arg0: i32) -> (i32, i32) {
    %c0_i32 = arith.constant 0 : i32
    %c0_i32_0 = arith.constant 0 : i32
    %c0_i32_1 = arith.constant 0 : i32
    return %c0_i32, %c0_i32_0 : i32, i32
  }
  func.func @transform_20(%arg0: i32) -> (i32, i32) {
    %c0_i32 = arith.constant 0 : i32
    %c0_i32_0 = arith.constant 0 : i32
    %c0_i32_1 = arith.constant 0 : i32
    return %c0_i32, %c0_i32_0 : i32, i32
  }
  func.func @transform_21(%arg0: i32) -> (i32, i32) {
    %c0_i32 = arith.constant 0 : i32
    %c0_i32_0 = arith.constant 0 : i32
    %c0_i32_1 = arith.constant 0 : i32
    return %c0_i32, %c0_i32_0 : i32, i32
  }
  func.func @transform_22(%arg0: i32) -> (i32, i32, i32) {
    %c0_i32 = arith.constant 0 : i32
    %c0_i32_0 = arith.constant 0 : i32
    %c0_i32_1 = arith.constant 0 : i32
    return %arg0, %c0_i32, %c0_i32_0 : i32, i32, i32
  }
  func.func @transform_23(%arg0: i32) -> (i32, i32, i32) {
    %c0_i32 = arith.constant 0 : i32
    %c0_i32_0 = arith.constant 0 : i32
    %c0_i32_1 = arith.constant 0 : i32
    return %arg0, %c0_i32, %c0_i32_0 : i32, i32, i32
  }
}

</mosaic_0001>

<llo_original>
// kernel: resnet_attention3_forward.1
$region0: #{resnet_attention3_forward.1}
  #allocation0 [shape = 'u32[]', space=smem, size = 0x4, offset = 0x4, fixed_abs, tag = 'smem constant byte address 0x4 - core index']
  #allocation1 [shape = 'u32[144,128]{1,0:T(1,128)}', space=vmem, size = 0x12000, scoped, tag = 'internal scratch']
  #allocation2 [shape = 'f32[10,10,256]{2,1,0:T(8,128)}', space=vmem, size = 0x28000, scoped, tag = 'scratch operand']
  #allocation3 [shape = 'f32[6,6,256]{2,1,0:T(8,128)}', space=vmem, size = 0xc000, scoped, tag = 'scratch operand']
  #allocation4 [shape = 'f32[16,256]{1,0:T(8,128)}', space=vmem, size = 0x4000, scoped, tag = 'scratch operand']
  %s0 = inlined_call_operand.hbm [shape: f32[2,8,8,256], index: 0, kind: input, shape index: {}]
  %s1 = inlined_call_operand.vmem [shape: f32[3,3,256], index: 1, kind: input, shape index: {}]
  %s2 = inlined_call_operand.hbm [shape: bf16[256,256], index: 2, kind: input, shape index: {}]
  %s3 = inlined_call_operand.hbm [shape: f32[1,256], index: 3, kind: input, shape index: {}]
  %s4 = inlined_call_operand.hbm [shape: f32[1,256], index: 4, kind: input, shape index: {}]
  %s5 = inlined_call_operand.vmem [shape: f32[3,3,256], index: 5, kind: input, shape index: {}]
  %s6 = inlined_call_operand.hbm [shape: bf16[256,256], index: 6, kind: input, shape index: {}]
  %s7 = inlined_call_operand.hbm [shape: f32[1,256], index: 7, kind: input, shape index: {}]
  %s8 = inlined_call_operand.hbm [shape: f32[1,256], index: 8, kind: input, shape index: {}]
  %s9 = inlined_call_operand.hbm [shape: f32[1,256], index: 9, kind: input, shape index: {}]
  %s10 = inlined_call_operand.hbm [shape: f32[1,256], index: 10, kind: input, shape index: {}]
  %s11 = inlined_call_operand.vmem [shape: f32[64,16], index: 11, kind: input, shape index: {}]
  %s12 = inlined_call_operand.vmem [shape: f32[3,3,256], index: 12, kind: input, shape index: {}]
  %s13 = inlined_call_operand.hbm [shape: bf16[256,256], index: 13, kind: input, shape index: {}]
  %s14 = inlined_call_operand.vmem [shape: f32[1,256], index: 14, kind: input, shape index: {}]
  %s15 = inlined_call_operand.vmem [shape: f32[1,256], index: 15, kind: input, shape index: {}]
  %s16 = inlined_call_operand.vmem [shape: f32[3,3,256], index: 16, kind: input, shape index: {}]
  %s17 = inlined_call_operand.hbm [shape: bf16[256,512], index: 17, kind: input, shape index: {}]
  %s18 = inlined_call_operand.vmem [shape: f32[1,512], index: 18, kind: input, shape index: {}]
  %s19 = inlined_call_operand.vmem [shape: f32[1,512], index: 19, kind: input, shape index: {}]
  %s20 = inlined_call_operand.hbm [shape: bf16[512,128], index: 20, kind: input, shape index: {}]
  %s21 = inlined_call_operand.vmem [shape: f32[1,128], index: 21, kind: input, shape index: {}]
  %s22 = inlined_call_operand.hbm [shape: f32[2,1,128], index: 22, kind: output, shape index: {0}]
  %s23 = inlined_call_operand.vmem [shape: f32[2,1,512], index: 23, kind: output, shape index: {1}]
  %24 = xla_tuple %s22, %s23
  %s25 = sld [smem:[#allocation0]]
  $region177: #{resnet_attention3_forward.1} parent=0
    _
  %s27 = ssub.s32 1, %s25
  %s28 = scalar_select 0, %s27, %s25
  $region1: #{resnet_attention3_forward.1} parent=0
    #allocation5 [shape = 'u8[131072]{0}', space=vmem, size = 0x20000, scoped, tag = 'input window, operand 0']
    #allocation6 [shape = 's32[2]{0}', space=sflag, size = 0x8, scoped, tag = 'scoped memory for resnet_attention3_forward.1']
    #allocation7 [shape = 's32[2]{0}', space=sflag, size = 0x8, scoped, tag = 'scoped memory for resnet_attention3_forward.1']
    #allocation8 [shape = 'u8[131072]{0}', space=vmem, size = 0x20000, scoped, tag = 'input window, operand 2, single buffered']
    #allocation9 [shape = 's32[1]{0}', space=sflag, size = 0x4, scoped, tag = 'scoped memory for resnet_attention3_forward.1']
    #allocation10 [shape = 'u8[1024]{0}', space=vmem, size = 0x400, scoped, tag = 'input window, operand 3, single buffered']
    #allocation11 [shape = 'u8[1024]{0}', space=vmem, size = 0x400, scoped, tag = 'input window, operand 4, single buffered']
    #allocation12 [shape = 's32[1]{0}', space=sflag, size = 0x4, scoped, tag = 'scoped memory for resnet_attention3_forward.1']
    #allocation13 [shape = 'u8[131072]{0}', space=vmem, size = 0x20000, scoped, tag = 'input window, operand 6, single buffered']
    #allocation14 [shape = 'u8[1024]{0}', space=vmem, size = 0x400, scoped, tag = 'input window, operand 7, single buffered']
    #allocation15 [shape = 's32[1]{0}', space=sflag, size = 0x4, scoped, tag = 'scoped memory for resnet_attention3_forward.1']
    #allocation16 [shape = 'u8[1024]{0}', space=vmem, size = 0x400, scoped, tag = 'input window, operand 8, single buffered']
    #allocation17 [shape = 'u8[1024]{0}', space=vmem, size = 0x400, scoped, tag = 'input window, operand 9, single buffered']
    #allocation18 [shape = 's32[1]{0}', space=sflag, size = 0x4, scoped, tag = 'scoped memory for resnet_attention3_forward.1']
    #allocation19 [shape = 'u8[1024]{0}', space=vmem, size = 0x400, scoped, tag = 'input window, operand 10, single buffered']
    #allocation20 [shape = 'u8[131072]{0}', space=vmem, size = 0x20000, scoped, tag = 'input window, operand 13, single buffered']
    #allocation21 [shape = 's32[1]{0}', space=sflag, size = 0x4, scoped, tag = 'scoped memory for resnet_attention3_forward.1']
    #allocation22 [shape = 'u8[262144]{0}', space=vmem, size = 0x40000, scoped, tag = 'input window, operand 17, single buffered']
    #allocation23 [shape = 'u8[131072]{0}', space=vmem, size = 0x20000, scoped, tag = 'input window, operand 20, single buffered']
    #allocation24 [shape = 's32[1]{0}', space=sflag, size = 0x4, scoped, tag = 'scoped memory for resnet_attention3_forward.1']
    #allocation25 [shape = 'u8[1024]{0}', space=vmem, size = 0x400, scoped, tag = 'output window, operand 0']
    %29 = vsyncpa [#allocation6], 0
    %s30 = scalar_lea.sflag [#allocation6], 1
    %31 = vsyncpa %s30, 0
    %32 = vsyncpa [#allocation9], 0
    %33 = vsyncpa [#allocation12], 0
    %34 = vsyncpa [#allocation15], 0
    %35 = vsyncpa [#allocation18], 0
    %36 = vsyncpa [#allocation21], 0
    %37 = vsyncpa [#allocation24], 0
    %38 = vsyncpa [#allocation7], 0
    %s39 = scalar_lea.sflag [#allocation7], 1
    %40 = vsyncpa %s39, 0
    loop: start=0, step=1, limit=4
    $region2: #{resnet_attention3_forward.1} parent=1 // loop_pre_header
      _
    $region3: #{resnet_attention3_forward.1} parent=1 // loop_header
      %s42 = sphi 0, %s46
      %p43 = scmp.ge.s32.totalorder %s42, 4
      %s52 = sphi 0, %s54
      %s55 = sphi 0, %s52
      %s56 = sphi 0, %s55
      %s72 = sphi 0, %s56
      %s76 = sphi 0, %s76
      %s78 = sphi 0, %s76
      %s79 = sphi 0, %s78
      %s93 = sphi 0, %s79
      %s97 = sphi 0, %s97
      %s99 = sphi 0, %s97
      %s100 = sphi 0, %s99
      %s114 = sphi 0, %s100
      %s118 = sphi 0, %s118
      %s120 = sphi 0, %s118
      %s121 = sphi 0, %s120
      %s135 = sphi 0, %s121
      %s139 = sphi 0, %s139
      %s141 = sphi 0, %s139
      %s142 = sphi 0, %s141
      %s156 = sphi 0, %s142
      %s160 = sphi 0, %s160
      %s162 = sphi 0, %s160
      %s163 = sphi 0, %s162
      %s177 = sphi 0, %s163
      %s181 = sphi 0, %s181
      %s183 = sphi 0, %s181
      %s184 = sphi 0, %s183
      %s198 = sphi 0, %s184
      %s202 = sphi 0, %s202
      %s204 = sphi 0, %s202
      %s205 = sphi 0, %s204
      %s219 = sphi 0, %s205
      %s223 = sphi 0, %s223
      %s225 = sphi 0, %s223
      %s226 = sphi 0, %s225
      %s240 = sphi 0, %s226
      %s244 = sphi 0, %s244
      %s246 = sphi 0, %s244
      %s247 = sphi 0, %s246
      %s261 = sphi 0, %s247
      %s265 = sphi 0, %s265
      %s267 = sphi 0, %s265
      %s268 = sphi 0, %s267
      %s282 = sphi 0, %s268
      %s286 = sphi 0, %s286
      %s288 = sphi 0, %s286
      %s289 = sphi 0, %s288
      %s303 = sphi 0, %s289
      %s307 = sphi 0, %s307
      %s309 = sphi 0, %s307
      %s310 = sphi 0, %s309
      %s324 = sphi 0, %s310
      %s328 = sphi 0, %s328
      %s330 = sphi 0, %s328
      %s331 = sphi 0, %s330
      %s345 = sphi 0, %s331
      %s349 = sphi 0, %s349
      %s351 = sphi 0, %s349
      %s352 = sphi 0, %s351
      %s366 = sphi 0, %s352
      %s370 = sphi 0, %s370
      %s372 = sphi 0, %s370
      %s373 = sphi 0, %s372
      %s387 = sphi 0, %s373
      %s391 = sphi 0, %s391
      %s393 = sphi 0, %s391
      %s394 = sphi 0, %s393
      %s408 = sphi 0, %s394
      %s412 = sphi 0, %s412
      %s414 = sphi 0, %s412
      %s415 = sphi 0, %s414
      %s429 = sphi 0, %s415
      %s433 = sphi 0, %s433
      %s435 = sphi 0, %s433
      %s436 = sphi 0, %s435
      %s450 = sphi 0, %s436
      %s454 = sphi 0, %s454
      %s456 = sphi 0, %s454
      %s457 = sphi 0, %s456
      %s471 = sphi 0, %s457
      %s475 = sphi 0, %s475
      %s477 = sphi 0, %s475
      %s478 = sphi 0, %s477
      %s492 = sphi 0, %s478
      %s496 = sphi 0, %s496
      %s498 = sphi 0, %s496
      %s499 = sphi 0, %s498
      %s513 = sphi 0, %s499
      %s519 = sphi 0, %s521
      %s522 = sphi 0, %s519
      %s523 = sphi 0, %s522
      %s539 = sphi 0, %s523
      %s545 = sphi 0, %s547
      %s548 = sphi 0, %s545
      %s549 = sphi 0, %s548
      %s565 = sphi 0, %s549
    $region4: #{resnet_attention3_forward.1} parent=1 // loop_header_branch
      %45 = sbr.rel (%p43) target = $region8
    $region5: #{resnet_attention3_forward.1} parent=1 // loop_body
      %s47 = ssub.s32 %s42, 1
      %s48 = ssub.s32 %s42, 2
      %s49 = sadd.s32 %s42, 1
      %s50 = ssub.s32 %s42, %s49
      %p51 = scmp.eq.s32.totalorder %s50, 0
      %s53 = sadd.s32 %s52, 1
      %s54 = scalar_select %p51, %s52, %s53
      %p57 = pneg %p51
      %p58 = scmp.eq.s32.totalorder %s42, 1
      %p59 = por %p57, %p58
      %p60 = scmp.ne.s32.totalorder %s52, %s55
      %p61 = scmp.eq.s32.totalorder %s42, 0
      %p62 = por %p60, %p61
      %p63 = scmp.ne.s32.totalorder %s52, %s55
      %p64 = scmp.eq.s32.totalorder %s47, 1
      %p65 = por %p63, %p64
      %p66 = scmp.ne.s32.totalorder %s55, %s56
      %p67 = scmp.eq.s32.totalorder %s47, 0
      %p68 = por %p66, %p67
      %p69 = scmp.ne.s32.totalorder %s55, %s56
      %p70 = scmp.eq.s32.totalorder %s48, 1
      %p71 = por %p69, %p70
      %p73 = scmp.ne.s32.totalorder %s56, %s72
      %p74 = scmp.eq.s32.totalorder %s48, 0
      %p75 = por %p73, %p74
      %s77 = sadd.s32 %s76, 1
      %p80 = scmp.eq.s32.totalorder %s42, 1
      %p81 = scmp.ne.s32.totalorder %s76, %s78
      %p82 = scmp.eq.s32.totalorder %s42, 0
      %p83 = por %p81, %p82
      %p84 = scmp.ne.s32.totalorder %s76, %s78
      %p85 = scmp.eq.s32.totalorder %s47, 1
      %p86 = por %p84, %p85
      %p87 = scmp.ne.s32.totalorder %s78, %s79
      %p88 = scmp.eq.s32.totalorder %s47, 0
      %p89 = por %p87, %p88
      %p90 = scmp.ne.s32.totalorder %s78, %s79
      %p91 = scmp.eq.s32.totalorder %s48, 1
      %p92 = por %p90, %p91
      %p94 = scmp.ne.s32.totalorder %s79, %s93
      %p95 = scmp.eq.s32.totalorder %s48, 0
      %p96 = por %p94, %p95
      %s98 = sadd.s32 %s97, 1
      %p101 = scmp.eq.s32.totalorder %s42, 1
      %p102 = scmp.ne.s32.totalorder %s97, %s99
      %p103 = scmp.eq.s32.totalorder %s42, 0
      %p104 = por %p102, %p103
      %p105 = scmp.ne.s32.totalorder %s97, %s99
      %p106 = scmp.eq.s32.totalorder %s47, 1
      %p107 = por %p105, %p106
      %p108 = scmp.ne.s32.totalorder %s99, %s100
      %p109 = scmp.eq.s32.totalorder %s47, 0
      %p110 = por %p108, %p109
      %p111 = scmp.ne.s32.totalorder %s99, %s100
      %p112 = scmp.eq.s32.totalorder %s48, 1
      %p113 = por %p111, %p112
      %p115 = scmp.ne.s32.totalorder %s100, %s114
      %p116 = scmp.eq.s32.totalorder %s48, 0
      %p117 = por %p115, %p116
      %s119 = sadd.s32 %s118, 1
      %p122 = scmp.eq.s32.totalorder %s42, 1
      %p123 = scmp.ne.s32.totalorder %s118, %s120
      %p124 = scmp.eq.s32.totalorder %s42, 0
      %p125 = por %p123, %p124
      %p126 = scmp.ne.s32.totalorder %s118, %s120
      %p127 = scmp.eq.s32.totalorder %s47, 1
      %p128 = por %p126, %p127
      %p129 = scmp.ne.s32.totalorder %s120, %s121
      %p130 = scmp.eq.s32.totalorder %s47, 0
      %p131 = por %p129, %p130
      %p132 = scmp.ne.s32.totalorder %s120, %s121
      %p133 = scmp.eq.s32.totalorder %s48, 1
      %p134 = por %p132, %p133
      %p136 = scmp.ne.s32.totalorder %s121, %s135
      %p137 = scmp.eq.s32.totalorder %s48, 0
      %p138 = por %p136, %p137
      %s140 = sadd.s32 %s139, 1
      %p143 = scmp.eq.s32.totalorder %s42, 1
      %p144 = scmp.ne.s32.totalorder %s139, %s141
      %p145 = scmp.eq.s32.totalorder %s42, 0
      %p146 = por %p144, %p145
      %p147 = scmp.ne.s32.totalorder %s139, %s141
      %p148 = scmp.eq.s32.totalorder %s47, 1
      %p149 = por %p147, %p148
      %p150 = scmp.ne.s32.totalorder %s141, %s142
      %p151 = scmp.eq.s32.totalorder %s47, 0
      %p152 = por %p150, %p151
      %p153 = scmp.ne.s32.totalorder %s141, %s142
      %p154 = scmp.eq.s32.totalorder %s48, 1
      %p155 = por %p153, %p154
      %p157 = scmp.ne.s32.totalorder %s142, %s156
      %p158 = scmp.eq.s32.totalorder %s48, 0
      %p159 = por %p157, %p158
      %s161 = sadd.s32 %s160, 1
      %p164 = scmp.eq.s32.totalorder %s42, 1
      %p165 = scmp.ne.s32.totalorder %s160, %s162
      %p166 = scmp.eq.s32.totalorder %s42, 0
      %p167 = por %p165, %p166
      %p168 = scmp.ne.s32.totalorder %s160, %s162
      %p169 = scmp.eq.s32.totalorder %s47, 1
      %p170 = por %p168, %p169
      %p171 = scmp.ne.s32.totalorder %s162, %s163
      %p172 = scmp.eq.s32.totalorder %s47, 0
      %p173 = por %p171, %p172
      %p174 = scmp.ne.s32.totalorder %s162, %s163
      %p175 = scmp.eq.s32.totalorder %s48, 1
      %p176 = por %p174, %p175
      %p178 = scmp.ne.s32.totalorder %s163, %s177
      %p179 = scmp.eq.s32.totalorder %s48, 0
      %p180 = por %p178, %p179
      %s182 = sadd.s32 %s181, 1
      %p185 = scmp.eq.s32.totalorder %s42, 1
      %p186 = scmp.ne.s32.totalorder %s181, %s183
      %p187 = scmp.eq.s32.totalorder %s42, 0
      %p188 = por %p186, %p187
      %p189 = scmp.ne.s32.totalorder %s181, %s183
      %p190 = scmp.eq.s32.totalorder %s47, 1
      %p191 = por %p189, %p190
      %p192 = scmp.ne.s32.totalorder %s183, %s184
      %p193 = scmp.eq.s32.totalorder %s47, 0
      %p194 = por %p192, %p193
      %p195 = scmp.ne.s32.totalorder %s183, %s184
      %p196 = scmp.eq.s32.totalorder %s48, 1
      %p197 = por %p195, %p196
      %p199 = scmp.ne.s32.totalorder %s184, %s198
      %p200 = scmp.eq.s32.totalorder %s48, 0
      %p201 = por %p199, %p200
      %s203 = sadd.s32 %s202, 1
      %p206 = scmp.eq.s32.totalorder %s42, 1
      %p207 = scmp.ne.s32.totalorder %s202, %s204
      %p208 = scmp.eq.s32.totalorder %s42, 0
      %p209 = por %p207, %p208
      %p210 = scmp.ne.s32.totalorder %s202, %s204
      %p211 = scmp.eq.s32.totalorder %s47, 1
      %p212 = por %p210, %p211
      %p213 = scmp.ne.s32.totalorder %s204, %s205
      %p214 = scmp.eq.s32.totalorder %s47, 0
      %p215 = por %p213, %p214
      %p216 = scmp.ne.s32.totalorder %s204, %s205
      %p217 = scmp.eq.s32.totalorder %s48, 1
      %p218 = por %p216, %p217
      %p220 = scmp.ne.s32.totalorder %s205, %s219
      %p221 = scmp.eq.s32.totalorder %s48, 0
      %p222 = por %p220, %p221
      %s224 = sadd.s32 %s223, 1
      %p227 = scmp.eq.s32.totalorder %s42, 1
      %p228 = scmp.ne.s32.totalorder %s223, %s225
      %p229 = scmp.eq.s32.totalorder %s42, 0
      %p230 = por %p228, %p229
      %p231 = scmp.ne.s32.totalorder %s223, %s225
      %p232 = scmp.eq.s32.totalorder %s47, 1
      %p233 = por %p231, %p232
      %p234 = scmp.ne.s32.totalorder %s225, %s226
      %p235 = scmp.eq.s32.totalorder %s47, 0
      %p236 = por %p234, %p235
      %p237 = scmp.ne.s32.totalorder %s225, %s226
      %p238 = scmp.eq.s32.totalorder %s48, 1
      %p239 = por %p237, %p238
      %p241 = scmp.ne.s32.totalorder %s226, %s240
      %p242 = scmp.eq.s32.totalorder %s48, 0
      %p243 = por %p241, %p242
      %s245 = sadd.s32 %s244, 1
      %p248 = scmp.eq.s32.totalorder %s42, 1
      %p249 = scmp.ne.s32.totalorder %s244, %s246
      %p250 = scmp.eq.s32.totalorder %s42, 0
      %p251 = por %p249, %p250
      %p252 = scmp.ne.s32.totalorder %s244, %s246
      %p253 = scmp.eq.s32.totalorder %s47, 1
      %p254 = por %p252, %p253
      %p255 = scmp.ne.s32.totalorder %s246, %s247
      %p256 = scmp.eq.s32.totalorder %s47, 0
      %p257 = por %p255, %p256
      %p258 = scmp.ne.s32.totalorder %s246, %s247
      %p259 = scmp.eq.s32.totalorder %s48, 1
      %p260 = por %p258, %p259
      %p262 = scmp.ne.s32.totalorder %s247, %s261
      %p263 = scmp.eq.s32.totalorder %s48, 0
      %p264 = por %p262, %p263
      %s266 = sadd.s32 %s265, 1
      %p269 = scmp.eq.s32.totalorder %s42, 1
      %p270 = scmp.ne.s32.totalorder %s265, %s267
      %p271 = scmp.eq.s32.totalorder %s42, 0
      %p272 = por %p270, %p271
      %p273 = scmp.ne.s32.totalorder %s265, %s267
      %p274 = scmp.eq.s32.totalorder %s47, 1
      %p275 = por %p273, %p274
      %p276 = scmp.ne.s32.totalorder %s267, %s268
      %p277 = scmp.eq.s32.totalorder %s47, 0
      %p278 = por %p276, %p277
      %p279 = scmp.ne.s32.totalorder %s267, %s268
      %p280 = scmp.eq.s32.totalorder %s48, 1
      %p281 = por %p279, %p280
      %p283 = scmp.ne.s32.totalorder %s268, %s282
      %p284 = scmp.eq.s32.totalorder %s48, 0
      %p285 = por %p283, %p284
      %s287 = sadd.s32 %s286, 1
      %p290 = scmp.eq.s32.totalorder %s42, 1
      %p291 = scmp.ne.s32.totalorder %s286, %s288
      %p292 = scmp.eq.s32.totalorder %s42, 0
      %p293 = por %p291, %p292
      %p294 = scmp.ne.s32.totalorder %s286, %s288
      %p295 = scmp.eq.s32.totalorder %s47, 1
      %p296 = por %p294, %p295
      %p297 = scmp.ne.s32.totalorder %s288, %s289
      %p298 = scmp.eq.s32.totalorder %s47, 0
      %p299 = por %p297, %p298
      %p300 = scmp.ne.s32.totalorder %s288, %s289
      %p301 = scmp.eq.s32.totalorder %s48, 1
      %p302 = por %p300, %p301
      %p304 = scmp.ne.s32.totalorder %s289, %s303
      %p305 = scmp.eq.s32.totalorder %s48, 0
      %p306 = por %p304, %p305
      %s308 = sadd.s32 %s307, 1
      %p311 = scmp.eq.s32.totalorder %s42, 1
      %p312 = scmp.ne.s32.totalorder %s307, %s309
      %p313 = scmp.eq.s32.totalorder %s42, 0
      %p314 = por %p312, %p313
      %p315 = scmp.ne.s32.totalorder %s307, %s309
      %p316 = scmp.eq.s32.totalorder %s47, 1
      %p317 = por %p315, %p316
      %p318 = scmp.ne.s32.totalorder %s309, %s310
      %p319 = scmp.eq.s32.totalorder %s47, 0
      %p320 = por %p318, %p319
      %p321 = scmp.ne.s32.totalorder %s309, %s310
      %p322 = scmp.eq.s32.totalorder %s48, 1
      %p323 = por %p321, %p322
      %p325 = scmp.ne.s32.totalorder %s310, %s324
      %p326 = scmp.eq.s32.totalorder %s48, 0
      %p327 = por %p325, %p326
      %s329 = sadd.s32 %s328, 1
      %p332 = scmp.eq.s32.totalorder %s42, 1
      %p333 = scmp.ne.s32.totalorder %s328, %s330
      %p334 = scmp.eq.s32.totalorder %s42, 0
      %p335 = por %p333, %p334
      %p336 = scmp.ne.s32.totalorder %s328, %s330
      %p337 = scmp.eq.s32.totalorder %s47, 1
      %p338 = por %p336, %p337
      %p339 = scmp.ne.s32.totalorder %s330, %s331
      %p340 = scmp.eq.s32.totalorder %s47, 0
      %p341 = por %p339, %p340
      %p342 = scmp.ne.s32.totalorder %s330, %s331
      %p343 = scmp.eq.s32.totalorder %s48, 1
      %p344 = por %p342, %p343
      %p346 = scmp.ne.s32.totalorder %s331, %s345
      %p347 = scmp.eq.s32.totalorder %s48, 0
      %p348 = por %p346, %p347
      %s350 = sadd.s32 %s349, 1
      %p353 = scmp.eq.s32.totalorder %s42, 1
      %p354 = scmp.ne.s32.totalorder %s349, %s351
      %p355 = scmp.eq.s32.totalorder %s42, 0
      %p356 = por %p354, %p355
      %p357 = scmp.ne.s32.totalorder %s349, %s351
      %p358 = scmp.eq.s32.totalorder %s47, 1
      %p359 = por %p357, %p358
      %p360 = scmp.ne.s32.totalorder %s351, %s352
      %p361 = scmp.eq.s32.totalorder %s47, 0
      %p362 = por %p360, %p361
      %p363 = scmp.ne.s32.totalorder %s351, %s352
      %p364 = scmp.eq.s32.totalorder %s48, 1
      %p365 = por %p363, %p364
      %p367 = scmp.ne.s32.totalorder %s352, %s366
      %p368 = scmp.eq.s32.totalorder %s48, 0
      %p369 = por %p367, %p368
      %s371 = sadd.s32 %s370, 1
      %p374 = scmp.eq.s32.totalorder %s42, 1
      %p375 = scmp.ne.s32.totalorder %s370, %s372
      %p376 = scmp.eq.s32.totalorder %s42, 0
      %p377 = por %p375, %p376
      %p378 = scmp.ne.s32.totalorder %s370, %s372
      %p379 = scmp.eq.s32.totalorder %s47, 1
      %p380 = por %p378, %p379
      %p381 = scmp.ne.s32.totalorder %s372, %s373
      %p382 = scmp.eq.s32.totalorder %s47, 0
      %p383 = por %p381, %p382
      %p384 = scmp.ne.s32.totalorder %s372, %s373
      %p385 = scmp.eq.s32.totalorder %s48, 1
      %p386 = por %p384, %p385
      %p388 = scmp.ne.s32.totalorder %s373, %s387
      %p389 = scmp.eq.s32.totalorder %s48, 0
      %p390 = por %p388, %p389
      %s392 = sadd.s32 %s391, 1
      %p395 = scmp.eq.s32.totalorder %s42, 1
      %p396 = scmp.ne.s32.totalorder %s391, %s393
      %p397 = scmp.eq.s32.totalorder %s42, 0
      %p398 = por %p396, %p397
      %p399 = scmp.ne.s32.totalorder %s391, %s393
      %p400 = scmp.eq.s32.totalorder %s47, 1
      %p401 = por %p399, %p400
      %p402 = scmp.ne.s32.totalorder %s393, %s394
      %p403 = scmp.eq.s32.totalorder %s47, 0
      %p404 = por %p402, %p403
      %p405 = scmp.ne.s32.totalorder %s393, %s394
      %p406 = scmp.eq.s32.totalorder %s48, 1
      %p407 = por %p405, %p406
      %p409 = scmp.ne.s32.totalorder %s394, %s408
      %p410 = scmp.eq.s32.totalorder %s48, 0
      %p411 = por %p409, %p410
      %s413 = sadd.s32 %s412, 1
      %p416 = scmp.eq.s32.totalorder %s42, 1
      %p417 = scmp.ne.s32.totalorder %s412, %s414
      %p418 = scmp.eq.s32.totalorder %s42, 0
      %p419 = por %p417, %p418
      %p420 = scmp.ne.s32.totalorder %s412, %s414
      %p421 = scmp.eq.s32.totalorder %s47, 1
      %p422 = por %p420, %p421
      %p423 = scmp.ne.s32.totalorder %s414, %s415
      %p424 = scmp.eq.s32.totalorder %s47, 0
      %p425 = por %p423, %p424
      %p426 = scmp.ne.s32.totalorder %s414, %s415
      %p427 = scmp.eq.s32.totalorder %s48, 1
      %p428 = por %p426, %p427
      %p430 = scmp.ne.s32.totalorder %s415, %s429
      %p431 = scmp.eq.s32.totalorder %s48, 0
      %p432 = por %p430, %p431
      %s434 = sadd.s32 %s433, 1
      %p437 = scmp.eq.s32.totalorder %s42, 1
      %p438 = scmp.ne.s32.totalorder %s433, %s435
      %p439 = scmp.eq.s32.totalorder %s42, 0
      %p440 = por %p438, %p439
      %p441 = scmp.ne.s32.totalorder %s433, %s435
      %p442 = scmp.eq.s32.totalorder %s47, 1
      %p443 = por %p441, %p442
      %p444 = scmp.ne.s32.totalorder %s435, %s436
      %p445 = scmp.eq.s32.totalorder %s47, 0
      %p446 = por %p444, %p445
      %p447 = scmp.ne.s32.totalorder %s435, %s436
      %p448 = scmp.eq.s32.totalorder %s48, 1
      %p449 = por %p447, %p448
      %p451 = scmp.ne.s32.totalorder %s436, %s450
      %p452 = scmp.eq.s32.totalorder %s48, 0
      %p453 = por %p451, %p452
      %s455 = sadd.s32 %s454, 1
      %p458 = scmp.eq.s32.totalorder %s42, 1
      %p459 = scmp.ne.s32.totalorder %s454, %s456
      %p460 = scmp.eq.s32.totalorder %s42, 0
      %p461 = por %p459, %p460
      %p462 = scmp.ne.s32.totalorder %s454, %s456
      %p463 = scmp.eq.s32.totalorder %s47, 1
      %p464 = por %p462, %p463
      %p465 = scmp.ne.s32.totalorder %s456, %s457
      %p466 = scmp.eq.s32.totalorder %s47, 0
      %p467 = por %p465, %p466
      %p468 = scmp.ne.s32.totalorder %s456, %s457
      %p469 = scmp.eq.s32.totalorder %s48, 1
      %p470 = por %p468, %p469
      %p472 = scmp.ne.s32.totalorder %s457, %s471
      %p473 = scmp.eq.s32.totalorder %s48, 0
      %p474 = por %p472, %p473
      %s476 = sadd.s32 %s475, 1
      %p479 = scmp.eq.s32.totalorder %s42, 1
      %p480 = scmp.ne.s32.totalorder %s475, %s477
      %p481 = scmp.eq.s32.totalorder %s42, 0
      %p482 = por %p480, %p481
      %p483 = scmp.ne.s32.totalorder %s475, %s477
      %p484 = scmp.eq.s32.totalorder %s47, 1
      %p485 = por %p483, %p484
      %p486 = scmp.ne.s32.totalorder %s477, %s478
      %p487 = scmp.eq.s32.totalorder %s47, 0
      %p488 = por %p486, %p487
      %p489 = scmp.ne.s32.totalorder %s477, %s478
      %p490 = scmp.eq.s32.totalorder %s48, 1
      %p491 = por %p489, %p490
      %p493 = scmp.ne.s32.totalorder %s478, %s492
      %p494 = scmp.eq.s32.totalorder %s48, 0
      %p495 = por %p493, %p494
      %s497 = sadd.s32 %s496, 1
      %p500 = scmp.eq.s32.totalorder %s42, 1
      %p501 = scmp.ne.s32.totalorder %s496, %s498
      %p502 = scmp.eq.s32.totalorder %s42, 0
      %p503 = por %p501, %p502
      %p504 = scmp.ne.s32.totalorder %s496, %s498
      %p505 = scmp.eq.s32.totalorder %s47, 1
      %p506 = por %p504, %p505
      %p507 = scmp.ne.s32.totalorder %s498, %s499
      %p508 = scmp.eq.s32.totalorder %s47, 0
      %p509 = por %p507, %p508
      %p510 = scmp.ne.s32.totalorder %s498, %s499
      %p511 = scmp.eq.s32.totalorder %s48, 1
      %p512 = por %p510, %p511
      %p514 = scmp.ne.s32.totalorder %s499, %s513
      %p515 = scmp.eq.s32.totalorder %s48, 0
      %p516 = por %p514, %p515
      %s517 = ssub.s32 %s42, %s49
      %p518 = scmp.eq.s32.totalorder %s517, 0
      %s520 = sadd.s32 %s519, 1
      %s521 = scalar_select %p518, %s519, %s520
      %p524 = pneg %p518
      %p525 = scmp.eq.s32.totalorder %s42, 1
      %p526 = por %p524, %p525
      %p527 = scmp.ne.s32.totalorder %s519, %s522
      %p528 = scmp.eq.s32.totalorder %s42, 0
      %p529 = por %p527, %p528
      %p530 = scmp.ne.s32.totalorder %s519, %s522
      %p531 = scmp.eq.s32.totalorder %s47, 1
      %p532 = por %p530, %p531
      %p533 = scmp.ne.s32.totalorder %s522, %s523
      %p534 = scmp.eq.s32.totalorder %s47, 0
      %p535 = por %p533, %p534
      %p536 = scmp.ne.s32.totalorder %s522, %s523
      %p537 = scmp.eq.s32.totalorder %s48, 1
      %p538 = por %p536, %p537
      %p540 = scmp.ne.s32.totalorder %s523, %s539
      %p541 = scmp.eq.s32.totalorder %s48, 0
      %p542 = por %p540, %p541
      %s543 = ssub.s32 %s42, %s49
      %p544 = scmp.eq.s32.totalorder %s543, 0
      %s546 = sadd.s32 %s545, 1
      %s547 = scalar_select %p544, %s545, %s546
      %p550 = pneg %p544
      %p551 = scmp.eq.s32.totalorder %s42, 1
      %p552 = por %p550, %p551
      %p553 = scmp.ne.s32.totalorder %s545, %s548
      %p554 = scmp.eq.s32.totalorder %s42, 0
      %p555 = por %p553, %p554
      %p556 = scmp.ne.s32.totalorder %s545, %s548
      %p557 = scmp.eq.s32.totalorder %s47, 1
      %p558 = por %p556, %p557
      %p559 = scmp.ne.s32.totalorder %s548, %s549
      %p560 = scmp.eq.s32.totalorder %s47, 0
      %p561 = por %p559, %p560
      %p562 = scmp.ne.s32.totalorder %s548, %s549
      %p563 = scmp.eq.s32.totalorder %s48, 1
      %p564 = por %p562, %p563
      %p566 = scmp.ne.s32.totalorder %s549, %s565
      %p567 = scmp.eq.s32.totalorder %s48, 0
      %p568 = por %p566, %p567
      %p569 = scmp.le.s32.totalorder 1, %s42
      %p570 = scmp.lt.s32.totalorder %s42, 3
      %p571 = pnand %p569, %p570
      %p572 = pneg %p571
      // Predicated region
      $region9: #{resnet_attention3_forward.1} parent=5 // pred_check
        _
      $region10: #{resnet_attention3_forward.1} parent=5 // pred_check_branch
        %574 = sbr.rel (%p571) target = $region12
      $region11: #{resnet_attention3_forward.1} parent=5 // pred_region
        %s575 = ssub.s32 %s42, 1
        // Predicated region
        $region13: #{resnet_attention3_forward.1} parent=11 // pred_check
          %p576 = pneg %p89
        $region14: #{resnet_attention3_forward.1} parent=11 // pred_check_branch
          %578 = sbr.rel (%p576) target = $region16
        $region15: #{resnet_attention3_forward.1} parent=11 // pred_region
          _
        $region16: #{resnet_attention3_forward.1} parent=11 // pred_fallthru
          _
        // Predicated region
        $region17: #{resnet_attention3_forward.1} parent=11 // pred_check
          %p579 = pneg %p110
        $region18: #{resnet_attention3_forward.1} parent=11 // pred_check_branch
          %581 = sbr.rel (%p579) target = $region20
        $region19: #{resnet_attention3_forward.1} parent=11 // pred_region
          %s583 = ssub.s32 4096, 4096
          %584 = vsyncadd [#allocation9], %s583
          %s585 = sshll.u32 [#allocation8], 4
          %s586 = int_to_ptr.vmem [resolvable:$true] %s585
          %591 = dma.hbm_to_vmem [thread:$0]  %s2, 4096, %s586, [#allocation9], 128, 128, 8
        $region20: #{resnet_attention3_forward.1} parent=11 // pred_fallthru
          _
        // Predicated region
        $region21: #{resnet_attention3_forward.1} parent=11 // pred_check
          %p592 = pneg %p131
        $region22: #{resnet_attention3_forward.1} parent=11 // pred_check_branch
          %594 = sbr.rel (%p592) target = $region24
        $region23: #{resnet_attention3_forward.1} parent=11 // pred_region
          %s596 = ssub.s32 32, 32
          %597 = vsyncadd [#allocation9], %s596
          %s599 = sshll.u32 [#allocation10], 4
          %s600 = int_to_ptr.vmem [resolvable:$true] %s599
          %602 = dma.hbm_to_vmem [thread:$0]  %s3, 32, %s600, [#allocation9]
        $region24: #{resnet_attention3_forward.1} parent=11 // pred_fallthru
          _
        // Predicated region
        $region25: #{resnet_attention3_forward.1} parent=11 // pred_check
          %p603 = pneg %p152
        $region26: #{resnet_attention3_forward.1} parent=11 // pred_check_branch
          %605 = sbr.rel (%p603) target = $region28
        $region27: #{resnet_attention3_forward.1} parent=11 // pred_region
          %s607 = ssub.s32 32, 32
          %608 = vsyncadd [#allocation12], %s607
          %s610 = sshll.u32 [#allocation11], 4
          %s611 = int_to_ptr.vmem [resolvable:$true] %s610
          %613 = dma.hbm_to_vmem [thread:$0]  %s4, 32, %s611, [#allocation12]
        $region28: #{resnet_attention3_forward.1} parent=11 // pred_fallthru
          _
        // Predicated region
        $region29: #{resnet_attention3_forward.1} parent=11 // pred_check
          %p614 = pneg %p173
        $region30: #{resnet_attention3_forward.1} parent=11 // pred_check_branch
          %616 = sbr.rel (%p614) target = $region32
        $region31: #{resnet_attention3_forward.1} parent=11 // pred_region
          _
        $region32: #{resnet_attention3_forward.1} parent=11 // pred_fallthru
          _
        // Predicated region
        $region33: #{resnet_attention3_forward.1} parent=11 // pred_check
          %p617 = pneg %p194
        $region34: #{resnet_attention3_forward.1} parent=11 // pred_check_branch
          %619 = sbr.rel (%p617) target = $region36
        $region35: #{resnet_attention3_forward.1} parent=11 // pred_region
          %s621 = ssub.s32 4096, 4096
          %622 = vsyncadd [#allocation12], %s621
          %s623 = sshll.u32 [#allocation13], 4
          %s624 = int_to_ptr.vmem [resolvable:$true] %s623
          %629 = dma.hbm_to_vmem [thread:$0]  %s6, 4096, %s624, [#allocation12], 128, 128, 8
        $region36: #{resnet_attention3_forward.1} parent=11 // pred_fallthru
          _
        // Predicated region
        $region37: #{resnet_attention3_forward.1} parent=11 // pred_check
          %p630 = pneg %p215
        $region38: #{resnet_attention3_forward.1} parent=11 // pred_check_branch
          %632 = sbr.rel (%p630) target = $region40
        $region39: #{resnet_attention3_forward.1} parent=11 // pred_region
          %s634 = ssub.s32 32, 32
          %635 = vsyncadd [#allocation15], %s634
          %s637 = sshll.u32 [#allocation14], 4
          %s638 = int_to_ptr.vmem [resolvable:$true] %s637
          %640 = dma.hbm_to_vmem [thread:$0]  %s7, 32, %s638, [#allocation15]
        $region40: #{resnet_attention3_forward.1} parent=11 // pred_fallthru
          _
        // Predicated region
        $region41: #{resnet_attention3_forward.1} parent=11 // pred_check
          %p641 = pneg %p236
        $region42: #{resnet_attention3_forward.1} parent=11 // pred_check_branch
          %643 = sbr.rel (%p641) target = $region44
        $region43: #{resnet_attention3_forward.1} parent=11 // pred_region
          %s645 = ssub.s32 32, 32
          %646 = vsyncadd [#allocation15], %s645
          %s648 = sshll.u32 [#allocation16], 4
          %s649 = int_to_ptr.vmem [resolvable:$true] %s648
          %651 = dma.hbm_to_vmem [thread:$0]  %s8, 32, %s649, [#allocation15]
        $region44: #{resnet_attention3_forward.1} parent=11 // pred_fallthru
          _
        // Predicated region
        $region45: #{resnet_attention3_forward.1} parent=11 // pred_check
          %p652 = pneg %p257
        $region46: #{resnet_attention3_forward.1} parent=11 // pred_check_branch
          %654 = sbr.rel (%p652) target = $region48
        $region47: #{resnet_attention3_forward.1} parent=11 // pred_region
          %s656 = ssub.s32 32, 32
          %657 = vsyncadd [#allocation18], %s656
          %s659 = sshll.u32 [#allocation17], 4
          %s660 = int_to_ptr.vmem [resolvable:$true] %s659
          %662 = dma.hbm_to_vmem [thread:$0]  %s9, 32, %s660, [#allocation18]
        $region48: #{resnet_attention3_forward.1} parent=11 // pred_fallthru
          _
        // Predicated region
        $region49: #{resnet_attention3_forward.1} parent=11 // pred_check
          %p663 = pneg %p278
        $region50: #{resnet_attention3_forward.1} parent=11 // pred_check_branch
          %665 = sbr.rel (%p663) target = $region52
        $region51: #{resnet_attention3_forward.1} parent=11 // pred_region
          %s667 = ssub.s32 32, 32
          %668 = vsyncadd [#allocation18], %s667
          %s670 = sshll.u32 [#allocation19], 4
          %s671 = int_to_ptr.vmem [resolvable:$true] %s670
          %673 = dma.hbm_to_vmem [thread:$0]  %s10, 32, %s671, [#allocation18]
        $region52: #{resnet_attention3_forward.1} parent=11 // pred_fallthru
          _
        // Predicated region
        $region53: #{resnet_attention3_forward.1} parent=11 // pred_check
          %p674 = pneg %p299
        $region54: #{resnet_attention3_forward.1} parent=11 // pred_check_branch
          %676 = sbr.rel (%p674) target = $region56
        $region55: #{resnet_attention3_forward.1} parent=11 // pred_region
          _
        $region56: #{resnet_attention3_forward.1} parent=11 // pred_fallthru
          _
        // Predicated region
        $region57: #{resnet_attention3_forward.1} parent=11 // pred_check
          %p677 = pneg %p320
        $region58: #{resnet_attention3_forward.1} parent=11 // pred_check_branch
          %679 = sbr.rel (%p677) target = $region60
        $region59: #{resnet_attention3_forward.1} parent=11 // pred_region
          _
        $region60: #{resnet_attention3_forward.1} parent=11 // pred_fallthru
          _
        // Predicated region
        $region61: #{resnet_attention3_forward.1} parent=11 // pred_check
          %p680 = pneg %p341
        $region62: #{resnet_attention3_forward.1} parent=11 // pred_check_branch
          %682 = sbr.rel (%p680) target = $region64
        $region63: #{resnet_attention3_forward.1} parent=11 // pred_region
          %s684 = ssub.s32 4096, 4096
          %685 = vsyncadd [#allocation21], %s684
          %s686 = sshll.u32 [#allocation20], 4
          %s687 = int_to_ptr.vmem [resolvable:$true] %s686
          %692 = dma.hbm_to_vmem [thread:$0]  %s13, 4096, %s687, [#allocation21], 128, 128, 8
        $region64: #{resnet_attention3_forward.1} parent=11 // pred_fallthru
          _
        // Predicated region
        $region65: #{resnet_attention3_forward.1} parent=11 // pred_check
          %p693 = pneg %p362
        $region66: #{resnet_attention3_forward.1} parent=11 // pred_check_branch
          %695 = sbr.rel (%p693) target = $region68
        $region67: #{resnet_attention3_forward.1} parent=11 // pred_region
          _
        $region68: #{resnet_attention3_forward.1} parent=11 // pred_fallthru
          _
        // Predicated region
        $region69: #{resnet_attention3_forward.1} parent=11 // pred_check
          %p696 = pneg %p383
        $region70: #{resnet_attention3_forward.1} parent=11 // pred_check_branch
          %698 = sbr.rel (%p696) target = $region72
        $region71: #{resnet_attention3_forward.1} parent=11 // pred_region
          _
        $region72: #{resnet_attention3_forward.1} parent=11 // pred_fallthru
          _
        // Predicated region
        $region73: #{resnet_attention3_forward.1} parent=11 // pred_check
          %p699 = pneg %p404
        $region74: #{resnet_attention3_forward.1} parent=11 // pred_check_branch
          %701 = sbr.rel (%p699) target = $region76
        $region75: #{resnet_attention3_forward.1} parent=11 // pred_region
          _
        $region76: #{resnet_attention3_forward.1} parent=11 // pred_fallthru
          _
        // Predicated region
        $region77: #{resnet_attention3_forward.1} parent=11 // pred_check
          %p702 = pneg %p425
        $region78: #{resnet_attention3_forward.1} parent=11 // pred_check_branch
          %704 = sbr.rel (%p702) target = $region80
        $region79: #{resnet_attention3_forward.1} parent=11 // pred_region
          %s706 = ssub.s32 8192, 8192
          %707 = vsyncadd [#allocation21], %s706
          %s708 = sshll.u32 [#allocation22], 4
          %s709 = int_to_ptr.vmem [resolvable:$true] %s708
          %714 = dma.hbm_to_vmem [thread:$0]  %s17, 8192, %s709, [#allocation21], 256, 256, 16
        $region80: #{resnet_attention3_forward.1} parent=11 // pred_fallthru
          _
        // Predicated region
        $region81: #{resnet_attention3_forward.1} parent=11 // pred_check
          %p715 = pneg %p446
        $region82: #{resnet_attention3_forward.1} parent=11 // pred_check_branch
          %717 = sbr.rel (%p715) target = $region84
        $region83: #{resnet_attention3_forward.1} parent=11 // pred_region
          _
        $region84: #{resnet_attention3_forward.1} parent=11 // pred_fallthru
          _
        // Predicated region
        $region85: #{resnet_attention3_forward.1} parent=11 // pred_check
          %p718 = pneg %p467
        $region86: #{resnet_attention3_forward.1} parent=11 // pred_check_branch
          %720 = sbr.rel (%p718) target = $region88
        $region87: #{resnet_attention3_forward.1} parent=11 // pred_region
          _
        $region88: #{resnet_attention3_forward.1} parent=11 // pred_fallthru
          _
        // Predicated region
        $region89: #{resnet_attention3_forward.1} parent=11 // pred_check
          %p721 = pneg %p488
        $region90: #{resnet_attention3_forward.1} parent=11 // pred_check_branch
          %723 = sbr.rel (%p721) target = $region92
        $region91: #{resnet_attention3_forward.1} parent=11 // pred_region
          %s725 = ssub.s32 4096, 4096
          %726 = vsyncadd [#allocation24], %s725
          %s727 = sshll.u32 [#allocation23], 4
          %s728 = int_to_ptr.vmem [resolvable:$true] %s727
          %733 = dma.hbm_to_vmem [thread:$0]  %s20, 4096, %s728, [#allocation24], 64, 64, 4
        $region92: #{resnet_attention3_forward.1} parent=11 // pred_fallthru
          _
        // Predicated region
        $region93: #{resnet_attention3_forward.1} parent=11 // pred_check
          %p734 = pneg %p509
        $region94: #{resnet_attention3_forward.1} parent=11 // pred_check_branch
          %736 = sbr.rel (%p734) target = $region96
        $region95: #{resnet_attention3_forward.1} parent=11 // pred_region
          _
        $region96: #{resnet_attention3_forward.1} parent=11 // pred_fallthru
          _
      $region12: #{resnet_attention3_forward.1} parent=5 // pred_fallthru
        _
      %p737 = scmp.lt.s32.totalorder %s42, 2
      // Predicated region
      $region97: #{resnet_attention3_forward.1} parent=5 // pred_check
        %p738 = pneg %p737
      $region98: #{resnet_attention3_forward.1} parent=5 // pred_check_branch
        %740 = sbr.rel (%p738) target = $region100
      $region99: #{resnet_attention3_forward.1} parent=5 // pred_region
        // Predicated region
        $region101: #{resnet_attention3_forward.1} parent=99 // pred_check
          %p741 = pneg %p62
        $region102: #{resnet_attention3_forward.1} parent=99 // pred_check_branch
          %743 = sbr.rel (%p741) target = $region104
        $region103: #{resnet_attention3_forward.1} parent=99 // pred_region
          %s744 = sand.u32 %s52, 1
          %s745 = scalar_lea.sflag [#allocation6], %s744
          %s746 = sand.u32 %s52, 1
          %s747 = smul.addr %s746, 128
          %s748 = scalar_lea.vmem [#allocation5], %s747
          %s750 = ssub.s32 2048, 2048
          %751 = vsyncadd %s745, %s750
          %s752 = smul.addr %s42, 16
          %s753 = smul.addr %s752, 128
          %s754 = scalar_lea.hbm %s0, %s753
          %s755 = sshll.u32 %s748, 4
          %s756 = int_to_ptr.vmem [resolvable:$true] %s755
          %761 = dma.hbm_to_vmem [thread:$0]  %s754, 2048, %s756, %s745, 256, 256, 16
        $region104: #{resnet_attention3_forward.1} parent=99 // pred_fallthru
          _
      $region100: #{resnet_attention3_forward.1} parent=5 // pred_fallthru
        _
      %p762 = scmp.le.s32.totalorder 1, %s42
      %p763 = scmp.lt.s32.totalorder %s42, 3
      %p764 = pnand %p762, %p763
      %p765 = pneg %p764
      // Predicated region
      $region105: #{resnet_attention3_forward.1} parent=5 // pred_check
        _
      $region106: #{resnet_attention3_forward.1} parent=5 // pred_check_branch
        %767 = sbr.rel (%p764) target = $region108
      $region107: #{resnet_attention3_forward.1} parent=5 // pred_region
        %s768 = ssub.s32 %s42, 1
        %s769 = sand.u32 %s55, 1
        %s770 = scalar_lea.sflag [#allocation6], %s769
        %s771 = sand.u32 %s55, 1
        %s772 = smul.addr %s771, 128
        %s773 = scalar_lea.vmem [#allocation5], %s772
        // Predicated region
        $region109: #{resnet_attention3_forward.1} parent=107 // pred_check
          %p774 = pneg %p68
        $region110: #{resnet_attention3_forward.1} parent=107 // pred_check_branch
          %776 = sbr.rel (%p774) target = $region112
        $region111: #{resnet_attention3_forward.1} parent=107 // pred_region
          %777 = dma.done %s770, 2048
        $region112: #{resnet_attention3_forward.1} parent=107 // pred_fallthru
          _
        // Predicated region
        $region113: #{resnet_attention3_forward.1} parent=107 // pred_check
          %p778 = pneg %p110
        $region114: #{resnet_attention3_forward.1} parent=107 // pred_check_branch
          %780 = sbr.rel (%p778) target = $region116
        $region115: #{resnet_attention3_forward.1} parent=107 // pred_region
          %781 = dma.done [#allocation9], 4096
        $region116: #{resnet_attention3_forward.1} parent=107 // pred_fallthru
          _
        // Predicated region
        $region117: #{resnet_attention3_forward.1} parent=107 // pred_check
          %p782 = pneg %p131
        $region118: #{resnet_attention3_forward.1} parent=107 // pred_check_branch
          %784 = sbr.rel (%p782) target = $region120
        $region119: #{resnet_attention3_forward.1} parent=107 // pred_region
          %785 = dma.done [#allocation9], 32
        $region120: #{resnet_attention3_forward.1} parent=107 // pred_fallthru
          _
        // Predicated region
        $region121: #{resnet_attention3_forward.1} parent=107 // pred_check
          %p786 = pneg %p152
        $region122: #{resnet_attention3_forward.1} parent=107 // pred_check_branch
          %788 = sbr.rel (%p786) target = $region124
        $region123: #{resnet_attention3_forward.1} parent=107 // pred_region
          %789 = dma.done [#allocation12], 32
        $region124: #{resnet_attention3_forward.1} parent=107 // pred_fallthru
          _
        // Predicated region
        $region125: #{resnet_attention3_forward.1} parent=107 // pred_check
          %p790 = pneg %p194
        $region126: #{resnet_attention3_forward.1} parent=107 // pred_check_branch
          %792 = sbr.rel (%p790) target = $region128
        $region127: #{resnet_attention3_forward.1} parent=107 // pred_region
          %793 = dma.done [#allocation12], 4096
        $region128: #{resnet_attention3_forward.1} parent=107 // pred_fallthru
          _
        // Predicated region
        $region129: #{resnet_attention3_forward.1} parent=107 // pred_check
          %p794 = pneg %p215
        $region130: #{resnet_attention3_forward.1} parent=107 // pred_check_branch
          %796 = sbr.rel (%p794) target = $region132
        $region131: #{resnet_attention3_forward.1} parent=107 // pred_region
          %797 = dma.done [#allocation15], 32
        $region132: #{resnet_attention3_forward.1} parent=107 // pred_fallthru
          _
        // Predicated region
        $region133: #{resnet_attention3_forward.1} parent=107 // pred_check
          %p798 = pneg %p236
        $region134: #{resnet_attention3_forward.1} parent=107 // pred_check_branch
          %800 = sbr.rel (%p798) target = $region136
        $region135: #{resnet_attention3_forward.1} parent=107 // pred_region
          %801 = dma.done [#allocation15], 32
        $region136: #{resnet_attention3_forward.1} parent=107 // pred_fallthru
          _
        // Predicated region
        $region137: #{resnet_attention3_forward.1} parent=107 // pred_check
          %p802 = pneg %p257
        $region138: #{resnet_attention3_forward.1} parent=107 // pred_check_branch
          %804 = sbr.rel (%p802) target = $region140
        $region139: #{resnet_attention3_forward.1} parent=107 // pred_region
          %805 = dma.done [#allocation18], 32
        $region140: #{resnet_attention3_forward.1} parent=107 // pred_fallthru
          _
        // Predicated region
        $region141: #{resnet_attention3_forward.1} parent=107 // pred_check
          %p806 = pneg %p278
        $region142: #{resnet_attention3_forward.1} parent=107 // pred_check_branch
          %808 = sbr.rel (%p806) target = $region144
        $region143: #{resnet_attention3_forward.1} parent=107 // pred_region
          %809 = dma.done [#allocation18], 32
        $region144: #{resnet_attention3_forward.1} parent=107 // pred_fallthru
          _
        // Predicated region
        $region145: #{resnet_attention3_forward.1} parent=107 // pred_check
          %p810 = pneg %p341
        $region146: #{resnet_attention3_forward.1} parent=107 // pred_check_branch
          %812 = sbr.rel (%p810) target = $region148
        $region147: #{resnet_attention3_forward.1} parent=107 // pred_region
          %813 = dma.done [#allocation21], 4096
        $region148: #{resnet_attention3_forward.1} parent=107 // pred_fallthru
          _
        // Predicated region
        $region149: #{resnet_attention3_forward.1} parent=107 // pred_check
          %p814 = pneg %p425
        $region150: #{resnet_attention3_forward.1} parent=107 // pred_check_branch
          %816 = sbr.rel (%p814) target = $region152
        $region151: #{resnet_attention3_forward.1} parent=107 // pred_region
          %817 = dma.done [#allocation21], 8192
        $region152: #{resnet_attention3_forward.1} parent=107 // pred_fallthru
          _
        // Predicated region
        $region153: #{resnet_attention3_forward.1} parent=107 // pred_check
          %p818 = pneg %p488
        $region154: #{resnet_attention3_forward.1} parent=107 // pred_check_branch
          %820 = sbr.rel (%p818) target = $region156
        $region155: #{resnet_attention3_forward.1} parent=107 // pred_region
          %821 = dma.done [#allocation24], 4096
        $region156: #{resnet_attention3_forward.1} parent=107 // pred_fallthru
          _
        %s822 = sand.u32 %s55, 1
        %s823 = scalar_lea.sflag [#allocation6], %s822
        %s824 = sand.u32 %s55, 1
        %s825 = smul.addr %s824, 128
        %s826 = scalar_lea.vmem [#allocation5], %s825
        %p827 = pneg %p68
        %p828 = pneg %p65
        %p829 = pneg %p89
        %p830 = pneg %p86
        %p831 = pneg %p110
        %p832 = pneg %p107
        %p833 = pneg %p131
        %p834 = pneg %p128
        %p835 = pneg %p152
        %p836 = pneg %p149
        %p837 = pneg %p173
        %p838 = pneg %p170
        %p839 = pneg %p194
        %p840 = pneg %p191
        %p841 = pneg %p215
        %p842 = pneg %p212
        %p843 = pneg %p236
        %p844 = pneg %p233
        %p845 = pneg %p257
        %p846 = pneg %p254
        %p847 = pneg %p278
        %p848 = pneg %p275
        %p849 = pneg %p299
        %p850 = pneg %p296
        %p851 = pneg %p320
        %p852 = pneg %p317
        %p853 = pneg %p341
        %p854 = pneg %p338
        %p855 = pneg %p362
        %p856 = pneg %p359
        %p857 = pneg %p383
        %p858 = pneg %p380
        %p859 = pneg %p404
        %p860 = pneg %p401
        %p861 = pneg %p425
        %p862 = pneg %p422
        %p863 = pneg %p446
        %p864 = pneg %p443
        %p865 = pneg %p467
        %p866 = pneg %p464
        %p867 = pneg %p488
        %p868 = pneg %p485
        %p869 = pneg %p509
        %p870 = pneg %p506
        %p871 = pneg %p535
        %p872 = pneg %p532
        %s873 = sand.u32 %s522, 1
        %s874 = scalar_lea.sflag [#allocation7], %s873
        %s875 = sand.u32 %s522, 1
        %s876 = scalar_lea.vmem [#allocation25], %s875
        %p877 = pneg %p561
        %p878 = pneg %p558
        %p879 = scmp.lt.s32.totalorder %s47, 1
        %s880 = scalar_select %p879, %s47, 1
        %s881 = smul.addr %s880, 4
        %s882 = scalar_lea.vmem %s23, %s881
        %p883 = scmp.lt.s32.totalorder %s47, 1
        %s884 = scalar_select %p883, %s47, 1
        %s885 = smul.addr %s884, 4
        %s886 = scalar_lea.vmem %s23, %s885
        %888 = vst [vmem:[#allocation2] sm:$0xff] 0.0
        %889 = vst [vmem:[#allocation2 + $0x8] sm:$0xff] 0.0
        %890 = vst [vmem:[#allocation2 + $0x10] sm:$0x3] 0.0
        %891 = vst [vmem:[#allocation2 + $0x18] sm:$0x3] 0.0
        %892 = vst [vmem:[#allocation2 + $0x20] sm:$0xff] 0.0
        %893 = vst [vmem:[#allocation2 + $0x28] sm:$0xff] 0.0
        %894 = vst [vmem:[#allocation2 + $0x30] sm:$0x3] 0.0
        %895 = vst [vmem:[#allocation2 + $0x38] sm:$0x3] 0.0
        %896 = vst [vmem:[#allocation2 + $0x40] sm:$0xff] 0.0
        %897 = vst [vmem:[#allocation2 + $0x48] sm:$0xff] 0.0
        %898 = vst [vmem:[#allocation2 + $0x50] sm:$0x3] 0.0
        %899 = vst [vmem:[#allocation2 + $0x58] sm:$0x3] 0.0
        %900 = vst [vmem:[#allocation2 + $0x60] sm:$0xff] 0.0
        %901 = vst [vmem:[#allocation2 + $0x68] sm:$0xff] 0.0
        %902 = vst [vmem:[#allocation2 + $0x70] sm:$0x3] 0.0
        %903 = vst [vmem:[#allocation2 + $0x78] sm:$0x3] 0.0
        %904 = vst [vmem:[#allocation2 + $0x80] sm:$0xff] 0.0
        %905 = vst [vmem:[#allocation2 + $0x88] sm:$0xff] 0.0
        %906 = vst [vmem:[#allocation2 + $0x90] sm:$0x3] 0.0
        %907 = vst [vmem:[#allocation2 + $0x98] sm:$0x3] 0.0
        %908 = vst [vmem:[#allocation2 + $0xa0] sm:$0xff] 0.0
        %909 = vst [vmem:[#allocation2 + $0xa8] sm:$0xff] 0.0
        %910 = vst [vmem:[#allocation2 + $0xb0] sm:$0x3] 0.0
        %911 = vst [vmem:[#allocation2 + $0xb8] sm:$0x3] 0.0
        %912 = vst [vmem:[#allocation2 + $0xc0] sm:$0xff] 0.0
        %913 = vst [vmem:[#allocation2 + $0xc8] sm:$0xff] 0.0
        %914 = vst [vmem:[#allocation2 + $0xd0] sm:$0x3] 0.0
        %915 = vst [vmem:[#allocation2 + $0xd8] sm:$0x3] 0.0
        %916 = vst [vmem:[#allocation2 + $0xe0] sm:$0xff] 0.0
        %917 = vst [vmem:[#allocation2 + $0xe8] sm:$0xff] 0.0
        %918 = vst [vmem:[#allocation2 + $0xf0] sm:$0x3] 0.0
        %919 = vst [vmem:[#allocation2 + $0xf8] sm:$0x3] 0.0
        %920 = vst [vmem:[#allocation2 + $0x100] sm:$0xff] 0.0
        %921 = vst [vmem:[#allocation2 + $0x108] sm:$0xff] 0.0
        %922 = vst [vmem:[#allocation2 + $0x110] sm:$0x3] 0.0
        %923 = vst [vmem:[#allocation2 + $0x118] sm:$0x3] 0.0
        %924 = vst [vmem:[#allocation2 + $0x120] sm:$0xff] 0.0
        %925 = vst [vmem:[#allocation2 + $0x128] sm:$0xff] 0.0
        %926 = vst [vmem:[#allocation2 + $0x130] sm:$0x3] 0.0
        %927 = vst [vmem:[#allocation2 + $0x138] sm:$0x3] 0.0
        %928 = vst [vmem:[#allocation3] sm:$0x3f] 0.0
        %929 = vst [vmem:[#allocation3 + $0x8] sm:$0x3f] 0.0
        %930 = vst [vmem:[#allocation3 + $0x10] sm:$0x3f] 0.0
        %931 = vst [vmem:[#allocation3 + $0x18] sm:$0x3f] 0.0
        %932 = vst [vmem:[#allocation3 + $0x20] sm:$0x3f] 0.0
        %933 = vst [vmem:[#allocation3 + $0x28] sm:$0x3f] 0.0
        %934 = vst [vmem:[#allocation3 + $0x30] sm:$0x3f] 0.0
        %935 = vst [vmem:[#allocation3 + $0x38] sm:$0x3f] 0.0
        %936 = vst [vmem:[#allocation3 + $0x40] sm:$0x3f] 0.0
        %937 = vst [vmem:[#allocation3 + $0x48] sm:$0x3f] 0.0
        %938 = vst [vmem:[#allocation3 + $0x50] sm:$0x3f] 0.0
        %939 = vst [vmem:[#allocation3 + $0x58] sm:$0x3f] 0.0
        %v940 = vld [vmem:[%s773] sm:$0xff]
        %v941 = vld [vmem:[%s773 + $0x8] sm:$0xff]
        %v942 = vld [vmem:[%s773 + $0x10] sm:$0xff]
        %v943 = vld [vmem:[%s773 + $0x18] sm:$0xff]
        %v944 = vld [vmem:[%s773 + $0x20] sm:$0xff]
        %v945 = vld [vmem:[%s773 + $0x28] sm:$0xff]
        %v946 = vld [vmem:[%s773 + $0x30] sm:$0xff]
        %v947 = vld [vmem:[%s773 + $0x38] sm:$0xff]
        %v948 = vld [vmem:[%s773 + $0x40] sm:$0xff]
        %v949 = vld [vmem:[%s773 + $0x48] sm:$0xff]
        %v950 = vld [vmem:[%s773 + $0x50] sm:$0xff]
        %v951 = vld [vmem:[%s773 + $0x58] sm:$0xff]
        %v952 = vld [vmem:[%s773 + $0x60] sm:$0xff]
        %v953 = vld [vmem:[%s773 + $0x68] sm:$0xff]
        %v954 = vld [vmem:[%s773 + $0x70] sm:$0xff]
        %v955 = vld [vmem:[%s773 + $0x78] sm:$0xff]
        %v972 = vrot.slane %v940, 7
        %v973 = vrot.slane %v941, 7
        %v974 = vrot.slane %v942, 7
        %v975 = vrot.slane %v943, 7
        %v976 = vrot.slane %v944, 7
        %v977 = vrot.slane %v945, 7
        %v978 = vrot.slane %v946, 7
        %v979 = vrot.slane %v947, 7
        %v980 = vrot.slane %v948, 7
        %v981 = vrot.slane %v949, 7
        %v982 = vrot.slane %v950, 7
        %v983 = vrot.slane %v951, 7
        %v984 = vrot.slane %v952, 7
        %v985 = vrot.slane %v953, 7
        %v986 = vrot.slane %v954, 7
        %v987 = vrot.slane %v955, 7
        %s1004 = scalar_lea.vmem [#allocation2], 32
        %1005 = vst [vmem:[%s1004] sm:$0xfe] %v972
        %1006 = vst [vmem:[%s1004 + $0x8] sm:$0xfe] %v973
        %1007 = vst [vmem:[%s1004 + $0x10] sm:$0x1] %v972
        %1008 = vst [vmem:[%s1004 + $0x18] sm:$0x1] %v973
        %1009 = vst [vmem:[%s1004 + $0x20] sm:$0xfe] %v974
        %1010 = vst [vmem:[%s1004 + $0x28] sm:$0xfe] %v975
        %1011 = vst [vmem:[%s1004 + $0x30] sm:$0x1] %v974
        %1012 = vst [vmem:[%s1004 + $0x38] sm:$0x1] %v975
        %1013 = vst [vmem:[%s1004 + $0x40] sm:$0xfe] %v976
        %1014 = vst [vmem:[%s1004 + $0x48] sm:$0xfe] %v977
        %1015 = vst [vmem:[%s1004 + $0x50] sm:$0x1] %v976
        %1016 = vst [vmem:[%s1004 + $0x58] sm:$0x1] %v977
        %1017 = vst [vmem:[%s1004 + $0x60] sm:$0xfe] %v978
        %1018 = vst [vmem:[%s1004 + $0x68] sm:$0xfe] %v979
        %1019 = vst [vmem:[%s1004 + $0x70] sm:$0x1] %v978
        %1020 = vst [vmem:[%s1004 + $0x78] sm:$0x1] %v979
        %1021 = vst [vmem:[%s1004 + $0x80] sm:$0xfe] %v980
        %1022 = vst [vmem:[%s1004 + $0x88] sm:$0xfe] %v981
        %1023 = vst [vmem:[%s1004 + $0x90] sm:$0x1] %v980
        %1024 = vst [vmem:[%s1004 + $0x98] sm:$0x1] %v981
        %1025 = vst [vmem:[%s1004 + $0xa0] sm:$0xfe] %v982
        %1026 = vst [vmem:[%s1004 + $0xa8] sm:$0xfe] %v983
        %1027 = vst [vmem:[%s1004 + $0xb0] sm:$0x1] %v982
        %1028 = vst [vmem:[%s1004 + $0xb8] sm:$0x1] %v983
        %1029 = vst [vmem:[%s1004 + $0xc0] sm:$0xfe] %v984
        %1030 = vst [vmem:[%s1004 + $0xc8] sm:$0xfe] %v985
        %1031 = vst [vmem:[%s1004 + $0xd0] sm:$0x1] %v984
        %1032 = vst [vmem:[%s1004 + $0xd8] sm:$0x1] %v985
        %1033 = vst [vmem:[%s1004 + $0xe0] sm:$0xfe] %v986
        %1034 = vst [vmem:[%s1004 + $0xe8] sm:$0xfe] %v987
        %1035 = vst [vmem:[%s1004 + $0xf0] sm:$0x1] %v986
        %1036 = vst [vmem:[%s1004 + $0xf8] sm:$0x1] %v987
        %v1037 = vld [vmem:[%s1] sm:$0x77]
        %v1038 = vld [vmem:[%s1 + $0x8] sm:$0x77]
        %v1039 = vld [vmem:[%s1 + $0x10] sm:$0x77]
        %v1040 = vld [vmem:[#allocation2] sm:$0xff]
        %v1041 = vld [vmem:[#allocation2 + $0x8] sm:$0xff]
        %v1042 = vld [vmem:[#allocation2 + $0x40] sm:$0xff]
        %v1043 = vld [vmem:[#allocation2 + $0x48] sm:$0xff]
        %v1044 = vld [vmem:[#allocation2 + $0x80] sm:$0xff]
        %v1045 = vld [vmem:[#allocation2 + $0x88] sm:$0xff]
        %v1046 = vld [vmem:[#allocation2 + $0xc0] sm:$0xff]
        %v1047 = vld [vmem:[#allocation2 + $0xc8] sm:$0xff]
        %v1049 = vlaneseq
        %v1050 = vshrl.u32 %v1049, 7
        %v1051 = vsub.s32 0, %v1050
        %v1052 = vrot.slane %v1037, %v1051
        %v1053 = vlaneseq
        %v1054 = vshrl.u32 %v1053, 7
        %v1055 = vsub.s32 4, %v1054
        %v1056 = vrot.slane %v1037, %v1055
        %v1059 = vlaneseq
        %v1060 = vshrl.u32 %v1059, 7
        %v1061 = vsub.s32 0, %v1060
        %v1062 = vrot.slane %v1052, %v1061
        %v1063 = vlaneseq
        %v1064 = vshrl.u32 %v1063, 7
        %v1065 = vsub.s32 0, %v1064
        %v1066 = vrot.slane %v1056, %v1065
        %v1067 = vmul.f32 %v1040, %v1062
        %v1068 = vmul.f32 %v1041, %v1066
        %v1069 = vmul.f32 %v1042, %v1062
        %v1070 = vmul.f32 %v1043, %v1066
        %v1071 = vmul.f32 %v1044, %v1062
        %v1072 = vmul.f32 %v1045, %v1066
        %v1073 = vmul.f32 %v1046, %v1062
        %v1074 = vmul.f32 %v1047, %v1066
        %v1075 = vld [vmem:[#allocation2] sm:$0xfe]
        %v1076 = vld [vmem:[#allocation2 + $0x8] sm:$0xfe]
        %v1077 = vld [vmem:[#allocation2 + $0x10] sm:$0x1]
        %v1078 = vld [vmem:[#allocation2 + $0x18] sm:$0x1]
        %v1079 = vld [vmem:[#allocation2 + $0x40] sm:$0xfe]
        %v1080 = vld [vmem:[#allocation2 + $0x48] sm:$0xfe]
        %v1081 = vld [vmem:[#allocation2 + $0x50] sm:$0x1]
        %v1082 = vld [vmem:[#allocation2 + $0x58] sm:$0x1]
        %v1083 = vld [vmem:[#allocation2 + $0x80] sm:$0xfe]
        %v1084 = vld [vmem:[#allocation2 + $0x88] sm:$0xfe]
        %v1085 = vld [vmem:[#allocation2 + $0x90] sm:$0x1]
        %v1086 = vld [vmem:[#allocation2 + $0x98] sm:$0x1]
        %v1087 = vld [vmem:[#allocation2 + $0xc0] sm:$0xfe]
        %v1088 = vld [vmem:[#allocation2 + $0xc8] sm:$0xfe]
        %v1089 = vld [vmem:[#allocation2 + $0xd0] sm:$0x1]
        %v1090 = vld [vmem:[#allocation2 + $0xd8] sm:$0x1]
        %v1091 = vlaneseq
        %v1092 = vshrl.u32 %v1091, 7
        %v1093 = vsub.s32 1, %v1092
        %v1094 = vrot.slane %v1037, %v1093
        %v1095 = vlaneseq
        %v1096 = vshrl.u32 %v1095, 7
        %v1097 = vsub.s32 5, %v1096
        %v1098 = vrot.slane %v1037, %v1097
        %v1101 = vlaneseq
        %v1102 = vshrl.u32 %v1101, 7
        %v1103 = vsub.s32 1, %v1102
        %v1104 = vrot.slane %v1094, %v1103
        %v1105 = vlaneseq
        %v1106 = vshrl.u32 %v1105, 7
        %v1107 = vsub.s32 1, %v1106
        %v1108 = vrot.slane %v1098, %v1107
        %v1109 = vmul.f32 %v1075, %v1104
        %v1110 = vmul.f32 %v1076, %v1108
        %v1111 = vmul.f32 %v1077, %v1104
        %v1112 = vmul.f32 %v1078, %v1108
        %v1113 = vmul.f32 %v1079, %v1104
        %v1114 = vmul.f32 %v1080, %v1108
        %v1115 = vmul.f32 %v1081, %v1104
        %v1116 = vmul.f32 %v1082, %v1108
        %v1117 = vmul.f32 %v1083, %v1104
        %v1118 = vmul.f32 %v1084, %v1108
        %v1119 = vmul.f32 %v1085, %v1104
        %v1120 = vmul.f32 %v1086, %v1108
        %v1121 = vmul.f32 %v1087, %v1104
        %v1122 = vmul.f32 %v1088, %v1108
        %v1123 = vmul.f32 %v1089, %v1104
        %v1124 = vmul.f32 %v1090, %v1108
        %vm1141 = vcmask 1046528
        %v1142 = vrot.slane %v1109, 1
        %v1143 = vrot.slane %v1111, 1
        %v1144 = vsel %vm1141, %v1142, %v1143
        %v1145 = vrot.slane %v1110, 1
        %v1146 = vrot.slane %v1112, 1
        %v1147 = vsel %vm1141, %v1145, %v1146
        %v1148 = vrot.slane %v1113, 1
        %v1149 = vrot.slane %v1115, 1
        %v1150 = vsel %vm1141, %v1148, %v1149
        %v1151 = vrot.slane %v1114, 1
        %v1152 = vrot.slane %v1116, 1
        %v1153 = vsel %vm1141, %v1151, %v1152
        %v1154 = vrot.slane %v1117, 1
        %v1155 = vrot.slane %v1119, 1
        %v1156 = vsel %vm1141, %v1154, %v1155
        %v1157 = vrot.slane %v1118, 1
        %v1158 = vrot.slane %v1120, 1
        %v1159 = vsel %vm1141, %v1157, %v1158
        %v1160 = vrot.slane %v1121, 1
        %v1161 = vrot.slane %v1123, 1
        %v1162 = vsel %vm1141, %v1160, %v1161
        %v1163 = vrot.slane %v1122, 1
        %v1164 = vrot.slane %v1124, 1
        %v1165 = vsel %vm1141, %v1163, %v1164
        %v1174 = vadd.f32 %v1067, %v1144
        %v1175 = vadd.f32 %v1068, %v1147
        %v1176 = vadd.f32 %v1069, %v1150
        %v1177 = vadd.f32 %v1070, %v1153
        %v1178 = vadd.f32 %v1071, %v1156
        %v1179 = vadd.f32 %v1072, %v1159
        %v1180 = vadd.f32 %v1073, %v1162
        %v1181 = vadd.f32 %v1074, %v1165
        %v1182 = vld [vmem:[#allocation2] sm:$0xfc]
        %v1183 = vld [vmem:[#allocation2 + $0x8] sm:$0xfc]
        %v1184 = vld [vmem:[#allocation2 + $0x10] sm:$0x3]
        %v1185 = vld [vmem:[#allocation2 + $0x18] sm:$0x3]
        %v1186 = vld [vmem:[#allocation2 + $0x40] sm:$0xfc]
        %v1187 = vld [vmem:[#allocation2 + $0x48] sm:$0xfc]
        %v1188 = vld [vmem:[#allocation2 + $0x50] sm:$0x3]
        %v1189 = vld [vmem:[#allocation2 + $0x58] sm:$0x3]
        %v1190 = vld [vmem:[#allocation2 + $0x80] sm:$0xfc]
        %v1191 = vld [vmem:[#allocation2 + $0x88] sm:$0xfc]
        %v1192 = vld [vmem:[#allocation2 + $0x90] sm:$0x3]
        %v1193 = vld [vmem:[#allocation2 + $0x98] sm:$0x3]
        %v1194 = vld [vmem:[#allocation2 + $0xc0] sm:$0xfc]
        %v1195 = vld [vmem:[#allocation2 + $0xc8] sm:$0xfc]
        %v1196 = vld [vmem:[#allocation2 + $0xd0] sm:$0x3]
        %v1197 = vld [vmem:[#allocation2 + $0xd8] sm:$0x3]
        %v1198 = vlaneseq
        %v1199 = vshrl.u32 %v1198, 7
        %v1200 = vsub.s32 2, %v1199
        %v1201 = vrot.slane %v1037, %v1200
        %v1202 = vlaneseq
        %v1203 = vshrl.u32 %v1202, 7
        %v1204 = vsub.s32 6, %v1203
        %v1205 = vrot.slane %v1037, %v1204
        %v1208 = vlaneseq
        %v1209 = vshrl.u32 %v1208, 7
        %v1210 = vsub.s32 2, %v1209
        %v1211 = vrot.slane %v1201, %v1210
        %v1212 = vlaneseq
        %v1213 = vshrl.u32 %v1212, 7
        %v1214 = vsub.s32 2, %v1213
        %v1215 = vrot.slane %v1205, %v1214
        %v1216 = vmul.f32 %v1182, %v1211
        %v1217 = vmul.f32 %v1183, %v1215
        %v1218 = vmul.f32 %v1184, %v1211
        %v1219 = vmul.f32 %v1185, %v1215
        %v1220 = vmul.f32 %v1186, %v1211
        %v1221 = vmul.f32 %v1187, %v1215
        %v1222 = vmul.f32 %v1188, %v1211
        %v1223 = vmul.f32 %v1189, %v1215
        %v1224 = vmul.f32 %v1190, %v1211
        %v1225 = vmul.f32 %v1191, %v1215
        %v1226 = vmul.f32 %v1192, %v1211
        %v1227 = vmul.f32 %v1193, %v1215
        %v1228 = vmul.f32 %v1194, %v1211
        %v1229 = vmul.f32 %v1195, %v1215
        %v1230 = vmul.f32 %v1196, %v1211
        %v1231 = vmul.f32 %v1197, %v1215
        %vm1248 = vcmask 1045504
        %v1249 = vrot.slane %v1216, 2
        %v1250 = vrot.slane %v1218, 2
        %v1251 = vsel %vm1248, %v1249, %v1250
        %v1252 = vrot.slane %v1217, 2
        %v1253 = vrot.slane %v1219, 2
        %v1254 = vsel %vm1248, %v1252, %v1253
        %v1255 = vrot.slane %v1220, 2
        %v1256 = vrot.slane %v1222, 2
        %v1257 = vsel %vm1248, %v1255, %v1256
        %v1258 = vrot.slane %v1221, 2
        %v1259 = vrot.slane %v1223, 2
        %v1260 = vsel %vm1248, %v1258, %v1259
        %v1261 = vrot.slane %v1224, 2
        %v1262 = vrot.slane %v1226, 2
        %v1263 = vsel %vm1248, %v1261, %v1262
        %v1264 = vrot.slane %v1225, 2
        %v1265 = vrot.slane %v1227, 2
        %v1266 = vsel %vm1248, %v1264, %v1265
        %v1267 = vrot.slane %v1228, 2
        %v1268 = vrot.slane %v1230, 2
        %v1269 = vsel %vm1248, %v1267, %v1268
        %v1270 = vrot.slane %v1229, 2
        %v1271 = vrot.slane %v1231, 2
        %v1272 = vsel %vm1248, %v1270, %v1271
        %v1281 = vadd.f32 %v1174, %v1251
        %v1282 = vadd.f32 %v1175, %v1254
        %v1283 = vadd.f32 %v1176, %v1257
        %v1284 = vadd.f32 %v1177, %v1260
        %v1285 = vadd.f32 %v1178, %v1263
        %v1286 = vadd.f32 %v1179, %v1266
        %v1287 = vadd.f32 %v1180, %v1269
        %v1288 = vadd.f32 %v1181, %v1272
        %v1289 = vld [vmem:[%s1004] sm:$0xff]
        %v1290 = vld [vmem:[%s1004 + $0x8] sm:$0xff]
        %v1291 = vld [vmem:[%s1004 + $0x40] sm:$0xff]
        %v1292 = vld [vmem:[%s1004 + $0x48] sm:$0xff]
        %v1293 = vld [vmem:[%s1004 + $0x80] sm:$0xff]
        %v1294 = vld [vmem:[%s1004 + $0x88] sm:$0xff]
        %v1295 = vld [vmem:[%s1004 + $0xc0] sm:$0xff]
        %v1296 = vld [vmem:[%s1004 + $0xc8] sm:$0xff]
        %v1298 = vlaneseq
        %v1299 = vshrl.u32 %v1298, 7
        %v1300 = vsub.s32 0, %v1299
        %v1301 = vrot.slane %v1038, %v1300
        %v1302 = vlaneseq
        %v1303 = vshrl.u32 %v1302, 7
        %v1304 = vsub.s32 4, %v1303
        %v1305 = vrot.slane %v1038, %v1304
        %v1308 = vlaneseq
        %v1309 = vshrl.u32 %v1308, 7
        %v1310 = vsub.s32 0, %v1309
        %v1311 = vrot.slane %v1301, %v1310
        %v1312 = vlaneseq
        %v1313 = vshrl.u32 %v1312, 7
        %v1314 = vsub.s32 0, %v1313
        %v1315 = vrot.slane %v1305, %v1314
        %v1316 = vmul.f32 %v1289, %v1311
        %v1317 = vmul.f32 %v1290, %v1315
        %v1318 = vmul.f32 %v1291, %v1311
        %v1319 = vmul.f32 %v1292, %v1315
        %v1320 = vmul.f32 %v1293, %v1311
        %v1321 = vmul.f32 %v1294, %v1315
        %v1322 = vmul.f32 %v1295, %v1311
        %v1323 = vmul.f32 %v1296, %v1315
        %v1324 = vadd.f32 %v1281, %v1316
        %v1325 = vadd.f32 %v1282, %v1317
        %v1326 = vadd.f32 %v1283, %v1318
        %v1327 = vadd.f32 %v1284, %v1319
        %v1328 = vadd.f32 %v1285, %v1320
        %v1329 = vadd.f32 %v1286, %v1321
        %v1330 = vadd.f32 %v1287, %v1322
        %v1331 = vadd.f32 %v1288, %v1323
        %v1332 = vld [vmem:[%s1004] sm:$0xfe]
        %v1333 = vld [vmem:[%s1004 + $0x8] sm:$0xfe]
        %v1334 = vld [vmem:[%s1004 + $0x10] sm:$0x1]
        %v1335 = vld [vmem:[%s1004 + $0x18] sm:$0x1]
        %v1336 = vld [vmem:[%s1004 + $0x40] sm:$0xfe]
        %v1337 = vld [vmem:[%s1004 + $0x48] sm:$0xfe]
        %v1338 = vld [vmem:[%s1004 + $0x50] sm:$0x1]
        %v1339 = vld [vmem:[%s1004 + $0x58] sm:$0x1]
        %v1340 = vld [vmem:[%s1004 + $0x80] sm:$0xfe]
        %v1341 = vld [vmem:[%s1004 + $0x88] sm:$0xfe]
        %v1342 = vld [vmem:[%s1004 + $0x90] sm:$0x1]
        %v1343 = vld [vmem:[%s1004 + $0x98] sm:$0x1]
        %v1344 = vld [vmem:[%s1004 + $0xc0] sm:$0xfe]
        %v1345 = vld [vmem:[%s1004 + $0xc8] sm:$0xfe]
        %v1346 = vld [vmem:[%s1004 + $0xd0] sm:$0x1]
        %v1347 = vld [vmem:[%s1004 + $0xd8] sm:$0x1]
        %v1348 = vlaneseq
        %v1349 = vshrl.u32 %v1348, 7
        %v1350 = vsub.s32 1, %v1349
        %v1351 = vrot.slane %v1038, %v1350
        %v1352 = vlaneseq
        %v1353 = vshrl.u32 %v1352, 7
        %v1354 = vsub.s32 5, %v1353
        %v1355 = vrot.slane %v1038, %v1354
        %v1358 = vlaneseq
        %v1359 = vshrl.u32 %v1358, 7
        %v1360 = vsub.s32 1, %v1359
        %v1361 = vrot.slane %v1351, %v1360
        %v1362 = vlaneseq
        %v1363 = vshrl.u32 %v1362, 7
        %v1364 = vsub.s32 1, %v1363
        %v1365 = vrot.slane %v1355, %v1364
        %v1366 = vmul.f32 %v1332, %v1361
        %v1367 = vmul.f32 %v1333, %v1365
        %v1368 = vmul.f32 %v1334, %v1361
        %v1369 = vmul.f32 %v1335, %v1365
        %v1370 = vmul.f32 %v1336, %v1361
        %v1371 = vmul.f32 %v1337, %v1365
        %v1372 = vmul.f32 %v1338, %v1361
        %v1373 = vmul.f32 %v1339, %v1365
        %v1374 = vmul.f32 %v1340, %v1361
        %v1375 = vmul.f32 %v1341, %v1365
        %v1376 = vmul.f32 %v1342, %v1361
        %v1377 = vmul.f32 %v1343, %v1365
        %v1378 = vmul.f32 %v1344, %v1361
        %v1379 = vmul.f32 %v1345, %v1365
        %v1380 = vmul.f32 %v1346, %v1361
        %v1381 = vmul.f32 %v1347, %v1365
        %v1398 = vrot.slane %v1366, 1
        %v1399 = vrot.slane %v1368, 1
        %v1400 = vsel %vm1141, %v1398, %v1399
        %v1401 = vrot.slane %v1367, 1
        %v1402 = vrot.slane %v1369, 1
        %v1403 = vsel %vm1141, %v1401, %v1402
        %v1404 = vrot.slane %v1370, 1
        %v1405 = vrot.slane %v1372, 1
        %v1406 = vsel %vm1141, %v1404, %v1405
        %v1407 = vrot.slane %v1371, 1
        %v1408 = vrot.slane %v1373, 1
        %v1409 = vsel %vm1141, %v1407, %v1408
        %v1410 = vrot.slane %v1374, 1
        %v1411 = vrot.slane %v1376, 1
        %v1412 = vsel %vm1141, %v1410, %v1411
        %v1413 = vrot.slane %v1375, 1
        %v1414 = vrot.slane %v1377, 1
        %v1415 = vsel %vm1141, %v1413, %v1414
        %v1416 = vrot.slane %v1378, 1
        %v1417 = vrot.slane %v1380, 1
        %v1418 = vsel %vm1141, %v1416, %v1417
        %v1419 = vrot.slane %v1379, 1
        %v1420 = vrot.slane %v1381, 1
        %v1421 = vsel %vm1141, %v1419, %v1420
        %v1430 = vadd.f32 %v1324, %v1400
        %v1431 = vadd.f32 %v1325, %v1403
        %v1432 = vadd.f32 %v1326, %v1406
        %v1433 = vadd.f32 %v1327, %v1409
        %v1434 = vadd.f32 %v1328, %v1412
        %v1435 = vadd.f32 %v1329, %v1415
        %v1436 = vadd.f32 %v1330, %v1418
        %v1437 = vadd.f32 %v1331, %v1421
        %v1438 = vld [vmem:[%s1004] sm:$0xfc]
        %v1439 = vld [vmem:[%s1004 + $0x8] sm:$0xfc]
        %v1440 = vld [vmem:[%s1004 + $0x10] sm:$0x3]
        %v1441 = vld [vmem:[%s1004 + $0x18] sm:$0x3]
        %v1442 = vld [vmem:[%s1004 + $0x40] sm:$0xfc]
        %v1443 = vld [vmem:[%s1004 + $0x48] sm:$0xfc]
        %v1444 = vld [vmem:[%s1004 + $0x50] sm:$0x3]
        %v1445 = vld [vmem:[%s1004 + $0x58] sm:$0x3]
        %v1446 = vld [vmem:[%s1004 + $0x80] sm:$0xfc]
        %v1447 = vld [vmem:[%s1004 + $0x88] sm:$0xfc]
        %v1448 = vld [vmem:[%s1004 + $0x90] sm:$0x3]
        %v1449 = vld [vmem:[%s1004 + $0x98] sm:$0x3]
        %v1450 = vld [vmem:[%s1004 + $0xc0] sm:$0xfc]
        %v1451 = vld [vmem:[%s1004 + $0xc8] sm:$0xfc]
        %v1452 = vld [vmem:[%s1004 + $0xd0] sm:$0x3]
        %v1453 = vld [vmem:[%s1004 + $0xd8] sm:$0x3]
        %v1454 = vlaneseq
        %v1455 = vshrl.u32 %v1454, 7
        %v1456 = vsub.s32 2, %v1455
        %v1457 = vrot.slane %v1038, %v1456
        %v1458 = vlaneseq
        %v1459 = vshrl.u32 %v1458, 7
        %v1460 = vsub.s32 6, %v1459
        %v1461 = vrot.slane %v1038, %v1460
        %v1464 = vlaneseq
        %v1465 = vshrl.u32 %v1464, 7
        %v1466 = vsub.s32 2, %v1465
        %v1467 = vrot.slane %v1457, %v1466
        %v1468 = vlaneseq
        %v1469 = vshrl.u32 %v1468, 7
        %v1470 = vsub.s32 2, %v1469
        %v1471 = vrot.slane %v1461, %v1470
        %v1472 = vmul.f32 %v1438, %v1467
        %v1473 = vmul.f32 %v1439, %v1471
        %v1474 = vmul.f32 %v1440, %v1467
        %v1475 = vmul.f32 %v1441, %v1471
        %v1476 = vmul.f32 %v1442, %v1467
        %v1477 = vmul.f32 %v1443, %v1471
        %v1478 = vmul.f32 %v1444, %v1467
        %v1479 = vmul.f32 %v1445, %v1471
        %v1480 = vmul.f32 %v1446, %v1467
        %v1481 = vmul.f32 %v1447, %v1471
        %v1482 = vmul.f32 %v1448, %v1467
        %v1483 = vmul.f32 %v1449, %v1471
        %v1484 = vmul.f32 %v1450, %v1467
        %v1485 = vmul.f32 %v1451, %v1471
        %v1486 = vmul.f32 %v1452, %v1467
        %v1487 = vmul.f32 %v1453, %v1471
        %v1504 = vrot.slane %v1472, 2
        %v1505 = vrot.slane %v1474, 2
        %v1506 = vsel %vm1248, %v1504, %v1505
        %v1507 = vrot.slane %v1473, 2
        %v1508 = vrot.slane %v1475, 2
        %v1509 = vsel %vm1248, %v1507, %v1508
        %v1510 = vrot.slane %v1476, 2
        %v1511 = vrot.slane %v1478, 2
        %v1512 = vsel %vm1248, %v1510, %v1511
        %v1513 = vrot.slane %v1477, 2
        %v1514 = vrot.slane %v1479, 2
        %v1515 = vsel %vm1248, %v1513, %v1514
        %v1516 = vrot.slane %v1480, 2
        %v1517 = vrot.slane %v1482, 2
        %v1518 = vsel %vm1248, %v1516, %v1517
        %v1519 = vrot.slane %v1481, 2
        %v1520 = vrot.slane %v1483, 2
        %v1521 = vsel %vm1248, %v1519, %v1520
        %v1522 = vrot.slane %v1484, 2
        %v1523 = vrot.slane %v1486, 2
        %v1524 = vsel %vm1248, %v1522, %v1523
        %v1525 = vrot.slane %v1485, 2
        %v1526 = vrot.slane %v1487, 2
        %v1527 = vsel %vm1248, %v1525, %v1526
        %v1536 = vadd.f32 %v1430, %v1506
        %v1537 = vadd.f32 %v1431, %v1509
        %v1538 = vadd.f32 %v1432, %v1512
        %v1539 = vadd.f32 %v1433, %v1515
        %v1540 = vadd.f32 %v1434, %v1518
        %v1541 = vadd.f32 %v1435, %v1521
        %v1542 = vadd.f32 %v1436, %v1524
        %v1543 = vadd.f32 %v1437, %v1527
        %s1544 = scalar_lea.vmem [#allocation2], 64
        %v1545 = vld [vmem:[%s1544] sm:$0xff]
        %v1546 = vld [vmem:[%s1544 + $0x8] sm:$0xff]
        %v1547 = vld [vmem:[%s1544 + $0x40] sm:$0xff]
        %v1548 = vld [vmem:[%s1544 + $0x48] sm:$0xff]
        %v1549 = vld [vmem:[%s1544 + $0x80] sm:$0xff]
        %v1550 = vld [vmem:[%s1544 + $0x88] sm:$0xff]
        %v1551 = vld [vmem:[%s1544 + $0xc0] sm:$0xff]
        %v1552 = vld [vmem:[%s1544 + $0xc8] sm:$0xff]
        %v1554 = vlaneseq
        %v1555 = vshrl.u32 %v1554, 7
        %v1556 = vsub.s32 0, %v1555
        %v1557 = vrot.slane %v1039, %v1556
        %v1558 = vlaneseq
        %v1559 = vshrl.u32 %v1558, 7
        %v1560 = vsub.s32 4, %v1559
        %v1561 = vrot.slane %v1039, %v1560
        %v1564 = vlaneseq
        %v1565 = vshrl.u32 %v1564, 7
        %v1566 = vsub.s32 0, %v1565
        %v1567 = vrot.slane %v1557, %v1566
        %v1568 = vlaneseq
        %v1569 = vshrl.u32 %v1568, 7
        %v1570 = vsub.s32 0, %v1569
        %v1571 = vrot.slane %v1561, %v1570
        %v1572 = vmul.f32 %v1545, %v1567
        %v1573 = vmul.f32 %v1546, %v1571
        %v1574 = vmul.f32 %v1547, %v1567
        %v1575 = vmul.f32 %v1548, %v1571
        %v1576 = vmul.f32 %v1549, %v1567
        %v1577 = vmul.f32 %v1550, %v1571
        %v1578 = vmul.f32 %v1551, %v1567
        %v1579 = vmul.f32 %v1552, %v1571
        %v1580 = vadd.f32 %v1536, %v1572
        %v1581 = vadd.f32 %v1537, %v1573
        %v1582 = vadd.f32 %v1538, %v1574
        %v1583 = vadd.f32 %v1539, %v1575
        %v1584 = vadd.f32 %v1540, %v1576
        %v1585 = vadd.f32 %v1541, %v1577
        %v1586 = vadd.f32 %v1542, %v1578
        %v1587 = vadd.f32 %v1543, %v1579
        %v1588 = vld [vmem:[%s1544] sm:$0xfe]
        %v1589 = vld [vmem:[%s1544 + $0x8] sm:$0xfe]
        %v1590 = vld [vmem:[%s1544 + $0x10] sm:$0x1]
        %v1591 = vld [vmem:[%s1544 + $0x18] sm:$0x1]
        %v1592 = vld [vmem:[%s1544 + $0x40] sm:$0xfe]
        %v1593 = vld [vmem:[%s1544 + $0x48] sm:$0xfe]
        %v1594 = vld [vmem:[%s1544 + $0x50] sm:$0x1]
        %v1595 = vld [vmem:[%s1544 + $0x58] sm:$0x1]
        %v1596 = vld [vmem:[%s1544 + $0x80] sm:$0xfe]
        %v1597 = vld [vmem:[%s1544 + $0x88] sm:$0xfe]
        %v1598 = vld [vmem:[%s1544 + $0x90] sm:$0x1]
        %v1599 = vld [vmem:[%s1544 + $0x98] sm:$0x1]
        %v1600 = vld [vmem:[%s1544 + $0xc0] sm:$0xfe]
        %v1601 = vld [vmem:[%s1544 + $0xc8] sm:$0xfe]
        %v1602 = vld [vmem:[%s1544 + $0xd0] sm:$0x1]
        %v1603 = vld [vmem:[%s1544 + $0xd8] sm:$0x1]
        %v1604 = vlaneseq
        %v1605 = vshrl.u32 %v1604, 7
        %v1606 = vsub.s32 1, %v1605
        %v1607 = vrot.slane %v1039, %v1606
        %v1608 = vlaneseq
        %v1609 = vshrl.u32 %v1608, 7
        %v1610 = vsub.s32 5, %v1609
        %v1611 = vrot.slane %v1039, %v1610
        %v1614 = vlaneseq
        %v1615 = vshrl.u32 %v1614, 7
        %v1616 = vsub.s32 1, %v1615
        %v1617 = vrot.slane %v1607, %v1616
        %v1618 = vlaneseq
        %v1619 = vshrl.u32 %v1618, 7
        %v1620 = vsub.s32 1, %v1619
        %v1621 = vrot.slane %v1611, %v1620
        %v1622 = vmul.f32 %v1588, %v1617
        %v1623 = vmul.f32 %v1589, %v1621
        %v1624 = vmul.f32 %v1590, %v1617
        %v1625 = vmul.f32 %v1591, %v1621
        %v1626 = vmul.f32 %v1592, %v1617
        %v1627 = vmul.f32 %v1593, %v1621
        %v1628 = vmul.f32 %v1594, %v1617
        %v1629 = vmul.f32 %v1595, %v1621
        %v1630 = vmul.f32 %v1596, %v1617
        %v1631 = vmul.f32 %v1597, %v1621
        %v1632 = vmul.f32 %v1598, %v1617
        %v1633 = vmul.f32 %v1599, %v1621
        %v1634 = vmul.f32 %v1600, %v1617
        %v1635 = vmul.f32 %v1601, %v1621
        %v1636 = vmul.f32 %v1602, %v1617
        %v1637 = vmul.f32 %v1603, %v1621
        %v1654 = vrot.slane %v1622, 1
        %v1655 = vrot.slane %v1624, 1
        %v1656 = vsel %vm1141, %v1654, %v1655
        %v1657 = vrot.slane %v1623, 1
        %v1658 = vrot.slane %v1625, 1
        %v1659 = vsel %vm1141, %v1657, %v1658
        %v1660 = vrot.slane %v1626, 1
        %v1661 = vrot.slane %v1628, 1
        %v1662 = vsel %vm1141, %v1660, %v1661
        %v1663 = vrot.slane %v1627, 1
        %v1664 = vrot.slane %v1629, 1
        %v1665 = vsel %vm1141, %v1663, %v1664
        %v1666 = vrot.slane %v1630, 1
        %v1667 = vrot.slane %v1632, 1
        %v1668 = vsel %vm1141, %v1666, %v1667
        %v1669 = vrot.slane %v1631, 1
        %v1670 = vrot.slane %v1633, 1
        %v1671 = vsel %vm1141, %v1669, %v1670
        %v1672 = vrot.slane %v1634, 1
        %v1673 = vrot.slane %v1636, 1
        %v1674 = vsel %vm1141, %v1672, %v1673
        %v1675 = vrot.slane %v1635, 1
        %v1676 = vrot.slane %v1637, 1
        %v1677 = vsel %vm1141, %v1675, %v1676
        %v1686 = vadd.f32 %v1580, %v1656
        %v1687 = vadd.f32 %v1581, %v1659
        %v1688 = vadd.f32 %v1582, %v1662
        %v1689 = vadd.f32 %v1583, %v1665
        %v1690 = vadd.f32 %v1584, %v1668
        %v1691 = vadd.f32 %v1585, %v1671
        %v1692 = vadd.f32 %v1586, %v1674
        %v1693 = vadd.f32 %v1587, %v1677
        %v1694 = vld [vmem:[%s1544] sm:$0xfc]
        %v1695 = vld [vmem:[%s1544 + $0x8] sm:$0xfc]
        %v1696 = vld [vmem:[%s1544 + $0x10] sm:$0x3]
        %v1697 = vld [vmem:[%s1544 + $0x18] sm:$0x3]
        %v1698 = vld [vmem:[%s1544 + $0x40] sm:$0xfc]
        %v1699 = vld [vmem:[%s1544 + $0x48] sm:$0xfc]
        %v1700 = vld [vmem:[%s1544 + $0x50] sm:$0x3]
        %v1701 = vld [vmem:[%s1544 + $0x58] sm:$0x3]
        %v1702 = vld [vmem:[%s1544 + $0x80] sm:$0xfc]
        %v1703 = vld [vmem:[%s1544 + $0x88] sm:$0xfc]
        %v1704 = vld [vmem:[%s1544 + $0x90] sm:$0x3]
        %v1705 = vld [vmem:[%s1544 + $0x98] sm:$0x3]
        %v1706 = vld [vmem:[%s1544 + $0xc0] sm:$0xfc]
        %v1707 = vld [vmem:[%s1544 + $0xc8] sm:$0xfc]
        %v1708 = vld [vmem:[%s1544 + $0xd0] sm:$0x3]
        %v1709 = vld [vmem:[%s1544 + $0xd8] sm:$0x3]
        %v1710 = vlaneseq
        %v1711 = vshrl.u32 %v1710, 7
        %v1712 = vsub.s32 2, %v1711
        %v1713 = vrot.slane %v1039, %v1712
        %v1714 = vlaneseq
        %v1715 = vshrl.u32 %v1714, 7
        %v1716 = vsub.s32 6, %v1715
        %v1717 = vrot.slane %v1039, %v1716
        %v1720 = vlaneseq
        %v1721 = vshrl.u32 %v1720, 7
        %v1722 = vsub.s32 2, %v1721
        %v1723 = vrot.slane %v1713, %v1722
        %v1724 = vlaneseq
        %v1725 = vshrl.u32 %v1724, 7
        %v1726 = vsub.s32 2, %v1725
        %v1727 = vrot.slane %v1717, %v1726
        %v1728 = vmul.f32 %v1694, %v1723
        %v1729 = vmul.f32 %v1695, %v1727
        %v1730 = vmul.f32 %v1696, %v1723
        %v1731 = vmul.f32 %v1697, %v1727
        %v1732 = vmul.f32 %v1698, %v1723
        %v1733 = vmul.f32 %v1699, %v1727
        %v1734 = vmul.f32 %v1700, %v1723
        %v1735 = vmul.f32 %v1701, %v1727
        %v1736 = vmul.f32 %v1702, %v1723
        %v1737 = vmul.f32 %v1703, %v1727
        %v1738 = vmul.f32 %v1704, %v1723
        %v1739 = vmul.f32 %v1705, %v1727
        %v1740 = vmul.f32 %v1706, %v1723
        %v1741 = vmul.f32 %v1707, %v1727
        %v1742 = vmul.f32 %v1708, %v1723
        %v1743 = vmul.f32 %v1709, %v1727
        %v1760 = vrot.slane %v1728, 2
        %v1761 = vrot.slane %v1730, 2
        %v1762 = vsel %vm1248, %v1760, %v1761
        %v1763 = vrot.slane %v1729, 2
        %v1764 = vrot.slane %v1731, 2
        %v1765 = vsel %vm1248, %v1763, %v1764
        %v1766 = vrot.slane %v1732, 2
        %v1767 = vrot.slane %v1734, 2
        %v1768 = vsel %vm1248, %v1766, %v1767
        %v1769 = vrot.slane %v1733, 2
        %v1770 = vrot.slane %v1735, 2
        %v1771 = vsel %vm1248, %v1769, %v1770
        %v1772 = vrot.slane %v1736, 2
        %v1773 = vrot.slane %v1738, 2
        %v1774 = vsel %vm1248, %v1772, %v1773
        %v1775 = vrot.slane %v1737, 2
        %v1776 = vrot.slane %v1739, 2
        %v1777 = vsel %vm1248, %v1775, %v1776
        %v1778 = vrot.slane %v1740, 2
        %v1779 = vrot.slane %v1742, 2
        %v1780 = vsel %vm1248, %v1778, %v1779
        %v1781 = vrot.slane %v1741, 2
        %v1782 = vrot.slane %v1743, 2
        %v1783 = vsel %vm1248, %v1781, %v1782
        %v1792 = vadd.f32 %v1686, %v1762
        %v1793 = vadd.f32 %v1687, %v1765
        %v1794 = vadd.f32 %v1688, %v1768
        %v1795 = vadd.f32 %v1689, %v1771
        %v1796 = vadd.f32 %v1690, %v1774
        %v1797 = vadd.f32 %v1691, %v1777
        %v1798 = vadd.f32 %v1692, %v1780
        %v1799 = vadd.f32 %v1693, %v1783
        %v1802 = vcombine.low %v1792, %v1793
        %v1804 = vunpack.c.l.s4 1966171168
        %v1805 = vunpack.c.0.s8 %v1804
        %v1806 = vlaneseq
        %v1807 = vshrl.u32 %v1806, 7
        %v1808 = vsub.s32 %v1805, %v1807
        %v1809 = vrot.slane %v1802, %v1808
        %v1811 = vunpack.c.l.s4 1966171168
        %v1812 = vunpack.c.0.s8 %v1811
        %v1813 = vlaneseq
        %v1814 = vshrl.u32 %v1813, 7
        %v1815 = vsub.s32 %v1812, %v1814
        %v1816 = vrot.slane %v1809, %v1815
        %v1818 = vlaneseq
        %vm1819 = vcmp.ge.s32.totalorder %v1818, 0
        %vm1820 = vcmp.lt.s32.totalorder %v1818, 256
        %vm1821 = vmand %vm1819, %vm1820
        %1822 = vst.msk [vmem:[#allocation4] ss:$8 sm:$0x3] %vm1821, %v1816
        %1823 = vst.msk [vmem:[#allocation4] ss:$8 sm:$0x0] %vm1821, %v1816
        %v1824 = vcombine.high %v1816, %v1816
        %s1826 = scalar_lea.vmem [#allocation4], 1
        %1827 = vst.msk [vmem:[%s1826] ss:$8 sm:$0x3] %vm1821, %v1824
        %1828 = vst.msk [vmem:[%s1826] ss:$8 sm:$0x0] %vm1821, %v1824
        %v1829 = vcombine.high %v1792, %v1793
        %v1831 = vunpack.c.l.s4 1966171168
        %v1832 = vunpack.c.0.s8 %v1831
        %v1833 = vlaneseq
        %v1834 = vshrl.u32 %v1833, 7
        %v1835 = vsub.s32 %v1832, %v1834
        %v1836 = vrot.slane %v1829, %v1835
        %v1838 = vunpack.c.l.s4 1966171168
        %v1839 = vunpack.c.0.s8 %v1838
        %v1840 = vlaneseq
        %v1841 = vshrl.u32 %v1840, 7
        %v1842 = vsub.s32 %v1839, %v1841
        %v1843 = vrot.slane %v1836, %v1842
        %s1845 = scalar_lea.vmem [#allocation4], 2
        %1846 = vst.msk [vmem:[%s1845] ss:$8 sm:$0x3] %vm1821, %v1843
        %1847 = vst.msk [vmem:[%s1845] ss:$8 sm:$0x0] %vm1821, %v1843
        %v1848 = vcombine.high %v1843, %v1843
        %s1850 = scalar_lea.vmem [#allocation4], 3
        %1851 = vst.msk [vmem:[%s1850] ss:$8 sm:$0x3] %vm1821, %v1848
        %1852 = vst.msk [vmem:[%s1850] ss:$8 sm:$0x0] %vm1821, %v1848
        %v1855 = vcombine.low %v1794, %v1795
        %v1857 = vunpack.c.l.s4 1966171168
        %v1858 = vunpack.c.0.s8 %v1857
        %v1859 = vlaneseq
        %v1860 = vshrl.u32 %v1859, 7
        %v1861 = vsub.s32 %v1858, %v1860
        %v1862 = vrot.slane %v1855, %v1861
        %v1864 = vunpack.c.l.s4 1966171168
        %v1865 = vunpack.c.0.s8 %v1864
        %v1866 = vlaneseq
        %v1867 = vshrl.u32 %v1866, 7
        %v1868 = vsub.s32 %v1865, %v1867
        %v1869 = vrot.slane %v1862, %v1868
        %s1871 = scalar_lea.vmem [#allocation4], 4
        %1872 = vst.msk [vmem:[%s1871] ss:$8 sm:$0x3] %vm1821, %v1869
        %1873 = vst.msk [vmem:[%s1871] ss:$8 sm:$0x0] %vm1821, %v1869
        %v1874 = vcombine.high %v1869, %v1869
        %s1876 = scalar_lea.vmem [#allocation4], 5
        %1877 = vst.msk [vmem:[%s1876] ss:$8 sm:$0x3] %vm1821, %v1874
        %1878 = vst.msk [vmem:[%s1876] ss:$8 sm:$0x0] %vm1821, %v1874
        %v1879 = vcombine.high %v1794, %v1795
        %v1881 = vunpack.c.l.s4 1966171168
        %v1882 = vunpack.c.0.s8 %v1881
        %v1883 = vlaneseq
        %v1884 = vshrl.u32 %v1883, 7
        %v1885 = vsub.s32 %v1882, %v1884
        %v1886 = vrot.slane %v1879, %v1885
        %v1888 = vunpack.c.l.s4 1966171168
        %v1889 = vunpack.c.0.s8 %v1888
        %v1890 = vlaneseq
        %v1891 = vshrl.u32 %v1890, 7
        %v1892 = vsub.s32 %v1889, %v1891
        %v1893 = vrot.slane %v1886, %v1892
        %s1895 = scalar_lea.vmem [#allocation4], 6
        %1896 = vst.msk [vmem:[%s1895] ss:$8 sm:$0x3] %vm1821, %v1893
        %1897 = vst.msk [vmem:[%s1895] ss:$8 sm:$0x0] %vm1821, %v1893
        %v1898 = vcombine.high %v1893, %v1893
        %s1900 = scalar_lea.vmem [#allocation4], 7
        %1901 = vst.msk [vmem:[%s1900] ss:$8 sm:$0x3] %vm1821, %v1898
        %1902 = vst.msk [vmem:[%s1900] ss:$8 sm:$0x0] %vm1821, %v1898
        %v1905 = vcombine.low %v1796, %v1797
        %v1907 = vunpack.c.l.s4 1966171168
        %v1908 = vunpack.c.0.s8 %v1907
        %v1909 = vlaneseq
        %v1910 = vshrl.u32 %v1909, 7
        %v1911 = vsub.s32 %v1908, %v1910
        %v1912 = vrot.slane %v1905, %v1911
        %v1914 = vunpack.c.l.s4 1966171168
        %v1915 = vunpack.c.0.s8 %v1914
        %v1916 = vlaneseq
        %v1917 = vshrl.u32 %v1916, 7
        %v1918 = vsub.s32 %v1915, %v1917
        %v1919 = vrot.slane %v1912, %v1918
        %s1921 = scalar_lea.vmem [#allocation4], 16
        %1922 = vst.msk [vmem:[%s1921] ss:$8 sm:$0x3] %vm1821, %v1919
        %1923 = vst.msk [vmem:[%s1921] ss:$8 sm:$0x0] %vm1821, %v1919
        %v1924 = vcombine.high %v1919, %v1919
        %s1926 = scalar_lea.vmem [#allocation4], 17
        %1927 = vst.msk [vmem:[%s1926] ss:$8 sm:$0x3] %vm1821, %v1924
        %1928 = vst.msk [vmem:[%s1926] ss:$8 sm:$0x0] %vm1821, %v1924
        %v1929 = vcombine.high %v1796, %v1797
        %v1931 = vunpack.c.l.s4 1966171168
        %v1932 = vunpack.c.0.s8 %v1931
        %v1933 = vlaneseq
        %v1934 = vshrl.u32 %v1933, 7
        %v1935 = vsub.s32 %v1932, %v1934
        %v1936 = vrot.slane %v1929, %v1935
        %v1938 = vunpack.c.l.s4 1966171168
        %v1939 = vunpack.c.0.s8 %v1938
        %v1940 = vlaneseq
        %v1941 = vshrl.u32 %v1940, 7
        %v1942 = vsub.s32 %v1939, %v1941
        %v1943 = vrot.slane %v1936, %v1942
        %s1945 = scalar_lea.vmem [#allocation4], 18
        %1946 = vst.msk [vmem:[%s1945] ss:$8 sm:$0x3] %vm1821, %v1943
        %1947 = vst.msk [vmem:[%s1945] ss:$8 sm:$0x0] %vm1821, %v1943
        %v1948 = vcombine.high %v1943, %v1943
        %s1950 = scalar_lea.vmem [#allocation4], 19
        %1951 = vst.msk [vmem:[%s1950] ss:$8 sm:$0x3] %vm1821, %v1948
        %1952 = vst.msk [vmem:[%s1950] ss:$8 sm:$0x0] %vm1821, %v1948
        %v1955 = vcombine.low %v1798, %v1799
        %v1957 = vunpack.c.l.s4 1966171168
        %v1958 = vunpack.c.0.s8 %v1957
        %v1959 = vlaneseq
        %v1960 = vshrl.u32 %v1959, 7
        %v1961 = vsub.s32 %v1958, %v1960
        %v1962 = vrot.slane %v1955, %v1961
        %v1964 = vunpack.c.l.s4 1966171168
        %v1965 = vunpack.c.0.s8 %v1964
        %v1966 = vlaneseq
        %v1967 = vshrl.u32 %v1966, 7
        %v1968 = vsub.s32 %v1965, %v1967
        %v1969 = vrot.slane %v1962, %v1968
        %s1971 = scalar_lea.vmem [#allocation4], 20
        %1972 = vst.msk [vmem:[%s1971] ss:$8 sm:$0x3] %vm1821, %v1969
        %1973 = vst.msk [vmem:[%s1971] ss:$8 sm:$0x0] %vm1821, %v1969
        %v1974 = vcombine.high %v1969, %v1969
        %s1976 = scalar_lea.vmem [#allocation4], 21
        %1977 = vst.msk [vmem:[%s1976] ss:$8 sm:$0x3] %vm1821, %v1974
        %1978 = vst.msk [vmem:[%s1976] ss:$8 sm:$0x0] %vm1821, %v1974
        %v1979 = vcombine.high %v1798, %v1799
        %v1981 = vunpack.c.l.s4 1966171168
        %v1982 = vunpack.c.0.s8 %v1981
        %v1983 = vlaneseq
        %v1984 = vshrl.u32 %v1983, 7
        %v1985 = vsub.s32 %v1982, %v1984
        %v1986 = vrot.slane %v1979, %v1985
        %v1988 = vunpack.c.l.s4 1966171168
        %v1989 = vunpack.c.0.s8 %v1988
        %v1990 = vlaneseq
        %v1991 = vshrl.u32 %v1990, 7
        %v1992 = vsub.s32 %v1989, %v1991
        %v1993 = vrot.slane %v1986, %v1992
        %s1995 = scalar_lea.vmem [#allocation4], 22
        %1996 = vst.msk [vmem:[%s1995] ss:$8 sm:$0x3] %vm1821, %v1993
        %1997 = vst.msk [vmem:[%s1995] ss:$8 sm:$0x0] %vm1821, %v1993
        %v1998 = vcombine.high %v1993, %v1993
        %s2000 = scalar_lea.vmem [#allocation4], 23
        %2001 = vst.msk [vmem:[%s2000] ss:$8 sm:$0x3] %vm1821, %v1998
        %2002 = vst.msk [vmem:[%s2000] ss:$8 sm:$0x0] %vm1821, %v1998
        %v2003 = vld [vmem:[#allocation4] sm:$0xff]
        %v2004 = vld [vmem:[#allocation4 + $0x8] sm:$0xff]
        %v2005 = vld [vmem:[#allocation4 + $0x10] sm:$0xff]
        %v2006 = vld [vmem:[#allocation4 + $0x18] sm:$0xff]
        %v2007 = vpack.c.bf16 %v2005, %v2003
        %v2008 = vpack.c.bf16 %v2006, %v2004
        %v2009 = vld [vmem:[#allocation8] sm:$0xff]
        %v2010 = vld [vmem:[#allocation8 + $0x8] sm:$0xff]
        %v2011 = vld [vmem:[#allocation8 + $0x10] sm:$0xff]
        %v2012 = vld [vmem:[#allocation8 + $0x18] sm:$0xff]
        %v2013 = vld [vmem:[#allocation8 + $0x20] sm:$0xff]
        %v2014 = vld [vmem:[#allocation8 + $0x28] sm:$0xff]
        %v2015 = vld [vmem:[#allocation8 + $0x30] sm:$0xff]
        %v2016 = vld [vmem:[#allocation8 + $0x38] sm:$0xff]
        %v2017 = vld [vmem:[#allocation8 + $0x40] sm:$0xff]
        %v2018 = vld [vmem:[#allocation8 + $0x48] sm:$0xff]
        %v2019 = vld [vmem:[#allocation8 + $0x50] sm:$0xff]
        %v2020 = vld [vmem:[#allocation8 + $0x58] sm:$0xff]
        %v2021 = vld [vmem:[#allocation8 + $0x60] sm:$0xff]
        %v2022 = vld [vmem:[#allocation8 + $0x68] sm:$0xff]
        %v2023 = vld [vmem:[#allocation8 + $0x70] sm:$0xff]
        %v2024 = vld [vmem:[#allocation8 + $0x78] sm:$0xff]
        %v2025 = vld [vmem:[#allocation8 + $0x80] sm:$0xff]
        %v2026 = vld [vmem:[#allocation8 + $0x88] sm:$0xff]
        %v2027 = vld [vmem:[#allocation8 + $0x90] sm:$0xff]
        %v2028 = vld [vmem:[#allocation8 + $0x98] sm:$0xff]
        %v2029 = vld [vmem:[#allocation8 + $0xa0] sm:$0xff]
        %v2030 = vld [vmem:[#allocation8 + $0xa8] sm:$0xff]
        %v2031 = vld [vmem:[#allocation8 + $0xb0] sm:$0xff]
        %v2032 = vld [vmem:[#allocation8 + $0xb8] sm:$0xff]
        %v2033 = vld [vmem:[#allocation8 + $0xc0] sm:$0xff]
        %v2034 = vld [vmem:[#allocation8 + $0xc8] sm:$0xff]
        %v2035 = vld [vmem:[#allocation8 + $0xd0] sm:$0xff]
        %v2036 = vld [vmem:[#allocation8 + $0xd8] sm:$0xff]
        %v2037 = vld [vmem:[#allocation8 + $0xe0] sm:$0xff]
        %v2038 = vld [vmem:[#allocation8 + $0xe8] sm:$0xff]
        %v2039 = vld [vmem:[#allocation8 + $0xf0] sm:$0xff]
        %v2040 = vld [vmem:[#allocation8 + $0xf8] sm:$0xff]
        %v2073 = vunpack.c.l.b16 %v2009
        %v2074 = vunpack.c.h.b16 %v2009
        %v2075 = vunpack.c.l.b16 %v2010
        %v2076 = vunpack.c.h.b16 %v2010
        %v2077 = vunpack.c.l.b16 %v2011
        %v2078 = vunpack.c.h.b16 %v2011
        %v2079 = vunpack.c.l.b16 %v2012
        %v2080 = vunpack.c.h.b16 %v2012
        %v2081 = vunpack.c.l.b16 %v2013
        %v2082 = vunpack.c.h.b16 %v2013
        %v2083 = vunpack.c.l.b16 %v2014
        %v2084 = vunpack.c.h.b16 %v2014
        %v2085 = vunpack.c.l.b16 %v2015
        %v2086 = vunpack.c.h.b16 %v2015
        %v2087 = vunpack.c.l.b16 %v2016
        %v2088 = vunpack.c.h.b16 %v2016
        %v2089 = vunpack.c.l.b16 %v2017
        %v2090 = vunpack.c.h.b16 %v2017
        %v2091 = vunpack.c.l.b16 %v2018
        %v2092 = vunpack.c.h.b16 %v2018
        %v2093 = vunpack.c.l.b16 %v2019
        %v2094 = vunpack.c.h.b16 %v2019
        %v2095 = vunpack.c.l.b16 %v2020
        %v2096 = vunpack.c.h.b16 %v2020
        %v2097 = vunpack.c.l.b16 %v2021
        %v2098 = vunpack.c.h.b16 %v2021
        %v2099 = vunpack.c.l.b16 %v2022
        %v2100 = vunpack.c.h.b16 %v2022
        %v2101 = vunpack.c.l.b16 %v2023
        %v2102 = vunpack.c.h.b16 %v2023
        %v2103 = vunpack.c.l.b16 %v2024
        %v2104 = vunpack.c.h.b16 %v2024
        %v2105 = vunpack.c.l.b16 %v2025
        %v2106 = vunpack.c.h.b16 %v2025
        %v2107 = vunpack.c.l.b16 %v2026
        %v2108 = vunpack.c.h.b16 %v2026
        %v2109 = vunpack.c.l.b16 %v2027
        %v2110 = vunpack.c.h.b16 %v2027
        %v2111 = vunpack.c.l.b16 %v2028
        %v2112 = vunpack.c.h.b16 %v2028
        %v2113 = vunpack.c.l.b16 %v2029
        %v2114 = vunpack.c.h.b16 %v2029
        %v2115 = vunpack.c.l.b16 %v2030
        %v2116 = vunpack.c.h.b16 %v2030
        %v2117 = vunpack.c.l.b16 %v2031
        %v2118 = vunpack.c.h.b16 %v2031
        %v2119 = vunpack.c.l.b16 %v2032
        %v2120 = vunpack.c.h.b16 %v2032
        %v2121 = vunpack.c.l.b16 %v2033
        %v2122 = vunpack.c.h.b16 %v2033
        %v2123 = vunpack.c.l.b16 %v2034
        %v2124 = vunpack.c.h.b16 %v2034
        %v2125 = vunpack.c.l.b16 %v2035
        %v2126 = vunpack.c.h.b16 %v2035
        %v2127 = vunpack.c.l.b16 %v2036
        %v2128 = vunpack.c.h.b16 %v2036
        %v2129 = vunpack.c.l.b16 %v2037
        %v2130 = vunpack.c.h.b16 %v2037
        %v2131 = vunpack.c.l.b16 %v2038
        %v2132 = vunpack.c.h.b16 %v2038
        %v2133 = vunpack.c.l.b16 %v2039
        %v2134 = vunpack.c.h.b16 %v2039
        %v2135 = vunpack.c.l.b16 %v2040
        %v2136 = vunpack.c.h.b16 %v2040
        %v2137 = vpack.c.b16 %v2075, %v2073
        %v2138 = vpack.c.b16 %v2076, %v2074
        %v2139 = vpack.c.b16 %v2079, %v2077
        %v2140 = vpack.c.b16 %v2080, %v2078
        %v2141 = vpack.c.b16 %v2083, %v2081
        %v2142 = vpack.c.b16 %v2084, %v2082
        %v2143 = vpack.c.b16 %v2087, %v2085
        %v2144 = vpack.c.b16 %v2088, %v2086
        %v2145 = vpack.c.b16 %v2091, %v2089
        %v2146 = vpack.c.b16 %v2092, %v2090
        %v2147 = vpack.c.b16 %v2095, %v2093
        %v2148 = vpack.c.b16 %v2096, %v2094
        %v2149 = vpack.c.b16 %v2099, %v2097
        %v2150 = vpack.c.b16 %v2100, %v2098
        %v2151 = vpack.c.b16 %v2103, %v2101
        %v2152 = vpack.c.b16 %v2104, %v2102
        %v2153 = vpack.c.b16 %v2107, %v2105
        %v2154 = vpack.c.b16 %v2108, %v2106
        %v2155 = vpack.c.b16 %v2111, %v2109
        %v2156 = vpack.c.b16 %v2112, %v2110
        %v2157 = vpack.c.b16 %v2115, %v2113
        %v2158 = vpack.c.b16 %v2116, %v2114
        %v2159 = vpack.c.b16 %v2119, %v2117
        %v2160 = vpack.c.b16 %v2120, %v2118
        %v2161 = vpack.c.b16 %v2123, %v2121
        %v2162 = vpack.c.b16 %v2124, %v2122
        %v2163 = vpack.c.b16 %v2127, %v2125
        %v2164 = vpack.c.b16 %v2128, %v2126
        %v2165 = vpack.c.b16 %v2131, %v2129
        %v2166 = vpack.c.b16 %v2132, %v2130
        %v2167 = vpack.c.b16 %v2135, %v2133
        %v2168 = vpack.c.b16 %v2136, %v2134
        %2201 = vmatprep.subr.bf16.mxu0 %v2138
        %2202 = vmatpush1.bf16.msra.mxu0 %v2137
        %2203 = vmatprep.subr.bf16.mxu0 %v2140
        %2204 = vmatpush1.bf16.msra.mxu0 %v2139
        %2205 = vmatprep.subr.bf16.mxu0 %v2142
        %2206 = vmatpush1.bf16.msra.mxu0 %v2141
        %2207 = vmatprep.subr.bf16.mxu0 %v2144
        %2208 = vmatpush1.bf16.msra.mxu0 %v2143
        %2209 = vmatprep.subr.bf16.mxu0 %v2146
        %2210 = vmatpush1.bf16.msra.mxu0 %v2145
        %2211 = vmatprep.subr.bf16.mxu0 %v2148
        %2212 = vmatpush1.bf16.msra.mxu0 %v2147
        %2213 = vmatprep.subr.bf16.mxu0 %v2150
        %2214 = vmatpush1.bf16.msra.mxu0 %v2149
        %2215 = vmatprep.subr.bf16.mxu0 %v2152
        %2216 = vmatpush1.bf16.msra.mxu0 %v2151
        %2217 = vmatprep.subr.bf16.mxu0 %v2154
        %2218 = vmatpush1.bf16.msra.mxu0 %v2153
        %2219 = vmatprep.subr.bf16.mxu0 %v2156
        %2220 = vmatpush1.bf16.msra.mxu0 %v2155
        %2221 = vmatprep.subr.bf16.mxu0 %v2158
        %2222 = vmatpush1.bf16.msra.mxu0 %v2157
        %2223 = vmatprep.subr.bf16.mxu0 %v2160
        %2224 = vmatpush1.bf16.msra.mxu0 %v2159
        %2225 = vmatprep.subr.bf16.mxu0 %v2162
        %2226 = vmatpush1.bf16.msra.mxu0 %v2161
        %2227 = vmatprep.subr.bf16.mxu0 %v2164
        %2228 = vmatpush1.bf16.msra.mxu0 %v2163
        %2229 = vmatprep.subr.bf16.mxu0 %v2166
        %2230 = vmatpush1.bf16.msra.mxu0 %v2165
        %2231 = vmatprep.subr.bf16.mxu0 %v2168
        %2232 = vmatpush1.bf16.msra.mxu0 %v2167
        %2233 = vmatprep.mubr.bf16.mxu0 %v2008
        %2234 = vmatmul.mubr.bf16.gmra.mrb[0].mxu0 %v2007
        %v2235 = vpop.f32.mrb[0].mxu0
        %v2236 = vadd.f32 0.0, %v2235
        %v2237 = vpop.f32.mrb[0].mxu0
        %v2238 = vadd.f32 0.0, %v2237
        %v2239 = vpop.f32.mrb[0].mxu0
        %v2240 = vadd.f32 0.0, %v2239
        %v2241 = vpop.f32.mrb[0].mxu0
        %v2242 = vadd.f32 0.0, %v2241
        %2243 = vdwg.mxu0
        %v2244 = vld [vmem:[#allocation10] sm:$0x3]
        %v2246 = vlaneseq
        %v2247 = vshrl.u32 %v2246, 7
        %v2248 = vsub.s32 0, %v2247
        %v2249 = vrot.slane %v2244, %v2248
        %v2250 = vlaneseq
        %v2251 = vshrl.u32 %v2250, 7
        %v2252 = vsub.s32 1, %v2251
        %v2253 = vrot.slane %v2244, %v2252
        %v2256 = vmul.f32 %v2236, %v2249
        %v2257 = vmul.f32 %v2238, %v2253
        %v2258 = vmul.f32 %v2240, %v2249
        %v2259 = vmul.f32 %v2242, %v2253
        %v2260 = vld [vmem:[#allocation11] sm:$0x3]
        %v2262 = vlaneseq
        %v2263 = vshrl.u32 %v2262, 7
        %v2264 = vsub.s32 0, %v2263
        %v2265 = vrot.slane %v2260, %v2264
        %v2266 = vlaneseq
        %v2267 = vshrl.u32 %v2266, 7
        %v2268 = vsub.s32 1, %v2267
        %v2269 = vrot.slane %v2260, %v2268
        %v2272 = vadd.f32 %v2256, %v2265
        %v2273 = vadd.f32 %v2257, %v2269
        %v2274 = vadd.f32 %v2258, %v2265
        %v2275 = vadd.f32 %v2259, %v2269
        %v2276 = vmax.f32 %v2272, 0.0
        %v2277 = vmax.f32 %v2273, 0.0
        %v2278 = vmax.f32 %v2274, 0.0
        %v2279 = vmax.f32 %v2275, 0.0
        %v2282 = vrot.slane %v2276, 7
        %v2283 = vrot.slane %v2277, 7
        %s2286 = scalar_lea.vmem [#allocation3], 16
        %2287 = vst [vmem:[%s2286] sm:$0x1e] %v2282
        %2288 = vst [vmem:[%s2286 + $0x8] sm:$0x1e] %v2283
        %v2289 = vrot.slane %v2276, 3
        %v2290 = vrot.slane %v2277, 3
        %s2293 = scalar_lea.vmem [#allocation3], 32
        %2294 = vst [vmem:[%s2293] sm:$0x1e] %v2289
        %2295 = vst [vmem:[%s2293 + $0x8] sm:$0x1e] %v2290
        %v2298 = vrot.slane %v2278, 7
        %v2299 = vrot.slane %v2279, 7
        %s2302 = scalar_lea.vmem [#allocation3], 48
        %2303 = vst [vmem:[%s2302] sm:$0x1e] %v2298
        %2304 = vst [vmem:[%s2302 + $0x8] sm:$0x1e] %v2299
        %v2305 = vrot.slane %v2278, 3
        %v2306 = vrot.slane %v2279, 3
        %s2309 = scalar_lea.vmem [#allocation3], 64
        %2310 = vst [vmem:[%s2309] sm:$0x1e] %v2305
        %2311 = vst [vmem:[%s2309 + $0x8] sm:$0x1e] %v2306
        %v2312 = vld [vmem:[%s5] sm:$0x77]
        %v2313 = vld [vmem:[%s5 + $0x8] sm:$0x77]
        %v2314 = vld [vmem:[%s5 + $0x10] sm:$0x77]
        %v2315 = vld [vmem:[#allocation3] sm:$0xf]
        %v2316 = vld [vmem:[#allocation3 + $0x8] sm:$0xf]
        %v2317 = vld [vmem:[#allocation3 + $0x10] sm:$0xf]
        %v2318 = vld [vmem:[#allocation3 + $0x18] sm:$0xf]
        %v2319 = vld [vmem:[#allocation3 + $0x20] sm:$0xf]
        %v2320 = vld [vmem:[#allocation3 + $0x28] sm:$0xf]
        %v2321 = vld [vmem:[#allocation3 + $0x30] sm:$0xf]
        %v2322 = vld [vmem:[#allocation3 + $0x38] sm:$0xf]
        %v2324 = vlaneseq
        %v2325 = vshrl.u32 %v2324, 7
        %v2326 = vsub.s32 0, %v2325
        %v2327 = vrot.slane %v2312, %v2326
        %v2328 = vlaneseq
        %v2329 = vshrl.u32 %v2328, 7
        %v2330 = vsub.s32 4, %v2329
        %v2331 = vrot.slane %v2312, %v2330
        %v2334 = vlaneseq
        %v2335 = vshrl.u32 %v2334, 7
        %v2336 = vsub.s32 0, %v2335
        %v2337 = vrot.slane %v2327, %v2336
        %v2338 = vlaneseq
        %v2339 = vshrl.u32 %v2338, 7
        %v2340 = vsub.s32 0, %v2339
        %v2341 = vrot.slane %v2331, %v2340
        %v2342 = vmul.f32 %v2315, %v2337
        %v2343 = vmul.f32 %v2316, %v2341
        %v2344 = vmul.f32 %v2317, %v2337
        %v2345 = vmul.f32 %v2318, %v2341
        %v2346 = vmul.f32 %v2319, %v2337
        %v2347 = vmul.f32 %v2320, %v2341
        %v2348 = vmul.f32 %v2321, %v2337
        %v2349 = vmul.f32 %v2322, %v2341
        %v2350 = vld [vmem:[#allocation3] sm:$0x1e]
        %v2351 = vld [vmem:[#allocation3 + $0x8] sm:$0x1e]
        %v2352 = vld [vmem:[#allocation3 + $0x10] sm:$0x1e]
        %v2353 = vld [vmem:[#allocation3 + $0x18] sm:$0x1e]
        %v2354 = vld [vmem:[#allocation3 + $0x20] sm:$0x1e]
        %v2355 = vld [vmem:[#allocation3 + $0x28] sm:$0x1e]
        %v2356 = vld [vmem:[#allocation3 + $0x30] sm:$0x1e]
        %v2357 = vld [vmem:[#allocation3 + $0x38] sm:$0x1e]
        %v2358 = vlaneseq
        %v2359 = vshrl.u32 %v2358, 7
        %v2360 = vsub.s32 1, %v2359
        %v2361 = vrot.slane %v2312, %v2360
        %v2362 = vlaneseq
        %v2363 = vshrl.u32 %v2362, 7
        %v2364 = vsub.s32 5, %v2363
        %v2365 = vrot.slane %v2312, %v2364
        %v2368 = vlaneseq
        %v2369 = vshrl.u32 %v2368, 7
        %v2370 = vsub.s32 1, %v2369
        %v2371 = vrot.slane %v2361, %v2370
        %v2372 = vlaneseq
        %v2373 = vshrl.u32 %v2372, 7
        %v2374 = vsub.s32 1, %v2373
        %v2375 = vrot.slane %v2365, %v2374
        %v2376 = vmul.f32 %v2350, %v2371
        %v2377 = vmul.f32 %v2351, %v2375
        %v2378 = vmul.f32 %v2352, %v2371
        %v2379 = vmul.f32 %v2353, %v2375
        %v2380 = vmul.f32 %v2354, %v2371
        %v2381 = vmul.f32 %v2355, %v2375
        %v2382 = vmul.f32 %v2356, %v2371
        %v2383 = vmul.f32 %v2357, %v2375
        %v2392 = vrot.slane %v2376, 1
        %v2393 = vrot.slane %v2377, 1
        %v2394 = vrot.slane %v2378, 1
        %v2395 = vrot.slane %v2379, 1
        %v2396 = vrot.slane %v2380, 1
        %v2397 = vrot.slane %v2381, 1
        %v2398 = vrot.slane %v2382, 1
        %v2399 = vrot.slane %v2383, 1
        %v2408 = vadd.f32 %v2342, %v2392
        %v2409 = vadd.f32 %v2343, %v2393
        %v2410 = vadd.f32 %v2344, %v2394
        %v2411 = vadd.f32 %v2345, %v2395
        %v2412 = vadd.f32 %v2346, %v2396
        %v2413 = vadd.f32 %v2347, %v2397
        %v2414 = vadd.f32 %v2348, %v2398
        %v2415 = vadd.f32 %v2349, %v2399
        %v2416 = vld [vmem:[#allocation3] sm:$0x3c]
        %v2417 = vld [vmem:[#allocation3 + $0x8] sm:$0x3c]
        %v2418 = vld [vmem:[#allocation3 + $0x10] sm:$0x3c]
        %v2419 = vld [vmem:[#allocation3 + $0x18] sm:$0x3c]
        %v2420 = vld [vmem:[#allocation3 + $0x20] sm:$0x3c]
        %v2421 = vld [vmem:[#allocation3 + $0x28] sm:$0x3c]
        %v2422 = vld [vmem:[#allocation3 + $0x30] sm:$0x3c]
        %v2423 = vld [vmem:[#allocation3 + $0x38] sm:$0x3c]
        %v2424 = vlaneseq
        %v2425 = vshrl.u32 %v2424, 7
        %v2426 = vsub.s32 2, %v2425
        %v2427 = vrot.slane %v2312, %v2426
        %v2428 = vlaneseq
        %v2429 = vshrl.u32 %v2428, 7
        %v2430 = vsub.s32 6, %v2429
        %v2431 = vrot.slane %v2312, %v2430
        %v2434 = vlaneseq
        %v2435 = vshrl.u32 %v2434, 7
        %v2436 = vsub.s32 2, %v2435
        %v2437 = vrot.slane %v2427, %v2436
        %v2438 = vlaneseq
        %v2439 = vshrl.u32 %v2438, 7
        %v2440 = vsub.s32 2, %v2439
        %v2441 = vrot.slane %v2431, %v2440
        %v2442 = vmul.f32 %v2416, %v2437
        %v2443 = vmul.f32 %v2417, %v2441
        %v2444 = vmul.f32 %v2418, %v2437
        %v2445 = vmul.f32 %v2419, %v2441
        %v2446 = vmul.f32 %v2420, %v2437
        %v2447 = vmul.f32 %v2421, %v2441
        %v2448 = vmul.f32 %v2422, %v2437
        %v2449 = vmul.f32 %v2423, %v2441
        %v2458 = vrot.slane %v2442, 2
        %v2459 = vrot.slane %v2443, 2
        %v2460 = vrot.slane %v2444, 2
        %v2461 = vrot.slane %v2445, 2
        %v2462 = vrot.slane %v2446, 2
        %v2463 = vrot.slane %v2447, 2
        %v2464 = vrot.slane %v2448, 2
        %v2465 = vrot.slane %v2449, 2
        %v2474 = vadd.f32 %v2408, %v2458
        %v2475 = vadd.f32 %v2409, %v2459
        %v2476 = vadd.f32 %v2410, %v2460
        %v2477 = vadd.f32 %v2411, %v2461
        %v2478 = vadd.f32 %v2412, %v2462
        %v2479 = vadd.f32 %v2413, %v2463
        %v2480 = vadd.f32 %v2414, %v2464
        %v2481 = vadd.f32 %v2415, %v2465
        %v2482 = vld [vmem:[%s2286] sm:$0xf]
        %v2483 = vld [vmem:[%s2286 + $0x8] sm:$0xf]
        %v2484 = vld [vmem:[%s2286 + $0x10] sm:$0xf]
        %v2485 = vld [vmem:[%s2286 + $0x18] sm:$0xf]
        %v2486 = vld [vmem:[%s2286 + $0x20] sm:$0xf]
        %v2487 = vld [vmem:[%s2286 + $0x28] sm:$0xf]
        %v2488 = vld [vmem:[%s2286 + $0x30] sm:$0xf]
        %v2489 = vld [vmem:[%s2286 + $0x38] sm:$0xf]
        %v2491 = vlaneseq
        %v2492 = vshrl.u32 %v2491, 7
        %v2493 = vsub.s32 0, %v2492
        %v2494 = vrot.slane %v2313, %v2493
        %v2495 = vlaneseq
        %v2496 = vshrl.u32 %v2495, 7
        %v2497 = vsub.s32 4, %v2496
        %v2498 = vrot.slane %v2313, %v2497
        %v2501 = vlaneseq
        %v2502 = vshrl.u32 %v2501, 7
        %v2503 = vsub.s32 0, %v2502
        %v2504 = vrot.slane %v2494, %v2503
        %v2505 = vlaneseq
        %v2506 = vshrl.u32 %v2505, 7
        %v2507 = vsub.s32 0, %v2506
        %v2508 = vrot.slane %v2498, %v2507
        %v2509 = vmul.f32 %v2482, %v2504
        %v2510 = vmul.f32 %v2483, %v2508
        %v2511 = vmul.f32 %v2484, %v2504
        %v2512 = vmul.f32 %v2485, %v2508
        %v2513 = vmul.f32 %v2486, %v2504
        %v2514 = vmul.f32 %v2487, %v2508
        %v2515 = vmul.f32 %v2488, %v2504
        %v2516 = vmul.f32 %v2489, %v2508
        %v2517 = vadd.f32 %v2474, %v2509
        %v2518 = vadd.f32 %v2475, %v2510
        %v2519 = vadd.f32 %v2476, %v2511
        %v2520 = vadd.f32 %v2477, %v2512
        %v2521 = vadd.f32 %v2478, %v2513
        %v2522 = vadd.f32 %v2479, %v2514
        %v2523 = vadd.f32 %v2480, %v2515
        %v2524 = vadd.f32 %v2481, %v2516
        %v2525 = vld [vmem:[%s2286] sm:$0x1e]
        %v2526 = vld [vmem:[%s2286 + $0x8] sm:$0x1e]
        %v2527 = vld [vmem:[%s2286 + $0x10] sm:$0x1e]
        %v2528 = vld [vmem:[%s2286 + $0x18] sm:$0x1e]
        %v2529 = vld [vmem:[%s2286 + $0x20] sm:$0x1e]
        %v2530 = vld [vmem:[%s2286 + $0x28] sm:$0x1e]
        %v2531 = vld [vmem:[%s2286 + $0x30] sm:$0x1e]
        %v2532 = vld [vmem:[%s2286 + $0x38] sm:$0x1e]
        %v2533 = vlaneseq
        %v2534 = vshrl.u32 %v2533, 7
        %v2535 = vsub.s32 1, %v2534
        %v2536 = vrot.slane %v2313, %v2535
        %v2537 = vlaneseq
        %v2538 = vshrl.u32 %v2537, 7
        %v2539 = vsub.s32 5, %v2538
        %v2540 = vrot.slane %v2313, %v2539
        %v2543 = vlaneseq
        %v2544 = vshrl.u32 %v2543, 7
        %v2545 = vsub.s32 1, %v2544
        %v2546 = vrot.slane %v2536, %v2545
        %v2547 = vlaneseq
        %v2548 = vshrl.u32 %v2547, 7
        %v2549 = vsub.s32 1, %v2548
        %v2550 = vrot.slane %v2540, %v2549
        %v2551 = vmul.f32 %v2525, %v2546
        %v2552 = vmul.f32 %v2526, %v2550
        %v2553 = vmul.f32 %v2527, %v2546
        %v2554 = vmul.f32 %v2528, %v2550
        %v2555 = vmul.f32 %v2529, %v2546
        %v2556 = vmul.f32 %v2530, %v2550
        %v2557 = vmul.f32 %v2531, %v2546
        %v2558 = vmul.f32 %v2532, %v2550
        %v2567 = vrot.slane %v2551, 1
        %v2568 = vrot.slane %v2552, 1
        %v2569 = vrot.slane %v2553, 1
        %v2570 = vrot.slane %v2554, 1
        %v2571 = vrot.slane %v2555, 1
        %v2572 = vrot.slane %v2556, 1
        %v2573 = vrot.slane %v2557, 1
        %v2574 = vrot.slane %v2558, 1
        %v2583 = vadd.f32 %v2517, %v2567
        %v2584 = vadd.f32 %v2518, %v2568
        %v2585 = vadd.f32 %v2519, %v2569
        %v2586 = vadd.f32 %v2520, %v2570
        %v2587 = vadd.f32 %v2521, %v2571
        %v2588 = vadd.f32 %v2522, %v2572
        %v2589 = vadd.f32 %v2523, %v2573
        %v2590 = vadd.f32 %v2524, %v2574
        %v2591 = vld [vmem:[%s2286] sm:$0x3c]
        %v2592 = vld [vmem:[%s2286 + $0x8] sm:$0x3c]
        %v2593 = vld [vmem:[%s2286 + $0x10] sm:$0x3c]
        %v2594 = vld [vmem:[%s2286 + $0x18] sm:$0x3c]
        %v2595 = vld [vmem:[%s2286 + $0x20] sm:$0x3c]
        %v2596 = vld [vmem:[%s2286 + $0x28] sm:$0x3c]
        %v2597 = vld [vmem:[%s2286 + $0x30] sm:$0x3c]
        %v2598 = vld [vmem:[%s2286 + $0x38] sm:$0x3c]
        %v2599 = vlaneseq
        %v2600 = vshrl.u32 %v2599, 7
        %v2601 = vsub.s32 2, %v2600
        %v2602 = vrot.slane %v2313, %v2601
        %v2603 = vlaneseq
        %v2604 = vshrl.u32 %v2603, 7
        %v2605 = vsub.s32 6, %v2604
        %v2606 = vrot.slane %v2313, %v2605
        %v2609 = vlaneseq
        %v2610 = vshrl.u32 %v2609, 7
        %v2611 = vsub.s32 2, %v2610
        %v2612 = vrot.slane %v2602, %v2611
        %v2613 = vlaneseq
        %v2614 = vshrl.u32 %v2613, 7
        %v2615 = vsub.s32 2, %v2614
        %v2616 = vrot.slane %v2606, %v2615
        %v2617 = vmul.f32 %v2591, %v2612
        %v2618 = vmul.f32 %v2592, %v2616
        %v2619 = vmul.f32 %v2593, %v2612
        %v2620 = vmul.f32 %v2594, %v2616
        %v2621 = vmul.f32 %v2595, %v2612
        %v2622 = vmul.f32 %v2596, %v2616
        %v2623 = vmul.f32 %v2597, %v2612
        %v2624 = vmul.f32 %v2598, %v2616
        %v2633 = vrot.slane %v2617, 2
        %v2634 = vrot.slane %v2618, 2
        %v2635 = vrot.slane %v2619, 2
        %v2636 = vrot.slane %v2620, 2
        %v2637 = vrot.slane %v2621, 2
        %v2638 = vrot.slane %v2622, 2
        %v2639 = vrot.slane %v2623, 2
        %v2640 = vrot.slane %v2624, 2
        %v2649 = vadd.f32 %v2583, %v2633
        %v2650 = vadd.f32 %v2584, %v2634
        %v2651 = vadd.f32 %v2585, %v2635
        %v2652 = vadd.f32 %v2586, %v2636
        %v2653 = vadd.f32 %v2587, %v2637
        %v2654 = vadd.f32 %v2588, %v2638
        %v2655 = vadd.f32 %v2589, %v2639
        %v2656 = vadd.f32 %v2590, %v2640
        %v2657 = vld [vmem:[%s2293] sm:$0xf]
        %v2658 = vld [vmem:[%s2293 + $0x8] sm:$0xf]
        %v2659 = vld [vmem:[%s2293 + $0x10] sm:$0xf]
        %v2660 = vld [vmem:[%s2293 + $0x18] sm:$0xf]
        %v2661 = vld [vmem:[%s2293 + $0x20] sm:$0xf]
        %v2662 = vld [vmem:[%s2293 + $0x28] sm:$0xf]
        %v2663 = vld [vmem:[%s2293 + $0x30] sm:$0xf]
        %v2664 = vld [vmem:[%s2293 + $0x38] sm:$0xf]
        %v2666 = vlaneseq
        %v2667 = vshrl.u32 %v2666, 7
        %v2668 = vsub.s32 0, %v2667
        %v2669 = vrot.slane %v2314, %v2668
        %v2670 = vlaneseq
        %v2671 = vshrl.u32 %v2670, 7
        %v2672 = vsub.s32 4, %v2671
        %v2673 = vrot.slane %v2314, %v2672
        %v2676 = vlaneseq
        %v2677 = vshrl.u32 %v2676, 7
        %v2678 = vsub.s32 0, %v2677
        %v2679 = vrot.slane %v2669, %v2678
        %v2680 = vlaneseq
        %v2681 = vshrl.u32 %v2680, 7
        %v2682 = vsub.s32 0, %v2681
        %v2683 = vrot.slane %v2673, %v2682
        %v2684 = vmul.f32 %v2657, %v2679
        %v2685 = vmul.f32 %v2658, %v2683
        %v2686 = vmul.f32 %v2659, %v2679
        %v2687 = vmul.f32 %v2660, %v2683
        %v2688 = vmul.f32 %v2661, %v2679
        %v2689 = vmul.f32 %v2662, %v2683
        %v2690 = vmul.f32 %v2663, %v2679
        %v2691 = vmul.f32 %v2664, %v2683
        %v2692 = vadd.f32 %v2649, %v2684
        %v2693 = vadd.f32 %v2650, %v2685
        %v2694 = vadd.f32 %v2651, %v2686
        %v2695 = vadd.f32 %v2652, %v2687
        %v2696 = vadd.f32 %v2653, %v2688
        %v2697 = vadd.f32 %v2654, %v2689
        %v2698 = vadd.f32 %v2655, %v2690
        %v2699 = vadd.f32 %v2656, %v2691
        %v2700 = vld [vmem:[%s2293] sm:$0x1e]
        %v2701 = vld [vmem:[%s2293 + $0x8] sm:$0x1e]
        %v2702 = vld [vmem:[%s2293 + $0x10] sm:$0x1e]
        %v2703 = vld [vmem:[%s2293 + $0x18] sm:$0x1e]
        %v2704 = vld [vmem:[%s2293 + $0x20] sm:$0x1e]
        %v2705 = vld [vmem:[%s2293 + $0x28] sm:$0x1e]
        %v2706 = vld [vmem:[%s2293 + $0x30] sm:$0x1e]
        %v2707 = vld [vmem:[%s2293 + $0x38] sm:$0x1e]
        %v2708 = vlaneseq
        %v2709 = vshrl.u32 %v2708, 7
        %v2710 = vsub.s32 1, %v2709
        %v2711 = vrot.slane %v2314, %v2710
        %v2712 = vlaneseq
        %v2713 = vshrl.u32 %v2712, 7
        %v2714 = vsub.s32 5, %v2713
        %v2715 = vrot.slane %v2314, %v2714
        %v2718 = vlaneseq
        %v2719 = vshrl.u32 %v2718, 7
        %v2720 = vsub.s32 1, %v2719
        %v2721 = vrot.slane %v2711, %v2720
        %v2722 = vlaneseq
        %v2723 = vshrl.u32 %v2722, 7
        %v2724 = vsub.s32 1, %v2723
        %v2725 = vrot.slane %v2715, %v2724
        %v2726 = vmul.f32 %v2700, %v2721
        %v2727 = vmul.f32 %v2701, %v2725
        %v2728 = vmul.f32 %v2702, %v2721
        %v2729 = vmul.f32 %v2703, %v2725
        %v2730 = vmul.f32 %v2704, %v2721
        %v2731 = vmul.f32 %v2705, %v2725
        %v2732 = vmul.f32 %v2706, %v2721
        %v2733 = vmul.f32 %v2707, %v2725
        %v2742 = vrot.slane %v2726, 1
        %v2743 = vrot.slane %v2727, 1
        %v2744 = vrot.slane %v2728, 1
        %v2745 = vrot.slane %v2729, 1
        %v2746 = vrot.slane %v2730, 1
        %v2747 = vrot.slane %v2731, 1
        %v2748 = vrot.slane %v2732, 1
        %v2749 = vrot.slane %v2733, 1
        %v2758 = vadd.f32 %v2692, %v2742
        %v2759 = vadd.f32 %v2693, %v2743
        %v2760 = vadd.f32 %v2694, %v2744
        %v2761 = vadd.f32 %v2695, %v2745
        %v2762 = vadd.f32 %v2696, %v2746
        %v2763 = vadd.f32 %v2697, %v2747
        %v2764 = vadd.f32 %v2698, %v2748
        %v2765 = vadd.f32 %v2699, %v2749
        %v2766 = vld [vmem:[%s2293] sm:$0x3c]
        %v2767 = vld [vmem:[%s2293 + $0x8] sm:$0x3c]
        %v2768 = vld [vmem:[%s2293 + $0x10] sm:$0x3c]
        %v2769 = vld [vmem:[%s2293 + $0x18] sm:$0x3c]
        %v2770 = vld [vmem:[%s2293 + $0x20] sm:$0x3c]
        %v2771 = vld [vmem:[%s2293 + $0x28] sm:$0x3c]
        %v2772 = vld [vmem:[%s2293 + $0x30] sm:$0x3c]
        %v2773 = vld [vmem:[%s2293 + $0x38] sm:$0x3c]
        %v2774 = vlaneseq
        %v2775 = vshrl.u32 %v2774, 7
        %v2776 = vsub.s32 2, %v2775
        %v2777 = vrot.slane %v2314, %v2776
        %v2778 = vlaneseq
        %v2779 = vshrl.u32 %v2778, 7
        %v2780 = vsub.s32 6, %v2779
        %v2781 = vrot.slane %v2314, %v2780
        %v2784 = vlaneseq
        %v2785 = vshrl.u32 %v2784, 7
        %v2786 = vsub.s32 2, %v2785
        %v2787 = vrot.slane %v2777, %v2786
        %v2788 = vlaneseq
        %v2789 = vshrl.u32 %v2788, 7
        %v2790 = vsub.s32 2, %v2789
        %v2791 = vrot.slane %v2781, %v2790
        %v2792 = vmul.f32 %v2766, %v2787
        %v2793 = vmul.f32 %v2767, %v2791
        %v2794 = vmul.f32 %v2768, %v2787
        %v2795 = vmul.f32 %v2769, %v2791
        %v2796 = vmul.f32 %v2770, %v2787
        %v2797 = vmul.f32 %v2771, %v2791
        %v2798 = vmul.f32 %v2772, %v2787
        %v2799 = vmul.f32 %v2773, %v2791
        %v2808 = vrot.slane %v2792, 2
        %v2809 = vrot.slane %v2793, 2
        %v2810 = vrot.slane %v2794, 2
        %v2811 = vrot.slane %v2795, 2
        %v2812 = vrot.slane %v2796, 2
        %v2813 = vrot.slane %v2797, 2
        %v2814 = vrot.slane %v2798, 2
        %v2815 = vrot.slane %v2799, 2
        %v2824 = vadd.f32 %v2758, %v2808
        %v2825 = vadd.f32 %v2759, %v2809
        %v2826 = vadd.f32 %v2760, %v2810
        %v2827 = vadd.f32 %v2761, %v2811
        %v2828 = vadd.f32 %v2762, %v2812
        %v2829 = vadd.f32 %v2763, %v2813
        %v2830 = vadd.f32 %v2764, %v2814
        %v2831 = vadd.f32 %v2765, %v2815
        %2832 = vst [vmem:[#allocation4] sm:$0xf] %v2824
        %2833 = vst [vmem:[#allocation4 + $0x8] sm:$0xf] %v2825
        %v2836 = vrot.slane %v2826, 4
        %v2837 = vrot.slane %v2827, 4
        %2840 = vst [vmem:[#allocation4] sm:$0xf0] %v2836
        %2841 = vst [vmem:[#allocation4 + $0x8] sm:$0xf0] %v2837
        %2842 = vst [vmem:[#allocation4 + $0x10] sm:$0xf] %v2828
        %2843 = vst [vmem:[#allocation4 + $0x18] sm:$0xf] %v2829
        %v2846 = vrot.slane %v2830, 4
        %v2847 = vrot.slane %v2831, 4
        %2850 = vst [vmem:[#allocation4 + $0x10] sm:$0xf0] %v2846
        %2851 = vst [vmem:[#allocation4 + $0x18] sm:$0xf0] %v2847
        %v2852 = vld [vmem:[#allocation4] sm:$0xff]
        %v2853 = vld [vmem:[#allocation4 + $0x8] sm:$0xff]
        %v2854 = vld [vmem:[#allocation4 + $0x10] sm:$0xff]
        %v2855 = vld [vmem:[#allocation4 + $0x18] sm:$0xff]
        %v2856 = vpack.c.bf16 %v2854, %v2852
        %v2857 = vpack.c.bf16 %v2855, %v2853
        %v2858 = vld [vmem:[#allocation13] sm:$0xff]
        %v2859 = vld [vmem:[#allocation13 + $0x8] sm:$0xff]
        %v2860 = vld [vmem:[#allocation13 + $0x10] sm:$0xff]
        %v2861 = vld [vmem:[#allocation13 + $0x18] sm:$0xff]
        %v2862 = vld [vmem:[#allocation13 + $0x20] sm:$0xff]
        %v2863 = vld [vmem:[#allocation13 + $0x28] sm:$0xff]
        %v2864 = vld [vmem:[#allocation13 + $0x30] sm:$0xff]
        %v2865 = vld [vmem:[#allocation13 + $0x38] sm:$0xff]
        %v2866 = vld [vmem:[#allocation13 + $0x40] sm:$0xff]
        %v2867 = vld [vmem:[#allocation13 + $0x48] sm:$0xff]
        %v2868 = vld [vmem:[#allocation13 + $0x50] sm:$0xff]
        %v2869 = vld [vmem:[#allocation13 + $0x58] sm:$0xff]
        %v2870 = vld [vmem:[#allocation13 + $0x60] sm:$0xff]
        %v2871 = vld [vmem:[#allocation13 + $0x68] sm:$0xff]
        %v2872 = vld [vmem:[#allocation13 + $0x70] sm:$0xff]
        %v2873 = vld [vmem:[#allocation13 + $0x78] sm:$0xff]
        %v2874 = vld [vmem:[#allocation13 + $0x80] sm:$0xff]
        %v2875 = vld [vmem:[#allocation13 + $0x88] sm:$0xff]
        %v2876 = vld [vmem:[#allocation13 + $0x90] sm:$0xff]
        %v2877 = vld [vmem:[#allocation13 + $0x98] sm:$0xff]
        %v2878 = vld [vmem:[#allocation13 + $0xa0] sm:$0xff]
        %v2879 = vld [vmem:[#allocation13 + $0xa8] sm:$0xff]
        %v2880 = vld [vmem:[#allocation13 + $0xb0] sm:$0xff]
        %v2881 = vld [vmem:[#allocation13 + $0xb8] sm:$0xff]
        %v2882 = vld [vmem:[#allocation13 + $0xc0] sm:$0xff]
        %v2883 = vld [vmem:[#allocation13 + $0xc8] sm:$0xff]
        %v2884 = vld [vmem:[#allocation13 + $0xd0] sm:$0xff]
        %v2885 = vld [vmem:[#allocation13 + $0xd8] sm:$0xff]
        %v2886 = vld [vmem:[#allocation13 + $0xe0] sm:$0xff]
        %v2887 = vld [vmem:[#allocation13 + $0xe8] sm:$0xff]
        %v2888 = vld [vmem:[#allocation13 + $0xf0] sm:$0xff]
        %v2889 = vld [vmem:[#allocation13 + $0xf8] sm:$0xff]
        %v2922 = vunpack.c.l.b16 %v2858
        %v2923 = vunpack.c.h.b16 %v2858
        %v2924 = vunpack.c.l.b16 %v2859
        %v2925 = vunpack.c.h.b16 %v2859
        %v2926 = vunpack.c.l.b16 %v2860
        %v2927 = vunpack.c.h.b16 %v2860
        %v2928 = vunpack.c.l.b16 %v2861
        %v2929 = vunpack.c.h.b16 %v2861
        %v2930 = vunpack.c.l.b16 %v2862
        %v2931 = vunpack.c.h.b16 %v2862
        %v2932 = vunpack.c.l.b16 %v2863
        %v2933 = vunpack.c.h.b16 %v2863
        %v2934 = vunpack.c.l.b16 %v2864
        %v2935 = vunpack.c.h.b16 %v2864
        %v2936 = vunpack.c.l.b16 %v2865
        %v2937 = vunpack.c.h.b16 %v2865
        %v2938 = vunpack.c.l.b16 %v2866
        %v2939 = vunpack.c.h.b16 %v2866
        %v2940 = vunpack.c.l.b16 %v2867
        %v2941 = vunpack.c.h.b16 %v2867
        %v2942 = vunpack.c.l.b16 %v2868
        %v2943 = vunpack.c.h.b16 %v2868
        %v2944 = vunpack.c.l.b16 %v2869
        %v2945 = vunpack.c.h.b16 %v2869
        %v2946 = vunpack.c.l.b16 %v2870
        %v2947 = vunpack.c.h.b16 %v2870
        %v2948 = vunpack.c.l.b16 %v2871
        %v2949 = vunpack.c.h.b16 %v2871
        %v2950 = vunpack.c.l.b16 %v2872
        %v2951 = vunpack.c.h.b16 %v2872
        %v2952 = vunpack.c.l.b16 %v2873
        %v2953 = vunpack.c.h.b16 %v2873
        %v2954 = vunpack.c.l.b16 %v2874
        %v2955 = vunpack.c.h.b16 %v2874
        %v2956 = vunpack.c.l.b16 %v2875
        %v2957 = vunpack.c.h.b16 %v2875
        %v2958 = vunpack.c.l.b16 %v2876
        %v2959 = vunpack.c.h.b16 %v2876
        %v2960 = vunpack.c.l.b16 %v2877
        %v2961 = vunpack.c.h.b16 %v2877
        %v2962 = vunpack.c.l.b16 %v2878
        %v2963 = vunpack.c.h.b16 %v2878
        %v2964 = vunpack.c.l.b16 %v2879
        %v2965 = vunpack.c.h.b16 %v2879
        %v2966 = vunpack.c.l.b16 %v2880
        %v2967 = vunpack.c.h.b16 %v2880
        %v2968 = vunpack.c.l.b16 %v2881
        %v2969 = vunpack.c.h.b16 %v2881
        %v2970 = vunpack.c.l.b16 %v2882
        %v2971 = vunpack.c.h.b16 %v2882
        %v2972 = vunpack.c.l.b16 %v2883
        %v2973 = vunpack.c.h.b16 %v2883
        %v2974 = vunpack.c.l.b16 %v2884
        %v2975 = vunpack.c.h.b16 %v2884
        %v2976 = vunpack.c.l.b16 %v2885
        %v2977 = vunpack.c.h.b16 %v2885
        %v2978 = vunpack.c.l.b16 %v2886
        %v2979 = vunpack.c.h.b16 %v2886
        %v2980 = vunpack.c.l.b16 %v2887
        %v2981 = vunpack.c.h.b16 %v2887
        %v2982 = vunpack.c.l.b16 %v2888
        %v2983 = vunpack.c.h.b16 %v2888
        %v2984 = vunpack.c.l.b16 %v2889
        %v2985 = vunpack.c.h.b16 %v2889
        %v2986 = vpack.c.b16 %v2924, %v2922
        %v2987 = vpack.c.b16 %v2925, %v2923
        %v2988 = vpack.c.b16 %v2928, %v2926
        %v2989 = vpack.c.b16 %v2929, %v2927
        %v2990 = vpack.c.b16 %v2932, %v2930
        %v2991 = vpack.c.b16 %v2933, %v2931
        %v2992 = vpack.c.b16 %v2936, %v2934
        %v2993 = vpack.c.b16 %v2937, %v2935
        %v2994 = vpack.c.b16 %v2940, %v2938
        %v2995 = vpack.c.b16 %v2941, %v2939
        %v2996 = vpack.c.b16 %v2944, %v2942
        %v2997 = vpack.c.b16 %v2945, %v2943
        %v2998 = vpack.c.b16 %v2948, %v2946
        %v2999 = vpack.c.b16 %v2949, %v2947
        %v3000 = vpack.c.b16 %v2952, %v2950
        %v3001 = vpack.c.b16 %v2953, %v2951
        %v3002 = vpack.c.b16 %v2956, %v2954
        %v3003 = vpack.c.b16 %v2957, %v2955
        %v3004 = vpack.c.b16 %v2960, %v2958
        %v3005 = vpack.c.b16 %v2961, %v2959
        %v3006 = vpack.c.b16 %v2964, %v2962
        %v3007 = vpack.c.b16 %v2965, %v2963
        %v3008 = vpack.c.b16 %v2968, %v2966
        %v3009 = vpack.c.b16 %v2969, %v2967
        %v3010 = vpack.c.b16 %v2972, %v2970
        %v3011 = vpack.c.b16 %v2973, %v2971
        %v3012 = vpack.c.b16 %v2976, %v2974
        %v3013 = vpack.c.b16 %v2977, %v2975
        %v3014 = vpack.c.b16 %v2980, %v2978
        %v3015 = vpack.c.b16 %v2981, %v2979
        %v3016 = vpack.c.b16 %v2984, %v2982
        %v3017 = vpack.c.b16 %v2985, %v2983
        %3050 = vmatprep.subr.bf16.mxu0 %v2987
        %3051 = vmatpush1.bf16.msra.mxu0 %v2986
        %3052 = vmatprep.subr.bf16.mxu0 %v2989
        %3053 = vmatpush1.bf16.msra.mxu0 %v2988
        %3054 = vmatprep.subr.bf16.mxu0 %v2991
        %3055 = vmatpush1.bf16.msra.mxu0 %v2990
        %3056 = vmatprep.subr.bf16.mxu0 %v2993
        %3057 = vmatpush1.bf16.msra.mxu0 %v2992
        %3058 = vmatprep.subr.bf16.mxu0 %v2995
        %3059 = vmatpush1.bf16.msra.mxu0 %v2994
        %3060 = vmatprep.subr.bf16.mxu0 %v2997
        %3061 = vmatpush1.bf16.msra.mxu0 %v2996
        %3062 = vmatprep.subr.bf16.mxu0 %v2999
        %3063 = vmatpush1.bf16.msra.mxu0 %v2998
        %3064 = vmatprep.subr.bf16.mxu0 %v3001
        %3065 = vmatpush1.bf16.msra.mxu0 %v3000
        %3066 = vmatprep.subr.bf16.mxu0 %v3003
        %3067 = vmatpush1.bf16.msra.mxu0 %v3002
        %3068 = vmatprep.subr.bf16.mxu0 %v3005
        %3069 = vmatpush1.bf16.msra.mxu0 %v3004
        %3070 = vmatprep.subr.bf16.mxu0 %v3007
        %3071 = vmatpush1.bf16.msra.mxu0 %v3006
        %3072 = vmatprep.subr.bf16.mxu0 %v3009
        %3073 = vmatpush1.bf16.msra.mxu0 %v3008
        %3074 = vmatprep.subr.bf16.mxu0 %v3011
        %3075 = vmatpush1.bf16.msra.mxu0 %v3010
        %3076 = vmatprep.subr.bf16.mxu0 %v3013
        %3077 = vmatpush1.bf16.msra.mxu0 %v3012
        %3078 = vmatprep.subr.bf16.mxu0 %v3015
        %3079 = vmatpush1.bf16.msra.mxu0 %v3014
        %3080 = vmatprep.subr.bf16.mxu0 %v3017
        %3081 = vmatpush1.bf16.msra.mxu0 %v3016
        %3082 = vmatprep.mubr.bf16.mxu0 %v2857
        %3083 = vmatmul.mubr.bf16.gmra.mrb[0].mxu0 %v2856
        %v3084 = vpop.f32.mrb[0].mxu0
        %v3085 = vadd.f32 0.0, %v3084
        %v3086 = vpop.f32.mrb[0].mxu0
        %v3087 = vadd.f32 0.0, %v3086
        %v3088 = vpop.f32.mrb[0].mxu0
        %v3089 = vadd.f32 0.0, %v3088
        %v3090 = vpop.f32.mrb[0].mxu0
        %v3091 = vadd.f32 0.0, %v3090
        %3092 = vdwg.mxu0
        %v3093 = vld [vmem:[#allocation14] sm:$0x3]
        %v3095 = vlaneseq
        %v3096 = vshrl.u32 %v3095, 7
        %v3097 = vsub.s32 0, %v3096
        %v3098 = vrot.slane %v3093, %v3097
        %v3099 = vlaneseq
        %v3100 = vshrl.u32 %v3099, 7
        %v3101 = vsub.s32 1, %v3100
        %v3102 = vrot.slane %v3093, %v3101
        %v3105 = vmul.f32 %v3085, %v3098
        %v3106 = vmul.f32 %v3087, %v3102
        %v3107 = vmul.f32 %v3089, %v3098
        %v3108 = vmul.f32 %v3091, %v3102
        %v3109 = vld [vmem:[#allocation16] sm:$0x3]
        %v3111 = vlaneseq
        %v3112 = vshrl.u32 %v3111, 7
        %v3113 = vsub.s32 0, %v3112
        %v3114 = vrot.slane %v3109, %v3113
        %v3115 = vlaneseq
        %v3116 = vshrl.u32 %v3115, 7
        %v3117 = vsub.s32 1, %v3116
        %v3118 = vrot.slane %v3109, %v3117
        %v3121 = vadd.f32 %v3105, %v3114
        %v3122 = vadd.f32 %v3106, %v3118
        %v3123 = vadd.f32 %v3107, %v3114
        %v3124 = vadd.f32 %v3108, %v3118
        %v3125 = vmax.f32 %v3121, 0.0
        %v3126 = vmax.f32 %v3122, 0.0
        %v3127 = vmax.f32 %v3123, 0.0
        %v3128 = vmax.f32 %v3124, 0.0
        %v3129 = vld [vmem:[#allocation17] sm:$0x3]
        %v3131 = vlaneseq
        %v3132 = vshrl.u32 %v3131, 7
        %v3133 = vsub.s32 0, %v3132
        %v3134 = vrot.slane %v3129, %v3133
        %v3135 = vlaneseq
        %v3136 = vshrl.u32 %v3135, 7
        %v3137 = vsub.s32 1, %v3136
        %v3138 = vrot.slane %v3129, %v3137
        %v3141 = vmul.f32 %v3125, %v3134
        %v3142 = vmul.f32 %v3126, %v3138
        %v3143 = vmul.f32 %v3127, %v3134
        %v3144 = vmul.f32 %v3128, %v3138
        %v3145 = vld [vmem:[#allocation19] sm:$0x3]
        %v3147 = vlaneseq
        %v3148 = vshrl.u32 %v3147, 7
        %v3149 = vsub.s32 0, %v3148
        %v3150 = vrot.slane %v3145, %v3149
        %v3151 = vlaneseq
        %v3152 = vshrl.u32 %v3151, 7
        %v3153 = vsub.s32 1, %v3152
        %v3154 = vrot.slane %v3145, %v3153
        %v3157 = vadd.f32 %v3141, %v3150
        %v3158 = vadd.f32 %v3142, %v3154
        %v3159 = vadd.f32 %v3143, %v3150
        %v3160 = vadd.f32 %v3144, %v3154
        %v3161 = vmax.f32 %v3157, 0.0
        %v3162 = vmax.f32 %v3158, 0.0
        %v3163 = vmax.f32 %v3159, 0.0
        %v3164 = vmax.f32 %v3160, 0.0
        %v3165 = vld [vmem:[%s11] sm:$0xff]
        %v3166 = vld [vmem:[%s11 + $0x8] sm:$0xff]
        %v3167 = vld [vmem:[%s11 + $0x10] sm:$0xff]
        %v3168 = vld [vmem:[%s11 + $0x18] sm:$0xff]
        %v3169 = vld [vmem:[%s11 + $0x20] sm:$0xff]
        %v3170 = vld [vmem:[%s11 + $0x28] sm:$0xff]
        %v3171 = vld [vmem:[%s11 + $0x30] sm:$0xff]
        %v3172 = vld [vmem:[%s11 + $0x38] sm:$0xff]
        %vm3173 = vcmask 130048
        %v3175 = vsel %vm3173, %v3165, 0
        %v3178 = vsel %vm3173, %v3166, 0
        %v3181 = vsel %vm3173, %v3167, 0
        %v3184 = vsel %vm3173, %v3168, 0
        %v3187 = vsel %vm3173, %v3169, 0
        %v3190 = vsel %vm3173, %v3170, 0
        %v3193 = vsel %vm3173, %v3171, 0
        %v3196 = vsel %vm3173, %v3172, 0
        %3198 = vmatprep.subr.mxu0 %v3162
        %3199 = vmatpush1.msra.mxu0 %v3161
        %3200 = vmatprep.subr.mxu0 %v3164
        %3201 = vmatpush1.msra.mxu0 %v3163
        %3202 = vmatprep.subr.mxu0 0.0
        %3203 = vmatpush1.msra.mxu0 0.0
        %3204 = vmatprep.subr.mxu0 0.0
        %3205 = vmatpush1.msra.mxu0 0.0
        %3206 = vmatprep.subr.mxu0 0.0
        %3207 = vmatpush1.msra.mxu0 0.0
        %3208 = vmatprep.subr.mxu0 0.0
        %3209 = vmatpush1.msra.mxu0 0.0
        %3210 = vmatprep.subr.mxu0 0.0
        %3211 = vmatpush1.msra.mxu0 0.0
        %3212 = vmatprep.subr.mxu0 0.0
        %3213 = vmatpush1.msra.mxu0 0.0
        %3214 = vmatprep.subr.mxu0 0.0
        %3215 = vmatpush1.msra.mxu0 0.0
        %3216 = vmatprep.subr.mxu0 0.0
        %3217 = vmatpush1.msra.mxu0 0.0
        %3218 = vmatprep.subr.mxu0 0.0
        %3219 = vmatpush1.msra.mxu0 0.0
        %3220 = vmatprep.subr.mxu0 0.0
        %3221 = vmatpush1.msra.mxu0 0.0
        %3222 = vmatprep.subr.mxu0 0.0
        %3223 = vmatpush1.msra.mxu0 0.0
        %3224 = vmatprep.subr.mxu0 0.0
        %3225 = vmatpush1.msra.mxu0 0.0
        %3226 = vmatprep.subr.mxu0 0.0
        %3227 = vmatpush1.msra.mxu0 0.0
        %3228 = vmatprep.subr.mxu0 0.0
        %3229 = vmatpush1.msra.mxu0 0.0
        %3230 = vmatprep.subr.mxu0 0.0
        %3231 = vmatpush1.msra.mxu0 0.0
        %3232 = vmatprep.subr.mxu0 0.0
        %3233 = vmatpush1.msra.mxu0 0.0
        %3234 = vmatprep.subr.mxu0 0.0
        %3235 = vmatpush1.msra.mxu0 0.0
        %3236 = vmatprep.subr.mxu0 0.0
        %3237 = vmatpush1.msra.mxu0 0.0
        %3238 = vmatprep.subr.mxu0 0.0
        %3239 = vmatpush1.msra.mxu0 0.0
        %3240 = vmatprep.subr.mxu0 0.0
        %3241 = vmatpush1.msra.mxu0 0.0
        %3242 = vmatprep.subr.mxu0 0.0
        %3243 = vmatpush1.msra.mxu0 0.0
        %3244 = vmatprep.subr.mxu0 0.0
        %3245 = vmatpush1.msra.mxu0 0.0
        %3246 = vmatprep.subr.mxu0 0.0
        %3247 = vmatpush1.msra.mxu0 0.0
        %3248 = vmatprep.subr.mxu0 0.0
        %3249 = vmatpush1.msra.mxu0 0.0
        %3250 = vmatprep.subr.mxu0 0.0
        %3251 = vmatpush1.msra.mxu0 0.0
        %3252 = vmatprep.subr.mxu0 0.0
        %3253 = vmatpush1.msra.mxu0 0.0
        %3254 = vmatprep.subr.mxu0 0.0
        %3255 = vmatpush1.msra.mxu0 0.0
        %3256 = vmatprep.subr.mxu0 0.0
        %3257 = vmatpush1.msra.mxu0 0.0
        %3258 = vmatprep.subr.mxu0 0.0
        %3259 = vmatpush1.msra.mxu0 0.0
        %3260 = vmatprep.subr.mxu0 0.0
        %3261 = vmatpush1.msra.mxu0 0.0
        %3262 = vmatprep.mubr.f32.mxu0 0.0
        %3263 = vmatmul.mubr.f32.gmra.mrb[0].mxu0 %v3175
        %v3264 = vpop.f32.mrb[0].mxu0
        %v3265 = vadd.f32 0.0, %v3264
        %v3266 = vpop.f32.mrb[0].mxu0
        %v3267 = vadd.f32 0.0, %v3266
        %3268 = vmatprep.mubr.f32.mxu0 0.0
        %3269 = vmatmul.mubr.f32.gmra.mrb[0].mxu0 %v3178
        %v3270 = vpop.f32.mrb[0].mxu0
        %v3271 = vadd.f32 0.0, %v3270
        %v3272 = vpop.f32.mrb[0].mxu0
        %v3273 = vadd.f32 0.0, %v3272
        %3274 = vmatprep.mubr.f32.mxu0 0.0
        %3275 = vmatmul.mubr.f32.gmra.mrb[0].mxu0 %v3181
        %v3276 = vpop.f32.mrb[0].mxu0
        %v3277 = vadd.f32 0.0, %v3276
        %v3278 = vpop.f32.mrb[0].mxu0
        %v3279 = vadd.f32 0.0, %v3278
        %3280 = vmatprep.mubr.f32.mxu0 0.0
        %3281 = vmatmul.mubr.f32.gmra.mrb[0].mxu0 %v3184
        %v3282 = vpop.f32.mrb[0].mxu0
        %v3283 = vadd.f32 0.0, %v3282
        %v3284 = vpop.f32.mrb[0].mxu0
        %v3285 = vadd.f32 0.0, %v3284
        %3286 = vmatprep.mubr.f32.mxu0 0.0
        %3287 = vmatmul.mubr.f32.gmra.mrb[0].mxu0 %v3187
        %v3288 = vpop.f32.mrb[0].mxu0
        %v3289 = vadd.f32 0.0, %v3288
        %v3290 = vpop.f32.mrb[0].mxu0
        %v3291 = vadd.f32 0.0, %v3290
        %3292 = vmatprep.mubr.f32.mxu0 0.0
        %3293 = vmatmul.mubr.f32.gmra.mrb[0].mxu0 %v3190
        %v3294 = vpop.f32.mrb[0].mxu0
        %v3295 = vadd.f32 0.0, %v3294
        %v3296 = vpop.f32.mrb[0].mxu0
        %v3297 = vadd.f32 0.0, %v3296
        %3298 = vmatprep.mubr.f32.mxu0 0.0
        %3299 = vmatmul.mubr.f32.gmra.mrb[0].mxu0 %v3193
        %v3300 = vpop.f32.mrb[0].mxu0
        %v3301 = vadd.f32 0.0, %v3300
        %v3302 = vpop.f32.mrb[0].mxu0
        %v3303 = vadd.f32 0.0, %v3302
        %3304 = vmatprep.mubr.f32.mxu0 0.0
        %3305 = vmatmul.mubr.f32.gmra.mrb[0].mxu0 %v3196
        %v3306 = vpop.f32.mrb[0].mxu0
        %v3307 = vadd.f32 0.0, %v3306
        %v3308 = vpop.f32.mrb[0].mxu0
        %v3309 = vadd.f32 0.0, %v3308
        %3310 = vdwg.mxu0
        %v3311 = vxor.u32 %v3265, 2147483648
        %v3312 = vxor.u32 %v3267, 2147483648
        %v3313 = vmul.f32 %v3311, 1.442695
        %v3314 = vpow.pop %v3313
        %v3315 = vmul.f32 %v3312, 1.442695
        %v3316 = vpow.pop %v3315
        %v3317 = vadd.f32 %v3314, 1.0
        %v3318 = vadd.f32 %v3316, 1.0
        %v3319 = vrcp.pop %v3317
        %v3320 = vmul.f32 1.0, %v3319
        %v3321 = vrcp.pop %v3318
        %v3322 = vmul.f32 1.0, %v3321
        %v3323 = vld [vmem:[%s773] sm:$0xff]
        %v3324 = vld [vmem:[%s773 + $0x8] sm:$0xff]
        %v3325 = vmul.f32 %v3320, %v3323
        %v3326 = vmul.f32 %v3322, %v3324
        %v3329 = vrot.slane %v3325, 7
        %v3330 = vrot.slane %v3326, 7
        %3333 = vst [vmem:[%s1004] sm:$0xfe] %v3329
        %3334 = vst [vmem:[%s1004 + $0x8] sm:$0xfe] %v3330
        %3335 = vst [vmem:[%s1004 + $0x10] sm:$0x1] %v3329
        %3336 = vst [vmem:[%s1004 + $0x18] sm:$0x1] %v3330
        %v3337 = vxor.u32 %v3271, 2147483648
        %v3338 = vxor.u32 %v3273, 2147483648
        %v3339 = vmul.f32 %v3337, 1.442695
        %v3340 = vpow.pop %v3339
        %v3341 = vmul.f32 %v3338, 1.442695
        %v3342 = vpow.pop %v3341
        %v3343 = vadd.f32 %v3340, 1.0
        %v3344 = vadd.f32 %v3342, 1.0
        %v3345 = vrcp.pop %v3343
        %v3346 = vmul.f32 1.0, %v3345
        %v3347 = vrcp.pop %v3344
        %v3348 = vmul.f32 1.0, %v3347
        %s3349 = scalar_lea.vmem %s773, 16 [#allocation5]
        %v3350 = vld [vmem:[%s3349] sm:$0xff]
        %v3351 = vld [vmem:[%s3349 + $0x8] sm:$0xff]
        %v3352 = vmul.f32 %v3346, %v3350
        %v3353 = vmul.f32 %v3348, %v3351
        %v3356 = vrot.slane %v3352, 7
        %v3357 = vrot.slane %v3353, 7
        %3360 = vst [vmem:[%s1544] sm:$0xfe] %v3356
        %3361 = vst [vmem:[%s1544 + $0x8] sm:$0xfe] %v3357
        %3362 = vst [vmem:[%s1544 + $0x10] sm:$0x1] %v3356
        %3363 = vst [vmem:[%s1544 + $0x18] sm:$0x1] %v3357
        %v3364 = vxor.u32 %v3277, 2147483648
        %v3365 = vxor.u32 %v3279, 2147483648
        %v3366 = vmul.f32 %v3364, 1.442695
        %v3367 = vpow.pop %v3366
        %v3368 = vmul.f32 %v3365, 1.442695
        %v3369 = vpow.pop %v3368
        %v3370 = vadd.f32 %v3367, 1.0
        %v3371 = vadd.f32 %v3369, 1.0
        %v3372 = vrcp.pop %v3370
        %v3373 = vmul.f32 1.0, %v3372
        %v3374 = vrcp.pop %v3371
        %v3375 = vmul.f32 1.0, %v3374
        %s3376 = scalar_lea.vmem %s773, 32 [#allocation5]
        %v3377 = vld [vmem:[%s3376] sm:$0xff]
        %v3378 = vld [vmem:[%s3376 + $0x8] sm:$0xff]
        %v3379 = vmul.f32 %v3373, %v3377
        %v3380 = vmul.f32 %v3375, %v3378
        %v3383 = vrot.slane %v3379, 7
        %v3384 = vrot.slane %v3380, 7
        %s3387 = scalar_lea.vmem [#allocation2], 96
        %3388 = vst [vmem:[%s3387] sm:$0xfe] %v3383
        %3389 = vst [vmem:[%s3387 + $0x8] sm:$0xfe] %v3384
        %3390 = vst [vmem:[%s3387 + $0x10] sm:$0x1] %v3383
        %3391 = vst [vmem:[%s3387 + $0x18] sm:$0x1] %v3384
        %v3392 = vxor.u32 %v3283, 2147483648
        %v3393 = vxor.u32 %v3285, 2147483648
        %v3394 = vmul.f32 %v3392, 1.442695
        %v3395 = vpow.pop %v3394
        %v3396 = vmul.f32 %v3393, 1.442695
        %v3397 = vpow.pop %v3396
        %v3398 = vadd.f32 %v3395, 1.0
        %v3399 = vadd.f32 %v3397, 1.0
        %v3400 = vrcp.pop %v3398
        %v3401 = vmul.f32 1.0, %v3400
        %v3402 = vrcp.pop %v3399
        %v3403 = vmul.f32 1.0, %v3402
        %s3404 = scalar_lea.vmem %s773, 48 [#allocation5]
        %v3405 = vld [vmem:[%s3404] sm:$0xff]
        %v3406 = vld [vmem:[%s3404 + $0x8] sm:$0xff]
        %v3407 = vmul.f32 %v3401, %v3405
        %v3408 = vmul.f32 %v3403, %v3406
        %v3411 = vrot.slane %v3407, 7
        %v3412 = vrot.slane %v3408, 7
        %s3415 = scalar_lea.vmem [#allocation2], 128
        %3416 = vst [vmem:[%s3415] sm:$0xfe] %v3411
        %3417 = vst [vmem:[%s3415 + $0x8] sm:$0xfe] %v3412
        %3418 = vst [vmem:[%s3415 + $0x10] sm:$0x1] %v3411
        %3419 = vst [vmem:[%s3415 + $0x18] sm:$0x1] %v3412
        %v3420 = vxor.u32 %v3289, 2147483648
        %v3421 = vxor.u32 %v3291, 2147483648
        %v3422 = vmul.f32 %v3420, 1.442695
        %v3423 = vpow.pop %v3422
        %v3424 = vmul.f32 %v3421, 1.442695
        %v3425 = vpow.pop %v3424
        %v3426 = vadd.f32 %v3423, 1.0
        %v3427 = vadd.f32 %v3425, 1.0
        %v3428 = vrcp.pop %v3426
        %v3429 = vmul.f32 1.0, %v3428
        %v3430 = vrcp.pop %v3427
        %v3431 = vmul.f32 1.0, %v3430
        %s3432 = scalar_lea.vmem %s773, 64 [#allocation5]
        %v3433 = vld [vmem:[%s3432] sm:$0xff]
        %v3434 = vld [vmem:[%s3432 + $0x8] sm:$0xff]
        %v3435 = vmul.f32 %v3429, %v3433
        %v3436 = vmul.f32 %v3431, %v3434
        %v3439 = vrot.slane %v3435, 7
        %v3440 = vrot.slane %v3436, 7
        %s3443 = scalar_lea.vmem [#allocation2], 160
        %3444 = vst [vmem:[%s3443] sm:$0xfe] %v3439
        %3445 = vst [vmem:[%s3443 + $0x8] sm:$0xfe] %v3440
        %3446 = vst [vmem:[%s3443 + $0x10] sm:$0x1] %v3439
        %3447 = vst [vmem:[%s3443 + $0x18] sm:$0x1] %v3440
        %v3448 = vxor.u32 %v3295, 2147483648
        %v3449 = vxor.u32 %v3297, 2147483648
        %v3450 = vmul.f32 %v3448, 1.442695
        %v3451 = vpow.pop %v3450
        %v3452 = vmul.f32 %v3449, 1.442695
        %v3453 = vpow.pop %v3452
        %v3454 = vadd.f32 %v3451, 1.0
        %v3455 = vadd.f32 %v3453, 1.0
        %v3456 = vrcp.pop %v3454
        %v3457 = vmul.f32 1.0, %v3456
        %v3458 = vrcp.pop %v3455
        %v3459 = vmul.f32 1.0, %v3458
        %s3460 = scalar_lea.vmem %s773, 80 [#allocation5]
        %v3461 = vld [vmem:[%s3460] sm:$0xff]
        %v3462 = vld [vmem:[%s3460 + $0x8] sm:$0xff]
        %v3463 = vmul.f32 %v3457, %v3461
        %v3464 = vmul.f32 %v3459, %v3462
        %v3467 = vrot.slane %v3463, 7
        %v3468 = vrot.slane %v3464, 7
        %s3471 = scalar_lea.vmem [#allocation2], 192
        %3472 = vst [vmem:[%s3471] sm:$0xfe] %v3467
        %3473 = vst [vmem:[%s3471 + $0x8] sm:$0xfe] %v3468
        %3474 = vst [vmem:[%s3471 + $0x10] sm:$0x1] %v3467
        %3475 = vst [vmem:[%s3471 + $0x18] sm:$0x1] %v3468
        %v3476 = vxor.u32 %v3301, 2147483648
        %v3477 = vxor.u32 %v3303, 2147483648
        %v3478 = vmul.f32 %v3476, 1.442695
        %v3479 = vpow.pop %v3478
        %v3480 = vmul.f32 %v3477, 1.442695
        %v3481 = vpow.pop %v3480
        %v3482 = vadd.f32 %v3479, 1.0
        %v3483 = vadd.f32 %v3481, 1.0
        %v3484 = vrcp.pop %v3482
        %v3485 = vmul.f32 1.0, %v3484
        %v3486 = vrcp.pop %v3483
        %v3487 = vmul.f32 1.0, %v3486
        %s3488 = scalar_lea.vmem %s773, 96 [#allocation5]
        %v3489 = vld [vmem:[%s3488] sm:$0xff]
        %v3490 = vld [vmem:[%s3488 + $0x8] sm:$0xff]
        %v3491 = vmul.f32 %v3485, %v3489
        %v3492 = vmul.f32 %v3487, %v3490
        %v3495 = vrot.slane %v3491, 7
        %v3496 = vrot.slane %v3492, 7
        %s3499 = scalar_lea.vmem [#allocation2], 224
        %3500 = vst [vmem:[%s3499] sm:$0xfe] %v3495
        %3501 = vst [vmem:[%s3499 + $0x8] sm:$0xfe] %v3496
        %3502 = vst [vmem:[%s3499 + $0x10] sm:$0x1] %v3495
        %3503 = vst [vmem:[%s3499 + $0x18] sm:$0x1] %v3496
        %v3504 = vxor.u32 %v3307, 2147483648
        %v3505 = vxor.u32 %v3309, 2147483648
        %v3506 = vmul.f32 %v3504, 1.442695
        %v3507 = vpow.pop %v3506
        %v3508 = vmul.f32 %v3505, 1.442695
        %v3509 = vpow.pop %v3508
        %v3510 = vadd.f32 %v3507, 1.0
        %v3511 = vadd.f32 %v3509, 1.0
        %v3512 = vrcp.pop %v3510
        %v3513 = vmul.f32 1.0, %v3512
        %v3514 = vrcp.pop %v3511
        %v3515 = vmul.f32 1.0, %v3514
        %s3516 = scalar_lea.vmem %s773, 112 [#allocation5]
        %v3517 = vld [vmem:[%s3516] sm:$0xff]
        %v3518 = vld [vmem:[%s3516 + $0x8] sm:$0xff]
        %v3519 = vmul.f32 %v3513, %v3517
        %v3520 = vmul.f32 %v3515, %v3518
        %v3523 = vrot.slane %v3519, 7
        %v3524 = vrot.slane %v3520, 7
        %s3527 = scalar_lea.vmem [#allocation2], 256
        %3528 = vst [vmem:[%s3527] sm:$0xfe] %v3523
        %3529 = vst [vmem:[%s3527 + $0x8] sm:$0xfe] %v3524
        %3530 = vst [vmem:[%s3527 + $0x10] sm:$0x1] %v3523
        %3531 = vst [vmem:[%s3527 + $0x18] sm:$0x1] %v3524
        %v3532 = vld [vmem:[%s12] sm:$0x77]
        %v3533 = vld [vmem:[%s12 + $0x8] sm:$0x77]
        %v3534 = vld [vmem:[%s12 + $0x10] sm:$0x77]
        %v3535 = vld [vmem:[#allocation2] sm:$0xff]
        %v3536 = vld [vmem:[#allocation2 + $0x8] sm:$0xff]
        %v3537 = vld [vmem:[#allocation2 + $0x40] sm:$0xff]
        %v3538 = vld [vmem:[#allocation2 + $0x48] sm:$0xff]
        %v3539 = vld [vmem:[#allocation2 + $0x80] sm:$0xff]
        %v3540 = vld [vmem:[#allocation2 + $0x88] sm:$0xff]
        %v3541 = vld [vmem:[#allocation2 + $0xc0] sm:$0xff]
        %v3542 = vld [vmem:[#allocation2 + $0xc8] sm:$0xff]
        %v3544 = vlaneseq
        %v3545 = vshrl.u32 %v3544, 7
        %v3546 = vsub.s32 0, %v3545
        %v3547 = vrot.slane %v3532, %v3546
        %v3548 = vlaneseq
        %v3549 = vshrl.u32 %v3548, 7
        %v3550 = vsub.s32 4, %v3549
        %v3551 = vrot.slane %v3532, %v3550
        %v3554 = vlaneseq
        %v3555 = vshrl.u32 %v3554, 7
        %v3556 = vsub.s32 0, %v3555
        %v3557 = vrot.slane %v3547, %v3556
        %v3558 = vlaneseq
        %v3559 = vshrl.u32 %v3558, 7
        %v3560 = vsub.s32 0, %v3559
        %v3561 = vrot.slane %v3551, %v3560
        %v3562 = vmul.f32 %v3535, %v3557
        %v3563 = vmul.f32 %v3536, %v3561
        %v3564 = vmul.f32 %v3537, %v3557
        %v3565 = vmul.f32 %v3538, %v3561
        %v3566 = vmul.f32 %v3539, %v3557
        %v3567 = vmul.f32 %v3540, %v3561
        %v3568 = vmul.f32 %v3541, %v3557
        %v3569 = vmul.f32 %v3542, %v3561
        %v3570 = vld [vmem:[#allocation2] sm:$0xfe]
        %v3571 = vld [vmem:[#allocation2 + $0x8] sm:$0xfe]
        %v3572 = vld [vmem:[#allocation2 + $0x10] sm:$0x1]
        %v3573 = vld [vmem:[#allocation2 + $0x18] sm:$0x1]
        %v3574 = vld [vmem:[#allocation2 + $0x40] sm:$0xfe]
        %v3575 = vld [vmem:[#allocation2 + $0x48] sm:$0xfe]
        %v3576 = vld [vmem:[#allocation2 + $0x50] sm:$0x1]
        %v3577 = vld [vmem:[#allocation2 + $0x58] sm:$0x1]
        %v3578 = vld [vmem:[#allocation2 + $0x80] sm:$0xfe]
        %v3579 = vld [vmem:[#allocation2 + $0x88] sm:$0xfe]
        %v3580 = vld [vmem:[#allocation2 + $0x90] sm:$0x1]
        %v3581 = vld [vmem:[#allocation2 + $0x98] sm:$0x1]
        %v3582 = vld [vmem:[#allocation2 + $0xc0] sm:$0xfe]
        %v3583 = vld [vmem:[#allocation2 + $0xc8] sm:$0xfe]
        %v3584 = vld [vmem:[#allocation2 + $0xd0] sm:$0x1]
        %v3585 = vld [vmem:[#allocation2 + $0xd8] sm:$0x1]
        %v3586 = vlaneseq
        %v3587 = vshrl.u32 %v3586, 7
        %v3588 = vsub.s32 1, %v3587
        %v3589 = vrot.slane %v3532, %v3588
        %v3590 = vlaneseq
        %v3591 = vshrl.u32 %v3590, 7
        %v3592 = vsub.s32 5, %v3591
        %v3593 = vrot.slane %v3532, %v3592
        %v3596 = vlaneseq
        %v3597 = vshrl.u32 %v3596, 7
        %v3598 = vsub.s32 1, %v3597
        %v3599 = vrot.slane %v3589, %v3598
        %v3600 = vlaneseq
        %v3601 = vshrl.u32 %v3600, 7
        %v3602 = vsub.s32 1, %v3601
        %v3603 = vrot.slane %v3593, %v3602
        %v3604 = vmul.f32 %v3570, %v3599
        %v3605 = vmul.f32 %v3571, %v3603
        %v3606 = vmul.f32 %v3572, %v3599
        %v3607 = vmul.f32 %v3573, %v3603
        %v3608 = vmul.f32 %v3574, %v3599
        %v3609 = vmul.f32 %v3575, %v3603
        %v3610 = vmul.f32 %v3576, %v3599
        %v3611 = vmul.f32 %v3577, %v3603
        %v3612 = vmul.f32 %v3578, %v3599
        %v3613 = vmul.f32 %v3579, %v3603
        %v3614 = vmul.f32 %v3580, %v3599
        %v3615 = vmul.f32 %v3581, %v3603
        %v3616 = vmul.f32 %v3582, %v3599
        %v3617 = vmul.f32 %v3583, %v3603
        %v3618 = vmul.f32 %v3584, %v3599
        %v3619 = vmul.f32 %v3585, %v3603
        %v3636 = vrot.slane %v3604, 1
        %v3637 = vrot.slane %v3606, 1
        %v3638 = vsel %vm1141, %v3636, %v3637
        %v3639 = vrot.slane %v3605, 1
        %v3640 = vrot.slane %v3607, 1
        %v3641 = vsel %vm1141, %v3639, %v3640
        %v3642 = vrot.slane %v3608, 1
        %v3643 = vrot.slane %v3610, 1
        %v3644 = vsel %vm1141, %v3642, %v3643
        %v3645 = vrot.slane %v3609, 1
        %v3646 = vrot.slane %v3611, 1
        %v3647 = vsel %vm1141, %v3645, %v3646
        %v3648 = vrot.slane %v3612, 1
        %v3649 = vrot.slane %v3614, 1
        %v3650 = vsel %vm1141, %v3648, %v3649
        %v3651 = vrot.slane %v3613, 1
        %v3652 = vrot.slane %v3615, 1
        %v3653 = vsel %vm1141, %v3651, %v3652
        %v3654 = vrot.slane %v3616, 1
        %v3655 = vrot.slane %v3618, 1
        %v3656 = vsel %vm1141, %v3654, %v3655
        %v3657 = vrot.slane %v3617, 1
        %v3658 = vrot.slane %v3619, 1
        %v3659 = vsel %vm1141, %v3657, %v3658
        %v3668 = vadd.f32 %v3562, %v3638
        %v3669 = vadd.f32 %v3563, %v3641
        %v3670 = vadd.f32 %v3564, %v3644
        %v3671 = vadd.f32 %v3565, %v3647
        %v3672 = vadd.f32 %v3566, %v3650
        %v3673 = vadd.f32 %v3567, %v3653
        %v3674 = vadd.f32 %v3568, %v3656
        %v3675 = vadd.f32 %v3569, %v3659
        %v3676 = vld [vmem:[#allocation2] sm:$0xfc]
        %v3677 = vld [vmem:[#allocation2 + $0x8] sm:$0xfc]
        %v3678 = vld [vmem:[#allocation2 + $0x10] sm:$0x3]
        %v3679 = vld [vmem:[#allocation2 + $0x18] sm:$0x3]
        %v3680 = vld [vmem:[#allocation2 + $0x40] sm:$0xfc]
        %v3681 = vld [vmem:[#allocation2 + $0x48] sm:$0xfc]
        %v3682 = vld [vmem:[#allocation2 + $0x50] sm:$0x3]
        %v3683 = vld [vmem:[#allocation2 + $0x58] sm:$0x3]
        %v3684 = vld [vmem:[#allocation2 + $0x80] sm:$0xfc]
        %v3685 = vld [vmem:[#allocation2 + $0x88] sm:$0xfc]
        %v3686 = vld [vmem:[#allocation2 + $0x90] sm:$0x3]
        %v3687 = vld [vmem:[#allocation2 + $0x98] sm:$0x3]
        %v3688 = vld [vmem:[#allocation2 + $0xc0] sm:$0xfc]
        %v3689 = vld [vmem:[#allocation2 + $0xc8] sm:$0xfc]
        %v3690 = vld [vmem:[#allocation2 + $0xd0] sm:$0x3]
        %v3691 = vld [vmem:[#allocation2 + $0xd8] sm:$0x3]
        %v3692 = vlaneseq
        %v3693 = vshrl.u32 %v3692, 7
        %v3694 = vsub.s32 2, %v3693
        %v3695 = vrot.slane %v3532, %v3694
        %v3696 = vlaneseq
        %v3697 = vshrl.u32 %v3696, 7
        %v3698 = vsub.s32 6, %v3697
        %v3699 = vrot.slane %v3532, %v3698
        %v3702 = vlaneseq
        %v3703 = vshrl.u32 %v3702, 7
        %v3704 = vsub.s32 2, %v3703
        %v3705 = vrot.slane %v3695, %v3704
        %v3706 = vlaneseq
        %v3707 = vshrl.u32 %v3706, 7
        %v3708 = vsub.s32 2, %v3707
        %v3709 = vrot.slane %v3699, %v3708
        %v3710 = vmul.f32 %v3676, %v3705
        %v3711 = vmul.f32 %v3677, %v3709
        %v3712 = vmul.f32 %v3678, %v3705
        %v3713 = vmul.f32 %v3679, %v3709
        %v3714 = vmul.f32 %v3680, %v3705
        %v3715 = vmul.f32 %v3681, %v3709
        %v3716 = vmul.f32 %v3682, %v3705
        %v3717 = vmul.f32 %v3683, %v3709
        %v3718 = vmul.f32 %v3684, %v3705
        %v3719 = vmul.f32 %v3685, %v3709
        %v3720 = vmul.f32 %v3686, %v3705
        %v3721 = vmul.f32 %v3687, %v3709
        %v3722 = vmul.f32 %v3688, %v3705
        %v3723 = vmul.f32 %v3689, %v3709
        %v3724 = vmul.f32 %v3690, %v3705
        %v3725 = vmul.f32 %v3691, %v3709
        %v3742 = vrot.slane %v3710, 2
        %v3743 = vrot.slane %v3712, 2
        %v3744 = vsel %vm1248, %v3742, %v3743
        %v3745 = vrot.slane %v3711, 2
        %v3746 = vrot.slane %v3713, 2
        %v3747 = vsel %vm1248, %v3745, %v3746
        %v3748 = vrot.slane %v3714, 2
        %v3749 = vrot.slane %v3716, 2
        %v3750 = vsel %vm1248, %v3748, %v3749
        %v3751 = vrot.slane %v3715, 2
        %v3752 = vrot.slane %v3717, 2
        %v3753 = vsel %vm1248, %v3751, %v3752
        %v3754 = vrot.slane %v3718, 2
        %v3755 = vrot.slane %v3720, 2
        %v3756 = vsel %vm1248, %v3754, %v3755
        %v3757 = vrot.slane %v3719, 2
        %v3758 = vrot.slane %v3721, 2
        %v3759 = vsel %vm1248, %v3757, %v3758
        %v3760 = vrot.slane %v3722, 2
        %v3761 = vrot.slane %v3724, 2
        %v3762 = vsel %vm1248, %v3760, %v3761
        %v3763 = vrot.slane %v3723, 2
        %v3764 = vrot.slane %v3725, 2
        %v3765 = vsel %vm1248, %v3763, %v3764
        %v3774 = vadd.f32 %v3668, %v3744
        %v3775 = vadd.f32 %v3669, %v3747
        %v3776 = vadd.f32 %v3670, %v3750
        %v3777 = vadd.f32 %v3671, %v3753
        %v3778 = vadd.f32 %v3672, %v3756
        %v3779 = vadd.f32 %v3673, %v3759
        %v3780 = vadd.f32 %v3674, %v3762
        %v3781 = vadd.f32 %v3675, %v3765
        %v3782 = vld [vmem:[%s1004] sm:$0xff]
        %v3783 = vld [vmem:[%s1004 + $0x8] sm:$0xff]
        %v3784 = vld [vmem:[%s1004 + $0x40] sm:$0xff]
        %v3785 = vld [vmem:[%s1004 + $0x48] sm:$0xff]
        %v3786 = vld [vmem:[%s1004 + $0x80] sm:$0xff]
        %v3787 = vld [vmem:[%s1004 + $0x88] sm:$0xff]
        %v3788 = vld [vmem:[%s1004 + $0xc0] sm:$0xff]
        %v3789 = vld [vmem:[%s1004 + $0xc8] sm:$0xff]
        %v3791 = vlaneseq
        %v3792 = vshrl.u32 %v3791, 7
        %v3793 = vsub.s32 0, %v3792
        %v3794 = vrot.slane %v3533, %v3793
        %v3795 = vlaneseq
        %v3796 = vshrl.u32 %v3795, 7
        %v3797 = vsub.s32 4, %v3796
        %v3798 = vrot.slane %v3533, %v3797
        %v3801 = vlaneseq
        %v3802 = vshrl.u32 %v3801, 7
        %v3803 = vsub.s32 0, %v3802
        %v3804 = vrot.slane %v3794, %v3803
        %v3805 = vlaneseq
        %v3806 = vshrl.u32 %v3805, 7
        %v3807 = vsub.s32 0, %v3806
        %v3808 = vrot.slane %v3798, %v3807
        %v3809 = vmul.f32 %v3782, %v3804
        %v3810 = vmul.f32 %v3783, %v3808
        %v3811 = vmul.f32 %v3784, %v3804
        %v3812 = vmul.f32 %v3785, %v3808
        %v3813 = vmul.f32 %v3786, %v3804
        %v3814 = vmul.f32 %v3787, %v3808
        %v3815 = vmul.f32 %v3788, %v3804
        %v3816 = vmul.f32 %v3789, %v3808
        %v3817 = vadd.f32 %v3774, %v3809
        %v3818 = vadd.f32 %v3775, %v3810
        %v3819 = vadd.f32 %v3776, %v3811
        %v3820 = vadd.f32 %v3777, %v3812
        %v3821 = vadd.f32 %v3778, %v3813
        %v3822 = vadd.f32 %v3779, %v3814
        %v3823 = vadd.f32 %v3780, %v3815
        %v3824 = vadd.f32 %v3781, %v3816
        %v3825 = vld [vmem:[%s1004] sm:$0xfe]
        %v3826 = vld [vmem:[%s1004 + $0x8] sm:$0xfe]
        %v3827 = vld [vmem:[%s1004 + $0x10] sm:$0x1]
        %v3828 = vld [vmem:[%s1004 + $0x18] sm:$0x1]
        %v3829 = vld [vmem:[%s1004 + $0x40] sm:$0xfe]
        %v3830 = vld [vmem:[%s1004 + $0x48] sm:$0xfe]
        %v3831 = vld [vmem:[%s1004 + $0x50] sm:$0x1]
        %v3832 = vld [vmem:[%s1004 + $0x58] sm:$0x1]
        %v3833 = vld [vmem:[%s1004 + $0x80] sm:$0xfe]
        %v3834 = vld [vmem:[%s1004 + $0x88] sm:$0xfe]
        %v3835 = vld [vmem:[%s1004 + $0x90] sm:$0x1]
        %v3836 = vld [vmem:[%s1004 + $0x98] sm:$0x1]
        %v3837 = vld [vmem:[%s1004 + $0xc0] sm:$0xfe]
        %v3838 = vld [vmem:[%s1004 + $0xc8] sm:$0xfe]
        %v3839 = vld [vmem:[%s1004 + $0xd0] sm:$0x1]
        %v3840 = vld [vmem:[%s1004 + $0xd8] sm:$0x1]
        %v3841 = vlaneseq
        %v3842 = vshrl.u32 %v3841, 7
        %v3843 = vsub.s32 1, %v3842
        %v3844 = vrot.slane %v3533, %v3843
        %v3845 = vlaneseq
        %v3846 = vshrl.u32 %v3845, 7
        %v3847 = vsub.s32 5, %v3846
        %v3848 = vrot.slane %v3533, %v3847
        %v3851 = vlaneseq
        %v3852 = vshrl.u32 %v3851, 7
        %v3853 = vsub.s32 1, %v3852
        %v3854 = vrot.slane %v3844, %v3853
        %v3855 = vlaneseq
        %v3856 = vshrl.u32 %v3855, 7
        %v3857 = vsub.s32 1, %v3856
        %v3858 = vrot.slane %v3848, %v3857
        %v3859 = vmul.f32 %v3825, %v3854
        %v3860 = vmul.f32 %v3826, %v3858
        %v3861 = vmul.f32 %v3827, %v3854
        %v3862 = vmul.f32 %v3828, %v3858
        %v3863 = vmul.f32 %v3829, %v3854
        %v3864 = vmul.f32 %v3830, %v3858
        %v3865 = vmul.f32 %v3831, %v3854
        %v3866 = vmul.f32 %v3832, %v3858
        %v3867 = vmul.f32 %v3833, %v3854
        %v3868 = vmul.f32 %v3834, %v3858
        %v3869 = vmul.f32 %v3835, %v3854
        %v3870 = vmul.f32 %v3836, %v3858
        %v3871 = vmul.f32 %v3837, %v3854
        %v3872 = vmul.f32 %v3838, %v3858
        %v3873 = vmul.f32 %v3839, %v3854
        %v3874 = vmul.f32 %v3840, %v3858
        %v3891 = vrot.slane %v3859, 1
        %v3892 = vrot.slane %v3861, 1
        %v3893 = vsel %vm1141, %v3891, %v3892
        %v3894 = vrot.slane %v3860, 1
        %v3895 = vrot.slane %v3862, 1
        %v3896 = vsel %vm1141, %v3894, %v3895
        %v3897 = vrot.slane %v3863, 1
        %v3898 = vrot.slane %v3865, 1
        %v3899 = vsel %vm1141, %v3897, %v3898
        %v3900 = vrot.slane %v3864, 1
        %v3901 = vrot.slane %v3866, 1
        %v3902 = vsel %vm1141, %v3900, %v3901
        %v3903 = vrot.slane %v3867, 1
        %v3904 = vrot.slane %v3869, 1
        %v3905 = vsel %vm1141, %v3903, %v3904
        %v3906 = vrot.slane %v3868, 1
        %v3907 = vrot.slane %v3870, 1
        %v3908 = vsel %vm1141, %v3906, %v3907
        %v3909 = vrot.slane %v3871, 1
        %v3910 = vrot.slane %v3873, 1
        %v3911 = vsel %vm1141, %v3909, %v3910
        %v3912 = vrot.slane %v3872, 1
        %v3913 = vrot.slane %v3874, 1
        %v3914 = vsel %vm1141, %v3912, %v3913
        %v3923 = vadd.f32 %v3817, %v3893
        %v3924 = vadd.f32 %v3818, %v3896
        %v3925 = vadd.f32 %v3819, %v3899
        %v3926 = vadd.f32 %v3820, %v3902
        %v3927 = vadd.f32 %v3821, %v3905
        %v3928 = vadd.f32 %v3822, %v3908
        %v3929 = vadd.f32 %v3823, %v3911
        %v3930 = vadd.f32 %v3824, %v3914
        %v3931 = vld [vmem:[%s1004] sm:$0xfc]
        %v3932 = vld [vmem:[%s1004 + $0x8] sm:$0xfc]
        %v3933 = vld [vmem:[%s1004 + $0x10] sm:$0x3]
        %v3934 = vld [vmem:[%s1004 + $0x18] sm:$0x3]
        %v3935 = vld [vmem:[%s1004 + $0x40] sm:$0xfc]
        %v3936 = vld [vmem:[%s1004 + $0x48] sm:$0xfc]
        %v3937 = vld [vmem:[%s1004 + $0x50] sm:$0x3]
        %v3938 = vld [vmem:[%s1004 + $0x58] sm:$0x3]
        %v3939 = vld [vmem:[%s1004 + $0x80] sm:$0xfc]
        %v3940 = vld [vmem:[%s1004 + $0x88] sm:$0xfc]
        %v3941 = vld [vmem:[%s1004 + $0x90] sm:$0x3]
        %v3942 = vld [vmem:[%s1004 + $0x98] sm:$0x3]
        %v3943 = vld [vmem:[%s1004 + $0xc0] sm:$0xfc]
        %v3944 = vld [vmem:[%s1004 + $0xc8] sm:$0xfc]
        %v3945 = vld [vmem:[%s1004 + $0xd0] sm:$0x3]
        %v3946 = vld [vmem:[%s1004 + $0xd8] sm:$0x3]
        %v3947 = vlaneseq
        %v3948 = vshrl.u32 %v3947, 7
        %v3949 = vsub.s32 2, %v3948
        %v3950 = vrot.slane %v3533, %v3949
        %v3951 = vlaneseq
        %v3952 = vshrl.u32 %v3951, 7
        %v3953 = vsub.s32 6, %v3952
        %v3954 = vrot.slane %v3533, %v3953
        %v3957 = vlaneseq
        %v3958 = vshrl.u32 %v3957, 7
        %v3959 = vsub.s32 2, %v3958
        %v3960 = vrot.slane %v3950, %v3959
        %v3961 = vlaneseq
        %v3962 = vshrl.u32 %v3961, 7
        %v3963 = vsub.s32 2, %v3962
        %v3964 = vrot.slane %v3954, %v3963
        %v3965 = vmul.f32 %v3931, %v3960
        %v3966 = vmul.f32 %v3932, %v3964
        %v3967 = vmul.f32 %v3933, %v3960
        %v3968 = vmul.f32 %v3934, %v3964
        %v3969 = vmul.f32 %v3935, %v3960
        %v3970 = vmul.f32 %v3936, %v3964
        %v3971 = vmul.f32 %v3937, %v3960
        %v3972 = vmul.f32 %v3938, %v3964
        %v3973 = vmul.f32 %v3939, %v3960
        %v3974 = vmul.f32 %v3940, %v3964
        %v3975 = vmul.f32 %v3941, %v3960
        %v3976 = vmul.f32 %v3942, %v3964
        %v3977 = vmul.f32 %v3943, %v3960
        %v3978 = vmul.f32 %v3944, %v3964
        %v3979 = vmul.f32 %v3945, %v3960
        %v3980 = vmul.f32 %v3946, %v3964
        %v3997 = vrot.slane %v3965, 2
        %v3998 = vrot.slane %v3967, 2
        %v3999 = vsel %vm1248, %v3997, %v3998
        %v4000 = vrot.slane %v3966, 2
        %v4001 = vrot.slane %v3968, 2
        %v4002 = vsel %vm1248, %v4000, %v4001
        %v4003 = vrot.slane %v3969, 2
        %v4004 = vrot.slane %v3971, 2
        %v4005 = vsel %vm1248, %v4003, %v4004
        %v4006 = vrot.slane %v3970, 2
        %v4007 = vrot.slane %v3972, 2
        %v4008 = vsel %vm1248, %v4006, %v4007
        %v4009 = vrot.slane %v3973, 2
        %v4010 = vrot.slane %v3975, 2
        %v4011 = vsel %vm1248, %v4009, %v4010
        %v4012 = vrot.slane %v3974, 2
        %v4013 = vrot.slane %v3976, 2
        %v4014 = vsel %vm1248, %v4012, %v4013
        %v4015 = vrot.slane %v3977, 2
        %v4016 = vrot.slane %v3979, 2
        %v4017 = vsel %vm1248, %v4015, %v4016
        %v4018 = vrot.slane %v3978, 2
        %v4019 = vrot.slane %v3980, 2
        %v4020 = vsel %vm1248, %v4018, %v4019
        %v4029 = vadd.f32 %v3923, %v3999
        %v4030 = vadd.f32 %v3924, %v4002
        %v4031 = vadd.f32 %v3925, %v4005
        %v4032 = vadd.f32 %v3926, %v4008
        %v4033 = vadd.f32 %v3927, %v4011
        %v4034 = vadd.f32 %v3928, %v4014
        %v4035 = vadd.f32 %v3929, %v4017
        %v4036 = vadd.f32 %v3930, %v4020
        %v4037 = vld [vmem:[%s1544] sm:$0xff]
        %v4038 = vld [vmem:[%s1544 + $0x8] sm:$0xff]
        %v4039 = vld [vmem:[%s1544 + $0x40] sm:$0xff]
        %v4040 = vld [vmem:[%s1544 + $0x48] sm:$0xff]
        %v4041 = vld [vmem:[%s1544 + $0x80] sm:$0xff]
        %v4042 = vld [vmem:[%s1544 + $0x88] sm:$0xff]
        %v4043 = vld [vmem:[%s1544 + $0xc0] sm:$0xff]
        %v4044 = vld [vmem:[%s1544 + $0xc8] sm:$0xff]
        %v4046 = vlaneseq
        %v4047 = vshrl.u32 %v4046, 7
        %v4048 = vsub.s32 0, %v4047
        %v4049 = vrot.slane %v3534, %v4048
        %v4050 = vlaneseq
        %v4051 = vshrl.u32 %v4050, 7
        %v4052 = vsub.s32 4, %v4051
        %v4053 = vrot.slane %v3534, %v4052
        %v4056 = vlaneseq
        %v4057 = vshrl.u32 %v4056, 7
        %v4058 = vsub.s32 0, %v4057
        %v4059 = vrot.slane %v4049, %v4058
        %v4060 = vlaneseq
        %v4061 = vshrl.u32 %v4060, 7
        %v4062 = vsub.s32 0, %v4061
        %v4063 = vrot.slane %v4053, %v4062
        %v4064 = vmul.f32 %v4037, %v4059
        %v4065 = vmul.f32 %v4038, %v4063
        %v4066 = vmul.f32 %v4039, %v4059
        %v4067 = vmul.f32 %v4040, %v4063
        %v4068 = vmul.f32 %v4041, %v4059
        %v4069 = vmul.f32 %v4042, %v4063
        %v4070 = vmul.f32 %v4043, %v4059
        %v4071 = vmul.f32 %v4044, %v4063
        %v4072 = vadd.f32 %v4029, %v4064
        %v4073 = vadd.f32 %v4030, %v4065
        %v4074 = vadd.f32 %v4031, %v4066
        %v4075 = vadd.f32 %v4032, %v4067
        %v4076 = vadd.f32 %v4033, %v4068
        %v4077 = vadd.f32 %v4034, %v4069
        %v4078 = vadd.f32 %v4035, %v4070
        %v4079 = vadd.f32 %v4036, %v4071
        %v4080 = vld [vmem:[%s1544] sm:$0xfe]
        %v4081 = vld [vmem:[%s1544 + $0x8] sm:$0xfe]
        %v4082 = vld [vmem:[%s1544 + $0x10] sm:$0x1]
        %v4083 = vld [vmem:[%s1544 + $0x18] sm:$0x1]
        %v4084 = vld [vmem:[%s1544 + $0x40] sm:$0xfe]
        %v4085 = vld [vmem:[%s1544 + $0x48] sm:$0xfe]
        %v4086 = vld [vmem:[%s1544 + $0x50] sm:$0x1]
        %v4087 = vld [vmem:[%s1544 + $0x58] sm:$0x1]
        %v4088 = vld [vmem:[%s1544 + $0x80] sm:$0xfe]
        %v4089 = vld [vmem:[%s1544 + $0x88] sm:$0xfe]
        %v4090 = vld [vmem:[%s1544 + $0x90] sm:$0x1]
        %v4091 = vld [vmem:[%s1544 + $0x98] sm:$0x1]
        %v4092 = vld [vmem:[%s1544 + $0xc0] sm:$0xfe]
        %v4093 = vld [vmem:[%s1544 + $0xc8] sm:$0xfe]
        %v4094 = vld [vmem:[%s1544 + $0xd0] sm:$0x1]
        %v4095 = vld [vmem:[%s1544 + $0xd8] sm:$0x1]
        %v4096 = vlaneseq
        %v4097 = vshrl.u32 %v4096, 7
        %v4098 = vsub.s32 1, %v4097
        %v4099 = vrot.slane %v3534, %v4098
        %v4100 = vlaneseq
        %v4101 = vshrl.u32 %v4100, 7
        %v4102 = vsub.s32 5, %v4101
        %v4103 = vrot.slane %v3534, %v4102
        %v4106 = vlaneseq
        %v4107 = vshrl.u32 %v4106, 7
        %v4108 = vsub.s32 1, %v4107
        %v4109 = vrot.slane %v4099, %v4108
        %v4110 = vlaneseq
        %v4111 = vshrl.u32 %v4110, 7
        %v4112 = vsub.s32 1, %v4111
        %v4113 = vrot.slane %v4103, %v4112
        %v4114 = vmul.f32 %v4080, %v4109
        %v4115 = vmul.f32 %v4081, %v4113
        %v4116 = vmul.f32 %v4082, %v4109
        %v4117 = vmul.f32 %v4083, %v4113
        %v4118 = vmul.f32 %v4084, %v4109
        %v4119 = vmul.f32 %v4085, %v4113
        %v4120 = vmul.f32 %v4086, %v4109
        %v4121 = vmul.f32 %v4087, %v4113
        %v4122 = vmul.f32 %v4088, %v4109
        %v4123 = vmul.f32 %v4089, %v4113
        %v4124 = vmul.f32 %v4090, %v4109
        %v4125 = vmul.f32 %v4091, %v4113
        %v4126 = vmul.f32 %v4092, %v4109
        %v4127 = vmul.f32 %v4093, %v4113
        %v4128 = vmul.f32 %v4094, %v4109
        %v4129 = vmul.f32 %v4095, %v4113
        %v4146 = vrot.slane %v4114, 1
        %v4147 = vrot.slane %v4116, 1
        %v4148 = vsel %vm1141, %v4146, %v4147
        %v4149 = vrot.slane %v4115, 1
        %v4150 = vrot.slane %v4117, 1
        %v4151 = vsel %vm1141, %v4149, %v4150
        %v4152 = vrot.slane %v4118, 1
        %v4153 = vrot.slane %v4120, 1
        %v4154 = vsel %vm1141, %v4152, %v4153
        %v4155 = vrot.slane %v4119, 1
        %v4156 = vrot.slane %v4121, 1
        %v4157 = vsel %vm1141, %v4155, %v4156
        %v4158 = vrot.slane %v4122, 1
        %v4159 = vrot.slane %v4124, 1
        %v4160 = vsel %vm1141, %v4158, %v4159
        %v4161 = vrot.slane %v4123, 1
        %v4162 = vrot.slane %v4125, 1
        %v4163 = vsel %vm1141, %v4161, %v4162
        %v4164 = vrot.slane %v4126, 1
        %v4165 = vrot.slane %v4128, 1
        %v4166 = vsel %vm1141, %v4164, %v4165
        %v4167 = vrot.slane %v4127, 1
        %v4168 = vrot.slane %v4129, 1
        %v4169 = vsel %vm1141, %v4167, %v4168
        %v4178 = vadd.f32 %v4072, %v4148
        %v4179 = vadd.f32 %v4073, %v4151
        %v4180 = vadd.f32 %v4074, %v4154
        %v4181 = vadd.f32 %v4075, %v4157
        %v4182 = vadd.f32 %v4076, %v4160
        %v4183 = vadd.f32 %v4077, %v4163
        %v4184 = vadd.f32 %v4078, %v4166
        %v4185 = vadd.f32 %v4079, %v4169
        %v4186 = vld [vmem:[%s1544] sm:$0xfc]
        %v4187 = vld [vmem:[%s1544 + $0x8] sm:$0xfc]
        %v4188 = vld [vmem:[%s1544 + $0x10] sm:$0x3]
        %v4189 = vld [vmem:[%s1544 + $0x18] sm:$0x3]
        %v4190 = vld [vmem:[%s1544 + $0x40] sm:$0xfc]
        %v4191 = vld [vmem:[%s1544 + $0x48] sm:$0xfc]
        %v4192 = vld [vmem:[%s1544 + $0x50] sm:$0x3]
        %v4193 = vld [vmem:[%s1544 + $0x58] sm:$0x3]
        %v4194 = vld [vmem:[%s1544 + $0x80] sm:$0xfc]
        %v4195 = vld [vmem:[%s1544 + $0x88] sm:$0xfc]
        %v4196 = vld [vmem:[%s1544 + $0x90] sm:$0x3]
        %v4197 = vld [vmem:[%s1544 + $0x98] sm:$0x3]
        %v4198 = vld [vmem:[%s1544 + $0xc0] sm:$0xfc]
        %v4199 = vld [vmem:[%s1544 + $0xc8] sm:$0xfc]
        %v4200 = vld [vmem:[%s1544 + $0xd0] sm:$0x3]
        %v4201 = vld [vmem:[%s1544 + $0xd8] sm:$0x3]
        %v4202 = vlaneseq
        %v4203 = vshrl.u32 %v4202, 7
        %v4204 = vsub.s32 2, %v4203
        %v4205 = vrot.slane %v3534, %v4204
        %v4206 = vlaneseq
        %v4207 = vshrl.u32 %v4206, 7
        %v4208 = vsub.s32 6, %v4207
        %v4209 = vrot.slane %v3534, %v4208
        %v4212 = vlaneseq
        %v4213 = vshrl.u32 %v4212, 7
        %v4214 = vsub.s32 2, %v4213
        %v4215 = vrot.slane %v4205, %v4214
        %v4216 = vlaneseq
        %v4217 = vshrl.u32 %v4216, 7
        %v4218 = vsub.s32 2, %v4217
        %v4219 = vrot.slane %v4209, %v4218
        %v4220 = vmul.f32 %v4186, %v4215
        %v4221 = vmul.f32 %v4187, %v4219
        %v4222 = vmul.f32 %v4188, %v4215
        %v4223 = vmul.f32 %v4189, %v4219
        %v4224 = vmul.f32 %v4190, %v4215
        %v4225 = vmul.f32 %v4191, %v4219
        %v4226 = vmul.f32 %v4192, %v4215
        %v4227 = vmul.f32 %v4193, %v4219
        %v4228 = vmul.f32 %v4194, %v4215
        %v4229 = vmul.f32 %v4195, %v4219
        %v4230 = vmul.f32 %v4196, %v4215
        %v4231 = vmul.f32 %v4197, %v4219
        %v4232 = vmul.f32 %v4198, %v4215
        %v4233 = vmul.f32 %v4199, %v4219
        %v4234 = vmul.f32 %v4200, %v4215
        %v4235 = vmul.f32 %v4201, %v4219
        %v4252 = vrot.slane %v4220, 2
        %v4253 = vrot.slane %v4222, 2
        %v4254 = vsel %vm1248, %v4252, %v4253
        %v4255 = vrot.slane %v4221, 2
        %v4256 = vrot.slane %v4223, 2
        %v4257 = vsel %vm1248, %v4255, %v4256
        %v4258 = vrot.slane %v4224, 2
        %v4259 = vrot.slane %v4226, 2
        %v4260 = vsel %vm1248, %v4258, %v4259
        %v4261 = vrot.slane %v4225, 2
        %v4262 = vrot.slane %v4227, 2
        %v4263 = vsel %vm1248, %v4261, %v4262
        %v4264 = vrot.slane %v4228, 2
        %v4265 = vrot.slane %v4230, 2
        %v4266 = vsel %vm1248, %v4264, %v4265
        %v4267 = vrot.slane %v4229, 2
        %v4268 = vrot.slane %v4231, 2
        %v4269 = vsel %vm1248, %v4267, %v4268
        %v4270 = vrot.slane %v4232, 2
        %v4271 = vrot.slane %v4234, 2
        %v4272 = vsel %vm1248, %v4270, %v4271
        %v4273 = vrot.slane %v4233, 2
        %v4274 = vrot.slane %v4235, 2
        %v4275 = vsel %vm1248, %v4273, %v4274
        %v4284 = vadd.f32 %v4178, %v4254
        %v4285 = vadd.f32 %v4179, %v4257
        %v4286 = vadd.f32 %v4180, %v4260
        %v4287 = vadd.f32 %v4181, %v4263
        %v4288 = vadd.f32 %v4182, %v4266
        %v4289 = vadd.f32 %v4183, %v4269
        %v4290 = vadd.f32 %v4184, %v4272
        %v4291 = vadd.f32 %v4185, %v4275
        %v4294 = vcombine.low %v4284, %v4285
        %v4296 = vunpack.c.l.s4 1966171168
        %v4297 = vunpack.c.0.s8 %v4296
        %v4298 = vlaneseq
        %v4299 = vshrl.u32 %v4298, 7
        %v4300 = vsub.s32 %v4297, %v4299
        %v4301 = vrot.slane %v4294, %v4300
        %v4303 = vunpack.c.l.s4 1966171168
        %v4304 = vunpack.c.0.s8 %v4303
        %v4305 = vlaneseq
        %v4306 = vshrl.u32 %v4305, 7
        %v4307 = vsub.s32 %v4304, %v4306
        %v4308 = vrot.slane %v4301, %v4307
        %4310 = vst.msk [vmem:[#allocation4] ss:$8 sm:$0x3] %vm1821, %v4308
        %4311 = vst.msk [vmem:[#allocation4] ss:$8 sm:$0x0] %vm1821, %v4308
        %v4312 = vcombine.high %v4308, %v4308
        %4314 = vst.msk [vmem:[%s1826] ss:$8 sm:$0x3] %vm1821, %v4312
        %4315 = vst.msk [vmem:[%s1826] ss:$8 sm:$0x0] %vm1821, %v4312
        %v4316 = vcombine.high %v4284, %v4285
        %v4318 = vunpack.c.l.s4 1966171168
        %v4319 = vunpack.c.0.s8 %v4318
        %v4320 = vlaneseq
        %v4321 = vshrl.u32 %v4320, 7
        %v4322 = vsub.s32 %v4319, %v4321
        %v4323 = vrot.slane %v4316, %v4322
        %v4325 = vunpack.c.l.s4 1966171168
        %v4326 = vunpack.c.0.s8 %v4325
        %v4327 = vlaneseq
        %v4328 = vshrl.u32 %v4327, 7
        %v4329 = vsub.s32 %v4326, %v4328
        %v4330 = vrot.slane %v4323, %v4329
        %4332 = vst.msk [vmem:[%s1845] ss:$8 sm:$0x3] %vm1821, %v4330
        %4333 = vst.msk [vmem:[%s1845] ss:$8 sm:$0x0] %vm1821, %v4330
        %v4334 = vcombine.high %v4330, %v4330
        %4336 = vst.msk [vmem:[%s1850] ss:$8 sm:$0x3] %vm1821, %v4334
        %4337 = vst.msk [vmem:[%s1850] ss:$8 sm:$0x0] %vm1821, %v4334
        %v4340 = vcombine.low %v4286, %v4287
        %v4342 = vunpack.c.l.s4 1966171168
        %v4343 = vunpack.c.0.s8 %v4342
        %v4344 = vlaneseq
        %v4345 = vshrl.u32 %v4344, 7
        %v4346 = vsub.s32 %v4343, %v4345
        %v4347 = vrot.slane %v4340, %v4346
        %v4349 = vunpack.c.l.s4 1966171168
        %v4350 = vunpack.c.0.s8 %v4349
        %v4351 = vlaneseq
        %v4352 = vshrl.u32 %v4351, 7
        %v4353 = vsub.s32 %v4350, %v4352
        %v4354 = vrot.slane %v4347, %v4353
        %4356 = vst.msk [vmem:[%s1871] ss:$8 sm:$0x3] %vm1821, %v4354
        %4357 = vst.msk [vmem:[%s1871] ss:$8 sm:$0x0] %vm1821, %v4354
        %v4358 = vcombine.high %v4354, %v4354
        %4360 = vst.msk [vmem:[%s1876] ss:$8 sm:$0x3] %vm1821, %v4358
        %4361 = vst.msk [vmem:[%s1876] ss:$8 sm:$0x0] %vm1821, %v4358
        %v4362 = vcombine.high %v4286, %v4287
        %v4364 = vunpack.c.l.s4 1966171168
        %v4365 = vunpack.c.0.s8 %v4364
        %v4366 = vlaneseq
        %v4367 = vshrl.u32 %v4366, 7
        %v4368 = vsub.s32 %v4365, %v4367
        %v4369 = vrot.slane %v4362, %v4368
        %v4371 = vunpack.c.l.s4 1966171168
        %v4372 = vunpack.c.0.s8 %v4371
        %v4373 = vlaneseq
        %v4374 = vshrl.u32 %v4373, 7
        %v4375 = vsub.s32 %v4372, %v4374
        %v4376 = vrot.slane %v4369, %v4375
        %4378 = vst.msk [vmem:[%s1895] ss:$8 sm:$0x3] %vm1821, %v4376
        %4379 = vst.msk [vmem:[%s1895] ss:$8 sm:$0x0] %vm1821, %v4376
        %v4380 = vcombine.high %v4376, %v4376
        %4382 = vst.msk [vmem:[%s1900] ss:$8 sm:$0x3] %vm1821, %v4380
        %4383 = vst.msk [vmem:[%s1900] ss:$8 sm:$0x0] %vm1821, %v4380
        %v4386 = vcombine.low %v4288, %v4289
        %v4388 = vunpack.c.l.s4 1966171168
        %v4389 = vunpack.c.0.s8 %v4388
        %v4390 = vlaneseq
        %v4391 = vshrl.u32 %v4390, 7
        %v4392 = vsub.s32 %v4389, %v4391
        %v4393 = vrot.slane %v4386, %v4392
        %v4395 = vunpack.c.l.s4 1966171168
        %v4396 = vunpack.c.0.s8 %v4395
        %v4397 = vlaneseq
        %v4398 = vshrl.u32 %v4397, 7
        %v4399 = vsub.s32 %v4396, %v4398
        %v4400 = vrot.slane %v4393, %v4399
        %4402 = vst.msk [vmem:[%s1921] ss:$8 sm:$0x3] %vm1821, %v4400
        %4403 = vst.msk [vmem:[%s1921] ss:$8 sm:$0x0] %vm1821, %v4400
        %v4404 = vcombine.high %v4400, %v4400
        %4406 = vst.msk [vmem:[%s1926] ss:$8 sm:$0x3] %vm1821, %v4404
        %4407 = vst.msk [vmem:[%s1926] ss:$8 sm:$0x0] %vm1821, %v4404
        %v4408 = vcombine.high %v4288, %v4289
        %v4410 = vunpack.c.l.s4 1966171168
        %v4411 = vunpack.c.0.s8 %v4410
        %v4412 = vlaneseq
        %v4413 = vshrl.u32 %v4412, 7
        %v4414 = vsub.s32 %v4411, %v4413
        %v4415 = vrot.slane %v4408, %v4414
        %v4417 = vunpack.c.l.s4 1966171168
        %v4418 = vunpack.c.0.s8 %v4417
        %v4419 = vlaneseq
        %v4420 = vshrl.u32 %v4419, 7
        %v4421 = vsub.s32 %v4418, %v4420
        %v4422 = vrot.slane %v4415, %v4421
        %4424 = vst.msk [vmem:[%s1945] ss:$8 sm:$0x3] %vm1821, %v4422
        %4425 = vst.msk [vmem:[%s1945] ss:$8 sm:$0x0] %vm1821, %v4422
        %v4426 = vcombine.high %v4422, %v4422
        %4428 = vst.msk [vmem:[%s1950] ss:$8 sm:$0x3] %vm1821, %v4426
        %4429 = vst.msk [vmem:[%s1950] ss:$8 sm:$0x0] %vm1821, %v4426
        %v4432 = vcombine.low %v4290, %v4291
        %v4434 = vunpack.c.l.s4 1966171168
        %v4435 = vunpack.c.0.s8 %v4434
        %v4436 = vlaneseq
        %v4437 = vshrl.u32 %v4436, 7
        %v4438 = vsub.s32 %v4435, %v4437
        %v4439 = vrot.slane %v4432, %v4438
        %v4441 = vunpack.c.l.s4 1966171168
        %v4442 = vunpack.c.0.s8 %v4441
        %v4443 = vlaneseq
        %v4444 = vshrl.u32 %v4443, 7
        %v4445 = vsub.s32 %v4442, %v4444
        %v4446 = vrot.slane %v4439, %v4445
        %4448 = vst.msk [vmem:[%s1971] ss:$8 sm:$0x3] %vm1821, %v4446
        %4449 = vst.msk [vmem:[%s1971] ss:$8 sm:$0x0] %vm1821, %v4446
        %v4450 = vcombine.high %v4446, %v4446
        %4452 = vst.msk [vmem:[%s1976] ss:$8 sm:$0x3] %vm1821, %v4450
        %4453 = vst.msk [vmem:[%s1976] ss:$8 sm:$0x0] %vm1821, %v4450
        %v4454 = vcombine.high %v4290, %v4291
        %v4456 = vunpack.c.l.s4 1966171168
        %v4457 = vunpack.c.0.s8 %v4456
        %v4458 = vlaneseq
        %v4459 = vshrl.u32 %v4458, 7
        %v4460 = vsub.s32 %v4457, %v4459
        %v4461 = vrot.slane %v4454, %v4460
        %v4463 = vunpack.c.l.s4 1966171168
        %v4464 = vunpack.c.0.s8 %v4463
        %v4465 = vlaneseq
        %v4466 = vshrl.u32 %v4465, 7
        %v4467 = vsub.s32 %v4464, %v4466
        %v4468 = vrot.slane %v4461, %v4467
        %4470 = vst.msk [vmem:[%s1995] ss:$8 sm:$0x3] %vm1821, %v4468
        %4471 = vst.msk [vmem:[%s1995] ss:$8 sm:$0x0] %vm1821, %v4468
        %v4472 = vcombine.high %v4468, %v4468
        %4474 = vst.msk [vmem:[%s2000] ss:$8 sm:$0x3] %vm1821, %v4472
        %4475 = vst.msk [vmem:[%s2000] ss:$8 sm:$0x0] %vm1821, %v4472
        %v4476 = vld [vmem:[#allocation4] sm:$0xff]
        %v4477 = vld [vmem:[#allocation4 + $0x8] sm:$0xff]
        %v4478 = vld [vmem:[#allocation4 + $0x10] sm:$0xff]
        %v4479 = vld [vmem:[#allocation4 + $0x18] sm:$0xff]
        %v4480 = vpack.c.bf16 %v4478, %v4476
        %v4481 = vpack.c.bf16 %v4479, %v4477
        %v4482 = vld [vmem:[#allocation20] sm:$0xff]
        %v4483 = vld [vmem:[#allocation20 + $0x8] sm:$0xff]
        %v4484 = vld [vmem:[#allocation20 + $0x10] sm:$0xff]
        %v4485 = vld [vmem:[#allocation20 + $0x18] sm:$0xff]
        %v4486 = vld [vmem:[#allocation20 + $0x20] sm:$0xff]
        %v4487 = vld [vmem:[#allocation20 + $0x28] sm:$0xff]
        %v4488 = vld [vmem:[#allocation20 + $0x30] sm:$0xff]
        %v4489 = vld [vmem:[#allocation20 + $0x38] sm:$0xff]
        %v4490 = vld [vmem:[#allocation20 + $0x40] sm:$0xff]
        %v4491 = vld [vmem:[#allocation20 + $0x48] sm:$0xff]
        %v4492 = vld [vmem:[#allocation20 + $0x50] sm:$0xff]
        %v4493 = vld [vmem:[#allocation20 + $0x58] sm:$0xff]
        %v4494 = vld [vmem:[#allocation20 + $0x60] sm:$0xff]
        %v4495 = vld [vmem:[#allocation20 + $0x68] sm:$0xff]
        %v4496 = vld [vmem:[#allocation20 + $0x70] sm:$0xff]
        %v4497 = vld [vmem:[#allocation20 + $0x78] sm:$0xff]
        %v4498 = vld [vmem:[#allocation20 + $0x80] sm:$0xff]
        %v4499 = vld [vmem:[#allocation20 + $0x88] sm:$0xff]
        %v4500 = vld [vmem:[#allocation20 + $0x90] sm:$0xff]
        %v4501 = vld [vmem:[#allocation20 + $0x98] sm:$0xff]
        %v4502 = vld [vmem:[#allocation20 + $0xa0] sm:$0xff]
        %v4503 = vld [vmem:[#allocation20 + $0xa8] sm:$0xff]
        %v4504 = vld [vmem:[#allocation20 + $0xb0] sm:$0xff]
        %v4505 = vld [vmem:[#allocation20 + $0xb8] sm:$0xff]
        %v4506 = vld [vmem:[#allocation20 + $0xc0] sm:$0xff]
        %v4507 = vld [vmem:[#allocation20 + $0xc8] sm:$0xff]
        %v4508 = vld [vmem:[#allocation20 + $0xd0] sm:$0xff]
        %v4509 = vld [vmem:[#allocation20 + $0xd8] sm:$0xff]
        %v4510 = vld [vmem:[#allocation20 + $0xe0] sm:$0xff]
        %v4511 = vld [vmem:[#allocation20 + $0xe8] sm:$0xff]
        %v4512 = vld [vmem:[#allocation20 + $0xf0] sm:$0xff]
        %v4513 = vld [vmem:[#allocation20 + $0xf8] sm:$0xff]
        %v4546 = vunpack.c.l.b16 %v4482
        %v4547 = vunpack.c.h.b16 %v4482
        %v4548 = vunpack.c.l.b16 %v4483
        %v4549 = vunpack.c.h.b16 %v4483
        %v4550 = vunpack.c.l.b16 %v4484
        %v4551 = vunpack.c.h.b16 %v4484
        %v4552 = vunpack.c.l.b16 %v4485
        %v4553 = vunpack.c.h.b16 %v4485
        %v4554 = vunpack.c.l.b16 %v4486
        %v4555 = vunpack.c.h.b16 %v4486
        %v4556 = vunpack.c.l.b16 %v4487
        %v4557 = vunpack.c.h.b16 %v4487
        %v4558 = vunpack.c.l.b16 %v4488
        %v4559 = vunpack.c.h.b16 %v4488
        %v4560 = vunpack.c.l.b16 %v4489
        %v4561 = vunpack.c.h.b16 %v4489
        %v4562 = vunpack.c.l.b16 %v4490
        %v4563 = vunpack.c.h.b16 %v4490
        %v4564 = vunpack.c.l.b16 %v4491
        %v4565 = vunpack.c.h.b16 %v4491
        %v4566 = vunpack.c.l.b16 %v4492
        %v4567 = vunpack.c.h.b16 %v4492
        %v4568 = vunpack.c.l.b16 %v4493
        %v4569 = vunpack.c.h.b16 %v4493
        %v4570 = vunpack.c.l.b16 %v4494
        %v4571 = vunpack.c.h.b16 %v4494
        %v4572 = vunpack.c.l.b16 %v4495
        %v4573 = vunpack.c.h.b16 %v4495
        %v4574 = vunpack.c.l.b16 %v4496
        %v4575 = vunpack.c.h.b16 %v4496
        %v4576 = vunpack.c.l.b16 %v4497
        %v4577 = vunpack.c.h.b16 %v4497
        %v4578 = vunpack.c.l.b16 %v4498
        %v4579 = vunpack.c.h.b16 %v4498
        %v4580 = vunpack.c.l.b16 %v4499
        %v4581 = vunpack.c.h.b16 %v4499
        %v4582 = vunpack.c.l.b16 %v4500
        %v4583 = vunpack.c.h.b16 %v4500
        %v4584 = vunpack.c.l.b16 %v4501
        %v4585 = vunpack.c.h.b16 %v4501
        %v4586 = vunpack.c.l.b16 %v4502
        %v4587 = vunpack.c.h.b16 %v4502
        %v4588 = vunpack.c.l.b16 %v4503
        %v4589 = vunpack.c.h.b16 %v4503
        %v4590 = vunpack.c.l.b16 %v4504
        %v4591 = vunpack.c.h.b16 %v4504
        %v4592 = vunpack.c.l.b16 %v4505
        %v4593 = vunpack.c.h.b16 %v4505
        %v4594 = vunpack.c.l.b16 %v4506
        %v4595 = vunpack.c.h.b16 %v4506
        %v4596 = vunpack.c.l.b16 %v4507
        %v4597 = vunpack.c.h.b16 %v4507
        %v4598 = vunpack.c.l.b16 %v4508
        %v4599 = vunpack.c.h.b16 %v4508
        %v4600 = vunpack.c.l.b16 %v4509
        %v4601 = vunpack.c.h.b16 %v4509
        %v4602 = vunpack.c.l.b16 %v4510
        %v4603 = vunpack.c.h.b16 %v4510
        %v4604 = vunpack.c.l.b16 %v4511
        %v4605 = vunpack.c.h.b16 %v4511
        %v4606 = vunpack.c.l.b16 %v4512
        %v4607 = vunpack.c.h.b16 %v4512
        %v4608 = vunpack.c.l.b16 %v4513
        %v4609 = vunpack.c.h.b16 %v4513
        %v4610 = vpack.c.b16 %v4548, %v4546
        %v4611 = vpack.c.b16 %v4549, %v4547
        %v4612 = vpack.c.b16 %v4552, %v4550
        %v4613 = vpack.c.b16 %v4553, %v4551
        %v4614 = vpack.c.b16 %v4556, %v4554
        %v4615 = vpack.c.b16 %v4557, %v4555
        %v4616 = vpack.c.b16 %v4560, %v4558
        %v4617 = vpack.c.b16 %v4561, %v4559
        %v4618 = vpack.c.b16 %v4564, %v4562
        %v4619 = vpack.c.b16 %v4565, %v4563
        %v4620 = vpack.c.b16 %v4568, %v4566
        %v4621 = vpack.c.b16 %v4569, %v4567
        %v4622 = vpack.c.b16 %v4572, %v4570
        %v4623 = vpack.c.b16 %v4573, %v4571
        %v4624 = vpack.c.b16 %v4576, %v4574
        %v4625 = vpack.c.b16 %v4577, %v4575
        %v4626 = vpack.c.b16 %v4580, %v4578
        %v4627 = vpack.c.b16 %v4581, %v4579
        %v4628 = vpack.c.b16 %v4584, %v4582
        %v4629 = vpack.c.b16 %v4585, %v4583
        %v4630 = vpack.c.b16 %v4588, %v4586
        %v4631 = vpack.c.b16 %v4589, %v4587
        %v4632 = vpack.c.b16 %v4592, %v4590
        %v4633 = vpack.c.b16 %v4593, %v4591
        %v4634 = vpack.c.b16 %v4596, %v4594
        %v4635 = vpack.c.b16 %v4597, %v4595
        %v4636 = vpack.c.b16 %v4600, %v4598
        %v4637 = vpack.c.b16 %v4601, %v4599
        %v4638 = vpack.c.b16 %v4604, %v4602
        %v4639 = vpack.c.b16 %v4605, %v4603
        %v4640 = vpack.c.b16 %v4608, %v4606
        %v4641 = vpack.c.b16 %v4609, %v4607
        %4674 = vmatprep.subr.bf16.mxu0 %v4611
        %4675 = vmatpush1.bf16.msra.mxu0 %v4610
        %4676 = vmatprep.subr.bf16.mxu0 %v4613
        %4677 = vmatpush1.bf16.msra.mxu0 %v4612
        %4678 = vmatprep.subr.bf16.mxu0 %v4615
        %4679 = vmatpush1.bf16.msra.mxu0 %v4614
        %4680 = vmatprep.subr.bf16.mxu0 %v4617
        %4681 = vmatpush1.bf16.msra.mxu0 %v4616
        %4682 = vmatprep.subr.bf16.mxu0 %v4619
        %4683 = vmatpush1.bf16.msra.mxu0 %v4618
        %4684 = vmatprep.subr.bf16.mxu0 %v4621
        %4685 = vmatpush1.bf16.msra.mxu0 %v4620
        %4686 = vmatprep.subr.bf16.mxu0 %v4623
        %4687 = vmatpush1.bf16.msra.mxu0 %v4622
        %4688 = vmatprep.subr.bf16.mxu0 %v4625
        %4689 = vmatpush1.bf16.msra.mxu0 %v4624
        %4690 = vmatprep.subr.bf16.mxu0 %v4627
        %4691 = vmatpush1.bf16.msra.mxu0 %v4626
        %4692 = vmatprep.subr.bf16.mxu0 %v4629
        %4693 = vmatpush1.bf16.msra.mxu0 %v4628
        %4694 = vmatprep.subr.bf16.mxu0 %v4631
        %4695 = vmatpush1.bf16.msra.mxu0 %v4630
        %4696 = vmatprep.subr.bf16.mxu0 %v4633
        %4697 = vmatpush1.bf16.msra.mxu0 %v4632
        %4698 = vmatprep.subr.bf16.mxu0 %v4635
        %4699 = vmatpush1.bf16.msra.mxu0 %v4634
        %4700 = vmatprep.subr.bf16.mxu0 %v4637
        %4701 = vmatpush1.bf16.msra.mxu0 %v4636
        %4702 = vmatprep.subr.bf16.mxu0 %v4639
        %4703 = vmatpush1.bf16.msra.mxu0 %v4638
        %4704 = vmatprep.subr.bf16.mxu0 %v4641
        %4705 = vmatpush1.bf16.msra.mxu0 %v4640
        %4706 = vmatprep.mubr.bf16.mxu0 %v4481
        %4707 = vmatmul.mubr.bf16.gmra.mrb[0].mxu0 %v4480
        %v4708 = vpop.f32.mrb[0].mxu0
        %v4709 = vadd.f32 0.0, %v4708
        %v4710 = vpop.f32.mrb[0].mxu0
        %v4711 = vadd.f32 0.0, %v4710
        %v4712 = vpop.f32.mrb[0].mxu0
        %v4713 = vadd.f32 0.0, %v4712
        %v4714 = vpop.f32.mrb[0].mxu0
        %v4715 = vadd.f32 0.0, %v4714
        %4716 = vdwg.mxu0
        %v4717 = vld [vmem:[%s14] sm:$0x3]
        %v4719 = vlaneseq
        %v4720 = vshrl.u32 %v4719, 7
        %v4721 = vsub.s32 0, %v4720
        %v4722 = vrot.slane %v4717, %v4721
        %v4723 = vlaneseq
        %v4724 = vshrl.u32 %v4723, 7
        %v4725 = vsub.s32 1, %v4724
        %v4726 = vrot.slane %v4717, %v4725
        %v4729 = vmul.f32 %v4709, %v4722
        %v4730 = vmul.f32 %v4711, %v4726
        %v4731 = vmul.f32 %v4713, %v4722
        %v4732 = vmul.f32 %v4715, %v4726
        %v4733 = vld [vmem:[%s15] sm:$0x3]
        %v4735 = vlaneseq
        %v4736 = vshrl.u32 %v4735, 7
        %v4737 = vsub.s32 0, %v4736
        %v4738 = vrot.slane %v4733, %v4737
        %v4739 = vlaneseq
        %v4740 = vshrl.u32 %v4739, 7
        %v4741 = vsub.s32 1, %v4740
        %v4742 = vrot.slane %v4733, %v4741
        %v4745 = vadd.f32 %v4729, %v4738
        %v4746 = vadd.f32 %v4730, %v4742
        %v4747 = vadd.f32 %v4731, %v4738
        %v4748 = vadd.f32 %v4732, %v4742
        %v4749 = vmax.f32 %v4745, 0.0
        %v4750 = vmax.f32 %v4746, 0.0
        %v4751 = vmax.f32 %v4747, 0.0
        %v4752 = vmax.f32 %v4748, 0.0
        %v4755 = vrot.slane %v4749, 7
        %v4756 = vrot.slane %v4750, 7
        %4759 = vst [vmem:[%s2286] sm:$0x1e] %v4755
        %4760 = vst [vmem:[%s2286 + $0x8] sm:$0x1e] %v4756
        %v4761 = vrot.slane %v4749, 3
        %v4762 = vrot.slane %v4750, 3
        %4765 = vst [vmem:[%s2293] sm:$0x1e] %v4761
        %4766 = vst [vmem:[%s2293 + $0x8] sm:$0x1e] %v4762
        %v4769 = vrot.slane %v4751, 7
        %v4770 = vrot.slane %v4752, 7
        %4773 = vst [vmem:[%s2302] sm:$0x1e] %v4769
        %4774 = vst [vmem:[%s2302 + $0x8] sm:$0x1e] %v4770
        %v4775 = vrot.slane %v4751, 3
        %v4776 = vrot.slane %v4752, 3
        %4779 = vst [vmem:[%s2309] sm:$0x1e] %v4775
        %4780 = vst [vmem:[%s2309 + $0x8] sm:$0x1e] %v4776
        %v4781 = vld [vmem:[%s16] sm:$0x77]
        %v4782 = vld [vmem:[%s16 + $0x8] sm:$0x77]
        %v4783 = vld [vmem:[%s16 + $0x10] sm:$0x77]
        %v4784 = vld [vmem:[#allocation3] sm:$0xf]
        %v4785 = vld [vmem:[#allocation3 + $0x8] sm:$0xf]
        %v4786 = vld [vmem:[#allocation3 + $0x10] sm:$0xf]
        %v4787 = vld [vmem:[#allocation3 + $0x18] sm:$0xf]
        %v4788 = vld [vmem:[#allocation3 + $0x20] sm:$0xf]
        %v4789 = vld [vmem:[#allocation3 + $0x28] sm:$0xf]
        %v4790 = vld [vmem:[#allocation3 + $0x30] sm:$0xf]
        %v4791 = vld [vmem:[#allocation3 + $0x38] sm:$0xf]
        %v4793 = vlaneseq
        %v4794 = vshrl.u32 %v4793, 7
        %v4795 = vsub.s32 0, %v4794
        %v4796 = vrot.slane %v4781, %v4795
        %v4797 = vlaneseq
        %v4798 = vshrl.u32 %v4797, 7
        %v4799 = vsub.s32 4, %v4798
        %v4800 = vrot.slane %v4781, %v4799
        %v4803 = vlaneseq
        %v4804 = vshrl.u32 %v4803, 7
        %v4805 = vsub.s32 0, %v4804
        %v4806 = vrot.slane %v4796, %v4805
        %v4807 = vlaneseq
        %v4808 = vshrl.u32 %v4807, 7
        %v4809 = vsub.s32 0, %v4808
        %v4810 = vrot.slane %v4800, %v4809
        %v4811 = vmul.f32 %v4784, %v4806
        %v4812 = vmul.f32 %v4785, %v4810
        %v4813 = vmul.f32 %v4786, %v4806
        %v4814 = vmul.f32 %v4787, %v4810
        %v4815 = vmul.f32 %v4788, %v4806
        %v4816 = vmul.f32 %v4789, %v4810
        %v4817 = vmul.f32 %v4790, %v4806
        %v4818 = vmul.f32 %v4791, %v4810
        %v4819 = vld [vmem:[#allocation3] sm:$0x1e]
        %v4820 = vld [vmem:[#allocation3 + $0x8] sm:$0x1e]
        %v4821 = vld [vmem:[#allocation3 + $0x10] sm:$0x1e]
        %v4822 = vld [vmem:[#allocation3 + $0x18] sm:$0x1e]
        %v4823 = vld [vmem:[#allocation3 + $0x20] sm:$0x1e]
        %v4824 = vld [vmem:[#allocation3 + $0x28] sm:$0x1e]
        %v4825 = vld [vmem:[#allocation3 + $0x30] sm:$0x1e]
        %v4826 = vld [vmem:[#allocation3 + $0x38] sm:$0x1e]
        %v4827 = vlaneseq
        %v4828 = vshrl.u32 %v4827, 7
        %v4829 = vsub.s32 1, %v4828
        %v4830 = vrot.slane %v4781, %v4829
        %v4831 = vlaneseq
        %v4832 = vshrl.u32 %v4831, 7
        %v4833 = vsub.s32 5, %v4832
        %v4834 = vrot.slane %v4781, %v4833
        %v4837 = vlaneseq
        %v4838 = vshrl.u32 %v4837, 7
        %v4839 = vsub.s32 1, %v4838
        %v4840 = vrot.slane %v4830, %v4839
        %v4841 = vlaneseq
        %v4842 = vshrl.u32 %v4841, 7
        %v4843 = vsub.s32 1, %v4842
        %v4844 = vrot.slane %v4834, %v4843
        %v4845 = vmul.f32 %v4819, %v4840
        %v4846 = vmul.f32 %v4820, %v4844
        %v4847 = vmul.f32 %v4821, %v4840
        %v4848 = vmul.f32 %v4822, %v4844
        %v4849 = vmul.f32 %v4823, %v4840
        %v4850 = vmul.f32 %v4824, %v4844
        %v4851 = vmul.f32 %v4825, %v4840
        %v4852 = vmul.f32 %v4826, %v4844
        %v4861 = vrot.slane %v4845, 1
        %v4862 = vrot.slane %v4846, 1
        %v4863 = vrot.slane %v4847, 1
        %v4864 = vrot.slane %v4848, 1
        %v4865 = vrot.slane %v4849, 1
        %v4866 = vrot.slane %v4850, 1
        %v4867 = vrot.slane %v4851, 1
        %v4868 = vrot.slane %v4852, 1
        %v4877 = vadd.f32 %v4811, %v4861
        %v4878 = vadd.f32 %v4812, %v4862
        %v4879 = vadd.f32 %v4813, %v4863
        %v4880 = vadd.f32 %v4814, %v4864
        %v4881 = vadd.f32 %v4815, %v4865
        %v4882 = vadd.f32 %v4816, %v4866
        %v4883 = vadd.f32 %v4817, %v4867
        %v4884 = vadd.f32 %v4818, %v4868
        %v4885 = vld [vmem:[#allocation3] sm:$0x3c]
        %v4886 = vld [vmem:[#allocation3 + $0x8] sm:$0x3c]
        %v4887 = vld [vmem:[#allocation3 + $0x10] sm:$0x3c]
        %v4888 = vld [vmem:[#allocation3 + $0x18] sm:$0x3c]
        %v4889 = vld [vmem:[#allocation3 + $0x20] sm:$0x3c]
        %v4890 = vld [vmem:[#allocation3 + $0x28] sm:$0x3c]
        %v4891 = vld [vmem:[#allocation3 + $0x30] sm:$0x3c]
        %v4892 = vld [vmem:[#allocation3 + $0x38] sm:$0x3c]
        %v4893 = vlaneseq
        %v4894 = vshrl.u32 %v4893, 7
        %v4895 = vsub.s32 2, %v4894
        %v4896 = vrot.slane %v4781, %v4895
        %v4897 = vlaneseq
        %v4898 = vshrl.u32 %v4897, 7
        %v4899 = vsub.s32 6, %v4898
        %v4900 = vrot.slane %v4781, %v4899
        %v4903 = vlaneseq
        %v4904 = vshrl.u32 %v4903, 7
        %v4905 = vsub.s32 2, %v4904
        %v4906 = vrot.slane %v4896, %v4905
        %v4907 = vlaneseq
        %v4908 = vshrl.u32 %v4907, 7
        %v4909 = vsub.s32 2, %v4908
        %v4910 = vrot.slane %v4900, %v4909
        %v4911 = vmul.f32 %v4885, %v4906
        %v4912 = vmul.f32 %v4886, %v4910
        %v4913 = vmul.f32 %v4887, %v4906
        %v4914 = vmul.f32 %v4888, %v4910
        %v4915 = vmul.f32 %v4889, %v4906
        %v4916 = vmul.f32 %v4890, %v4910
        %v4917 = vmul.f32 %v4891, %v4906
        %v4918 = vmul.f32 %v4892, %v4910
        %v4927 = vrot.slane %v4911, 2
        %v4928 = vrot.slane %v4912, 2
        %v4929 = vrot.slane %v4913, 2
        %v4930 = vrot.slane %v4914, 2
        %v4931 = vrot.slane %v4915, 2
        %v4932 = vrot.slane %v4916, 2
        %v4933 = vrot.slane %v4917, 2
        %v4934 = vrot.slane %v4918, 2
        %v4943 = vadd.f32 %v4877, %v4927
        %v4944 = vadd.f32 %v4878, %v4928
        %v4945 = vadd.f32 %v4879, %v4929
        %v4946 = vadd.f32 %v4880, %v4930
        %v4947 = vadd.f32 %v4881, %v4931
        %v4948 = vadd.f32 %v4882, %v4932
        %v4949 = vadd.f32 %v4883, %v4933
        %v4950 = vadd.f32 %v4884, %v4934
        %v4951 = vld [vmem:[%s2286] sm:$0xf]
        %v4952 = vld [vmem:[%s2286 + $0x8] sm:$0xf]
        %v4953 = vld [vmem:[%s2286 + $0x10] sm:$0xf]
        %v4954 = vld [vmem:[%s2286 + $0x18] sm:$0xf]
        %v4955 = vld [vmem:[%s2286 + $0x20] sm:$0xf]
        %v4956 = vld [vmem:[%s2286 + $0x28] sm:$0xf]
        %v4957 = vld [vmem:[%s2286 + $0x30] sm:$0xf]
        %v4958 = vld [vmem:[%s2286 + $0x38] sm:$0xf]
        %v4960 = vlaneseq
        %v4961 = vshrl.u32 %v4960, 7
        %v4962 = vsub.s32 0, %v4961
        %v4963 = vrot.slane %v4782, %v4962
        %v4964 = vlaneseq
        %v4965 = vshrl.u32 %v4964, 7
        %v4966 = vsub.s32 4, %v4965
        %v4967 = vrot.slane %v4782, %v4966
        %v4970 = vlaneseq
        %v4971 = vshrl.u32 %v4970, 7
        %v4972 = vsub.s32 0, %v4971
        %v4973 = vrot.slane %v4963, %v4972
        %v4974 = vlaneseq
        %v4975 = vshrl.u32 %v4974, 7
        %v4976 = vsub.s32 0, %v4975
        %v4977 = vrot.slane %v4967, %v4976
        %v4978 = vmul.f32 %v4951, %v4973
        %v4979 = vmul.f32 %v4952, %v4977
        %v4980 = vmul.f32 %v4953, %v4973
        %v4981 = vmul.f32 %v4954, %v4977
        %v4982 = vmul.f32 %v4955, %v4973
        %v4983 = vmul.f32 %v4956, %v4977
        %v4984 = vmul.f32 %v4957, %v4973
        %v4985 = vmul.f32 %v4958, %v4977
        %v4986 = vadd.f32 %v4943, %v4978
        %v4987 = vadd.f32 %v4944, %v4979
        %v4988 = vadd.f32 %v4945, %v4980
        %v4989 = vadd.f32 %v4946, %v4981
        %v4990 = vadd.f32 %v4947, %v4982
        %v4991 = vadd.f32 %v4948, %v4983
        %v4992 = vadd.f32 %v4949, %v4984
        %v4993 = vadd.f32 %v4950, %v4985
        %v4994 = vld [vmem:[%s2286] sm:$0x1e]
        %v4995 = vld [vmem:[%s2286 + $0x8] sm:$0x1e]
        %v4996 = vld [vmem:[%s2286 + $0x10] sm:$0x1e]
        %v4997 = vld [vmem:[%s2286 + $0x18] sm:$0x1e]
        %v4998 = vld [vmem:[%s2286 + $0x20] sm:$0x1e]
        %v4999 = vld [vmem:[%s2286 + $0x28] sm:$0x1e]
        %v5000 = vld [vmem:[%s2286 + $0x30] sm:$0x1e]
        %v5001 = vld [vmem:[%s2286 + $0x38] sm:$0x1e]
        %v5002 = vlaneseq
        %v5003 = vshrl.u32 %v5002, 7
        %v5004 = vsub.s32 1, %v5003
        %v5005 = vrot.slane %v4782, %v5004
        %v5006 = vlaneseq
        %v5007 = vshrl.u32 %v5006, 7
        %v5008 = vsub.s32 5, %v5007
        %v5009 = vrot.slane %v4782, %v5008
        %v5012 = vlaneseq
        %v5013 = vshrl.u32 %v5012, 7
        %v5014 = vsub.s32 1, %v5013
        %v5015 = vrot.slane %v5005, %v5014
        %v5016 = vlaneseq
        %v5017 = vshrl.u32 %v5016, 7
        %v5018 = vsub.s32 1, %v5017
        %v5019 = vrot.slane %v5009, %v5018
        %v5020 = vmul.f32 %v4994, %v5015
        %v5021 = vmul.f32 %v4995, %v5019
        %v5022 = vmul.f32 %v4996, %v5015
        %v5023 = vmul.f32 %v4997, %v5019
        %v5024 = vmul.f32 %v4998, %v5015
        %v5025 = vmul.f32 %v4999, %v5019
        %v5026 = vmul.f32 %v5000, %v5015
        %v5027 = vmul.f32 %v5001, %v5019
        %v5036 = vrot.slane %v5020, 1
        %v5037 = vrot.slane %v5021, 1
        %v5038 = vrot.slane %v5022, 1
        %v5039 = vrot.slane %v5023, 1
        %v5040 = vrot.slane %v5024, 1
        %v5041 = vrot.slane %v5025, 1
        %v5042 = vrot.slane %v5026, 1
        %v5043 = vrot.slane %v5027, 1
        %v5052 = vadd.f32 %v4986, %v5036
        %v5053 = vadd.f32 %v4987, %v5037
        %v5054 = vadd.f32 %v4988, %v5038
        %v5055 = vadd.f32 %v4989, %v5039
        %v5056 = vadd.f32 %v4990, %v5040
        %v5057 = vadd.f32 %v4991, %v5041
        %v5058 = vadd.f32 %v4992, %v5042
        %v5059 = vadd.f32 %v4993, %v5043
        %v5060 = vld [vmem:[%s2286] sm:$0x3c]
        %v5061 = vld [vmem:[%s2286 + $0x8] sm:$0x3c]
        %v5062 = vld [vmem:[%s2286 + $0x10] sm:$0x3c]
        %v5063 = vld [vmem:[%s2286 + $0x18] sm:$0x3c]
        %v5064 = vld [vmem:[%s2286 + $0x20] sm:$0x3c]
        %v5065 = vld [vmem:[%s2286 + $0x28] sm:$0x3c]
        %v5066 = vld [vmem:[%s2286 + $0x30] sm:$0x3c]
        %v5067 = vld [vmem:[%s2286 + $0x38] sm:$0x3c]
        %v5068 = vlaneseq
        %v5069 = vshrl.u32 %v5068, 7
        %v5070 = vsub.s32 2, %v5069
        %v5071 = vrot.slane %v4782, %v5070
        %v5072 = vlaneseq
        %v5073 = vshrl.u32 %v5072, 7
        %v5074 = vsub.s32 6, %v5073
        %v5075 = vrot.slane %v4782, %v5074
        %v5078 = vlaneseq
        %v5079 = vshrl.u32 %v5078, 7
        %v5080 = vsub.s32 2, %v5079
        %v5081 = vrot.slane %v5071, %v5080
        %v5082 = vlaneseq
        %v5083 = vshrl.u32 %v5082, 7
        %v5084 = vsub.s32 2, %v5083
        %v5085 = vrot.slane %v5075, %v5084
        %v5086 = vmul.f32 %v5060, %v5081
        %v5087 = vmul.f32 %v5061, %v5085
        %v5088 = vmul.f32 %v5062, %v5081
        %v5089 = vmul.f32 %v5063, %v5085
        %v5090 = vmul.f32 %v5064, %v5081
        %v5091 = vmul.f32 %v5065, %v5085
        %v5092 = vmul.f32 %v5066, %v5081
        %v5093 = vmul.f32 %v5067, %v5085
        %v5102 = vrot.slane %v5086, 2
        %v5103 = vrot.slane %v5087, 2
        %v5104 = vrot.slane %v5088, 2
        %v5105 = vrot.slane %v5089, 2
        %v5106 = vrot.slane %v5090, 2
        %v5107 = vrot.slane %v5091, 2
        %v5108 = vrot.slane %v5092, 2
        %v5109 = vrot.slane %v5093, 2
        %v5118 = vadd.f32 %v5052, %v5102
        %v5119 = vadd.f32 %v5053, %v5103
        %v5120 = vadd.f32 %v5054, %v5104
        %v5121 = vadd.f32 %v5055, %v5105
        %v5122 = vadd.f32 %v5056, %v5106
        %v5123 = vadd.f32 %v5057, %v5107
        %v5124 = vadd.f32 %v5058, %v5108
        %v5125 = vadd.f32 %v5059, %v5109
        %v5126 = vld [vmem:[%s2293] sm:$0xf]
        %v5127 = vld [vmem:[%s2293 + $0x8] sm:$0xf]
        %v5128 = vld [vmem:[%s2293 + $0x10] sm:$0xf]
        %v5129 = vld [vmem:[%s2293 + $0x18] sm:$0xf]
        %v5130 = vld [vmem:[%s2293 + $0x20] sm:$0xf]
        %v5131 = vld [vmem:[%s2293 + $0x28] sm:$0xf]
        %v5132 = vld [vmem:[%s2293 + $0x30] sm:$0xf]
        %v5133 = vld [vmem:[%s2293 + $0x38] sm:$0xf]
        %v5135 = vlaneseq
        %v5136 = vshrl.u32 %v5135, 7
        %v5137 = vsub.s32 0, %v5136
        %v5138 = vrot.slane %v4783, %v5137
        %v5139 = vlaneseq
        %v5140 = vshrl.u32 %v5139, 7
        %v5141 = vsub.s32 4, %v5140
        %v5142 = vrot.slane %v4783, %v5141
        %v5145 = vlaneseq
        %v5146 = vshrl.u32 %v5145, 7
        %v5147 = vsub.s32 0, %v5146
        %v5148 = vrot.slane %v5138, %v5147
        %v5149 = vlaneseq
        %v5150 = vshrl.u32 %v5149, 7
        %v5151 = vsub.s32 0, %v5150
        %v5152 = vrot.slane %v5142, %v5151
        %v5153 = vmul.f32 %v5126, %v5148
        %v5154 = vmul.f32 %v5127, %v5152
        %v5155 = vmul.f32 %v5128, %v5148
        %v5156 = vmul.f32 %v5129, %v5152
        %v5157 = vmul.f32 %v5130, %v5148
        %v5158 = vmul.f32 %v5131, %v5152
        %v5159 = vmul.f32 %v5132, %v5148
        %v5160 = vmul.f32 %v5133, %v5152
        %v5161 = vadd.f32 %v5118, %v5153
        %v5162 = vadd.f32 %v5119, %v5154
        %v5163 = vadd.f32 %v5120, %v5155
        %v5164 = vadd.f32 %v5121, %v5156
        %v5165 = vadd.f32 %v5122, %v5157
        %v5166 = vadd.f32 %v5123, %v5158
        %v5167 = vadd.f32 %v5124, %v5159
        %v5168 = vadd.f32 %v5125, %v5160
        %v5169 = vld [vmem:[%s2293] sm:$0x1e]
        %v5170 = vld [vmem:[%s2293 + $0x8] sm:$0x1e]
        %v5171 = vld [vmem:[%s2293 + $0x10] sm:$0x1e]
        %v5172 = vld [vmem:[%s2293 + $0x18] sm:$0x1e]
        %v5173 = vld [vmem:[%s2293 + $0x20] sm:$0x1e]
        %v5174 = vld [vmem:[%s2293 + $0x28] sm:$0x1e]
        %v5175 = vld [vmem:[%s2293 + $0x30] sm:$0x1e]
        %v5176 = vld [vmem:[%s2293 + $0x38] sm:$0x1e]
        %v5177 = vlaneseq
        %v5178 = vshrl.u32 %v5177, 7
        %v5179 = vsub.s32 1, %v5178
        %v5180 = vrot.slane %v4783, %v5179
        %v5181 = vlaneseq
        %v5182 = vshrl.u32 %v5181, 7
        %v5183 = vsub.s32 5, %v5182
        %v5184 = vrot.slane %v4783, %v5183
        %v5187 = vlaneseq
        %v5188 = vshrl.u32 %v5187, 7
        %v5189 = vsub.s32 1, %v5188
        %v5190 = vrot.slane %v5180, %v5189
        %v5191 = vlaneseq
        %v5192 = vshrl.u32 %v5191, 7
        %v5193 = vsub.s32 1, %v5192
        %v5194 = vrot.slane %v5184, %v5193
        %v5195 = vmul.f32 %v5169, %v5190
        %v5196 = vmul.f32 %v5170, %v5194
        %v5197 = vmul.f32 %v5171, %v5190
        %v5198 = vmul.f32 %v5172, %v5194
        %v5199 = vmul.f32 %v5173, %v5190
        %v5200 = vmul.f32 %v5174, %v5194
        %v5201 = vmul.f32 %v5175, %v5190
        %v5202 = vmul.f32 %v5176, %v5194
        %v5211 = vrot.slane %v5195, 1
        %v5212 = vrot.slane %v5196, 1
        %v5213 = vrot.slane %v5197, 1
        %v5214 = vrot.slane %v5198, 1
        %v5215 = vrot.slane %v5199, 1
        %v5216 = vrot.slane %v5200, 1
        %v5217 = vrot.slane %v5201, 1
        %v5218 = vrot.slane %v5202, 1
        %v5227 = vadd.f32 %v5161, %v5211
        %v5228 = vadd.f32 %v5162, %v5212
        %v5229 = vadd.f32 %v5163, %v5213
        %v5230 = vadd.f32 %v5164, %v5214
        %v5231 = vadd.f32 %v5165, %v5215
        %v5232 = vadd.f32 %v5166, %v5216
        %v5233 = vadd.f32 %v5167, %v5217
        %v5234 = vadd.f32 %v5168, %v5218
        %v5235 = vld [vmem:[%s2293] sm:$0x3c]
        %v5236 = vld [vmem:[%s2293 + $0x8] sm:$0x3c]
        %v5237 = vld [vmem:[%s2293 + $0x10] sm:$0x3c]
        %v5238 = vld [vmem:[%s2293 + $0x18] sm:$0x3c]
        %v5239 = vld [vmem:[%s2293 + $0x20] sm:$0x3c]
        %v5240 = vld [vmem:[%s2293 + $0x28] sm:$0x3c]
        %v5241 = vld [vmem:[%s2293 + $0x30] sm:$0x3c]
        %v5242 = vld [vmem:[%s2293 + $0x38] sm:$0x3c]
        %v5243 = vlaneseq
        %v5244 = vshrl.u32 %v5243, 7
        %v5245 = vsub.s32 2, %v5244
        %v5246 = vrot.slane %v4783, %v5245
        %v5247 = vlaneseq
        %v5248 = vshrl.u32 %v5247, 7
        %v5249 = vsub.s32 6, %v5248
        %v5250 = vrot.slane %v4783, %v5249
        %v5253 = vlaneseq
        %v5254 = vshrl.u32 %v5253, 7
        %v5255 = vsub.s32 2, %v5254
        %v5256 = vrot.slane %v5246, %v5255
        %v5257 = vlaneseq
        %v5258 = vshrl.u32 %v5257, 7
        %v5259 = vsub.s32 2, %v5258
        %v5260 = vrot.slane %v5250, %v5259
        %v5261 = vmul.f32 %v5235, %v5256
        %v5262 = vmul.f32 %v5236, %v5260
        %v5263 = vmul.f32 %v5237, %v5256
        %v5264 = vmul.f32 %v5238, %v5260
        %v5265 = vmul.f32 %v5239, %v5256
        %v5266 = vmul.f32 %v5240, %v5260
        %v5267 = vmul.f32 %v5241, %v5256
        %v5268 = vmul.f32 %v5242, %v5260
        %v5277 = vrot.slane %v5261, 2
        %v5278 = vrot.slane %v5262, 2
        %v5279 = vrot.slane %v5263, 2
        %v5280 = vrot.slane %v5264, 2
        %v5281 = vrot.slane %v5265, 2
        %v5282 = vrot.slane %v5266, 2
        %v5283 = vrot.slane %v5267, 2
        %v5284 = vrot.slane %v5268, 2
        %v5293 = vadd.f32 %v5227, %v5277
        %v5294 = vadd.f32 %v5228, %v5278
        %v5295 = vadd.f32 %v5229, %v5279
        %v5296 = vadd.f32 %v5230, %v5280
        %v5297 = vadd.f32 %v5231, %v5281
        %v5298 = vadd.f32 %v5232, %v5282
        %v5299 = vadd.f32 %v5233, %v5283
        %v5300 = vadd.f32 %v5234, %v5284
        %5301 = vst [vmem:[#allocation4] sm:$0xf] %v5293
        %5302 = vst [vmem:[#allocation4 + $0x8] sm:$0xf] %v5294
        %v5305 = vrot.slane %v5295, 4
        %v5306 = vrot.slane %v5296, 4
        %5309 = vst [vmem:[#allocation4] sm:$0xf0] %v5305
        %5310 = vst [vmem:[#allocation4 + $0x8] sm:$0xf0] %v5306
        %5311 = vst [vmem:[#allocation4 + $0x10] sm:$0xf] %v5297
        %5312 = vst [vmem:[#allocation4 + $0x18] sm:$0xf] %v5298
        %v5315 = vrot.slane %v5299, 4
        %v5316 = vrot.slane %v5300, 4
        %5319 = vst [vmem:[#allocation4 + $0x10] sm:$0xf0] %v5315
        %5320 = vst [vmem:[#allocation4 + $0x18] sm:$0xf0] %v5316
        %v5321 = vld [vmem:[#allocation4] sm:$0xff]
        %v5322 = vld [vmem:[#allocation4 + $0x8] sm:$0xff]
        %v5323 = vld [vmem:[#allocation4 + $0x10] sm:$0xff]
        %v5324 = vld [vmem:[#allocation4 + $0x18] sm:$0xff]
        %v5325 = vpack.c.bf16 %v5323, %v5321
        %v5326 = vpack.c.bf16 %v5324, %v5322
        %v5327 = vld [vmem:[#allocation22] sm:$0xff]
        %v5328 = vld [vmem:[#allocation22 + $0x8] sm:$0xff]
        %v5329 = vld [vmem:[#allocation22 + $0x10] sm:$0xff]
        %v5330 = vld [vmem:[#allocation22 + $0x18] sm:$0xff]
        %v5331 = vld [vmem:[#allocation22 + $0x20] sm:$0xff]
        %v5332 = vld [vmem:[#allocation22 + $0x28] sm:$0xff]
        %v5333 = vld [vmem:[#allocation22 + $0x30] sm:$0xff]
        %v5334 = vld [vmem:[#allocation22 + $0x38] sm:$0xff]
        %v5335 = vld [vmem:[#allocation22 + $0x40] sm:$0xff]
        %v5336 = vld [vmem:[#allocation22 + $0x48] sm:$0xff]
        %v5337 = vld [vmem:[#allocation22 + $0x50] sm:$0xff]
        %v5338 = vld [vmem:[#allocation22 + $0x58] sm:$0xff]
        %v5339 = vld [vmem:[#allocation22 + $0x60] sm:$0xff]
        %v5340 = vld [vmem:[#allocation22 + $0x68] sm:$0xff]
        %v5341 = vld [vmem:[#allocation22 + $0x70] sm:$0xff]
        %v5342 = vld [vmem:[#allocation22 + $0x78] sm:$0xff]
        %v5343 = vld [vmem:[#allocation22 + $0x80] sm:$0xff]
        %v5344 = vld [vmem:[#allocation22 + $0x88] sm:$0xff]
        %v5345 = vld [vmem:[#allocation22 + $0x90] sm:$0xff]
        %v5346 = vld [vmem:[#allocation22 + $0x98] sm:$0xff]
        %v5347 = vld [vmem:[#allocation22 + $0xa0] sm:$0xff]
        %v5348 = vld [vmem:[#allocation22 + $0xa8] sm:$0xff]
        %v5349 = vld [vmem:[#allocation22 + $0xb0] sm:$0xff]
        %v5350 = vld [vmem:[#allocation22 + $0xb8] sm:$0xff]
        %v5351 = vld [vmem:[#allocation22 + $0xc0] sm:$0xff]
        %v5352 = vld [vmem:[#allocation22 + $0xc8] sm:$0xff]
        %v5353 = vld [vmem:[#allocation22 + $0xd0] sm:$0xff]
        %v5354 = vld [vmem:[#allocation22 + $0xd8] sm:$0xff]
        %v5355 = vld [vmem:[#allocation22 + $0xe0] sm:$0xff]
        %v5356 = vld [vmem:[#allocation22 + $0xe8] sm:$0xff]
        %v5357 = vld [vmem:[#allocation22 + $0xf0] sm:$0xff]
        %v5358 = vld [vmem:[#allocation22 + $0xf8] sm:$0xff]
        %v5359 = vld [vmem:[#allocation22 + $0x100] sm:$0xff]
        %v5360 = vld [vmem:[#allocation22 + $0x108] sm:$0xff]
        %v5361 = vld [vmem:[#allocation22 + $0x110] sm:$0xff]
        %v5362 = vld [vmem:[#allocation22 + $0x118] sm:$0xff]
        %v5363 = vld [vmem:[#allocation22 + $0x120] sm:$0xff]
        %v5364 = vld [vmem:[#allocation22 + $0x128] sm:$0xff]
        %v5365 = vld [vmem:[#allocation22 + $0x130] sm:$0xff]
        %v5366 = vld [vmem:[#allocation22 + $0x138] sm:$0xff]
        %v5367 = vld [vmem:[#allocation22 + $0x140] sm:$0xff]
        %v5368 = vld [vmem:[#allocation22 + $0x148] sm:$0xff]
        %v5369 = vld [vmem:[#allocation22 + $0x150] sm:$0xff]
        %v5370 = vld [vmem:[#allocation22 + $0x158] sm:$0xff]
        %v5371 = vld [vmem:[#allocation22 + $0x160] sm:$0xff]
        %v5372 = vld [vmem:[#allocation22 + $0x168] sm:$0xff]
        %v5373 = vld [vmem:[#allocation22 + $0x170] sm:$0xff]
        %v5374 = vld [vmem:[#allocation22 + $0x178] sm:$0xff]
        %v5375 = vld [vmem:[#allocation22 + $0x180] sm:$0xff]
        %v5376 = vld [vmem:[#allocation22 + $0x188] sm:$0xff]
        %v5377 = vld [vmem:[#allocation22 + $0x190] sm:$0xff]
        %v5378 = vld [vmem:[#allocation22 + $0x198] sm:$0xff]
        %v5379 = vld [vmem:[#allocation22 + $0x1a0] sm:$0xff]
        %v5380 = vld [vmem:[#allocation22 + $0x1a8] sm:$0xff]
        %v5381 = vld [vmem:[#allocation22 + $0x1b0] sm:$0xff]
        %v5382 = vld [vmem:[#allocation22 + $0x1b8] sm:$0xff]
        %v5383 = vld [vmem:[#allocation22 + $0x1c0] sm:$0xff]
        %v5384 = vld [vmem:[#allocation22 + $0x1c8] sm:$0xff]
        %v5385 = vld [vmem:[#allocation22 + $0x1d0] sm:$0xff]
        %v5386 = vld [vmem:[#allocation22 + $0x1d8] sm:$0xff]
        %v5387 = vld [vmem:[#allocation22 + $0x1e0] sm:$0xff]
        %v5388 = vld [vmem:[#allocation22 + $0x1e8] sm:$0xff]
        %v5389 = vld [vmem:[#allocation22 + $0x1f0] sm:$0xff]
        %v5390 = vld [vmem:[#allocation22 + $0x1f8] sm:$0xff]
        %v5455 = vunpack.c.l.b16 %v5327
        %v5456 = vunpack.c.h.b16 %v5327
        %v5457 = vunpack.c.l.b16 %v5328
        %v5458 = vunpack.c.h.b16 %v5328
        %v5459 = vunpack.c.l.b16 %v5329
        %v5460 = vunpack.c.h.b16 %v5329
        %v5461 = vunpack.c.l.b16 %v5330
        %v5462 = vunpack.c.h.b16 %v5330
        %v5463 = vunpack.c.l.b16 %v5331
        %v5464 = vunpack.c.h.b16 %v5331
        %v5465 = vunpack.c.l.b16 %v5332
        %v5466 = vunpack.c.h.b16 %v5332
        %v5467 = vunpack.c.l.b16 %v5333
        %v5468 = vunpack.c.h.b16 %v5333
        %v5469 = vunpack.c.l.b16 %v5334
        %v5470 = vunpack.c.h.b16 %v5334
        %v5471 = vunpack.c.l.b16 %v5335
        %v5472 = vunpack.c.h.b16 %v5335
        %v5473 = vunpack.c.l.b16 %v5336
        %v5474 = vunpack.c.h.b16 %v5336
        %v5475 = vunpack.c.l.b16 %v5337
        %v5476 = vunpack.c.h.b16 %v5337
        %v5477 = vunpack.c.l.b16 %v5338
        %v5478 = vunpack.c.h.b16 %v5338
        %v5479 = vunpack.c.l.b16 %v5339
        %v5480 = vunpack.c.h.b16 %v5339
        %v5481 = vunpack.c.l.b16 %v5340
        %v5482 = vunpack.c.h.b16 %v5340
        %v5483 = vunpack.c.l.b16 %v5341
        %v5484 = vunpack.c.h.b16 %v5341
        %v5485 = vunpack.c.l.b16 %v5342
        %v5486 = vunpack.c.h.b16 %v5342
        %v5487 = vunpack.c.l.b16 %v5343
        %v5488 = vunpack.c.h.b16 %v5343
        %v5489 = vunpack.c.l.b16 %v5344
        %v5490 = vunpack.c.h.b16 %v5344
        %v5491 = vunpack.c.l.b16 %v5345
        %v5492 = vunpack.c.h.b16 %v5345
        %v5493 = vunpack.c.l.b16 %v5346
        %v5494 = vunpack.c.h.b16 %v5346
        %v5495 = vunpack.c.l.b16 %v5347
        %v5496 = vunpack.c.h.b16 %v5347
        %v5497 = vunpack.c.l.b16 %v5348
        %v5498 = vunpack.c.h.b16 %v5348
        %v5499 = vunpack.c.l.b16 %v5349
        %v5500 = vunpack.c.h.b16 %v5349
        %v5501 = vunpack.c.l.b16 %v5350
        %v5502 = vunpack.c.h.b16 %v5350
        %v5503 = vunpack.c.l.b16 %v5351
        %v5504 = vunpack.c.h.b16 %v5351
        %v5505 = vunpack.c.l.b16 %v5352
        %v5506 = vunpack.c.h.b16 %v5352
        %v5507 = vunpack.c.l.b16 %v5353
        %v5508 = vunpack.c.h.b16 %v5353
        %v5509 = vunpack.c.l.b16 %v5354
        %v5510 = vunpack.c.h.b16 %v5354
        %v5511 = vunpack.c.l.b16 %v5355
        %v5512 = vunpack.c.h.b16 %v5355
        %v5513 = vunpack.c.l.b16 %v5356
        %v5514 = vunpack.c.h.b16 %v5356
        %v5515 = vunpack.c.l.b16 %v5357
        %v5516 = vunpack.c.h.b16 %v5357
        %v5517 = vunpack.c.l.b16 %v5358
        %v5518 = vunpack.c.h.b16 %v5358
        %v5519 = vunpack.c.l.b16 %v5359
        %v5520 = vunpack.c.h.b16 %v5359
        %v5521 = vunpack.c.l.b16 %v5360
        %v5522 = vunpack.c.h.b16 %v5360
        %v5523 = vunpack.c.l.b16 %v5361
        %v5524 = vunpack.c.h.b16 %v5361
        %v5525 = vunpack.c.l.b16 %v5362
        %v5526 = vunpack.c.h.b16 %v5362
        %v5527 = vunpack.c.l.b16 %v5363
        %v5528 = vunpack.c.h.b16 %v5363
        %v5529 = vunpack.c.l.b16 %v5364
        %v5530 = vunpack.c.h.b16 %v5364
        %v5531 = vunpack.c.l.b16 %v5365
        %v5532 = vunpack.c.h.b16 %v5365
        %v5533 = vunpack.c.l.b16 %v5366
        %v5534 = vunpack.c.h.b16 %v5366
        %v5535 = vunpack.c.l.b16 %v5367
        %v5536 = vunpack.c.h.b16 %v5367
        %v5537 = vunpack.c.l.b16 %v5368
        %v5538 = vunpack.c.h.b16 %v5368
        %v5539 = vunpack.c.l.b16 %v5369
        %v5540 = vunpack.c.h.b16 %v5369
        %v5541 = vunpack.c.l.b16 %v5370
        %v5542 = vunpack.c.h.b16 %v5370
        %v5543 = vunpack.c.l.b16 %v5371
        %v5544 = vunpack.c.h.b16 %v5371
        %v5545 = vunpack.c.l.b16 %v5372
        %v5546 = vunpack.c.h.b16 %v5372
        %v5547 = vunpack.c.l.b16 %v5373
        %v5548 = vunpack.c.h.b16 %v5373
        %v5549 = vunpack.c.l.b16 %v5374
        %v5550 = vunpack.c.h.b16 %v5374
        %v5551 = vunpack.c.l.b16 %v5375
        %v5552 = vunpack.c.h.b16 %v5375
        %v5553 = vunpack.c.l.b16 %v5376
        %v5554 = vunpack.c.h.b16 %v5376
        %v5555 = vunpack.c.l.b16 %v5377
        %v5556 = vunpack.c.h.b16 %v5377
        %v5557 = vunpack.c.l.b16 %v5378
        %v5558 = vunpack.c.h.b16 %v5378
        %v5559 = vunpack.c.l.b16 %v5379
        %v5560 = vunpack.c.h.b16 %v5379
        %v5561 = vunpack.c.l.b16 %v5380
        %v5562 = vunpack.c.h.b16 %v5380
        %v5563 = vunpack.c.l.b16 %v5381
        %v5564 = vunpack.c.h.b16 %v5381
        %v5565 = vunpack.c.l.b16 %v5382
        %v5566 = vunpack.c.h.b16 %v5382
        %v5567 = vunpack.c.l.b16 %v5383
        %v5568 = vunpack.c.h.b16 %v5383
        %v5569 = vunpack.c.l.b16 %v5384
        %v5570 = vunpack.c.h.b16 %v5384
        %v5571 = vunpack.c.l.b16 %v5385
        %v5572 = vunpack.c.h.b16 %v5385
        %v5573 = vunpack.c.l.b16 %v5386
        %v5574 = vunpack.c.h.b16 %v5386
        %v5575 = vunpack.c.l.b16 %v5387
        %v5576 = vunpack.c.h.b16 %v5387
        %v5577 = vunpack.c.l.b16 %v5388
        %v5578 = vunpack.c.h.b16 %v5388
        %v5579 = vunpack.c.l.b16 %v5389
        %v5580 = vunpack.c.h.b16 %v5389
        %v5581 = vunpack.c.l.b16 %v5390
        %v5582 = vunpack.c.h.b16 %v5390
        %v5583 = vpack.c.b16 %v5459, %v5455
        %v5584 = vpack.c.b16 %v5460, %v5456
        %v5585 = vpack.c.b16 %v5461, %v5457
        %v5586 = vpack.c.b16 %v5462, %v5458
        %v5587 = vpack.c.b16 %v5467, %v5463
        %v5588 = vpack.c.b16 %v5468, %v5464
        %v5589 = vpack.c.b16 %v5469, %v5465
        %v5590 = vpack.c.b16 %v5470, %v5466
        %v5591 = vpack.c.b16 %v5475, %v5471
        %v5592 = vpack.c.b16 %v5476, %v5472
        %v5593 = vpack.c.b16 %v5477, %v5473
        %v5594 = vpack.c.b16 %v5478, %v5474
        %v5595 = vpack.c.b16 %v5483, %v5479
        %v5596 = vpack.c.b16 %v5484, %v5480
        %v5597 = vpack.c.b16 %v5485, %v5481
        %v5598 = vpack.c.b16 %v5486, %v5482
        %v5599 = vpack.c.b16 %v5491, %v5487
        %v5600 = vpack.c.b16 %v5492, %v5488
        %v5601 = vpack.c.b16 %v5493, %v5489
        %v5602 = vpack.c.b16 %v5494, %v5490
        %v5603 = vpack.c.b16 %v5499, %v5495
        %v5604 = vpack.c.b16 %v5500, %v5496
        %v5605 = vpack.c.b16 %v5501, %v5497
        %v5606 = vpack.c.b16 %v5502, %v5498
        %v5607 = vpack.c.b16 %v5507, %v5503
        %v5608 = vpack.c.b16 %v5508, %v5504
        %v5609 = vpack.c.b16 %v5509, %v5505
        %v5610 = vpack.c.b16 %v5510, %v5506
        %v5611 = vpack.c.b16 %v5515, %v5511
        %v5612 = vpack.c.b16 %v5516, %v5512
        %v5613 = vpack.c.b16 %v5517, %v5513
        %v5614 = vpack.c.b16 %v5518, %v5514
        %v5615 = vpack.c.b16 %v5523, %v5519
        %v5616 = vpack.c.b16 %v5524, %v5520
        %v5617 = vpack.c.b16 %v5525, %v5521
        %v5618 = vpack.c.b16 %v5526, %v5522
        %v5619 = vpack.c.b16 %v5531, %v5527
        %v5620 = vpack.c.b16 %v5532, %v5528
        %v5621 = vpack.c.b16 %v5533, %v5529
        %v5622 = vpack.c.b16 %v5534, %v5530
        %v5623 = vpack.c.b16 %v5539, %v5535
        %v5624 = vpack.c.b16 %v5540, %v5536
        %v5625 = vpack.c.b16 %v5541, %v5537
        %v5626 = vpack.c.b16 %v5542, %v5538
        %v5627 = vpack.c.b16 %v5547, %v5543
        %v5628 = vpack.c.b16 %v5548, %v5544
        %v5629 = vpack.c.b16 %v5549, %v5545
        %v5630 = vpack.c.b16 %v5550, %v5546
        %v5631 = vpack.c.b16 %v5555, %v5551
        %v5632 = vpack.c.b16 %v5556, %v5552
        %v5633 = vpack.c.b16 %v5557, %v5553
        %v5634 = vpack.c.b16 %v5558, %v5554
        %v5635 = vpack.c.b16 %v5563, %v5559
        %v5636 = vpack.c.b16 %v5564, %v5560
        %v5637 = vpack.c.b16 %v5565, %v5561
        %v5638 = vpack.c.b16 %v5566, %v5562
        %v5639 = vpack.c.b16 %v5571, %v5567
        %v5640 = vpack.c.b16 %v5572, %v5568
        %v5641 = vpack.c.b16 %v5573, %v5569
        %v5642 = vpack.c.b16 %v5574, %v5570
        %v5643 = vpack.c.b16 %v5579, %v5575
        %v5644 = vpack.c.b16 %v5580, %v5576
        %v5645 = vpack.c.b16 %v5581, %v5577
        %v5646 = vpack.c.b16 %v5582, %v5578
        %5711 = vmatprep.subr.bf16.mxu0 %v5584
        %5712 = vmatpush1.bf16.msra.mxu0 %v5583
        %5713 = vmatprep.subr.bf16.mxu0 %v5588
        %5714 = vmatpush1.bf16.msra.mxu0 %v5587
        %5715 = vmatprep.subr.bf16.mxu0 %v5592
        %5716 = vmatpush1.bf16.msra.mxu0 %v5591
        %5717 = vmatprep.subr.bf16.mxu0 %v5596
        %5718 = vmatpush1.bf16.msra.mxu0 %v5595
        %5719 = vmatprep.subr.bf16.mxu0 %v5600
        %5720 = vmatpush1.bf16.msra.mxu0 %v5599
        %5721 = vmatprep.subr.bf16.mxu0 %v5604
        %5722 = vmatpush1.bf16.msra.mxu0 %v5603
        %5723 = vmatprep.subr.bf16.mxu0 %v5608
        %5724 = vmatpush1.bf16.msra.mxu0 %v5607
        %5725 = vmatprep.subr.bf16.mxu0 %v5612
        %5726 = vmatpush1.bf16.msra.mxu0 %v5611
        %5727 = vmatprep.subr.bf16.mxu0 %v5616
        %5728 = vmatpush1.bf16.msra.mxu0 %v5615
        %5729 = vmatprep.subr.bf16.mxu0 %v5620
        %5730 = vmatpush1.bf16.msra.mxu0 %v5619
        %5731 = vmatprep.subr.bf16.mxu0 %v5624
        %5732 = vmatpush1.bf16.msra.mxu0 %v5623
        %5733 = vmatprep.subr.bf16.mxu0 %v5628
        %5734 = vmatpush1.bf16.msra.mxu0 %v5627
        %5735 = vmatprep.subr.bf16.mxu0 %v5632
        %5736 = vmatpush1.bf16.msra.mxu0 %v5631
        %5737 = vmatprep.subr.bf16.mxu0 %v5636
        %5738 = vmatpush1.bf16.msra.mxu0 %v5635
        %5739 = vmatprep.subr.bf16.mxu0 %v5640
        %5740 = vmatpush1.bf16.msra.mxu0 %v5639
        %5741 = vmatprep.subr.bf16.mxu0 %v5644
        %5742 = vmatpush1.bf16.msra.mxu0 %v5643
        %5743 = vmatprep.mubr.bf16.mxu0 %v5326
        %5744 = vmatmul.mubr.bf16.gmra.mrb[0].mxu0 %v5325
        %v5745 = vpop.f32.mrb[0].mxu0
        %v5746 = vadd.f32 0.0, %v5745
        %v5747 = vpop.f32.mrb[0].mxu0
        %v5748 = vadd.f32 0.0, %v5747
        %v5749 = vpop.f32.mrb[0].mxu0
        %v5750 = vadd.f32 0.0, %v5749
        %v5751 = vpop.f32.mrb[0].mxu0
        %v5752 = vadd.f32 0.0, %v5751
        %5753 = vdwg.mxu0
        %5754 = vmatprep.subr.bf16.mxu0 %v5586
        %5755 = vmatpush1.bf16.msra.mxu0 %v5585
        %5756 = vmatprep.subr.bf16.mxu0 %v5590
        %5757 = vmatpush1.bf16.msra.mxu0 %v5589
        %5758 = vmatprep.subr.bf16.mxu0 %v5594
        %5759 = vmatpush1.bf16.msra.mxu0 %v5593
        %5760 = vmatprep.subr.bf16.mxu0 %v5598
        %5761 = vmatpush1.bf16.msra.mxu0 %v5597
        %5762 = vmatprep.subr.bf16.mxu0 %v5602
        %5763 = vmatpush1.bf16.msra.mxu0 %v5601
        %5764 = vmatprep.subr.bf16.mxu0 %v5606
        %5765 = vmatpush1.bf16.msra.mxu0 %v5605
        %5766 = vmatprep.subr.bf16.mxu0 %v5610
        %5767 = vmatpush1.bf16.msra.mxu0 %v5609
        %5768 = vmatprep.subr.bf16.mxu0 %v5614
        %5769 = vmatpush1.bf16.msra.mxu0 %v5613
        %5770 = vmatprep.subr.bf16.mxu0 %v5618
        %5771 = vmatpush1.bf16.msra.mxu0 %v5617
        %5772 = vmatprep.subr.bf16.mxu0 %v5622
        %5773 = vmatpush1.bf16.msra.mxu0 %v5621
        %5774 = vmatprep.subr.bf16.mxu0 %v5626
        %5775 = vmatpush1.bf16.msra.mxu0 %v5625
        %5776 = vmatprep.subr.bf16.mxu0 %v5630
        %5777 = vmatpush1.bf16.msra.mxu0 %v5629
        %5778 = vmatprep.subr.bf16.mxu0 %v5634
        %5779 = vmatpush1.bf16.msra.mxu0 %v5633
        %5780 = vmatprep.subr.bf16.mxu0 %v5638
        %5781 = vmatpush1.bf16.msra.mxu0 %v5637
        %5782 = vmatprep.subr.bf16.mxu0 %v5642
        %5783 = vmatpush1.bf16.msra.mxu0 %v5641
        %5784 = vmatprep.subr.bf16.mxu0 %v5646
        %5785 = vmatpush1.bf16.msra.mxu0 %v5645
        %5786 = vmatprep.mubr.bf16.mxu0 %v5326
        %5787 = vmatmul.mubr.bf16.gmra.mrb[0].mxu0 %v5325
        %v5788 = vpop.f32.mrb[0].mxu0
        %v5789 = vadd.f32 0.0, %v5788
        %v5790 = vpop.f32.mrb[0].mxu0
        %v5791 = vadd.f32 0.0, %v5790
        %v5792 = vpop.f32.mrb[0].mxu0
        %v5793 = vadd.f32 0.0, %v5792
        %v5794 = vpop.f32.mrb[0].mxu0
        %v5795 = vadd.f32 0.0, %v5794
        %5796 = vdwg.mxu0
        %v5797 = vld [vmem:[%s18] sm:$0xf]
        %v5799 = vlaneseq
        %v5800 = vshrl.u32 %v5799, 7
        %v5801 = vsub.s32 0, %v5800
        %v5802 = vrot.slane %v5797, %v5801
        %v5803 = vlaneseq
        %v5804 = vshrl.u32 %v5803, 7
        %v5805 = vsub.s32 1, %v5804
        %v5806 = vrot.slane %v5797, %v5805
        %v5807 = vlaneseq
        %v5808 = vshrl.u32 %v5807, 7
        %v5809 = vsub.s32 2, %v5808
        %v5810 = vrot.slane %v5797, %v5809
        %v5811 = vlaneseq
        %v5812 = vshrl.u32 %v5811, 7
        %v5813 = vsub.s32 3, %v5812
        %v5814 = vrot.slane %v5797, %v5813
        %v5819 = vmul.f32 %v5746, %v5802
        %v5820 = vmul.f32 %v5748, %v5806
        %v5821 = vmul.f32 %v5789, %v5810
        %v5822 = vmul.f32 %v5791, %v5814
        %v5823 = vmul.f32 %v5750, %v5802
        %v5824 = vmul.f32 %v5752, %v5806
        %v5825 = vmul.f32 %v5793, %v5810
        %v5826 = vmul.f32 %v5795, %v5814
        %v5827 = vld [vmem:[%s19] sm:$0xf]
        %v5829 = vlaneseq
        %v5830 = vshrl.u32 %v5829, 7
        %v5831 = vsub.s32 0, %v5830
        %v5832 = vrot.slane %v5827, %v5831
        %v5833 = vlaneseq
        %v5834 = vshrl.u32 %v5833, 7
        %v5835 = vsub.s32 1, %v5834
        %v5836 = vrot.slane %v5827, %v5835
        %v5837 = vlaneseq
        %v5838 = vshrl.u32 %v5837, 7
        %v5839 = vsub.s32 2, %v5838
        %v5840 = vrot.slane %v5827, %v5839
        %v5841 = vlaneseq
        %v5842 = vshrl.u32 %v5841, 7
        %v5843 = vsub.s32 3, %v5842
        %v5844 = vrot.slane %v5827, %v5843
        %v5849 = vadd.f32 %v5819, %v5832
        %v5850 = vadd.f32 %v5820, %v5836
        %v5851 = vadd.f32 %v5821, %v5840
        %v5852 = vadd.f32 %v5822, %v5844
        %v5853 = vadd.f32 %v5823, %v5832
        %v5854 = vadd.f32 %v5824, %v5836
        %v5855 = vadd.f32 %v5825, %v5840
        %v5856 = vadd.f32 %v5826, %v5844
        %v5857 = vmax.f32 %v5849, 0.0
        %v5858 = vmax.f32 %v5850, 0.0
        %v5859 = vmax.f32 %v5851, 0.0
        %v5860 = vmax.f32 %v5852, 0.0
        %v5861 = vmax.f32 %v5853, 0.0
        %v5862 = vmax.f32 %v5854, 0.0
        %v5863 = vmax.f32 %v5855, 0.0
        %v5864 = vmax.f32 %v5856, 0.0
        %v5865 = vadd.f32 %v5857, %v5861
        %v5866 = vrot.slane %v5865, 4
        %v5867 = vadd.f32 %v5865, %v5866
        %v5868 = vrot.slane %v5867, 2
        %v5869 = vadd.f32 %v5867, %v5868
        %v5870 = vrot.slane %v5869, 1
        %v5871 = vadd.f32 %v5869, %v5870
        %v5872 = vadd.f32 %v5858, %v5862
        %v5873 = vrot.slane %v5872, 4
        %v5874 = vadd.f32 %v5872, %v5873
        %v5875 = vrot.slane %v5874, 2
        %v5876 = vadd.f32 %v5874, %v5875
        %v5877 = vrot.slane %v5876, 1
        %v5878 = vadd.f32 %v5876, %v5877
        %v5879 = vadd.f32 %v5859, %v5863
        %v5880 = vrot.slane %v5879, 4
        %v5881 = vadd.f32 %v5879, %v5880
        %v5882 = vrot.slane %v5881, 2
        %v5883 = vadd.f32 %v5881, %v5882
        %v5884 = vrot.slane %v5883, 1
        %v5885 = vadd.f32 %v5883, %v5884
        %v5886 = vadd.f32 %v5860, %v5864
        %v5887 = vrot.slane %v5886, 4
        %v5888 = vadd.f32 %v5886, %v5887
        %v5889 = vrot.slane %v5888, 2
        %v5890 = vadd.f32 %v5888, %v5889
        %v5891 = vrot.slane %v5890, 1
        %v5892 = vadd.f32 %v5890, %v5891
        %v5893 = vrcp.pop 16.0
        %v5894 = vmul.f32 %v5871, %v5893
        %v5895 = vmul.f32 %v5878, %v5893
        %v5896 = vmul.f32 %v5885, %v5893
        %v5897 = vmul.f32 %v5892, %v5893
        %v5902 = vcombine.low %v5894, %v5895
        %v5903 = vcombine.low %v5896, %v5897
        %v5905 = vunpack.c.l.s4 1966171168
        %v5906 = vunpack.c.0.s8 %v5905
        %v5907 = vlaneseq
        %v5908 = vshrl.u32 %v5907, 7
        %v5909 = vsub.s32 %v5906, %v5908
        %v5910 = vrot.slane %v5902, %v5909
        %v5912 = vunpack.c.l.s4 1966171168
        %v5913 = vunpack.c.0.s8 %v5912
        %v5914 = vlaneseq
        %v5915 = vshrl.u32 %v5914, 7
        %v5916 = vsub.s32 %v5913, %v5915
        %v5917 = vrot.slane %v5903, %v5916
        %v5918 = vcombine.low %v5910, %v5917
        %v5920 = vunpack.c.l.s4 1966171168
        %v5921 = vunpack.c.0.s8 %v5920
        %v5922 = vlaneseq
        %v5923 = vshrl.u32 %v5922, 7
        %v5924 = vsub.s32 %v5921, %v5923
        %v5925 = vrot.slane %v5918, %v5924
        %vm5927 = vcmp.lt.s32.totalorder %v1818, 512
        %vm5928 = vmand %vm1819, %vm5927
        %5929 = vst.msk [vmem:[%s886] sm:$0xf] %vm5928, %v5925
        %v5930 = vpack.c.bf16 %v5894, %v5894
        %v5931 = vpack.c.bf16 %v5895, %v5895
        %v5932 = vpack.c.bf16 %v5896, %v5896
        %v5933 = vpack.c.bf16 %v5897, %v5897
        %v5934 = vld [vmem:[#allocation23] sm:$0xf]
        %v5935 = vld [vmem:[#allocation23 + $0x4] sm:$0xf]
        %v5936 = vld [vmem:[#allocation23 + $0x8] sm:$0xf]
        %v5937 = vld [vmem:[#allocation23 + $0xc] sm:$0xf]
        %v5938 = vld [vmem:[#allocation23 + $0x10] sm:$0xf]
        %v5939 = vld [vmem:[#allocation23 + $0x14] sm:$0xf]
        %v5940 = vld [vmem:[#allocation23 + $0x18] sm:$0xf]
        %v5941 = vld [vmem:[#allocation23 + $0x1c] sm:$0xf]
        %v5942 = vld [vmem:[#allocation23 + $0x20] sm:$0xf]
        %v5943 = vld [vmem:[#allocation23 + $0x24] sm:$0xf]
        %v5944 = vld [vmem:[#allocation23 + $0x28] sm:$0xf]
        %v5945 = vld [vmem:[#allocation23 + $0x2c] sm:$0xf]
        %v5946 = vld [vmem:[#allocation23 + $0x30] sm:$0xf]
        %v5947 = vld [vmem:[#allocation23 + $0x34] sm:$0xf]
        %v5948 = vld [vmem:[#allocation23 + $0x38] sm:$0xf]
        %v5949 = vld [vmem:[#allocation23 + $0x3c] sm:$0xf]
        %v5950 = vld [vmem:[#allocation23 + $0x40] sm:$0xf]
        %v5951 = vld [vmem:[#allocation23 + $0x44] sm:$0xf]
        %v5952 = vld [vmem:[#allocation23 + $0x48] sm:$0xf]
        %v5953 = vld [vmem:[#allocation23 + $0x4c] sm:$0xf]
        %v5954 = vld [vmem:[#allocation23 + $0x50] sm:$0xf]
        %v5955 = vld [vmem:[#allocation23 + $0x54] sm:$0xf]
        %v5956 = vld [vmem:[#allocation23 + $0x58] sm:$0xf]
        %v5957 = vld [vmem:[#allocation23 + $0x5c] sm:$0xf]
        %v5958 = vld [vmem:[#allocation23 + $0x60] sm:$0xf]
        %v5959 = vld [vmem:[#allocation23 + $0x64] sm:$0xf]
        %v5960 = vld [vmem:[#allocation23 + $0x68] sm:$0xf]
        %v5961 = vld [vmem:[#allocation23 + $0x6c] sm:$0xf]
        %v5962 = vld [vmem:[#allocation23 + $0x70] sm:$0xf]
        %v5963 = vld [vmem:[#allocation23 + $0x74] sm:$0xf]
        %v5964 = vld [vmem:[#allocation23 + $0x78] sm:$0xf]
        %v5965 = vld [vmem:[#allocation23 + $0x7c] sm:$0xf]
        %v5966 = vld [vmem:[#allocation23 + $0x80] sm:$0xf]
        %v5967 = vld [vmem:[#allocation23 + $0x84] sm:$0xf]
        %v5968 = vld [vmem:[#allocation23 + $0x88] sm:$0xf]
        %v5969 = vld [vmem:[#allocation23 + $0x8c] sm:$0xf]
        %v5970 = vld [vmem:[#allocation23 + $0x90] sm:$0xf]
        %v5971 = vld [vmem:[#allocation23 + $0x94] sm:$0xf]
        %v5972 = vld [vmem:[#allocation23 + $0x98] sm:$0xf]
        %v5973 = vld [vmem:[#allocation23 + $0x9c] sm:$0xf]
        %v5974 = vld [vmem:[#allocation23 + $0xa0] sm:$0xf]
        %v5975 = vld [vmem:[#allocation23 + $0xa4] sm:$0xf]
        %v5976 = vld [vmem:[#allocation23 + $0xa8] sm:$0xf]
        %v5977 = vld [vmem:[#allocation23 + $0xac] sm:$0xf]
        %v5978 = vld [vmem:[#allocation23 + $0xb0] sm:$0xf]
        %v5979 = vld [vmem:[#allocation23 + $0xb4] sm:$0xf]
        %v5980 = vld [vmem:[#allocation23 + $0xb8] sm:$0xf]
        %v5981 = vld [vmem:[#allocation23 + $0xbc] sm:$0xf]
        %v5982 = vld [vmem:[#allocation23 + $0xc0] sm:$0xf]
        %v5983 = vld [vmem:[#allocation23 + $0xc4] sm:$0xf]
        %v5984 = vld [vmem:[#allocation23 + $0xc8] sm:$0xf]
        %v5985 = vld [vmem:[#allocation23 + $0xcc] sm:$0xf]
        %v5986 = vld [vmem:[#allocation23 + $0xd0] sm:$0xf]
        %v5987 = vld [vmem:[#allocation23 + $0xd4] sm:$0xf]
        %v5988 = vld [vmem:[#allocation23 + $0xd8] sm:$0xf]
        %v5989 = vld [vmem:[#allocation23 + $0xdc] sm:$0xf]
        %v5990 = vld [vmem:[#allocation23 + $0xe0] sm:$0xf]
        %v5991 = vld [vmem:[#allocation23 + $0xe4] sm:$0xf]
        %v5992 = vld [vmem:[#allocation23 + $0xe8] sm:$0xf]
        %v5993 = vld [vmem:[#allocation23 + $0xec] sm:$0xf]
        %v5994 = vld [vmem:[#allocation23 + $0xf0] sm:$0xf]
        %v5995 = vld [vmem:[#allocation23 + $0xf4] sm:$0xf]
        %v5996 = vld [vmem:[#allocation23 + $0xf8] sm:$0xf]
        %v5997 = vld [vmem:[#allocation23 + $0xfc] sm:$0xf]
        %v5998 = vld [vmem:[%s21] sm:$0x1]
        %v6063 = vunpack.c.l.b16 %v5934
        %v6064 = vunpack.c.l.b16 %v5935
        %v6065 = vunpack.c.l.b16 %v5936
        %v6066 = vunpack.c.l.b16 %v5937
        %v6067 = vunpack.c.l.b16 %v5938
        %v6068 = vunpack.c.l.b16 %v5939
        %v6069 = vunpack.c.l.b16 %v5940
        %v6070 = vunpack.c.l.b16 %v5941
        %v6071 = vunpack.c.l.b16 %v5942
        %v6072 = vunpack.c.l.b16 %v5943
        %v6073 = vunpack.c.l.b16 %v5944
        %v6074 = vunpack.c.l.b16 %v5945
        %v6075 = vunpack.c.l.b16 %v5946
        %v6076 = vunpack.c.l.b16 %v5947
        %v6077 = vunpack.c.l.b16 %v5948
        %v6078 = vunpack.c.l.b16 %v5949
        %v6079 = vunpack.c.l.b16 %v5950
        %v6080 = vunpack.c.l.b16 %v5951
        %v6081 = vunpack.c.l.b16 %v5952
        %v6082 = vunpack.c.l.b16 %v5953
        %v6083 = vunpack.c.l.b16 %v5954
        %v6084 = vunpack.c.l.b16 %v5955
        %v6085 = vunpack.c.l.b16 %v5956
        %v6086 = vunpack.c.l.b16 %v5957
        %v6087 = vunpack.c.l.b16 %v5958
        %v6088 = vunpack.c.l.b16 %v5959
        %v6089 = vunpack.c.l.b16 %v5960
        %v6090 = vunpack.c.l.b16 %v5961
        %v6091 = vunpack.c.l.b16 %v5962
        %v6092 = vunpack.c.l.b16 %v5963
        %v6093 = vunpack.c.l.b16 %v5964
        %v6094 = vunpack.c.l.b16 %v5965
        %v6095 = vunpack.c.l.b16 %v5966
        %v6096 = vunpack.c.l.b16 %v5967
        %v6097 = vunpack.c.l.b16 %v5968
        %v6098 = vunpack.c.l.b16 %v5969
        %v6099 = vunpack.c.l.b16 %v5970
        %v6100 = vunpack.c.l.b16 %v5971
        %v6101 = vunpack.c.l.b16 %v5972
        %v6102 = vunpack.c.l.b16 %v5973
        %v6103 = vunpack.c.l.b16 %v5974
        %v6104 = vunpack.c.l.b16 %v5975
        %v6105 = vunpack.c.l.b16 %v5976
        %v6106 = vunpack.c.l.b16 %v5977
        %v6107 = vunpack.c.l.b16 %v5978
        %v6108 = vunpack.c.l.b16 %v5979
        %v6109 = vunpack.c.l.b16 %v5980
        %v6110 = vunpack.c.l.b16 %v5981
        %v6111 = vunpack.c.l.b16 %v5982
        %v6112 = vunpack.c.l.b16 %v5983
        %v6113 = vunpack.c.l.b16 %v5984
        %v6114 = vunpack.c.l.b16 %v5985
        %v6115 = vunpack.c.l.b16 %v5986
        %v6116 = vunpack.c.l.b16 %v5987
        %v6117 = vunpack.c.l.b16 %v5988
        %v6118 = vunpack.c.l.b16 %v5989
        %v6119 = vunpack.c.l.b16 %v5990
        %v6120 = vunpack.c.l.b16 %v5991
        %v6121 = vunpack.c.l.b16 %v5992
        %v6122 = vunpack.c.l.b16 %v5993
        %v6123 = vunpack.c.l.b16 %v5994
        %v6124 = vunpack.c.l.b16 %v5995
        %v6125 = vunpack.c.l.b16 %v5996
        %v6126 = vunpack.c.l.b16 %v5997
        %v6127 = vpack.c.b16 %v6064, %v6063
        %v6128 = vpack.c.b16 %v6066, %v6065
        %v6129 = vpack.c.b16 %v6068, %v6067
        %v6130 = vpack.c.b16 %v6070, %v6069
        %v6131 = vpack.c.b16 %v6072, %v6071
        %v6132 = vpack.c.b16 %v6074, %v6073
        %v6133 = vpack.c.b16 %v6076, %v6075
        %v6134 = vpack.c.b16 %v6078, %v6077
        %v6135 = vpack.c.b16 %v6080, %v6079
        %v6136 = vpack.c.b16 %v6082, %v6081
        %v6137 = vpack.c.b16 %v6084, %v6083
        %v6138 = vpack.c.b16 %v6086, %v6085
        %v6139 = vpack.c.b16 %v6088, %v6087
        %v6140 = vpack.c.b16 %v6090, %v6089
        %v6141 = vpack.c.b16 %v6092, %v6091
        %v6142 = vpack.c.b16 %v6094, %v6093
        %v6143 = vpack.c.b16 %v6096, %v6095
        %v6144 = vpack.c.b16 %v6098, %v6097
        %v6145 = vpack.c.b16 %v6100, %v6099
        %v6146 = vpack.c.b16 %v6102, %v6101
        %v6147 = vpack.c.b16 %v6104, %v6103
        %v6148 = vpack.c.b16 %v6106, %v6105
        %v6149 = vpack.c.b16 %v6108, %v6107
        %v6150 = vpack.c.b16 %v6110, %v6109
        %v6151 = vpack.c.b16 %v6112, %v6111
        %v6152 = vpack.c.b16 %v6114, %v6113
        %v6153 = vpack.c.b16 %v6116, %v6115
        %v6154 = vpack.c.b16 %v6118, %v6117
        %v6155 = vpack.c.b16 %v6120, %v6119
        %v6156 = vpack.c.b16 %v6122, %v6121
        %v6157 = vpack.c.b16 %v6124, %v6123
        %v6158 = vpack.c.b16 %v6126, %v6125
        %6191 = vmatprep.subr.bf16.mxu0 0
        %6192 = vmatpush1.bf16.msra.mxu0 %v6127
        %6193 = vmatprep.subr.bf16.mxu0 0
        %6194 = vmatpush1.bf16.msra.mxu0 %v6128
        %6195 = vmatprep.subr.bf16.mxu0 0
        %6196 = vmatpush1.bf16.msra.mxu0 %v6129
        %6197 = vmatprep.subr.bf16.mxu0 0
        %6198 = vmatpush1.bf16.msra.mxu0 %v6130
        %6199 = vmatprep.subr.bf16.mxu0 0
        %6200 = vmatpush1.bf16.msra.mxu0 %v6131
        %6201 = vmatprep.subr.bf16.mxu0 0
        %6202 = vmatpush1.bf16.msra.mxu0 %v6132
        %6203 = vmatprep.subr.bf16.mxu0 0
        %6204 = vmatpush1.bf16.msra.mxu0 %v6133
        %6205 = vmatprep.subr.bf16.mxu0 0
        %6206 = vmatpush1.bf16.msra.mxu0 %v6134
        %6207 = vmatprep.subr.bf16.mxu0 0
        %6208 = vmatpush1.bf16.msra.mxu0 %v6135
        %6209 = vmatprep.subr.bf16.mxu0 0
        %6210 = vmatpush1.bf16.msra.mxu0 %v6136
        %6211 = vmatprep.subr.bf16.mxu0 0
        %6212 = vmatpush1.bf16.msra.mxu0 %v6137
        %6213 = vmatprep.subr.bf16.mxu0 0
        %6214 = vmatpush1.bf16.msra.mxu0 %v6138
        %6215 = vmatprep.subr.bf16.mxu0 0
        %6216 = vmatpush1.bf16.msra.mxu0 %v6139
        %6217 = vmatprep.subr.bf16.mxu0 0
        %6218 = vmatpush1.bf16.msra.mxu0 %v6140
        %6219 = vmatprep.subr.bf16.mxu0 0
        %6220 = vmatpush1.bf16.msra.mxu0 %v6141
        %6221 = vmatprep.subr.bf16.mxu0 0
        %6222 = vmatpush1.bf16.msra.mxu0 %v6142
        %6223 = vmatprep.mubr.bf16.mxu0 %v5931
        %6224 = vmatmul.mubr.bf16.gmra.mrb[0].mxu0 %v5930
        %v6225 = vpop.f32.mrb[0].mxu0
        %v6226 = vadd.f32 %v5998, %v6225
        %v6227 = vpop.f32.mrb[0].mxu0
        %v6228 = vpop.f32.mrb[0].mxu0
        %v6229 = vpop.f32.mrb[0].mxu0
        %6230 = vdwg.mxu0
        %6231 = vmatprep.subr.bf16.mxu0 0
        %6232 = vmatpush1.bf16.msra.mxu0 %v6143
        %6233 = vmatprep.subr.bf16.mxu0 0
        %6234 = vmatpush1.bf16.msra.mxu0 %v6144
        %6235 = vmatprep.subr.bf16.mxu0 0
        %6236 = vmatpush1.bf16.msra.mxu0 %v6145
        %6237 = vmatprep.subr.bf16.mxu0 0
        %6238 = vmatpush1.bf16.msra.mxu0 %v6146
        %6239 = vmatprep.subr.bf16.mxu0 0
        %6240 = vmatpush1.bf16.msra.mxu0 %v6147
        %6241 = vmatprep.subr.bf16.mxu0 0
        %6242 = vmatpush1.bf16.msra.mxu0 %v6148
        %6243 = vmatprep.subr.bf16.mxu0 0
        %6244 = vmatpush1.bf16.msra.mxu0 %v6149
        %6245 = vmatprep.subr.bf16.mxu0 0
        %6246 = vmatpush1.bf16.msra.mxu0 %v6150
        %6247 = vmatprep.subr.bf16.mxu0 0
        %6248 = vmatpush1.bf16.msra.mxu0 %v6151
        %6249 = vmatprep.subr.bf16.mxu0 0
        %6250 = vmatpush1.bf16.msra.mxu0 %v6152
        %6251 = vmatprep.subr.bf16.mxu0 0
        %6252 = vmatpush1.bf16.msra.mxu0 %v6153
        %6253 = vmatprep.subr.bf16.mxu0 0
        %6254 = vmatpush1.bf16.msra.mxu0 %v6154
        %6255 = vmatprep.subr.bf16.mxu0 0
        %6256 = vmatpush1.bf16.msra.mxu0 %v6155
        %6257 = vmatprep.subr.bf16.mxu0 0
        %6258 = vmatpush1.bf16.msra.mxu0 %v6156
        %6259 = vmatprep.subr.bf16.mxu0 0
        %6260 = vmatpush1.bf16.msra.mxu0 %v6157
        %6261 = vmatprep.subr.bf16.mxu0 0
        %6262 = vmatpush1.bf16.msra.mxu0 %v6158
        %6263 = vmatprep.mubr.bf16.mxu0 %v5933
        %6264 = vmatmul.mubr.bf16.gmra.mrb[0].mxu0 %v5932
        %v6265 = vpop.f32.mrb[0].mxu0
        %v6266 = vadd.f32 %v6226, %v6265
        %v6267 = vpop.f32.mrb[0].mxu0
        %v6268 = vpop.f32.mrb[0].mxu0
        %v6269 = vpop.f32.mrb[0].mxu0
        %6270 = vdwg.mxu0
        %6271 = vst [vmem:[%s876] sm:$0x1] %v6266
        %s6272 = sand.u32 %s522, 1
        %s6273 = scalar_lea.sflag [#allocation7], %s6272
        %s6274 = sand.u32 %s522, 1
        %s6275 = scalar_lea.vmem [#allocation25], %s6274
        %p6276 = scmp.lt.s32.totalorder %s47, 1
        %s6277 = scalar_select %p6276, %s47, 1
        %s6278 = smul.addr %s6277, 4
        %s6279 = scalar_lea.vmem %s23, %s6278
        // Predicated region
        $region157: #{resnet_attention3_forward.1} parent=107 // pred_check
          %p6280 = pneg %p532
        $region158: #{resnet_attention3_forward.1} parent=107 // pred_check_branch
          %6282 = sbr.rel (%p6280) target = $region160
        $region159: #{resnet_attention3_forward.1} parent=107 // pred_region
          %s6284 = ssub.s32 16, 16
          %6285 = vsyncadd %s6273, %s6284
          %s6286 = smul.addr %s47, 16
          %s6287 = scalar_lea.hbm %s22, %s6286
          %s6289 = sshll.u32 %s6275, 4
          %s6290 = int_to_ptr.vmem [resolvable:$true] %s6289
          %6292 = dma.vmem_to_hbm [thread:$0]  %s6290, 16, %s6287, %s6273
        $region160: #{resnet_attention3_forward.1} parent=107 // pred_fallthru
          _
        // Predicated region
        $region161: #{resnet_attention3_forward.1} parent=107 // pred_check
          %p6293 = pneg %p558
        $region162: #{resnet_attention3_forward.1} parent=107 // pred_check_branch
          %6295 = sbr.rel (%p6293) target = $region164
        $region163: #{resnet_attention3_forward.1} parent=107 // pred_region
          _
        $region164: #{resnet_attention3_forward.1} parent=107 // pred_fallthru
          _
      $region108: #{resnet_attention3_forward.1} parent=5 // pred_fallthru
        _
      %p6296 = scmp.le.s32.totalorder 2, %s42
      // Predicated region
      $region165: #{resnet_attention3_forward.1} parent=5 // pred_check
        %p6297 = pneg %p6296
      $region166: #{resnet_attention3_forward.1} parent=5 // pred_check_branch
        %6299 = sbr.rel (%p6297) target = $region168
      $region167: #{resnet_attention3_forward.1} parent=5 // pred_region
        %s6300 = ssub.s32 %s42, 2
        // Predicated region
        $region169: #{resnet_attention3_forward.1} parent=167 // pred_check
          %p6301 = pneg %p538
        $region170: #{resnet_attention3_forward.1} parent=167 // pred_check_branch
          %6303 = sbr.rel (%p6301) target = $region172
        $region171: #{resnet_attention3_forward.1} parent=167 // pred_region
          %s6304 = sand.u32 %s523, 1
          %s6305 = scalar_lea.sflag [#allocation7], %s6304
          %s6306 = sand.u32 %s523, 1
          %s6307 = scalar_lea.vmem [#allocation25], %s6306
          %6308 = dma.done %s6305, 16
        $region172: #{resnet_attention3_forward.1} parent=167 // pred_fallthru
          _
        // Predicated region
        $region173: #{resnet_attention3_forward.1} parent=167 // pred_check
          %p6309 = pneg %p564
        $region174: #{resnet_attention3_forward.1} parent=167 // pred_check_branch
          %6311 = sbr.rel (%p6309) target = $region176
        $region175: #{resnet_attention3_forward.1} parent=167 // pred_region
          %p6312 = scmp.lt.s32.totalorder %s48, 1
          %s6313 = scalar_select %p6312, %s48, 1
          %s6314 = smul.addr %s6313, 4
          %s6315 = scalar_lea.vmem %s23, %s6314
        $region176: #{resnet_attention3_forward.1} parent=167 // pred_fallthru
          _
      $region168: #{resnet_attention3_forward.1} parent=5 // pred_fallthru
        _
    $region6: #{resnet_attention3_forward.1} parent=1 // loop_footer
      %s46 = sadd.s32 1, %s42
    $region7: #{resnet_attention3_forward.1} parent=1 // loop_footer_branch
      %41 = sbr.rel target = $region3
    $region8: #{resnet_attention3_forward.1} parent=1 // loop_exit
      _
    %6316 = vsyncpa [#allocation6], 1
    %s6317 = scalar_lea.sflag [#allocation6], 1
    %6318 = vsyncpa %s6317, 1
    %6319 = vsyncpa [#allocation9], 1
    %6320 = vsyncpa [#allocation12], 1
    %6321 = vsyncpa [#allocation15], 1
    %6322 = vsyncpa [#allocation18], 1
    %6323 = vsyncpa [#allocation21], 1
    %6324 = vsyncpa [#allocation24], 1
    %6325 = vsyncpa [#allocation7], 1
    %s6326 = scalar_lea.sflag [#allocation7], 1
    %6327 = vsyncpa %s6326, 1

</llo_original>
